<compile_context>
chip_gen: v5e
topology: v5e:2x2
jax: 0.10.0
libtpu: 0.0.40
codegen_flags: <defaults>
</compile_context>

<pallas_src>
import numpy as np
import jax
import jax.numpy as jnp
from jax import lax
from jax.experimental import pallas as pl
from jax.experimental.pallas import tpu as pltpu

_LANE = 128
_COO_COMBS = ((0, 1), (0, 2), (1, 2))   # itertools.combinations(range(3), 2)


def _avg_pool2d(x, s):
    """x: (D, H, W). Matches F.avg_pool2d(kernel_size=s, stride=s), no padding."""
    if s == 1:
        return x
    d, h, w = x.shape
    hs, ws = (h // s) * s, (w // s) * s
    x = x[:, :hs, :ws].reshape(d, hs // s, s, ws // s, s)
    return x.mean(axis=(2, 4))


def _grid_plan(n_pts, max_tile):
    """Choose (padded_n, tile): big lane-dense tiles, >=2 grid steps when possible."""
    n_pad = max(_LANE, ((n_pts + _LANE - 1) // _LANE) * _LANE)
    if n_pad <= 2 * _LANE:
        return n_pad, n_pad                      # tiny problem: single step
    tile = min(max_tile, ((n_pad // 2 + _LANE - 1) // _LANE) * _LANE)
    n_pad = ((n_pad + tile - 1) // tile) * tile
    return n_pad, tile


def _make_kplane_kernel(level_cfg, out_dim, concat):
    d = out_dim

    # layout:
    #   coords_ref       : (3, Nt)            f32 — normalized coords; lanes = points
    #   per level l:
    #     g_a (2*l)      : (D*(ry+rz), rx)    f32 — planes (0,1),(0,2) stacked along M
    #     g_b (2*l + 1)  : (D*rz, ry)         f32 — plane (1,2)
    #   out_ref          : (L*D or D, Nt)     f32 — lane-dense per-point features
    def kernel(coords_ref, *refs):
        out_ref = refs[-1]
        g_refs = refs[:-1]
        nt = out_ref.shape[-1]
        coords = coords_ref[...]                                    # (3, Nt)

        # Unnormalize + border clamp, batched over all 3 axes per distinct resolution.
        u_cache = {}

        def unnorm(r):
            if r not in u_cache:
                u_cache[r] = jnp.clip((coords + 1.0) * (0.5 * (r - 1)),
                                      0.0, float(r - 1))            # (3, Nt)
            return u_cache[r]

        # Hat weights w[k, n] = max(0, 1 - |k - u[n]|): identical to the
        # (1-frac)@i0 + frac@(i0+1) lerp of grid_sample(align_corners=True, border).
        hat_cache = {}

        def hat(axis, r):
            key = (axis, r)
            if key not in hat_cache:
                u = unnorm(r)[axis:axis + 1, :]                                   # (1, Nt)
                k = lax.broadcasted_iota(jnp.int32, (r, nt), 0).astype(jnp.float32)
                hat_cache[key] = jnp.maximum(1.0 - jnp.abs(k - u), 0.0)           # (r, Nt)
            return hat_cache[key]

        acc = None
        for lvl, (rx, ry, rz) in enumerate(level_cfg):
            g_a = g_refs[2 * lvl][...]          # (D*(ry+rz), rx)
            g_b = g_refs[2 * lvl + 1][...]      # (D*rz, ry)
            hx, hy, hz = hat(0, rx), hat(1, ry), hat(2, rz)

            # MXU: interpolate along each plane's W axis (2 stacked matmuls / level).
            # Precision left at HIGHEST: after stacking these matmuls are a tiny
            # fraction of MXU capacity, and exact f32 keeps validation tight.
            t_a = jnp.dot(g_a, hx, preferred_element_type=jnp.float32,
                          precision=lax.Precision.HIGHEST)          # (D*(ry+rz), Nt)
            t_b = jnp.dot(g_b, hy, preferred_element_type=jnp.float32,
                          precision=lax.Precision.HIGHEST)          # (D*rz, Nt)

            # VPU: interpolate along the H axis with per-point hat weights, then
            # take the elementwise product of the three plane features.
            f01 = jnp.sum(t_a[:d * ry, :].reshape(d, ry, nt) * hy[None, :, :], axis=1)
            f02 = jnp.sum(t_a[d * ry:, :].reshape(d, rz, nt) * hz[None, :, :], axis=1)
            f12 = jnp.sum(t_b.reshape(d, rz, nt) * hz[None, :, :], axis=1)
            feat = f01 * f02 * f12                                   # (D, Nt)

            if concat:
                out_ref[lvl * d:(lvl + 1) * d, :] = feat
            else:
                acc = feat if acc is None else acc + feat
        if not concat:
            out_ref[...] = acc

    return kernel


def kplane_interp_forward(planes, pts, *, multiscale_res, concat_features=True,
                          max_tile=1024):
    """planes: three arrays (1, D, reso_max[b], reso_max[a]) for (a,b) in
    ((0,1),(0,2),(1,2)); pts: (N, 3) normalized coords in [-1, 1]."""
    out_dim = planes[0].shape[1]
    last_mult = multiscale_res[-1]
    n = pts.shape[0]
    n_pad, tile = _grid_plan(n, max_tile)

    coords_t = jnp.zeros((3, n_pad), jnp.float32).at[:, :n].set(
        pts.T.astype(jnp.float32))

    # One-time parameter preprocessing (avg-pool per level, flatten, stack along M).
    level_inputs, level_cfg = [], []
    for m in multiscale_res:
        s = int(last_mult / m)                                   # as in torch forward
        p01 = _avg_pool2d(planes[0][0].astype(jnp.float32), s)   # (D, ry, rx)
        p02 = _avg_pool2d(planes[1][0].astype(jnp.float32), s)   # (D, rz, rx)
        p12 = _avg_pool2d(planes[2][0].astype(jnp.float32), s)   # (D, rz, ry)
        ry, rx = p01.shape[1], p01.shape[2]
        rz = p02.shape[1]
        assert p02.shape[2] == rx and p12.shape[1] == rz and p12.shape[2] == ry
        assert min(rx, ry, rz) >= 2, "bilinear interpolation needs resolution >= 2"
        g_a = jnp.concatenate([p01.reshape(out_dim * ry, rx),
                               p02.reshape(out_dim * rz, rx)], axis=0)
        g_b = p12.reshape(out_dim * rz, ry)
        level_inputs += [g_a, g_b]
        level_cfg.append((rx, ry, rz))

    n_levels = len(level_cfg)
    out_rows = out_dim * n_levels if concat_features else out_dim

    in_specs = [pl.BlockSpec((3, tile), lambda i: (0, i))]
    for arr in level_inputs:
        in_specs.append(pl.BlockSpec(arr.shape, lambda i: (0, 0)))

    kernel = _make_kplane_kernel(tuple(level_cfg), out_dim, concat_features)
    out = pl.pallas_call(
        kernel,
        out_shape=jax.ShapeDtypeStruct((out_rows, n_pad), jnp.float32),
        grid_spec=pltpu.PrefetchScalarGridSpec(
            num_scalar_prefetch=0,
            grid=(n_pad // tile,),
            in_specs=in_specs,
            out_specs=pl.BlockSpec((out_rows, tile), lambda i: (0, i)),
        ),
        compiler_params=pltpu.CompilerParams(
            dimension_semantics=("parallel",),
            vmem_limit_bytes=48 * 1024 * 1024,   # explicit: v5e scoped default is 16 MiB
        ),
    )(coords_t, *level_inputs)

    return out[:, :n].T     # (N, out_rows); row blocks per level == torch.cat order


def init_kplane_grids(key, *, out_dim, resolution, multiscale_res, a=0.1, b=0.5):
    """Mirrors KPlaneInterp._init_grid_param for in_dim=3, grid_nd=2 (uniform init)."""
    last_mult = multiscale_res[-1]
    max_res = [r * last_mult for r in resolution]
    planes = []
    for (ca, cb) in _COO_COMBS:
        key, sub = jax.random.split(key)
        planes.append(jax.random.uniform(
            sub, (1, out_dim, max_res[cb], max_res[ca]), jnp.float32,
            minval=a, maxval=b))
    return planes


def kplane_reference(planes, pts, *, multiscale_res, concat_features=True):
    """Pure-JAX mirror of the PyTorch forward (validation only)."""
    last_mult = multiscale_res[-1]
    outs, total = [], 0.0
    for m in multiscale_res:
        s = int(last_mult / m)
        interp_space = 1.0
        for ci, (ca, cb) in enumerate(_COO_COMBS):
            g = _avg_pool2d(planes[ci][0].astype(jnp.float32), s)   # (D, H, W)
            h, w = g.shape[1], g.shape[2]
            ux = jnp.clip((pts[:, ca] + 1.0) * 0.5 * (w - 1), 0.0, w - 1.0)
            uy = jnp.clip((pts[:, cb] + 1.0) * 0.5 * (h - 1), 0.0, h - 1.0)
            x0 = jnp.clip(jnp.floor(ux), 0.0, w - 2.0)
            y0 = jnp.clip(jnp.floor(uy), 0.0, h - 2.0)
            fx, fy = ux - x0, uy - y0
            x0, y0 = x0.astype(jnp.int32), y0.astype(jnp.int32)
            v00 = g[:, y0, x0]
            v01 = g[:, y0, x0 + 1]
            v10 = g[:, y0 + 1, x0]
            v11 = g[:, y0 + 1, x0 + 1]
            val = (v00 * (1 - fx) * (1 - fy) + v01 * fx * (1 - fy)
                   + v10 * (1 - fx) * fy + v11 * fx * fy)            # (D, N)
            interp_space = interp_space * val.T                      # (N, D)
        if concat_features:
            outs.append(interp_space)
        else:
            total = total + interp_space
    return jnp.concatenate(outs, axis=-1) if concat_features else total


if __name__ == "__main__":
    # Config analogous to KPlaneInterp.__init__:
    #   grid_dimensions=2, input_coordinate_dim=3, output_coordinate_dim=8,
    #   resolution=[16,16,16], multiscale_res=[1,2], concat_features_across_scales=True
    out_dim = 8
    resolution = (16, 16, 16)
    multiscale_res = (1, 2)
    concat_features = True

    key = jax.random.PRNGKey(0)
    k_params, k_pts = jax.random.split(key)
    planes = init_kplane_grids(k_params, out_dim=out_dim, resolution=resolution,
                               multiscale_res=multiscale_res)

    n = 200
    pts = jax.random.uniform(k_pts, (n, 3), jnp.float32, minval=-1.0, maxval=1.0)

    out = kplane_interp_forward(planes, pts, multiscale_res=multiscale_res,
                                concat_features=concat_features)
    out = jax.block_until_ready(out)
    assert out.shape == (n, out_dim * len(multiscale_res)), out.shape

    ref = kplane_reference(planes, pts, multiscale_res=multiscale_res,
                           concat_features=concat_features)
    np.testing.assert_allclose(np.asarray(out), np.asarray(ref), rtol=1e-4, atol=1e-5)
    print("KERNEL_OK")
</pallas_src>

<mosaic_0001>
module attributes {stable_mosaic.version = 11 : i64} {
  func.func @kernel(%arg0: i32, %arg1: memref<3x256xf32, #tpu.memory_space<vmem>>, %arg2: memref<256x16xf32, #tpu.memory_space<vmem>>, %arg3: memref<128x16xf32, #tpu.memory_space<vmem>>, %arg4: memref<512x32xf32, #tpu.memory_space<vmem>>, %arg5: memref<256x32xf32, #tpu.memory_space<vmem>>, %arg6: memref<16x256xf32, #tpu.memory_space<vmem>>) attributes {dimension_semantics = [#tpu.dimension_semantics<parallel>], iteration_bounds = array<i64: 1>, scalar_prefetch = 0 : i64, scratch_operands = 0 : i64, tpu.core_type = #tpu.core_type<tc>, window_params = [{transform_indices = @transform_0, window_bounds = array<i64: 3, 256>}, {pipeline_mode = #tpu.pipeline_mode<synchronous>, transform_indices = @transform_1, window_bounds = array<i64: 256, 16>}, {pipeline_mode = #tpu.pipeline_mode<synchronous>, transform_indices = @transform_2, window_bounds = array<i64: 128, 16>}, {pipeline_mode = #tpu.pipeline_mode<synchronous>, transform_indices = @transform_3, window_bounds = array<i64: 512, 32>}, {pipeline_mode = #tpu.pipeline_mode<synchronous>, transform_indices = @transform_4, window_bounds = array<i64: 256, 32>}, {transform_indices = @transform_5, window_bounds = array<i64: 16, 256>}]} {
    %c0 = arith.constant 0 : index
    %c0_0 = arith.constant 0 : index
    %0 = vector.load %arg1[%c0, %c0_0] : memref<3x256xf32, #tpu.memory_space<vmem>>, vector<3x256xf32>
    %c0_1 = arith.constant 0 : index
    %c0_2 = arith.constant 0 : index
    %1 = vector.load %arg2[%c0_1, %c0_2] : memref<256x16xf32, #tpu.memory_space<vmem>>, vector<256x16xf32>
    %c0_3 = arith.constant 0 : index
    %c0_4 = arith.constant 0 : index
    %2 = vector.load %arg3[%c0_3, %c0_4] : memref<128x16xf32, #tpu.memory_space<vmem>>, vector<128x16xf32>
    %cst = arith.constant 1.000000e+00 : f32
    %3 = vector.broadcast %cst : f32 to vector<3x256xf32>
    %4 = arith.addf %0, %3 : vector<3x256xf32>
    %cst_5 = arith.constant 7.500000e+00 : f32
    %5 = vector.broadcast %cst_5 : f32 to vector<3x256xf32>
    %6 = arith.mulf %4, %5 : vector<3x256xf32>
    %cst_6 = arith.constant 0.000000e+00 : f32
    %cst_7 = arith.constant 1.500000e+01 : f32
    %7 = vector.broadcast %cst_6 : f32 to vector<3x256xf32>
    %8 = arith.maximumf %7, %6 : vector<3x256xf32>
    %9 = vector.broadcast %cst_7 : f32 to vector<3x256xf32>
    %10 = arith.minimumf %9, %8 : vector<3x256xf32>
    %11 = vector.extract_strided_slice %10 {offsets = [0, 0], sizes = [1, 256], strides = [1, 1]} : vector<3x256xf32> to vector<1x256xf32>
    %12 = tpu.iota {dimensions = array<i32: 0>} : vector<16x256xi32>
    %13 = arith.sitofp %12 : vector<16x256xi32> to vector<16x256xf32>
    %14 = vector.broadcast %11 : vector<1x256xf32> to vector<16x256xf32>
    %15 = arith.subf %13, %14 : vector<16x256xf32>
    %16 = math.absf %15 : vector<16x256xf32>
    %cst_8 = arith.constant 1.000000e+00 : f32
    %17 = vector.broadcast %cst_8 : f32 to vector<16x256xf32>
    %18 = arith.subf %17, %16 : vector<16x256xf32>
    %cst_9 = arith.constant 0.000000e+00 : f32
    %19 = vector.broadcast %cst_9 : f32 to vector<16x256xf32>
    %20 = arith.maximumf %18, %19 : vector<16x256xf32>
    %21 = vector.extract_strided_slice %10 {offsets = [1, 0], sizes = [1, 256], strides = [1, 1]} : vector<3x256xf32> to vector<1x256xf32>
    %22 = tpu.iota {dimensions = array<i32: 0>} : vector<16x256xi32>
    %23 = arith.sitofp %22 : vector<16x256xi32> to vector<16x256xf32>
    %24 = vector.broadcast %21 : vector<1x256xf32> to vector<16x256xf32>
    %25 = arith.subf %23, %24 : vector<16x256xf32>
    %26 = math.absf %25 : vector<16x256xf32>
    %cst_10 = arith.constant 1.000000e+00 : f32
    %27 = vector.broadcast %cst_10 : f32 to vector<16x256xf32>
    %28 = arith.subf %27, %26 : vector<16x256xf32>
    %cst_11 = arith.constant 0.000000e+00 : f32
    %29 = vector.broadcast %cst_11 : f32 to vector<16x256xf32>
    %30 = arith.maximumf %28, %29 : vector<16x256xf32>
    %31 = vector.extract_strided_slice %10 {offsets = [2, 0], sizes = [1, 256], strides = [1, 1]} : vector<3x256xf32> to vector<1x256xf32>
    %32 = tpu.iota {dimensions = array<i32: 0>} : vector<16x256xi32>
    %33 = arith.sitofp %32 : vector<16x256xi32> to vector<16x256xf32>
    %34 = vector.broadcast %31 : vector<1x256xf32> to vector<16x256xf32>
    %35 = arith.subf %33, %34 : vector<16x256xf32>
    %36 = math.absf %35 : vector<16x256xf32>
    %cst_12 = arith.constant 1.000000e+00 : f32
    %37 = vector.broadcast %cst_12 : f32 to vector<16x256xf32>
    %38 = arith.subf %37, %36 : vector<16x256xf32>
    %cst_13 = arith.constant 0.000000e+00 : f32
    %39 = vector.broadcast %cst_13 : f32 to vector<16x256xf32>
    %40 = arith.maximumf %38, %39 : vector<16x256xf32>
    %cst_14 = arith.constant dense<0.000000e+00> : vector<256x256xf32>
    %41 = tpu.matmul %1, %20, %cst_14 {dimension_numbers = #tpu.dot_dimension_numbers<[1], [0], [0], [1], [0, 0, 1, 1], [], []>, precision = #tpu.contract_precision<fp32>} : vector<256x16xf32>, vector<16x256xf32>, vector<256x256xf32> -> vector<256x256xf32>
    %cst_15 = arith.constant dense<0.000000e+00> : vector<128x256xf32>
    %42 = tpu.matmul %2, %30, %cst_15 {dimension_numbers = #tpu.dot_dimension_numbers<[1], [0], [0], [1], [0, 0, 1, 1], [], []>, precision = #tpu.contract_precision<fp32>} : vector<128x16xf32>, vector<16x256xf32>, vector<128x256xf32> -> vector<128x256xf32>
    %43 = vector.extract_strided_slice %41 {offsets = [0, 0], sizes = [128, 256], strides = [1, 1]} : vector<256x256xf32> to vector<128x256xf32>
    %44 = vector.shape_cast %43 : vector<128x256xf32> to vector<8x16x256xf32>
    %45 = vector.shape_cast %30 : vector<16x256xf32> to vector<1x16x256xf32>
    %46 = vector.broadcast %45 : vector<1x16x256xf32> to vector<8x16x256xf32>
    %47 = arith.mulf %44, %46 : vector<8x16x256xf32>
    %cst_16 = arith.constant dense<0.000000e+00> : vector<8x256xf32>
    %48 = vector.multi_reduction <add>, %47, %cst_16 [1] : vector<8x16x256xf32> to vector<8x256xf32>
    %49 = vector.extract_strided_slice %41 {offsets = [128, 0], sizes = [128, 256], strides = [1, 1]} : vector<256x256xf32> to vector<128x256xf32>
    %50 = vector.shape_cast %49 : vector<128x256xf32> to vector<8x16x256xf32>
    %51 = vector.shape_cast %40 : vector<16x256xf32> to vector<1x16x256xf32>
    %52 = vector.broadcast %51 : vector<1x16x256xf32> to vector<8x16x256xf32>
    %53 = arith.mulf %50, %52 : vector<8x16x256xf32>
    %cst_17 = arith.constant dense<0.000000e+00> : vector<8x256xf32>
    %54 = vector.multi_reduction <add>, %53, %cst_17 [1] : vector<8x16x256xf32> to vector<8x256xf32>
    %55 = vector.shape_cast %42 : vector<128x256xf32> to vector<8x16x256xf32>
    %56 = vector.shape_cast %40 : vector<16x256xf32> to vector<1x16x256xf32>
    %57 = vector.broadcast %56 : vector<1x16x256xf32> to vector<8x16x256xf32>
    %58 = arith.mulf %55, %57 : vector<8x16x256xf32>
    %cst_18 = arith.constant dense<0.000000e+00> : vector<8x256xf32>
    %59 = vector.multi_reduction <add>, %58, %cst_18 [1] : vector<8x16x256xf32> to vector<8x256xf32>
    %60 = arith.mulf %48, %54 : vector<8x256xf32>
    %61 = arith.mulf %60, %59 : vector<8x256xf32>
    %c0_19 = arith.constant 0 : index
    %c0_20 = arith.constant 0 : index
    %62 = vector.load %arg6[%c0_19, %c0_20] : memref<16x256xf32, #tpu.memory_space<vmem>>, vector<8x256xf32>
    tpu.vector_store %arg6[%c0_19, %c0_20], %61 {strides = array<i32>} : memref<16x256xf32, #tpu.memory_space<vmem>>, vector<8x256xf32>,
    %c0_21 = arith.constant 0 : index
    %c0_22 = arith.constant 0 : index
    %63 = vector.load %arg4[%c0_21, %c0_22] : memref<512x32xf32, #tpu.memory_space<vmem>>, vector<512x32xf32>
    %c0_23 = arith.constant 0 : index
    %c0_24 = arith.constant 0 : index
    %64 = vector.load %arg5[%c0_23, %c0_24] : memref<256x32xf32, #tpu.memory_space<vmem>>, vector<256x32xf32>
    %cst_25 = arith.constant 1.000000e+00 : f32
    %65 = vector.broadcast %cst_25 : f32 to vector<3x256xf32>
    %66 = arith.addf %0, %65 : vector<3x256xf32>
    %cst_26 = arith.constant 1.550000e+01 : f32
    %67 = vector.broadcast %cst_26 : f32 to vector<3x256xf32>
    %68 = arith.mulf %66, %67 : vector<3x256xf32>
    %cst_27 = arith.constant 0.000000e+00 : f32
    %cst_28 = arith.constant 3.100000e+01 : f32
    %69 = vector.broadcast %cst_27 : f32 to vector<3x256xf32>
    %70 = arith.maximumf %69, %68 : vector<3x256xf32>
    %71 = vector.broadcast %cst_28 : f32 to vector<3x256xf32>
    %72 = arith.minimumf %71, %70 : vector<3x256xf32>
    %73 = vector.extract_strided_slice %72 {offsets = [0, 0], sizes = [1, 256], strides = [1, 1]} : vector<3x256xf32> to vector<1x256xf32>
    %74 = tpu.iota {dimensions = array<i32: 0>} : vector<32x256xi32>
    %75 = arith.sitofp %74 : vector<32x256xi32> to vector<32x256xf32>
    %76 = vector.broadcast %73 : vector<1x256xf32> to vector<32x256xf32>
    %77 = arith.subf %75, %76 : vector<32x256xf32>
    %78 = math.absf %77 : vector<32x256xf32>
    %cst_29 = arith.constant 1.000000e+00 : f32
    %79 = vector.broadcast %cst_29 : f32 to vector<32x256xf32>
    %80 = arith.subf %79, %78 : vector<32x256xf32>
    %cst_30 = arith.constant 0.000000e+00 : f32
    %81 = vector.broadcast %cst_30 : f32 to vector<32x256xf32>
    %82 = arith.maximumf %80, %81 : vector<32x256xf32>
    %83 = vector.extract_strided_slice %72 {offsets = [1, 0], sizes = [1, 256], strides = [1, 1]} : vector<3x256xf32> to vector<1x256xf32>
    %84 = tpu.iota {dimensions = array<i32: 0>} : vector<32x256xi32>
    %85 = arith.sitofp %84 : vector<32x256xi32> to vector<32x256xf32>
    %86 = vector.broadcast %83 : vector<1x256xf32> to vector<32x256xf32>
    %87 = arith.subf %85, %86 : vector<32x256xf32>
    %88 = math.absf %87 : vector<32x256xf32>
    %cst_31 = arith.constant 1.000000e+00 : f32
    %89 = vector.broadcast %cst_31 : f32 to vector<32x256xf32>
    %90 = arith.subf %89, %88 : vector<32x256xf32>
    %cst_32 = arith.constant 0.000000e+00 : f32
    %91 = vector.broadcast %cst_32 : f32 to vector<32x256xf32>
    %92 = arith.maximumf %90, %91 : vector<32x256xf32>
    %93 = vector.extract_strided_slice %72 {offsets = [2, 0], sizes = [1, 256], strides = [1, 1]} : vector<3x256xf32> to vector<1x256xf32>
    %94 = tpu.iota {dimensions = array<i32: 0>} : vector<32x256xi32>
    %95 = arith.sitofp %94 : vector<32x256xi32> to vector<32x256xf32>
    %96 = vector.broadcast %93 : vector<1x256xf32> to vector<32x256xf32>
    %97 = arith.subf %95, %96 : vector<32x256xf32>
    %98 = math.absf %97 : vector<32x256xf32>
    %cst_33 = arith.constant 1.000000e+00 : f32
    %99 = vector.broadcast %cst_33 : f32 to vector<32x256xf32>
    %100 = arith.subf %99, %98 : vector<32x256xf32>
    %cst_34 = arith.constant 0.000000e+00 : f32
    %101 = vector.broadcast %cst_34 : f32 to vector<32x256xf32>
    %102 = arith.maximumf %100, %101 : vector<32x256xf32>
    %cst_35 = arith.constant dense<0.000000e+00> : vector<512x256xf32>
    %103 = tpu.matmul %63, %82, %cst_35 {dimension_numbers = #tpu.dot_dimension_numbers<[1], [0], [0], [1], [0, 0, 1, 1], [], []>, precision = #tpu.contract_precision<fp32>} : vector<512x32xf32>, vector<32x256xf32>, vector<512x256xf32> -> vector<512x256xf32>
    %cst_36 = arith.constant dense<0.000000e+00> : vector<256x256xf32>
    %104 = tpu.matmul %64, %92, %cst_36 {dimension_numbers = #tpu.dot_dimension_numbers<[1], [0], [0], [1], [0, 0, 1, 1], [], []>, precision = #tpu.contract_precision<fp32>} : vector<256x32xf32>, vector<32x256xf32>, vector<256x256xf32> -> vector<256x256xf32>
    %105 = vector.extract_strided_slice %103 {offsets = [0, 0], sizes = [256, 256], strides = [1, 1]} : vector<512x256xf32> to vector<256x256xf32>
    %106 = vector.shape_cast %105 : vector<256x256xf32> to vector<8x32x256xf32>
    %107 = vector.shape_cast %92 : vector<32x256xf32> to vector<1x32x256xf32>
    %108 = vector.broadcast %107 : vector<1x32x256xf32> to vector<8x32x256xf32>
    %109 = arith.mulf %106, %108 : vector<8x32x256xf32>
    %cst_37 = arith.constant dense<0.000000e+00> : vector<8x256xf32>
    %110 = vector.multi_reduction <add>, %109, %cst_37 [1] : vector<8x32x256xf32> to vector<8x256xf32>
    %111 = vector.extract_strided_slice %103 {offsets = [256, 0], sizes = [256, 256], strides = [1, 1]} : vector<512x256xf32> to vector<256x256xf32>
    %112 = vector.shape_cast %111 : vector<256x256xf32> to vector<8x32x256xf32>
    %113 = vector.shape_cast %102 : vector<32x256xf32> to vector<1x32x256xf32>
    %114 = vector.broadcast %113 : vector<1x32x256xf32> to vector<8x32x256xf32>
    %115 = arith.mulf %112, %114 : vector<8x32x256xf32>
    %cst_38 = arith.constant dense<0.000000e+00> : vector<8x256xf32>
    %116 = vector.multi_reduction <add>, %115, %cst_38 [1] : vector<8x32x256xf32> to vector<8x256xf32>
    %117 = vector.shape_cast %104 : vector<256x256xf32> to vector<8x32x256xf32>
    %118 = vector.shape_cast %102 : vector<32x256xf32> to vector<1x32x256xf32>
    %119 = vector.broadcast %118 : vector<1x32x256xf32> to vector<8x32x256xf32>
    %120 = arith.mulf %117, %119 : vector<8x32x256xf32>
    %cst_39 = arith.constant dense<0.000000e+00> : vector<8x256xf32>
    %121 = vector.multi_reduction <add>, %120, %cst_39 [1] : vector<8x32x256xf32> to vector<8x256xf32>
    %122 = arith.mulf %110, %116 : vector<8x256xf32>
    %123 = arith.mulf %122, %121 : vector<8x256xf32>
    %c8 = arith.constant 8 : index
    %c0_40 = arith.constant 0 : index
    %124 = vector.load %arg6[%c8, %c0_40] : memref<16x256xf32, #tpu.memory_space<vmem>>, vector<8x256xf32>
    tpu.vector_store %arg6[%c8, %c0_40], %123 {strides = array<i32>} : memref<16x256xf32, #tpu.memory_space<vmem>>, vector<8x256xf32>,
    return
  }
  func.func @transform_0(%arg0: i32) -> (i32, i32) {
    %c0_i32 = arith.constant 0 : i32
    %c0_i32_0 = arith.constant 0 : i32
    return %c0_i32, %arg0 : i32, i32
  }
  func.func @transform_1(%arg0: i32) -> (i32, i32) {
    %c0_i32 = arith.constant 0 : i32
    %c0_i32_0 = arith.constant 0 : i32
    %c0_i32_1 = arith.constant 0 : i32
    return %c0_i32, %c0_i32_0 : i32, i32
  }
  func.func @transform_2(%arg0: i32) -> (i32, i32) {
    %c0_i32 = arith.constant 0 : i32
    %c0_i32_0 = arith.constant 0 : i32
    %c0_i32_1 = arith.constant 0 : i32
    return %c0_i32, %c0_i32_0 : i32, i32
  }
  func.func @transform_3(%arg0: i32) -> (i32, i32) {
    %c0_i32 = arith.constant 0 : i32
    %c0_i32_0 = arith.constant 0 : i32
    %c0_i32_1 = arith.constant 0 : i32
    return %c0_i32, %c0_i32_0 : i32, i32
  }
  func.func @transform_4(%arg0: i32) -> (i32, i32) {
    %c0_i32 = arith.constant 0 : i32
    %c0_i32_0 = arith.constant 0 : i32
    %c0_i32_1 = arith.constant 0 : i32
    return %c0_i32, %c0_i32_0 : i32, i32
  }
  func.func @transform_5(%arg0: i32) -> (i32, i32) {
    %c0_i32 = arith.constant 0 : i32
    %c0_i32_0 = arith.constant 0 : i32
    return %c0_i32, %arg0 : i32, i32
  }
}

</mosaic_0001>

<llo_original>
// kernel: tpu_custom_call.1
$region0: #{tpu_custom_call.1}
  #allocation0 [shape = 'u32[]', space=smem, size = 0x4, offset = 0x4, fixed_abs, tag = 'smem constant byte address 0x4 - core index']
  #allocation1 [shape = 'u32[72,128]{1,0:T(1,128)}', space=vmem, size = 0x9000, scoped, tag = 'internal scratch']
  %s0 = inlined_call_operand.vmem [shape: f32[3,256], index: 0, kind: input, shape index: {}]
  %s1 = inlined_call_operand.vmem [shape: f32[256,16], index: 1, kind: input, shape index: {}]
  %s2 = inlined_call_operand.vmem [shape: f32[128,16], index: 2, kind: input, shape index: {}]
  %s3 = inlined_call_operand.vmem [shape: f32[512,32], index: 3, kind: input, shape index: {}]
  %s4 = inlined_call_operand.vmem [shape: f32[256,32], index: 4, kind: input, shape index: {}]
  %s5 = inlined_call_operand.hbm [shape: f32[16,256], index: 5, kind: output, shape index: {}]
  %s6 = sld [smem:[#allocation0]]
  $region30: #{tpu_custom_call.1} parent=0
    _
  %s8 = ssub.s32 1, %s6
  %s9 = scalar_select 0, %s8, %s6
  $region1: #{tpu_custom_call.1} parent=0
    #allocation2 [shape = 'u8[16384]{0}', space=vmem, size = 0x4000, scoped, tag = 'output window, operand 0, single buffered']
    #allocation3 [shape = 's32[1]{0}', space=sflag, size = 0x4, scoped, tag = 'scoped memory for tpu_custom_call.1']
    %10 = vsyncpa [#allocation3], 0
    // Predicated region
    $region2: #{tpu_custom_call.1} parent=1 // pred_check
      _
    $region3: #{tpu_custom_call.1} parent=1 // pred_check_branch
      %12 = sbr.rel (0) target = $region5
    $region4: #{tpu_custom_call.1} parent=1 // pred_region
      _
    $region5: #{tpu_custom_call.1} parent=1 // pred_fallthru
      _
    // Predicated region
    $region6: #{tpu_custom_call.1} parent=1 // pred_check
      _
    $region7: #{tpu_custom_call.1} parent=1 // pred_check_branch
      %14 = sbr.rel (0) target = $region9
    $region8: #{tpu_custom_call.1} parent=1 // pred_region
      _
    $region9: #{tpu_custom_call.1} parent=1 // pred_fallthru
      _
    // Predicated region
    $region10: #{tpu_custom_call.1} parent=1 // pred_check
      _
    $region11: #{tpu_custom_call.1} parent=1 // pred_check_branch
      %16 = sbr.rel (0) target = $region13
    $region12: #{tpu_custom_call.1} parent=1 // pred_region
      _
    $region13: #{tpu_custom_call.1} parent=1 // pred_fallthru
      _
    // Predicated region
    $region14: #{tpu_custom_call.1} parent=1 // pred_check
      _
    $region15: #{tpu_custom_call.1} parent=1 // pred_check_branch
      %18 = sbr.rel (0) target = $region17
    $region16: #{tpu_custom_call.1} parent=1 // pred_region
      _
    $region17: #{tpu_custom_call.1} parent=1 // pred_fallthru
      _
    // Predicated region
    $region18: #{tpu_custom_call.1} parent=1 // pred_check
      _
    $region19: #{tpu_custom_call.1} parent=1 // pred_check_branch
      %20 = sbr.rel (0) target = $region21
    $region20: #{tpu_custom_call.1} parent=1 // pred_region
      _
    $region21: #{tpu_custom_call.1} parent=1 // pred_fallthru
      _
    %v21 = vld [vmem:[%s0] sm:$0x77]
    %v22 = vld [vmem:[%s1] sm:$0xff]
    %v23 = vld [vmem:[%s1 + $0x8] sm:$0xff]
    %v24 = vld [vmem:[%s1 + $0x10] sm:$0xff]
    %v25 = vld [vmem:[%s1 + $0x18] sm:$0xff]
    %v26 = vld [vmem:[%s1 + $0x20] sm:$0xff]
    %v27 = vld [vmem:[%s1 + $0x28] sm:$0xff]
    %v28 = vld [vmem:[%s1 + $0x30] sm:$0xff]
    %v29 = vld [vmem:[%s1 + $0x38] sm:$0xff]
    %v30 = vld [vmem:[%s1 + $0x40] sm:$0xff]
    %v31 = vld [vmem:[%s1 + $0x48] sm:$0xff]
    %v32 = vld [vmem:[%s1 + $0x50] sm:$0xff]
    %v33 = vld [vmem:[%s1 + $0x58] sm:$0xff]
    %v34 = vld [vmem:[%s1 + $0x60] sm:$0xff]
    %v35 = vld [vmem:[%s1 + $0x68] sm:$0xff]
    %v36 = vld [vmem:[%s1 + $0x70] sm:$0xff]
    %v37 = vld [vmem:[%s1 + $0x78] sm:$0xff]
    %v38 = vld [vmem:[%s1 + $0x80] sm:$0xff]
    %v39 = vld [vmem:[%s1 + $0x88] sm:$0xff]
    %v40 = vld [vmem:[%s1 + $0x90] sm:$0xff]
    %v41 = vld [vmem:[%s1 + $0x98] sm:$0xff]
    %v42 = vld [vmem:[%s1 + $0xa0] sm:$0xff]
    %v43 = vld [vmem:[%s1 + $0xa8] sm:$0xff]
    %v44 = vld [vmem:[%s1 + $0xb0] sm:$0xff]
    %v45 = vld [vmem:[%s1 + $0xb8] sm:$0xff]
    %v46 = vld [vmem:[%s1 + $0xc0] sm:$0xff]
    %v47 = vld [vmem:[%s1 + $0xc8] sm:$0xff]
    %v48 = vld [vmem:[%s1 + $0xd0] sm:$0xff]
    %v49 = vld [vmem:[%s1 + $0xd8] sm:$0xff]
    %v50 = vld [vmem:[%s1 + $0xe0] sm:$0xff]
    %v51 = vld [vmem:[%s1 + $0xe8] sm:$0xff]
    %v52 = vld [vmem:[%s1 + $0xf0] sm:$0xff]
    %v53 = vld [vmem:[%s1 + $0xf8] sm:$0xff]
    %v54 = vld [vmem:[%s2] sm:$0xff]
    %v55 = vld [vmem:[%s2 + $0x8] sm:$0xff]
    %v56 = vld [vmem:[%s2 + $0x10] sm:$0xff]
    %v57 = vld [vmem:[%s2 + $0x18] sm:$0xff]
    %v58 = vld [vmem:[%s2 + $0x20] sm:$0xff]
    %v59 = vld [vmem:[%s2 + $0x28] sm:$0xff]
    %v60 = vld [vmem:[%s2 + $0x30] sm:$0xff]
    %v61 = vld [vmem:[%s2 + $0x38] sm:$0xff]
    %v62 = vld [vmem:[%s2 + $0x40] sm:$0xff]
    %v63 = vld [vmem:[%s2 + $0x48] sm:$0xff]
    %v64 = vld [vmem:[%s2 + $0x50] sm:$0xff]
    %v65 = vld [vmem:[%s2 + $0x58] sm:$0xff]
    %v66 = vld [vmem:[%s2 + $0x60] sm:$0xff]
    %v67 = vld [vmem:[%s2 + $0x68] sm:$0xff]
    %v68 = vld [vmem:[%s2 + $0x70] sm:$0xff]
    %v69 = vld [vmem:[%s2 + $0x78] sm:$0xff]
    %v70 = vadd.f32 %v21, 1.0
    %v71 = vmul.f32 %v70, 7.5
    %v72 = vmax.f32 %v71, 0.0
    %v73 = vmin.f32 %v72, 15.0
    %v74 = vlaneseq
    %v75 = vshrl.u32 %v74, 7
    %v76 = vadd.s32 %v75, 8
    %v77 = vcvt.s32.f32 %v75
    %v78 = vcvt.s32.f32 %v76
    %v80 = vperm.slane %v73, 0
    %v81 = vperm.slane %v73, 4
    %v84 = vperm.slane %v80, 0
    %v85 = vperm.slane %v81, 0
    %v86 = vsub.f32 %v77, %v84
    %v87 = vsub.f32 %v77, %v85
    %v88 = vsub.f32 %v78, %v84
    %v89 = vsub.f32 %v78, %v85
    %v90 = vand.u32 2147483647, %v86
    %v91 = vand.u32 2147483647, %v87
    %v92 = vand.u32 2147483647, %v88
    %v93 = vand.u32 2147483647, %v89
    %v94 = vsub.f32 1.0, %v90
    %v95 = vsub.f32 1.0, %v91
    %v96 = vsub.f32 1.0, %v92
    %v97 = vsub.f32 1.0, %v93
    %v98 = vmax.f32 %v94, 0.0
    %v99 = vmax.f32 %v95, 0.0
    %v100 = vmax.f32 %v96, 0.0
    %v101 = vmax.f32 %v97, 0.0
    %v102 = vperm.slane %v73, 1
    %v103 = vperm.slane %v73, 5
    %v106 = vperm.slane %v102, 1
    %v107 = vperm.slane %v103, 1
    %v108 = vsub.f32 %v77, %v106
    %v109 = vsub.f32 %v77, %v107
    %v110 = vsub.f32 %v78, %v106
    %v111 = vsub.f32 %v78, %v107
    %v112 = vand.u32 2147483647, %v108
    %v113 = vand.u32 2147483647, %v109
    %v114 = vand.u32 2147483647, %v110
    %v115 = vand.u32 2147483647, %v111
    %v116 = vsub.f32 1.0, %v112
    %v117 = vsub.f32 1.0, %v113
    %v118 = vsub.f32 1.0, %v114
    %v119 = vsub.f32 1.0, %v115
    %v120 = vmax.f32 %v116, 0.0
    %v121 = vmax.f32 %v117, 0.0
    %v122 = vmax.f32 %v118, 0.0
    %v123 = vmax.f32 %v119, 0.0
    %v124 = vperm.slane %v73, 2
    %v125 = vperm.slane %v73, 6
    %v128 = vperm.slane %v124, 2
    %v129 = vperm.slane %v125, 2
    %v130 = vsub.f32 %v77, %v128
    %v131 = vsub.f32 %v77, %v129
    %v132 = vsub.f32 %v78, %v128
    %v133 = vsub.f32 %v78, %v129
    %v134 = vand.u32 2147483647, %v130
    %v135 = vand.u32 2147483647, %v131
    %v136 = vand.u32 2147483647, %v132
    %v137 = vand.u32 2147483647, %v133
    %v138 = vsub.f32 1.0, %v134
    %v139 = vsub.f32 1.0, %v135
    %v140 = vsub.f32 1.0, %v136
    %v141 = vsub.f32 1.0, %v137
    %v142 = vmax.f32 %v138, 0.0
    %v143 = vmax.f32 %v139, 0.0
    %v144 = vmax.f32 %v140, 0.0
    %v145 = vmax.f32 %v141, 0.0
    %vm146 = vcmask 130048
    %v148 = vsel %vm146, %v22, 0
    %v151 = vsel %vm146, %v23, 0
    %v154 = vsel %vm146, %v24, 0
    %v157 = vsel %vm146, %v25, 0
    %v160 = vsel %vm146, %v26, 0
    %v163 = vsel %vm146, %v27, 0
    %v166 = vsel %vm146, %v28, 0
    %v169 = vsel %vm146, %v29, 0
    %v172 = vsel %vm146, %v30, 0
    %v175 = vsel %vm146, %v31, 0
    %v178 = vsel %vm146, %v32, 0
    %v181 = vsel %vm146, %v33, 0
    %v184 = vsel %vm146, %v34, 0
    %v187 = vsel %vm146, %v35, 0
    %v190 = vsel %vm146, %v36, 0
    %v193 = vsel %vm146, %v37, 0
    %v196 = vsel %vm146, %v38, 0
    %v199 = vsel %vm146, %v39, 0
    %v202 = vsel %vm146, %v40, 0
    %v205 = vsel %vm146, %v41, 0
    %v208 = vsel %vm146, %v42, 0
    %v211 = vsel %vm146, %v43, 0
    %v214 = vsel %vm146, %v44, 0
    %v217 = vsel %vm146, %v45, 0
    %v220 = vsel %vm146, %v46, 0
    %v223 = vsel %vm146, %v47, 0
    %v226 = vsel %vm146, %v48, 0
    %v229 = vsel %vm146, %v49, 0
    %v232 = vsel %vm146, %v50, 0
    %v235 = vsel %vm146, %v51, 0
    %v238 = vsel %vm146, %v52, 0
    %v241 = vsel %vm146, %v53, 0
    %243 = vmatpush.msra.mxu0 0.0
    %244 = vmatpush.msra.mxu0 0.0
    %245 = vmatpush.msra.mxu0 0.0
    %246 = vmatpush.msra.mxu0 0.0
    %247 = vmatpush.msra.mxu0 0.0
    %248 = vmatpush.msra.mxu0 0.0
    %249 = vmatpush.msra.mxu0 0.0
    %250 = vmatpush.msra.mxu0 0.0
    %251 = vmatpush.msra.mxu0 0.0
    %252 = vmatpush.msra.mxu0 0.0
    %253 = vmatpush.msra.mxu0 0.0
    %254 = vmatpush.msra.mxu0 0.0
    %255 = vmatpush.msra.mxu0 0.0
    %256 = vmatpush.msra.mxu0 0.0
    %v257 = vand.u32 %v100, 4294901760
    %258 = vmatpush.msra.mxu0 %v257
    %v259 = vand.u32 %v98, 4294901760
    %260 = vmatpush.msra.mxu0 %v259
    %v261 = vand.u32 %v148, 4294901760
    %v262 = vsub.f32 %v148, %v261
    %v263 = vand.u32 %v262, 4294901760
    %v264 = vsub.f32 %v262, %v263
    %v265 = vand.u32 %v264, 4294901760
    %266 = vmatmul.f32.gmra.mxu0 %v265
    %v267 = vpop.f32.mrf.mxu0
    %v268 = vadd.f32 0.0, %v267
    %v269 = vand.u32 %v151, 4294901760
    %v270 = vsub.f32 %v151, %v269
    %v271 = vand.u32 %v270, 4294901760
    %v272 = vsub.f32 %v270, %v271
    %v273 = vand.u32 %v272, 4294901760
    %274 = vmatmul.f32.gmra.mxu0 %v273
    %v275 = vpop.f32.mrf.mxu0
    %v276 = vadd.f32 0.0, %v275
    %v277 = vand.u32 %v154, 4294901760
    %v278 = vsub.f32 %v154, %v277
    %v279 = vand.u32 %v278, 4294901760
    %v280 = vsub.f32 %v278, %v279
    %v281 = vand.u32 %v280, 4294901760
    %282 = vmatmul.f32.gmra.mxu0 %v281
    %v283 = vpop.f32.mrf.mxu0
    %v284 = vadd.f32 0.0, %v283
    %v285 = vand.u32 %v157, 4294901760
    %v286 = vsub.f32 %v157, %v285
    %v287 = vand.u32 %v286, 4294901760
    %v288 = vsub.f32 %v286, %v287
    %v289 = vand.u32 %v288, 4294901760
    %290 = vmatmul.f32.gmra.mxu0 %v289
    %v291 = vpop.f32.mrf.mxu0
    %v292 = vadd.f32 0.0, %v291
    %v293 = vand.u32 %v160, 4294901760
    %v294 = vsub.f32 %v160, %v293
    %v295 = vand.u32 %v294, 4294901760
    %v296 = vsub.f32 %v294, %v295
    %v297 = vand.u32 %v296, 4294901760
    %298 = vmatmul.f32.gmra.mxu0 %v297
    %v299 = vpop.f32.mrf.mxu0
    %v300 = vadd.f32 0.0, %v299
    %v301 = vand.u32 %v163, 4294901760
    %v302 = vsub.f32 %v163, %v301
    %v303 = vand.u32 %v302, 4294901760
    %v304 = vsub.f32 %v302, %v303
    %v305 = vand.u32 %v304, 4294901760
    %306 = vmatmul.f32.gmra.mxu0 %v305
    %v307 = vpop.f32.mrf.mxu0
    %v308 = vadd.f32 0.0, %v307
    %v309 = vand.u32 %v166, 4294901760
    %v310 = vsub.f32 %v166, %v309
    %v311 = vand.u32 %v310, 4294901760
    %v312 = vsub.f32 %v310, %v311
    %v313 = vand.u32 %v312, 4294901760
    %314 = vmatmul.f32.gmra.mxu0 %v313
    %v315 = vpop.f32.mrf.mxu0
    %v316 = vadd.f32 0.0, %v315
    %v317 = vand.u32 %v169, 4294901760
    %v318 = vsub.f32 %v169, %v317
    %v319 = vand.u32 %v318, 4294901760
    %v320 = vsub.f32 %v318, %v319
    %v321 = vand.u32 %v320, 4294901760
    %322 = vmatmul.f32.gmra.mxu0 %v321
    %v323 = vpop.f32.mrf.mxu0
    %v324 = vadd.f32 0.0, %v323
    %v325 = vand.u32 %v172, 4294901760
    %v326 = vsub.f32 %v172, %v325
    %v327 = vand.u32 %v326, 4294901760
    %v328 = vsub.f32 %v326, %v327
    %v329 = vand.u32 %v328, 4294901760
    %330 = vmatmul.f32.gmra.mxu0 %v329
    %v331 = vpop.f32.mrf.mxu0
    %v332 = vadd.f32 0.0, %v331
    %v333 = vand.u32 %v175, 4294901760
    %v334 = vsub.f32 %v175, %v333
    %v335 = vand.u32 %v334, 4294901760
    %v336 = vsub.f32 %v334, %v335
    %v337 = vand.u32 %v336, 4294901760
    %338 = vmatmul.f32.gmra.mxu0 %v337
    %v339 = vpop.f32.mrf.mxu0
    %v340 = vadd.f32 0.0, %v339
    %v341 = vand.u32 %v178, 4294901760
    %v342 = vsub.f32 %v178, %v341
    %v343 = vand.u32 %v342, 4294901760
    %v344 = vsub.f32 %v342, %v343
    %v345 = vand.u32 %v344, 4294901760
    %346 = vmatmul.f32.gmra.mxu0 %v345
    %v347 = vpop.f32.mrf.mxu0
    %v348 = vadd.f32 0.0, %v347
    %v349 = vand.u32 %v181, 4294901760
    %v350 = vsub.f32 %v181, %v349
    %v351 = vand.u32 %v350, 4294901760
    %v352 = vsub.f32 %v350, %v351
    %v353 = vand.u32 %v352, 4294901760
    %354 = vmatmul.f32.gmra.mxu0 %v353
    %v355 = vpop.f32.mrf.mxu0
    %v356 = vadd.f32 0.0, %v355
    %v357 = vand.u32 %v184, 4294901760
    %v358 = vsub.f32 %v184, %v357
    %v359 = vand.u32 %v358, 4294901760
    %v360 = vsub.f32 %v358, %v359
    %v361 = vand.u32 %v360, 4294901760
    %362 = vmatmul.f32.gmra.mxu0 %v361
    %v363 = vpop.f32.mrf.mxu0
    %v364 = vadd.f32 0.0, %v363
    %v365 = vand.u32 %v187, 4294901760
    %v366 = vsub.f32 %v187, %v365
    %v367 = vand.u32 %v366, 4294901760
    %v368 = vsub.f32 %v366, %v367
    %v369 = vand.u32 %v368, 4294901760
    %370 = vmatmul.f32.gmra.mxu0 %v369
    %v371 = vpop.f32.mrf.mxu0
    %v372 = vadd.f32 0.0, %v371
    %v373 = vand.u32 %v190, 4294901760
    %v374 = vsub.f32 %v190, %v373
    %v375 = vand.u32 %v374, 4294901760
    %v376 = vsub.f32 %v374, %v375
    %v377 = vand.u32 %v376, 4294901760
    %378 = vmatmul.f32.gmra.mxu0 %v377
    %v379 = vpop.f32.mrf.mxu0
    %v380 = vadd.f32 0.0, %v379
    %v381 = vand.u32 %v193, 4294901760
    %v382 = vsub.f32 %v193, %v381
    %v383 = vand.u32 %v382, 4294901760
    %v384 = vsub.f32 %v382, %v383
    %v385 = vand.u32 %v384, 4294901760
    %386 = vmatmul.f32.gmra.mxu0 %v385
    %v387 = vpop.f32.mrf.mxu0
    %v388 = vadd.f32 0.0, %v387
    %v389 = vand.u32 %v196, 4294901760
    %v390 = vsub.f32 %v196, %v389
    %v391 = vand.u32 %v390, 4294901760
    %v392 = vsub.f32 %v390, %v391
    %v393 = vand.u32 %v392, 4294901760
    %394 = vmatmul.f32.gmra.mxu0 %v393
    %v395 = vpop.f32.mrf.mxu0
    %v396 = vadd.f32 0.0, %v395
    %v397 = vand.u32 %v199, 4294901760
    %v398 = vsub.f32 %v199, %v397
    %v399 = vand.u32 %v398, 4294901760
    %v400 = vsub.f32 %v398, %v399
    %v401 = vand.u32 %v400, 4294901760
    %402 = vmatmul.f32.gmra.mxu0 %v401
    %v403 = vpop.f32.mrf.mxu0
    %v404 = vadd.f32 0.0, %v403
    %v405 = vand.u32 %v202, 4294901760
    %v406 = vsub.f32 %v202, %v405
    %v407 = vand.u32 %v406, 4294901760
    %v408 = vsub.f32 %v406, %v407
    %v409 = vand.u32 %v408, 4294901760
    %410 = vmatmul.f32.gmra.mxu0 %v409
    %v411 = vpop.f32.mrf.mxu0
    %v412 = vadd.f32 0.0, %v411
    %v413 = vand.u32 %v205, 4294901760
    %v414 = vsub.f32 %v205, %v413
    %v415 = vand.u32 %v414, 4294901760
    %v416 = vsub.f32 %v414, %v415
    %v417 = vand.u32 %v416, 4294901760
    %418 = vmatmul.f32.gmra.mxu0 %v417
    %v419 = vpop.f32.mrf.mxu0
    %v420 = vadd.f32 0.0, %v419
    %v421 = vand.u32 %v208, 4294901760
    %v422 = vsub.f32 %v208, %v421
    %v423 = vand.u32 %v422, 4294901760
    %v424 = vsub.f32 %v422, %v423
    %v425 = vand.u32 %v424, 4294901760
    %426 = vmatmul.f32.gmra.mxu0 %v425
    %v427 = vpop.f32.mrf.mxu0
    %v428 = vadd.f32 0.0, %v427
    %v429 = vand.u32 %v211, 4294901760
    %v430 = vsub.f32 %v211, %v429
    %v431 = vand.u32 %v430, 4294901760
    %v432 = vsub.f32 %v430, %v431
    %v433 = vand.u32 %v432, 4294901760
    %434 = vmatmul.f32.gmra.mxu0 %v433
    %v435 = vpop.f32.mrf.mxu0
    %v436 = vadd.f32 0.0, %v435
    %v437 = vand.u32 %v214, 4294901760
    %v438 = vsub.f32 %v214, %v437
    %v439 = vand.u32 %v438, 4294901760
    %v440 = vsub.f32 %v438, %v439
    %v441 = vand.u32 %v440, 4294901760
    %442 = vmatmul.f32.gmra.mxu0 %v441
    %v443 = vpop.f32.mrf.mxu0
    %v444 = vadd.f32 0.0, %v443
    %v445 = vand.u32 %v217, 4294901760
    %v446 = vsub.f32 %v217, %v445
    %v447 = vand.u32 %v446, 4294901760
    %v448 = vsub.f32 %v446, %v447
    %v449 = vand.u32 %v448, 4294901760
    %450 = vmatmul.f32.gmra.mxu0 %v449
    %v451 = vpop.f32.mrf.mxu0
    %v452 = vadd.f32 0.0, %v451
    %v453 = vand.u32 %v220, 4294901760
    %v454 = vsub.f32 %v220, %v453
    %v455 = vand.u32 %v454, 4294901760
    %v456 = vsub.f32 %v454, %v455
    %v457 = vand.u32 %v456, 4294901760
    %458 = vmatmul.f32.gmra.mxu0 %v457
    %v459 = vpop.f32.mrf.mxu0
    %v460 = vadd.f32 0.0, %v459
    %v461 = vand.u32 %v223, 4294901760
    %v462 = vsub.f32 %v223, %v461
    %v463 = vand.u32 %v462, 4294901760
    %v464 = vsub.f32 %v462, %v463
    %v465 = vand.u32 %v464, 4294901760
    %466 = vmatmul.f32.gmra.mxu0 %v465
    %v467 = vpop.f32.mrf.mxu0
    %v468 = vadd.f32 0.0, %v467
    %v469 = vand.u32 %v226, 4294901760
    %v470 = vsub.f32 %v226, %v469
    %v471 = vand.u32 %v470, 4294901760
    %v472 = vsub.f32 %v470, %v471
    %v473 = vand.u32 %v472, 4294901760
    %474 = vmatmul.f32.gmra.mxu0 %v473
    %v475 = vpop.f32.mrf.mxu0
    %v476 = vadd.f32 0.0, %v475
    %v477 = vand.u32 %v229, 4294901760
    %v478 = vsub.f32 %v229, %v477
    %v479 = vand.u32 %v478, 4294901760
    %v480 = vsub.f32 %v478, %v479
    %v481 = vand.u32 %v480, 4294901760
    %482 = vmatmul.f32.gmra.mxu0 %v481
    %v483 = vpop.f32.mrf.mxu0
    %v484 = vadd.f32 0.0, %v483
    %v485 = vand.u32 %v232, 4294901760
    %v486 = vsub.f32 %v232, %v485
    %v487 = vand.u32 %v486, 4294901760
    %v488 = vsub.f32 %v486, %v487
    %v489 = vand.u32 %v488, 4294901760
    %490 = vmatmul.f32.gmra.mxu0 %v489
    %v491 = vpop.f32.mrf.mxu0
    %v492 = vadd.f32 0.0, %v491
    %v493 = vand.u32 %v235, 4294901760
    %v494 = vsub.f32 %v235, %v493
    %v495 = vand.u32 %v494, 4294901760
    %v496 = vsub.f32 %v494, %v495
    %v497 = vand.u32 %v496, 4294901760
    %498 = vmatmul.f32.gmra.mxu0 %v497
    %v499 = vpop.f32.mrf.mxu0
    %v500 = vadd.f32 0.0, %v499
    %v501 = vand.u32 %v238, 4294901760
    %v502 = vsub.f32 %v238, %v501
    %v503 = vand.u32 %v502, 4294901760
    %v504 = vsub.f32 %v502, %v503
    %v505 = vand.u32 %v504, 4294901760
    %506 = vmatmul.f32.gmra.mxu0 %v505
    %v507 = vpop.f32.mrf.mxu0
    %v508 = vadd.f32 0.0, %v507
    %v509 = vand.u32 %v241, 4294901760
    %v510 = vsub.f32 %v241, %v509
    %v511 = vand.u32 %v510, 4294901760
    %v512 = vsub.f32 %v510, %v511
    %v513 = vand.u32 %v512, 4294901760
    %514 = vmatmul.f32.gmra.mxu0 %v513
    %v515 = vpop.f32.mrf.mxu0
    %v516 = vadd.f32 0.0, %v515
    %517 = vdwg.mxu0
    %518 = vmatpush.msra.mxu0 0.0
    %519 = vmatpush.msra.mxu0 0.0
    %520 = vmatpush.msra.mxu0 0.0
    %521 = vmatpush.msra.mxu0 0.0
    %522 = vmatpush.msra.mxu0 0.0
    %523 = vmatpush.msra.mxu0 0.0
    %524 = vmatpush.msra.mxu0 0.0
    %525 = vmatpush.msra.mxu0 0.0
    %526 = vmatpush.msra.mxu0 0.0
    %527 = vmatpush.msra.mxu0 0.0
    %528 = vmatpush.msra.mxu0 0.0
    %529 = vmatpush.msra.mxu0 0.0
    %530 = vmatpush.msra.mxu0 0.0
    %531 = vmatpush.msra.mxu0 0.0
    %v532 = vand.u32 %v100, 4294901760
    %v533 = vsub.f32 %v100, %v532
    %v534 = vand.u32 %v533, 4294901760
    %v535 = vsub.f32 %v533, %v534
    %v536 = vand.u32 %v535, 4294901760
    %537 = vmatpush.msra.mxu0 %v536
    %v538 = vand.u32 %v98, 4294901760
    %v539 = vsub.f32 %v98, %v538
    %v540 = vand.u32 %v539, 4294901760
    %v541 = vsub.f32 %v539, %v540
    %v542 = vand.u32 %v541, 4294901760
    %543 = vmatpush.msra.mxu0 %v542
    %v544 = vand.u32 %v148, 4294901760
    %545 = vmatmul.f32.gmra.mxu0 %v544
    %v546 = vpop.f32.mrf.mxu0
    %v547 = vadd.f32 %v268, %v546
    %v548 = vand.u32 %v151, 4294901760
    %549 = vmatmul.f32.gmra.mxu0 %v548
    %v550 = vpop.f32.mrf.mxu0
    %v551 = vadd.f32 %v276, %v550
    %v552 = vand.u32 %v154, 4294901760
    %553 = vmatmul.f32.gmra.mxu0 %v552
    %v554 = vpop.f32.mrf.mxu0
    %v555 = vadd.f32 %v284, %v554
    %v556 = vand.u32 %v157, 4294901760
    %557 = vmatmul.f32.gmra.mxu0 %v556
    %v558 = vpop.f32.mrf.mxu0
    %v559 = vadd.f32 %v292, %v558
    %v560 = vand.u32 %v160, 4294901760
    %561 = vmatmul.f32.gmra.mxu0 %v560
    %v562 = vpop.f32.mrf.mxu0
    %v563 = vadd.f32 %v300, %v562
    %v564 = vand.u32 %v163, 4294901760
    %565 = vmatmul.f32.gmra.mxu0 %v564
    %v566 = vpop.f32.mrf.mxu0
    %v567 = vadd.f32 %v308, %v566
    %v568 = vand.u32 %v166, 4294901760
    %569 = vmatmul.f32.gmra.mxu0 %v568
    %v570 = vpop.f32.mrf.mxu0
    %v571 = vadd.f32 %v316, %v570
    %v572 = vand.u32 %v169, 4294901760
    %573 = vmatmul.f32.gmra.mxu0 %v572
    %v574 = vpop.f32.mrf.mxu0
    %v575 = vadd.f32 %v324, %v574
    %v576 = vand.u32 %v172, 4294901760
    %577 = vmatmul.f32.gmra.mxu0 %v576
    %v578 = vpop.f32.mrf.mxu0
    %v579 = vadd.f32 %v332, %v578
    %v580 = vand.u32 %v175, 4294901760
    %581 = vmatmul.f32.gmra.mxu0 %v580
    %v582 = vpop.f32.mrf.mxu0
    %v583 = vadd.f32 %v340, %v582
    %v584 = vand.u32 %v178, 4294901760
    %585 = vmatmul.f32.gmra.mxu0 %v584
    %v586 = vpop.f32.mrf.mxu0
    %v587 = vadd.f32 %v348, %v586
    %v588 = vand.u32 %v181, 4294901760
    %589 = vmatmul.f32.gmra.mxu0 %v588
    %v590 = vpop.f32.mrf.mxu0
    %v591 = vadd.f32 %v356, %v590
    %v592 = vand.u32 %v184, 4294901760
    %593 = vmatmul.f32.gmra.mxu0 %v592
    %v594 = vpop.f32.mrf.mxu0
    %v595 = vadd.f32 %v364, %v594
    %v596 = vand.u32 %v187, 4294901760
    %597 = vmatmul.f32.gmra.mxu0 %v596
    %v598 = vpop.f32.mrf.mxu0
    %v599 = vadd.f32 %v372, %v598
    %v600 = vand.u32 %v190, 4294901760
    %601 = vmatmul.f32.gmra.mxu0 %v600
    %v602 = vpop.f32.mrf.mxu0
    %v603 = vadd.f32 %v380, %v602
    %v604 = vand.u32 %v193, 4294901760
    %605 = vmatmul.f32.gmra.mxu0 %v604
    %v606 = vpop.f32.mrf.mxu0
    %v607 = vadd.f32 %v388, %v606
    %v608 = vand.u32 %v196, 4294901760
    %609 = vmatmul.f32.gmra.mxu0 %v608
    %v610 = vpop.f32.mrf.mxu0
    %v611 = vadd.f32 %v396, %v610
    %v612 = vand.u32 %v199, 4294901760
    %613 = vmatmul.f32.gmra.mxu0 %v612
    %v614 = vpop.f32.mrf.mxu0
    %v615 = vadd.f32 %v404, %v614
    %v616 = vand.u32 %v202, 4294901760
    %617 = vmatmul.f32.gmra.mxu0 %v616
    %v618 = vpop.f32.mrf.mxu0
    %v619 = vadd.f32 %v412, %v618
    %v620 = vand.u32 %v205, 4294901760
    %621 = vmatmul.f32.gmra.mxu0 %v620
    %v622 = vpop.f32.mrf.mxu0
    %v623 = vadd.f32 %v420, %v622
    %v624 = vand.u32 %v208, 4294901760
    %625 = vmatmul.f32.gmra.mxu0 %v624
    %v626 = vpop.f32.mrf.mxu0
    %v627 = vadd.f32 %v428, %v626
    %v628 = vand.u32 %v211, 4294901760
    %629 = vmatmul.f32.gmra.mxu0 %v628
    %v630 = vpop.f32.mrf.mxu0
    %v631 = vadd.f32 %v436, %v630
    %v632 = vand.u32 %v214, 4294901760
    %633 = vmatmul.f32.gmra.mxu0 %v632
    %v634 = vpop.f32.mrf.mxu0
    %v635 = vadd.f32 %v444, %v634
    %v636 = vand.u32 %v217, 4294901760
    %637 = vmatmul.f32.gmra.mxu0 %v636
    %v638 = vpop.f32.mrf.mxu0
    %v639 = vadd.f32 %v452, %v638
    %v640 = vand.u32 %v220, 4294901760
    %641 = vmatmul.f32.gmra.mxu0 %v640
    %v642 = vpop.f32.mrf.mxu0
    %v643 = vadd.f32 %v460, %v642
    %v644 = vand.u32 %v223, 4294901760
    %645 = vmatmul.f32.gmra.mxu0 %v644
    %v646 = vpop.f32.mrf.mxu0
    %v647 = vadd.f32 %v468, %v646
    %v648 = vand.u32 %v226, 4294901760
    %649 = vmatmul.f32.gmra.mxu0 %v648
    %v650 = vpop.f32.mrf.mxu0
    %v651 = vadd.f32 %v476, %v650
    %v652 = vand.u32 %v229, 4294901760
    %653 = vmatmul.f32.gmra.mxu0 %v652
    %v654 = vpop.f32.mrf.mxu0
    %v655 = vadd.f32 %v484, %v654
    %v656 = vand.u32 %v232, 4294901760
    %657 = vmatmul.f32.gmra.mxu0 %v656
    %v658 = vpop.f32.mrf.mxu0
    %v659 = vadd.f32 %v492, %v658
    %v660 = vand.u32 %v235, 4294901760
    %661 = vmatmul.f32.gmra.mxu0 %v660
    %v662 = vpop.f32.mrf.mxu0
    %v663 = vadd.f32 %v500, %v662
    %v664 = vand.u32 %v238, 4294901760
    %665 = vmatmul.f32.gmra.mxu0 %v664
    %v666 = vpop.f32.mrf.mxu0
    %v667 = vadd.f32 %v508, %v666
    %v668 = vand.u32 %v241, 4294901760
    %669 = vmatmul.f32.gmra.mxu0 %v668
    %v670 = vpop.f32.mrf.mxu0
    %v671 = vadd.f32 %v516, %v670
    %672 = vdwg.mxu0
    %673 = vmatpush.msra.mxu0 0.0
    %674 = vmatpush.msra.mxu0 0.0
    %675 = vmatpush.msra.mxu0 0.0
    %676 = vmatpush.msra.mxu0 0.0
    %677 = vmatpush.msra.mxu0 0.0
    %678 = vmatpush.msra.mxu0 0.0
    %679 = vmatpush.msra.mxu0 0.0
    %680 = vmatpush.msra.mxu0 0.0
    %681 = vmatpush.msra.mxu0 0.0
    %682 = vmatpush.msra.mxu0 0.0
    %683 = vmatpush.msra.mxu0 0.0
    %684 = vmatpush.msra.mxu0 0.0
    %685 = vmatpush.msra.mxu0 0.0
    %686 = vmatpush.msra.mxu0 0.0
    %v687 = vand.u32 %v100, 4294901760
    %v688 = vsub.f32 %v100, %v687
    %689 = vmatpush.msra.mxu0 %v688
    %v690 = vand.u32 %v98, 4294901760
    %v691 = vsub.f32 %v98, %v690
    %692 = vmatpush.msra.mxu0 %v691
    %v693 = vand.u32 %v148, 4294901760
    %v694 = vsub.f32 %v148, %v693
    %695 = vmatmul.f32.gmra.mxu0 %v694
    %v696 = vpop.f32.mrf.mxu0
    %v697 = vadd.f32 %v547, %v696
    %v698 = vand.u32 %v151, 4294901760
    %v699 = vsub.f32 %v151, %v698
    %700 = vmatmul.f32.gmra.mxu0 %v699
    %v701 = vpop.f32.mrf.mxu0
    %v702 = vadd.f32 %v551, %v701
    %v703 = vand.u32 %v154, 4294901760
    %v704 = vsub.f32 %v154, %v703
    %705 = vmatmul.f32.gmra.mxu0 %v704
    %v706 = vpop.f32.mrf.mxu0
    %v707 = vadd.f32 %v555, %v706
    %v708 = vand.u32 %v157, 4294901760
    %v709 = vsub.f32 %v157, %v708
    %710 = vmatmul.f32.gmra.mxu0 %v709
    %v711 = vpop.f32.mrf.mxu0
    %v712 = vadd.f32 %v559, %v711
    %v713 = vand.u32 %v160, 4294901760
    %v714 = vsub.f32 %v160, %v713
    %715 = vmatmul.f32.gmra.mxu0 %v714
    %v716 = vpop.f32.mrf.mxu0
    %v717 = vadd.f32 %v563, %v716
    %v718 = vand.u32 %v163, 4294901760
    %v719 = vsub.f32 %v163, %v718
    %720 = vmatmul.f32.gmra.mxu0 %v719
    %v721 = vpop.f32.mrf.mxu0
    %v722 = vadd.f32 %v567, %v721
    %v723 = vand.u32 %v166, 4294901760
    %v724 = vsub.f32 %v166, %v723
    %725 = vmatmul.f32.gmra.mxu0 %v724
    %v726 = vpop.f32.mrf.mxu0
    %v727 = vadd.f32 %v571, %v726
    %v728 = vand.u32 %v169, 4294901760
    %v729 = vsub.f32 %v169, %v728
    %730 = vmatmul.f32.gmra.mxu0 %v729
    %v731 = vpop.f32.mrf.mxu0
    %v732 = vadd.f32 %v575, %v731
    %v733 = vand.u32 %v172, 4294901760
    %v734 = vsub.f32 %v172, %v733
    %735 = vmatmul.f32.gmra.mxu0 %v734
    %v736 = vpop.f32.mrf.mxu0
    %v737 = vadd.f32 %v579, %v736
    %v738 = vand.u32 %v175, 4294901760
    %v739 = vsub.f32 %v175, %v738
    %740 = vmatmul.f32.gmra.mxu0 %v739
    %v741 = vpop.f32.mrf.mxu0
    %v742 = vadd.f32 %v583, %v741
    %v743 = vand.u32 %v178, 4294901760
    %v744 = vsub.f32 %v178, %v743
    %745 = vmatmul.f32.gmra.mxu0 %v744
    %v746 = vpop.f32.mrf.mxu0
    %v747 = vadd.f32 %v587, %v746
    %v748 = vand.u32 %v181, 4294901760
    %v749 = vsub.f32 %v181, %v748
    %750 = vmatmul.f32.gmra.mxu0 %v749
    %v751 = vpop.f32.mrf.mxu0
    %v752 = vadd.f32 %v591, %v751
    %v753 = vand.u32 %v184, 4294901760
    %v754 = vsub.f32 %v184, %v753
    %755 = vmatmul.f32.gmra.mxu0 %v754
    %v756 = vpop.f32.mrf.mxu0
    %v757 = vadd.f32 %v595, %v756
    %v758 = vand.u32 %v187, 4294901760
    %v759 = vsub.f32 %v187, %v758
    %760 = vmatmul.f32.gmra.mxu0 %v759
    %v761 = vpop.f32.mrf.mxu0
    %v762 = vadd.f32 %v599, %v761
    %v763 = vand.u32 %v190, 4294901760
    %v764 = vsub.f32 %v190, %v763
    %765 = vmatmul.f32.gmra.mxu0 %v764
    %v766 = vpop.f32.mrf.mxu0
    %v767 = vadd.f32 %v603, %v766
    %v768 = vand.u32 %v193, 4294901760
    %v769 = vsub.f32 %v193, %v768
    %770 = vmatmul.f32.gmra.mxu0 %v769
    %v771 = vpop.f32.mrf.mxu0
    %v772 = vadd.f32 %v607, %v771
    %v773 = vand.u32 %v196, 4294901760
    %v774 = vsub.f32 %v196, %v773
    %775 = vmatmul.f32.gmra.mxu0 %v774
    %v776 = vpop.f32.mrf.mxu0
    %v777 = vadd.f32 %v611, %v776
    %v778 = vand.u32 %v199, 4294901760
    %v779 = vsub.f32 %v199, %v778
    %780 = vmatmul.f32.gmra.mxu0 %v779
    %v781 = vpop.f32.mrf.mxu0
    %v782 = vadd.f32 %v615, %v781
    %v783 = vand.u32 %v202, 4294901760
    %v784 = vsub.f32 %v202, %v783
    %785 = vmatmul.f32.gmra.mxu0 %v784
    %v786 = vpop.f32.mrf.mxu0
    %v787 = vadd.f32 %v619, %v786
    %v788 = vand.u32 %v205, 4294901760
    %v789 = vsub.f32 %v205, %v788
    %790 = vmatmul.f32.gmra.mxu0 %v789
    %v791 = vpop.f32.mrf.mxu0
    %v792 = vadd.f32 %v623, %v791
    %v793 = vand.u32 %v208, 4294901760
    %v794 = vsub.f32 %v208, %v793
    %795 = vmatmul.f32.gmra.mxu0 %v794
    %v796 = vpop.f32.mrf.mxu0
    %v797 = vadd.f32 %v627, %v796
    %v798 = vand.u32 %v211, 4294901760
    %v799 = vsub.f32 %v211, %v798
    %800 = vmatmul.f32.gmra.mxu0 %v799
    %v801 = vpop.f32.mrf.mxu0
    %v802 = vadd.f32 %v631, %v801
    %v803 = vand.u32 %v214, 4294901760
    %v804 = vsub.f32 %v214, %v803
    %805 = vmatmul.f32.gmra.mxu0 %v804
    %v806 = vpop.f32.mrf.mxu0
    %v807 = vadd.f32 %v635, %v806
    %v808 = vand.u32 %v217, 4294901760
    %v809 = vsub.f32 %v217, %v808
    %810 = vmatmul.f32.gmra.mxu0 %v809
    %v811 = vpop.f32.mrf.mxu0
    %v812 = vadd.f32 %v639, %v811
    %v813 = vand.u32 %v220, 4294901760
    %v814 = vsub.f32 %v220, %v813
    %815 = vmatmul.f32.gmra.mxu0 %v814
    %v816 = vpop.f32.mrf.mxu0
    %v817 = vadd.f32 %v643, %v816
    %v818 = vand.u32 %v223, 4294901760
    %v819 = vsub.f32 %v223, %v818
    %820 = vmatmul.f32.gmra.mxu0 %v819
    %v821 = vpop.f32.mrf.mxu0
    %v822 = vadd.f32 %v647, %v821
    %v823 = vand.u32 %v226, 4294901760
    %v824 = vsub.f32 %v226, %v823
    %825 = vmatmul.f32.gmra.mxu0 %v824
    %v826 = vpop.f32.mrf.mxu0
    %v827 = vadd.f32 %v651, %v826
    %v828 = vand.u32 %v229, 4294901760
    %v829 = vsub.f32 %v229, %v828
    %830 = vmatmul.f32.gmra.mxu0 %v829
    %v831 = vpop.f32.mrf.mxu0
    %v832 = vadd.f32 %v655, %v831
    %v833 = vand.u32 %v232, 4294901760
    %v834 = vsub.f32 %v232, %v833
    %835 = vmatmul.f32.gmra.mxu0 %v834
    %v836 = vpop.f32.mrf.mxu0
    %v837 = vadd.f32 %v659, %v836
    %v838 = vand.u32 %v235, 4294901760
    %v839 = vsub.f32 %v235, %v838
    %840 = vmatmul.f32.gmra.mxu0 %v839
    %v841 = vpop.f32.mrf.mxu0
    %v842 = vadd.f32 %v663, %v841
    %v843 = vand.u32 %v238, 4294901760
    %v844 = vsub.f32 %v238, %v843
    %845 = vmatmul.f32.gmra.mxu0 %v844
    %v846 = vpop.f32.mrf.mxu0
    %v847 = vadd.f32 %v667, %v846
    %v848 = vand.u32 %v241, 4294901760
    %v849 = vsub.f32 %v241, %v848
    %850 = vmatmul.f32.gmra.mxu0 %v849
    %v851 = vpop.f32.mrf.mxu0
    %v852 = vadd.f32 %v671, %v851
    %853 = vdwg.mxu0
    %854 = vmatpush.msra.mxu0 0.0
    %855 = vmatpush.msra.mxu0 0.0
    %856 = vmatpush.msra.mxu0 0.0
    %857 = vmatpush.msra.mxu0 0.0
    %858 = vmatpush.msra.mxu0 0.0
    %859 = vmatpush.msra.mxu0 0.0
    %860 = vmatpush.msra.mxu0 0.0
    %861 = vmatpush.msra.mxu0 0.0
    %862 = vmatpush.msra.mxu0 0.0
    %863 = vmatpush.msra.mxu0 0.0
    %864 = vmatpush.msra.mxu0 0.0
    %865 = vmatpush.msra.mxu0 0.0
    %866 = vmatpush.msra.mxu0 0.0
    %867 = vmatpush.msra.mxu0 0.0
    %v868 = vand.u32 %v100, 4294901760
    %869 = vmatpush.msra.mxu0 %v868
    %v870 = vand.u32 %v98, 4294901760
    %871 = vmatpush.msra.mxu0 %v870
    %v872 = vand.u32 %v148, 4294901760
    %v873 = vsub.f32 %v148, %v872
    %v874 = vand.u32 %v873, 4294901760
    %875 = vmatmul.f32.gmra.mxu0 %v874
    %v876 = vpop.f32.mrf.mxu0
    %v877 = vadd.f32 %v697, %v876
    %v878 = vand.u32 %v151, 4294901760
    %v879 = vsub.f32 %v151, %v878
    %v880 = vand.u32 %v879, 4294901760
    %881 = vmatmul.f32.gmra.mxu0 %v880
    %v882 = vpop.f32.mrf.mxu0
    %v883 = vadd.f32 %v702, %v882
    %v884 = vand.u32 %v154, 4294901760
    %v885 = vsub.f32 %v154, %v884
    %v886 = vand.u32 %v885, 4294901760
    %887 = vmatmul.f32.gmra.mxu0 %v886
    %v888 = vpop.f32.mrf.mxu0
    %v889 = vadd.f32 %v707, %v888
    %v890 = vand.u32 %v157, 4294901760
    %v891 = vsub.f32 %v157, %v890
    %v892 = vand.u32 %v891, 4294901760
    %893 = vmatmul.f32.gmra.mxu0 %v892
    %v894 = vpop.f32.mrf.mxu0
    %v895 = vadd.f32 %v712, %v894
    %v896 = vand.u32 %v160, 4294901760
    %v897 = vsub.f32 %v160, %v896
    %v898 = vand.u32 %v897, 4294901760
    %899 = vmatmul.f32.gmra.mxu0 %v898
    %v900 = vpop.f32.mrf.mxu0
    %v901 = vadd.f32 %v717, %v900
    %v902 = vand.u32 %v163, 4294901760
    %v903 = vsub.f32 %v163, %v902
    %v904 = vand.u32 %v903, 4294901760
    %905 = vmatmul.f32.gmra.mxu0 %v904
    %v906 = vpop.f32.mrf.mxu0
    %v907 = vadd.f32 %v722, %v906
    %v908 = vand.u32 %v166, 4294901760
    %v909 = vsub.f32 %v166, %v908
    %v910 = vand.u32 %v909, 4294901760
    %911 = vmatmul.f32.gmra.mxu0 %v910
    %v912 = vpop.f32.mrf.mxu0
    %v913 = vadd.f32 %v727, %v912
    %v914 = vand.u32 %v169, 4294901760
    %v915 = vsub.f32 %v169, %v914
    %v916 = vand.u32 %v915, 4294901760
    %917 = vmatmul.f32.gmra.mxu0 %v916
    %v918 = vpop.f32.mrf.mxu0
    %v919 = vadd.f32 %v732, %v918
    %v920 = vand.u32 %v172, 4294901760
    %v921 = vsub.f32 %v172, %v920
    %v922 = vand.u32 %v921, 4294901760
    %923 = vmatmul.f32.gmra.mxu0 %v922
    %v924 = vpop.f32.mrf.mxu0
    %v925 = vadd.f32 %v737, %v924
    %v926 = vand.u32 %v175, 4294901760
    %v927 = vsub.f32 %v175, %v926
    %v928 = vand.u32 %v927, 4294901760
    %929 = vmatmul.f32.gmra.mxu0 %v928
    %v930 = vpop.f32.mrf.mxu0
    %v931 = vadd.f32 %v742, %v930
    %v932 = vand.u32 %v178, 4294901760
    %v933 = vsub.f32 %v178, %v932
    %v934 = vand.u32 %v933, 4294901760
    %935 = vmatmul.f32.gmra.mxu0 %v934
    %v936 = vpop.f32.mrf.mxu0
    %v937 = vadd.f32 %v747, %v936
    %v938 = vand.u32 %v181, 4294901760
    %v939 = vsub.f32 %v181, %v938
    %v940 = vand.u32 %v939, 4294901760
    %941 = vmatmul.f32.gmra.mxu0 %v940
    %v942 = vpop.f32.mrf.mxu0
    %v943 = vadd.f32 %v752, %v942
    %v944 = vand.u32 %v184, 4294901760
    %v945 = vsub.f32 %v184, %v944
    %v946 = vand.u32 %v945, 4294901760
    %947 = vmatmul.f32.gmra.mxu0 %v946
    %v948 = vpop.f32.mrf.mxu0
    %v949 = vadd.f32 %v757, %v948
    %v950 = vand.u32 %v187, 4294901760
    %v951 = vsub.f32 %v187, %v950
    %v952 = vand.u32 %v951, 4294901760
    %953 = vmatmul.f32.gmra.mxu0 %v952
    %v954 = vpop.f32.mrf.mxu0
    %v955 = vadd.f32 %v762, %v954
    %v956 = vand.u32 %v190, 4294901760
    %v957 = vsub.f32 %v190, %v956
    %v958 = vand.u32 %v957, 4294901760
    %959 = vmatmul.f32.gmra.mxu0 %v958
    %v960 = vpop.f32.mrf.mxu0
    %v961 = vadd.f32 %v767, %v960
    %v962 = vand.u32 %v193, 4294901760
    %v963 = vsub.f32 %v193, %v962
    %v964 = vand.u32 %v963, 4294901760
    %965 = vmatmul.f32.gmra.mxu0 %v964
    %v966 = vpop.f32.mrf.mxu0
    %v967 = vadd.f32 %v772, %v966
    %v968 = vand.u32 %v196, 4294901760
    %v969 = vsub.f32 %v196, %v968
    %v970 = vand.u32 %v969, 4294901760
    %971 = vmatmul.f32.gmra.mxu0 %v970
    %v972 = vpop.f32.mrf.mxu0
    %v973 = vadd.f32 %v777, %v972
    %v974 = vand.u32 %v199, 4294901760
    %v975 = vsub.f32 %v199, %v974
    %v976 = vand.u32 %v975, 4294901760
    %977 = vmatmul.f32.gmra.mxu0 %v976
    %v978 = vpop.f32.mrf.mxu0
    %v979 = vadd.f32 %v782, %v978
    %v980 = vand.u32 %v202, 4294901760
    %v981 = vsub.f32 %v202, %v980
    %v982 = vand.u32 %v981, 4294901760
    %983 = vmatmul.f32.gmra.mxu0 %v982
    %v984 = vpop.f32.mrf.mxu0
    %v985 = vadd.f32 %v787, %v984
    %v986 = vand.u32 %v205, 4294901760
    %v987 = vsub.f32 %v205, %v986
    %v988 = vand.u32 %v987, 4294901760
    %989 = vmatmul.f32.gmra.mxu0 %v988
    %v990 = vpop.f32.mrf.mxu0
    %v991 = vadd.f32 %v792, %v990
    %v992 = vand.u32 %v208, 4294901760
    %v993 = vsub.f32 %v208, %v992
    %v994 = vand.u32 %v993, 4294901760
    %995 = vmatmul.f32.gmra.mxu0 %v994
    %v996 = vpop.f32.mrf.mxu0
    %v997 = vadd.f32 %v797, %v996
    %v998 = vand.u32 %v211, 4294901760
    %v999 = vsub.f32 %v211, %v998
    %v1000 = vand.u32 %v999, 4294901760
    %1001 = vmatmul.f32.gmra.mxu0 %v1000
    %v1002 = vpop.f32.mrf.mxu0
    %v1003 = vadd.f32 %v802, %v1002
    %v1004 = vand.u32 %v214, 4294901760
    %v1005 = vsub.f32 %v214, %v1004
    %v1006 = vand.u32 %v1005, 4294901760
    %1007 = vmatmul.f32.gmra.mxu0 %v1006
    %v1008 = vpop.f32.mrf.mxu0
    %v1009 = vadd.f32 %v807, %v1008
    %v1010 = vand.u32 %v217, 4294901760
    %v1011 = vsub.f32 %v217, %v1010
    %v1012 = vand.u32 %v1011, 4294901760
    %1013 = vmatmul.f32.gmra.mxu0 %v1012
    %v1014 = vpop.f32.mrf.mxu0
    %v1015 = vadd.f32 %v812, %v1014
    %v1016 = vand.u32 %v220, 4294901760
    %v1017 = vsub.f32 %v220, %v1016
    %v1018 = vand.u32 %v1017, 4294901760
    %1019 = vmatmul.f32.gmra.mxu0 %v1018
    %v1020 = vpop.f32.mrf.mxu0
    %v1021 = vadd.f32 %v817, %v1020
    %v1022 = vand.u32 %v223, 4294901760
    %v1023 = vsub.f32 %v223, %v1022
    %v1024 = vand.u32 %v1023, 4294901760
    %1025 = vmatmul.f32.gmra.mxu0 %v1024
    %v1026 = vpop.f32.mrf.mxu0
    %v1027 = vadd.f32 %v822, %v1026
    %v1028 = vand.u32 %v226, 4294901760
    %v1029 = vsub.f32 %v226, %v1028
    %v1030 = vand.u32 %v1029, 4294901760
    %1031 = vmatmul.f32.gmra.mxu0 %v1030
    %v1032 = vpop.f32.mrf.mxu0
    %v1033 = vadd.f32 %v827, %v1032
    %v1034 = vand.u32 %v229, 4294901760
    %v1035 = vsub.f32 %v229, %v1034
    %v1036 = vand.u32 %v1035, 4294901760
    %1037 = vmatmul.f32.gmra.mxu0 %v1036
    %v1038 = vpop.f32.mrf.mxu0
    %v1039 = vadd.f32 %v832, %v1038
    %v1040 = vand.u32 %v232, 4294901760
    %v1041 = vsub.f32 %v232, %v1040
    %v1042 = vand.u32 %v1041, 4294901760
    %1043 = vmatmul.f32.gmra.mxu0 %v1042
    %v1044 = vpop.f32.mrf.mxu0
    %v1045 = vadd.f32 %v837, %v1044
    %v1046 = vand.u32 %v235, 4294901760
    %v1047 = vsub.f32 %v235, %v1046
    %v1048 = vand.u32 %v1047, 4294901760
    %1049 = vmatmul.f32.gmra.mxu0 %v1048
    %v1050 = vpop.f32.mrf.mxu0
    %v1051 = vadd.f32 %v842, %v1050
    %v1052 = vand.u32 %v238, 4294901760
    %v1053 = vsub.f32 %v238, %v1052
    %v1054 = vand.u32 %v1053, 4294901760
    %1055 = vmatmul.f32.gmra.mxu0 %v1054
    %v1056 = vpop.f32.mrf.mxu0
    %v1057 = vadd.f32 %v847, %v1056
    %v1058 = vand.u32 %v241, 4294901760
    %v1059 = vsub.f32 %v241, %v1058
    %v1060 = vand.u32 %v1059, 4294901760
    %1061 = vmatmul.f32.gmra.mxu0 %v1060
    %v1062 = vpop.f32.mrf.mxu0
    %v1063 = vadd.f32 %v852, %v1062
    %1064 = vdwg.mxu0
    %1065 = vmatpush.msra.mxu0 0.0
    %1066 = vmatpush.msra.mxu0 0.0
    %1067 = vmatpush.msra.mxu0 0.0
    %1068 = vmatpush.msra.mxu0 0.0
    %1069 = vmatpush.msra.mxu0 0.0
    %1070 = vmatpush.msra.mxu0 0.0
    %1071 = vmatpush.msra.mxu0 0.0
    %1072 = vmatpush.msra.mxu0 0.0
    %1073 = vmatpush.msra.mxu0 0.0
    %1074 = vmatpush.msra.mxu0 0.0
    %1075 = vmatpush.msra.mxu0 0.0
    %1076 = vmatpush.msra.mxu0 0.0
    %1077 = vmatpush.msra.mxu0 0.0
    %1078 = vmatpush.msra.mxu0 0.0
    %v1079 = vand.u32 %v100, 4294901760
    %v1080 = vsub.f32 %v100, %v1079
    %v1081 = vand.u32 %v1080, 4294901760
    %1082 = vmatpush.msra.mxu0 %v1081
    %v1083 = vand.u32 %v98, 4294901760
    %v1084 = vsub.f32 %v98, %v1083
    %v1085 = vand.u32 %v1084, 4294901760
    %1086 = vmatpush.msra.mxu0 %v1085
    %v1087 = vand.u32 %v148, 4294901760
    %1088 = vmatmul.f32.gmra.mxu0 %v1087
    %v1089 = vpop.f32.mrf.mxu0
    %v1090 = vadd.f32 %v877, %v1089
    %v1091 = vand.u32 %v151, 4294901760
    %1092 = vmatmul.f32.gmra.mxu0 %v1091
    %v1093 = vpop.f32.mrf.mxu0
    %v1094 = vadd.f32 %v883, %v1093
    %v1095 = vand.u32 %v154, 4294901760
    %1096 = vmatmul.f32.gmra.mxu0 %v1095
    %v1097 = vpop.f32.mrf.mxu0
    %v1098 = vadd.f32 %v889, %v1097
    %v1099 = vand.u32 %v157, 4294901760
    %1100 = vmatmul.f32.gmra.mxu0 %v1099
    %v1101 = vpop.f32.mrf.mxu0
    %v1102 = vadd.f32 %v895, %v1101
    %v1103 = vand.u32 %v160, 4294901760
    %1104 = vmatmul.f32.gmra.mxu0 %v1103
    %v1105 = vpop.f32.mrf.mxu0
    %v1106 = vadd.f32 %v901, %v1105
    %v1107 = vand.u32 %v163, 4294901760
    %1108 = vmatmul.f32.gmra.mxu0 %v1107
    %v1109 = vpop.f32.mrf.mxu0
    %v1110 = vadd.f32 %v907, %v1109
    %v1111 = vand.u32 %v166, 4294901760
    %1112 = vmatmul.f32.gmra.mxu0 %v1111
    %v1113 = vpop.f32.mrf.mxu0
    %v1114 = vadd.f32 %v913, %v1113
    %v1115 = vand.u32 %v169, 4294901760
    %1116 = vmatmul.f32.gmra.mxu0 %v1115
    %v1117 = vpop.f32.mrf.mxu0
    %v1118 = vadd.f32 %v919, %v1117
    %v1119 = vand.u32 %v172, 4294901760
    %1120 = vmatmul.f32.gmra.mxu0 %v1119
    %v1121 = vpop.f32.mrf.mxu0
    %v1122 = vadd.f32 %v925, %v1121
    %v1123 = vand.u32 %v175, 4294901760
    %1124 = vmatmul.f32.gmra.mxu0 %v1123
    %v1125 = vpop.f32.mrf.mxu0
    %v1126 = vadd.f32 %v931, %v1125
    %v1127 = vand.u32 %v178, 4294901760
    %1128 = vmatmul.f32.gmra.mxu0 %v1127
    %v1129 = vpop.f32.mrf.mxu0
    %v1130 = vadd.f32 %v937, %v1129
    %v1131 = vand.u32 %v181, 4294901760
    %1132 = vmatmul.f32.gmra.mxu0 %v1131
    %v1133 = vpop.f32.mrf.mxu0
    %v1134 = vadd.f32 %v943, %v1133
    %v1135 = vand.u32 %v184, 4294901760
    %1136 = vmatmul.f32.gmra.mxu0 %v1135
    %v1137 = vpop.f32.mrf.mxu0
    %v1138 = vadd.f32 %v949, %v1137
    %v1139 = vand.u32 %v187, 4294901760
    %1140 = vmatmul.f32.gmra.mxu0 %v1139
    %v1141 = vpop.f32.mrf.mxu0
    %v1142 = vadd.f32 %v955, %v1141
    %v1143 = vand.u32 %v190, 4294901760
    %1144 = vmatmul.f32.gmra.mxu0 %v1143
    %v1145 = vpop.f32.mrf.mxu0
    %v1146 = vadd.f32 %v961, %v1145
    %v1147 = vand.u32 %v193, 4294901760
    %1148 = vmatmul.f32.gmra.mxu0 %v1147
    %v1149 = vpop.f32.mrf.mxu0
    %v1150 = vadd.f32 %v967, %v1149
    %v1151 = vand.u32 %v196, 4294901760
    %1152 = vmatmul.f32.gmra.mxu0 %v1151
    %v1153 = vpop.f32.mrf.mxu0
    %v1154 = vadd.f32 %v973, %v1153
    %v1155 = vand.u32 %v199, 4294901760
    %1156 = vmatmul.f32.gmra.mxu0 %v1155
    %v1157 = vpop.f32.mrf.mxu0
    %v1158 = vadd.f32 %v979, %v1157
    %v1159 = vand.u32 %v202, 4294901760
    %1160 = vmatmul.f32.gmra.mxu0 %v1159
    %v1161 = vpop.f32.mrf.mxu0
    %v1162 = vadd.f32 %v985, %v1161
    %v1163 = vand.u32 %v205, 4294901760
    %1164 = vmatmul.f32.gmra.mxu0 %v1163
    %v1165 = vpop.f32.mrf.mxu0
    %v1166 = vadd.f32 %v991, %v1165
    %v1167 = vand.u32 %v208, 4294901760
    %1168 = vmatmul.f32.gmra.mxu0 %v1167
    %v1169 = vpop.f32.mrf.mxu0
    %v1170 = vadd.f32 %v997, %v1169
    %v1171 = vand.u32 %v211, 4294901760
    %1172 = vmatmul.f32.gmra.mxu0 %v1171
    %v1173 = vpop.f32.mrf.mxu0
    %v1174 = vadd.f32 %v1003, %v1173
    %v1175 = vand.u32 %v214, 4294901760
    %1176 = vmatmul.f32.gmra.mxu0 %v1175
    %v1177 = vpop.f32.mrf.mxu0
    %v1178 = vadd.f32 %v1009, %v1177
    %v1179 = vand.u32 %v217, 4294901760
    %1180 = vmatmul.f32.gmra.mxu0 %v1179
    %v1181 = vpop.f32.mrf.mxu0
    %v1182 = vadd.f32 %v1015, %v1181
    %v1183 = vand.u32 %v220, 4294901760
    %1184 = vmatmul.f32.gmra.mxu0 %v1183
    %v1185 = vpop.f32.mrf.mxu0
    %v1186 = vadd.f32 %v1021, %v1185
    %v1187 = vand.u32 %v223, 4294901760
    %1188 = vmatmul.f32.gmra.mxu0 %v1187
    %v1189 = vpop.f32.mrf.mxu0
    %v1190 = vadd.f32 %v1027, %v1189
    %v1191 = vand.u32 %v226, 4294901760
    %1192 = vmatmul.f32.gmra.mxu0 %v1191
    %v1193 = vpop.f32.mrf.mxu0
    %v1194 = vadd.f32 %v1033, %v1193
    %v1195 = vand.u32 %v229, 4294901760
    %1196 = vmatmul.f32.gmra.mxu0 %v1195
    %v1197 = vpop.f32.mrf.mxu0
    %v1198 = vadd.f32 %v1039, %v1197
    %v1199 = vand.u32 %v232, 4294901760
    %1200 = vmatmul.f32.gmra.mxu0 %v1199
    %v1201 = vpop.f32.mrf.mxu0
    %v1202 = vadd.f32 %v1045, %v1201
    %v1203 = vand.u32 %v235, 4294901760
    %1204 = vmatmul.f32.gmra.mxu0 %v1203
    %v1205 = vpop.f32.mrf.mxu0
    %v1206 = vadd.f32 %v1051, %v1205
    %v1207 = vand.u32 %v238, 4294901760
    %1208 = vmatmul.f32.gmra.mxu0 %v1207
    %v1209 = vpop.f32.mrf.mxu0
    %v1210 = vadd.f32 %v1057, %v1209
    %v1211 = vand.u32 %v241, 4294901760
    %1212 = vmatmul.f32.gmra.mxu0 %v1211
    %v1213 = vpop.f32.mrf.mxu0
    %v1214 = vadd.f32 %v1063, %v1213
    %1215 = vdwg.mxu0
    %1216 = vmatpush.msra.mxu0 0.0
    %1217 = vmatpush.msra.mxu0 0.0
    %1218 = vmatpush.msra.mxu0 0.0
    %1219 = vmatpush.msra.mxu0 0.0
    %1220 = vmatpush.msra.mxu0 0.0
    %1221 = vmatpush.msra.mxu0 0.0
    %1222 = vmatpush.msra.mxu0 0.0
    %1223 = vmatpush.msra.mxu0 0.0
    %1224 = vmatpush.msra.mxu0 0.0
    %1225 = vmatpush.msra.mxu0 0.0
    %1226 = vmatpush.msra.mxu0 0.0
    %1227 = vmatpush.msra.mxu0 0.0
    %1228 = vmatpush.msra.mxu0 0.0
    %1229 = vmatpush.msra.mxu0 0.0
    %v1230 = vand.u32 %v100, 4294901760
    %1231 = vmatpush.msra.mxu0 %v1230
    %v1232 = vand.u32 %v98, 4294901760
    %1233 = vmatpush.msra.mxu0 %v1232
    %v1234 = vand.u32 %v148, 4294901760
    %1235 = vmatmul.f32.gmra.mxu0 %v1234
    %v1236 = vpop.f32.mrf.mxu0
    %v1237 = vadd.f32 %v1090, %v1236
    %v1238 = vand.u32 %v151, 4294901760
    %1239 = vmatmul.f32.gmra.mxu0 %v1238
    %v1240 = vpop.f32.mrf.mxu0
    %v1241 = vadd.f32 %v1094, %v1240
    %v1242 = vand.u32 %v154, 4294901760
    %1243 = vmatmul.f32.gmra.mxu0 %v1242
    %v1244 = vpop.f32.mrf.mxu0
    %v1245 = vadd.f32 %v1098, %v1244
    %v1246 = vand.u32 %v157, 4294901760
    %1247 = vmatmul.f32.gmra.mxu0 %v1246
    %v1248 = vpop.f32.mrf.mxu0
    %v1249 = vadd.f32 %v1102, %v1248
    %v1250 = vand.u32 %v160, 4294901760
    %1251 = vmatmul.f32.gmra.mxu0 %v1250
    %v1252 = vpop.f32.mrf.mxu0
    %v1253 = vadd.f32 %v1106, %v1252
    %v1254 = vand.u32 %v163, 4294901760
    %1255 = vmatmul.f32.gmra.mxu0 %v1254
    %v1256 = vpop.f32.mrf.mxu0
    %v1257 = vadd.f32 %v1110, %v1256
    %v1258 = vand.u32 %v166, 4294901760
    %1259 = vmatmul.f32.gmra.mxu0 %v1258
    %v1260 = vpop.f32.mrf.mxu0
    %v1261 = vadd.f32 %v1114, %v1260
    %v1262 = vand.u32 %v169, 4294901760
    %1263 = vmatmul.f32.gmra.mxu0 %v1262
    %v1264 = vpop.f32.mrf.mxu0
    %v1265 = vadd.f32 %v1118, %v1264
    %v1266 = vand.u32 %v172, 4294901760
    %1267 = vmatmul.f32.gmra.mxu0 %v1266
    %v1268 = vpop.f32.mrf.mxu0
    %v1269 = vadd.f32 %v1122, %v1268
    %v1270 = vand.u32 %v175, 4294901760
    %1271 = vmatmul.f32.gmra.mxu0 %v1270
    %v1272 = vpop.f32.mrf.mxu0
    %v1273 = vadd.f32 %v1126, %v1272
    %v1274 = vand.u32 %v178, 4294901760
    %1275 = vmatmul.f32.gmra.mxu0 %v1274
    %v1276 = vpop.f32.mrf.mxu0
    %v1277 = vadd.f32 %v1130, %v1276
    %v1278 = vand.u32 %v181, 4294901760
    %1279 = vmatmul.f32.gmra.mxu0 %v1278
    %v1280 = vpop.f32.mrf.mxu0
    %v1281 = vadd.f32 %v1134, %v1280
    %v1282 = vand.u32 %v184, 4294901760
    %1283 = vmatmul.f32.gmra.mxu0 %v1282
    %v1284 = vpop.f32.mrf.mxu0
    %v1285 = vadd.f32 %v1138, %v1284
    %v1286 = vand.u32 %v187, 4294901760
    %1287 = vmatmul.f32.gmra.mxu0 %v1286
    %v1288 = vpop.f32.mrf.mxu0
    %v1289 = vadd.f32 %v1142, %v1288
    %v1290 = vand.u32 %v190, 4294901760
    %1291 = vmatmul.f32.gmra.mxu0 %v1290
    %v1292 = vpop.f32.mrf.mxu0
    %v1293 = vadd.f32 %v1146, %v1292
    %v1294 = vand.u32 %v193, 4294901760
    %1295 = vmatmul.f32.gmra.mxu0 %v1294
    %v1296 = vpop.f32.mrf.mxu0
    %v1297 = vadd.f32 %v1150, %v1296
    %v1298 = vand.u32 %v196, 4294901760
    %1299 = vmatmul.f32.gmra.mxu0 %v1298
    %v1300 = vpop.f32.mrf.mxu0
    %v1301 = vadd.f32 %v1154, %v1300
    %v1302 = vand.u32 %v199, 4294901760
    %1303 = vmatmul.f32.gmra.mxu0 %v1302
    %v1304 = vpop.f32.mrf.mxu0
    %v1305 = vadd.f32 %v1158, %v1304
    %v1306 = vand.u32 %v202, 4294901760
    %1307 = vmatmul.f32.gmra.mxu0 %v1306
    %v1308 = vpop.f32.mrf.mxu0
    %v1309 = vadd.f32 %v1162, %v1308
    %v1310 = vand.u32 %v205, 4294901760
    %1311 = vmatmul.f32.gmra.mxu0 %v1310
    %v1312 = vpop.f32.mrf.mxu0
    %v1313 = vadd.f32 %v1166, %v1312
    %v1314 = vand.u32 %v208, 4294901760
    %1315 = vmatmul.f32.gmra.mxu0 %v1314
    %v1316 = vpop.f32.mrf.mxu0
    %v1317 = vadd.f32 %v1170, %v1316
    %v1318 = vand.u32 %v211, 4294901760
    %1319 = vmatmul.f32.gmra.mxu0 %v1318
    %v1320 = vpop.f32.mrf.mxu0
    %v1321 = vadd.f32 %v1174, %v1320
    %v1322 = vand.u32 %v214, 4294901760
    %1323 = vmatmul.f32.gmra.mxu0 %v1322
    %v1324 = vpop.f32.mrf.mxu0
    %v1325 = vadd.f32 %v1178, %v1324
    %v1326 = vand.u32 %v217, 4294901760
    %1327 = vmatmul.f32.gmra.mxu0 %v1326
    %v1328 = vpop.f32.mrf.mxu0
    %v1329 = vadd.f32 %v1182, %v1328
    %v1330 = vand.u32 %v220, 4294901760
    %1331 = vmatmul.f32.gmra.mxu0 %v1330
    %v1332 = vpop.f32.mrf.mxu0
    %v1333 = vadd.f32 %v1186, %v1332
    %v1334 = vand.u32 %v223, 4294901760
    %1335 = vmatmul.f32.gmra.mxu0 %v1334
    %v1336 = vpop.f32.mrf.mxu0
    %v1337 = vadd.f32 %v1190, %v1336
    %v1338 = vand.u32 %v226, 4294901760
    %1339 = vmatmul.f32.gmra.mxu0 %v1338
    %v1340 = vpop.f32.mrf.mxu0
    %v1341 = vadd.f32 %v1194, %v1340
    %v1342 = vand.u32 %v229, 4294901760
    %1343 = vmatmul.f32.gmra.mxu0 %v1342
    %v1344 = vpop.f32.mrf.mxu0
    %v1345 = vadd.f32 %v1198, %v1344
    %v1346 = vand.u32 %v232, 4294901760
    %1347 = vmatmul.f32.gmra.mxu0 %v1346
    %v1348 = vpop.f32.mrf.mxu0
    %v1349 = vadd.f32 %v1202, %v1348
    %v1350 = vand.u32 %v235, 4294901760
    %1351 = vmatmul.f32.gmra.mxu0 %v1350
    %v1352 = vpop.f32.mrf.mxu0
    %v1353 = vadd.f32 %v1206, %v1352
    %v1354 = vand.u32 %v238, 4294901760
    %1355 = vmatmul.f32.gmra.mxu0 %v1354
    %v1356 = vpop.f32.mrf.mxu0
    %v1357 = vadd.f32 %v1210, %v1356
    %v1358 = vand.u32 %v241, 4294901760
    %1359 = vmatmul.f32.gmra.mxu0 %v1358
    %v1360 = vpop.f32.mrf.mxu0
    %v1361 = vadd.f32 %v1214, %v1360
    %1362 = vdwg.mxu0
    %1363 = vmatpush.msra.mxu0 0.0
    %1364 = vmatpush.msra.mxu0 0.0
    %1365 = vmatpush.msra.mxu0 0.0
    %1366 = vmatpush.msra.mxu0 0.0
    %1367 = vmatpush.msra.mxu0 0.0
    %1368 = vmatpush.msra.mxu0 0.0
    %1369 = vmatpush.msra.mxu0 0.0
    %1370 = vmatpush.msra.mxu0 0.0
    %1371 = vmatpush.msra.mxu0 0.0
    %1372 = vmatpush.msra.mxu0 0.0
    %1373 = vmatpush.msra.mxu0 0.0
    %1374 = vmatpush.msra.mxu0 0.0
    %1375 = vmatpush.msra.mxu0 0.0
    %1376 = vmatpush.msra.mxu0 0.0
    %v1377 = vand.u32 %v101, 4294901760
    %1378 = vmatpush.msra.mxu0 %v1377
    %v1379 = vand.u32 %v99, 4294901760
    %1380 = vmatpush.msra.mxu0 %v1379
    %v1381 = vand.u32 %v148, 4294901760
    %v1382 = vsub.f32 %v148, %v1381
    %v1383 = vand.u32 %v1382, 4294901760
    %v1384 = vsub.f32 %v1382, %v1383
    %v1385 = vand.u32 %v1384, 4294901760
    %1386 = vmatmul.f32.gmra.mxu0 %v1385
    %v1387 = vpop.f32.mrf.mxu0
    %v1388 = vadd.f32 0.0, %v1387
    %v1389 = vand.u32 %v151, 4294901760
    %v1390 = vsub.f32 %v151, %v1389
    %v1391 = vand.u32 %v1390, 4294901760
    %v1392 = vsub.f32 %v1390, %v1391
    %v1393 = vand.u32 %v1392, 4294901760
    %1394 = vmatmul.f32.gmra.mxu0 %v1393
    %v1395 = vpop.f32.mrf.mxu0
    %v1396 = vadd.f32 0.0, %v1395
    %v1397 = vand.u32 %v154, 4294901760
    %v1398 = vsub.f32 %v154, %v1397
    %v1399 = vand.u32 %v1398, 4294901760
    %v1400 = vsub.f32 %v1398, %v1399
    %v1401 = vand.u32 %v1400, 4294901760
    %1402 = vmatmul.f32.gmra.mxu0 %v1401
    %v1403 = vpop.f32.mrf.mxu0
    %v1404 = vadd.f32 0.0, %v1403
    %v1405 = vand.u32 %v157, 4294901760
    %v1406 = vsub.f32 %v157, %v1405
    %v1407 = vand.u32 %v1406, 4294901760
    %v1408 = vsub.f32 %v1406, %v1407
    %v1409 = vand.u32 %v1408, 4294901760
    %1410 = vmatmul.f32.gmra.mxu0 %v1409
    %v1411 = vpop.f32.mrf.mxu0
    %v1412 = vadd.f32 0.0, %v1411
    %v1413 = vand.u32 %v160, 4294901760
    %v1414 = vsub.f32 %v160, %v1413
    %v1415 = vand.u32 %v1414, 4294901760
    %v1416 = vsub.f32 %v1414, %v1415
    %v1417 = vand.u32 %v1416, 4294901760
    %1418 = vmatmul.f32.gmra.mxu0 %v1417
    %v1419 = vpop.f32.mrf.mxu0
    %v1420 = vadd.f32 0.0, %v1419
    %v1421 = vand.u32 %v163, 4294901760
    %v1422 = vsub.f32 %v163, %v1421
    %v1423 = vand.u32 %v1422, 4294901760
    %v1424 = vsub.f32 %v1422, %v1423
    %v1425 = vand.u32 %v1424, 4294901760
    %1426 = vmatmul.f32.gmra.mxu0 %v1425
    %v1427 = vpop.f32.mrf.mxu0
    %v1428 = vadd.f32 0.0, %v1427
    %v1429 = vand.u32 %v166, 4294901760
    %v1430 = vsub.f32 %v166, %v1429
    %v1431 = vand.u32 %v1430, 4294901760
    %v1432 = vsub.f32 %v1430, %v1431
    %v1433 = vand.u32 %v1432, 4294901760
    %1434 = vmatmul.f32.gmra.mxu0 %v1433
    %v1435 = vpop.f32.mrf.mxu0
    %v1436 = vadd.f32 0.0, %v1435
    %v1437 = vand.u32 %v169, 4294901760
    %v1438 = vsub.f32 %v169, %v1437
    %v1439 = vand.u32 %v1438, 4294901760
    %v1440 = vsub.f32 %v1438, %v1439
    %v1441 = vand.u32 %v1440, 4294901760
    %1442 = vmatmul.f32.gmra.mxu0 %v1441
    %v1443 = vpop.f32.mrf.mxu0
    %v1444 = vadd.f32 0.0, %v1443
    %v1445 = vand.u32 %v172, 4294901760
    %v1446 = vsub.f32 %v172, %v1445
    %v1447 = vand.u32 %v1446, 4294901760
    %v1448 = vsub.f32 %v1446, %v1447
    %v1449 = vand.u32 %v1448, 4294901760
    %1450 = vmatmul.f32.gmra.mxu0 %v1449
    %v1451 = vpop.f32.mrf.mxu0
    %v1452 = vadd.f32 0.0, %v1451
    %v1453 = vand.u32 %v175, 4294901760
    %v1454 = vsub.f32 %v175, %v1453
    %v1455 = vand.u32 %v1454, 4294901760
    %v1456 = vsub.f32 %v1454, %v1455
    %v1457 = vand.u32 %v1456, 4294901760
    %1458 = vmatmul.f32.gmra.mxu0 %v1457
    %v1459 = vpop.f32.mrf.mxu0
    %v1460 = vadd.f32 0.0, %v1459
    %v1461 = vand.u32 %v178, 4294901760
    %v1462 = vsub.f32 %v178, %v1461
    %v1463 = vand.u32 %v1462, 4294901760
    %v1464 = vsub.f32 %v1462, %v1463
    %v1465 = vand.u32 %v1464, 4294901760
    %1466 = vmatmul.f32.gmra.mxu0 %v1465
    %v1467 = vpop.f32.mrf.mxu0
    %v1468 = vadd.f32 0.0, %v1467
    %v1469 = vand.u32 %v181, 4294901760
    %v1470 = vsub.f32 %v181, %v1469
    %v1471 = vand.u32 %v1470, 4294901760
    %v1472 = vsub.f32 %v1470, %v1471
    %v1473 = vand.u32 %v1472, 4294901760
    %1474 = vmatmul.f32.gmra.mxu0 %v1473
    %v1475 = vpop.f32.mrf.mxu0
    %v1476 = vadd.f32 0.0, %v1475
    %v1477 = vand.u32 %v184, 4294901760
    %v1478 = vsub.f32 %v184, %v1477
    %v1479 = vand.u32 %v1478, 4294901760
    %v1480 = vsub.f32 %v1478, %v1479
    %v1481 = vand.u32 %v1480, 4294901760
    %1482 = vmatmul.f32.gmra.mxu0 %v1481
    %v1483 = vpop.f32.mrf.mxu0
    %v1484 = vadd.f32 0.0, %v1483
    %v1485 = vand.u32 %v187, 4294901760
    %v1486 = vsub.f32 %v187, %v1485
    %v1487 = vand.u32 %v1486, 4294901760
    %v1488 = vsub.f32 %v1486, %v1487
    %v1489 = vand.u32 %v1488, 4294901760
    %1490 = vmatmul.f32.gmra.mxu0 %v1489
    %v1491 = vpop.f32.mrf.mxu0
    %v1492 = vadd.f32 0.0, %v1491
    %v1493 = vand.u32 %v190, 4294901760
    %v1494 = vsub.f32 %v190, %v1493
    %v1495 = vand.u32 %v1494, 4294901760
    %v1496 = vsub.f32 %v1494, %v1495
    %v1497 = vand.u32 %v1496, 4294901760
    %1498 = vmatmul.f32.gmra.mxu0 %v1497
    %v1499 = vpop.f32.mrf.mxu0
    %v1500 = vadd.f32 0.0, %v1499
    %v1501 = vand.u32 %v193, 4294901760
    %v1502 = vsub.f32 %v193, %v1501
    %v1503 = vand.u32 %v1502, 4294901760
    %v1504 = vsub.f32 %v1502, %v1503
    %v1505 = vand.u32 %v1504, 4294901760
    %1506 = vmatmul.f32.gmra.mxu0 %v1505
    %v1507 = vpop.f32.mrf.mxu0
    %v1508 = vadd.f32 0.0, %v1507
    %v1509 = vand.u32 %v196, 4294901760
    %v1510 = vsub.f32 %v196, %v1509
    %v1511 = vand.u32 %v1510, 4294901760
    %v1512 = vsub.f32 %v1510, %v1511
    %v1513 = vand.u32 %v1512, 4294901760
    %1514 = vmatmul.f32.gmra.mxu0 %v1513
    %v1515 = vpop.f32.mrf.mxu0
    %v1516 = vadd.f32 0.0, %v1515
    %v1517 = vand.u32 %v199, 4294901760
    %v1518 = vsub.f32 %v199, %v1517
    %v1519 = vand.u32 %v1518, 4294901760
    %v1520 = vsub.f32 %v1518, %v1519
    %v1521 = vand.u32 %v1520, 4294901760
    %1522 = vmatmul.f32.gmra.mxu0 %v1521
    %v1523 = vpop.f32.mrf.mxu0
    %v1524 = vadd.f32 0.0, %v1523
    %v1525 = vand.u32 %v202, 4294901760
    %v1526 = vsub.f32 %v202, %v1525
    %v1527 = vand.u32 %v1526, 4294901760
    %v1528 = vsub.f32 %v1526, %v1527
    %v1529 = vand.u32 %v1528, 4294901760
    %1530 = vmatmul.f32.gmra.mxu0 %v1529
    %v1531 = vpop.f32.mrf.mxu0
    %v1532 = vadd.f32 0.0, %v1531
    %v1533 = vand.u32 %v205, 4294901760
    %v1534 = vsub.f32 %v205, %v1533
    %v1535 = vand.u32 %v1534, 4294901760
    %v1536 = vsub.f32 %v1534, %v1535
    %v1537 = vand.u32 %v1536, 4294901760
    %1538 = vmatmul.f32.gmra.mxu0 %v1537
    %v1539 = vpop.f32.mrf.mxu0
    %v1540 = vadd.f32 0.0, %v1539
    %v1541 = vand.u32 %v208, 4294901760
    %v1542 = vsub.f32 %v208, %v1541
    %v1543 = vand.u32 %v1542, 4294901760
    %v1544 = vsub.f32 %v1542, %v1543
    %v1545 = vand.u32 %v1544, 4294901760
    %1546 = vmatmul.f32.gmra.mxu0 %v1545
    %v1547 = vpop.f32.mrf.mxu0
    %v1548 = vadd.f32 0.0, %v1547
    %v1549 = vand.u32 %v211, 4294901760
    %v1550 = vsub.f32 %v211, %v1549
    %v1551 = vand.u32 %v1550, 4294901760
    %v1552 = vsub.f32 %v1550, %v1551
    %v1553 = vand.u32 %v1552, 4294901760
    %1554 = vmatmul.f32.gmra.mxu0 %v1553
    %v1555 = vpop.f32.mrf.mxu0
    %v1556 = vadd.f32 0.0, %v1555
    %v1557 = vand.u32 %v214, 4294901760
    %v1558 = vsub.f32 %v214, %v1557
    %v1559 = vand.u32 %v1558, 4294901760
    %v1560 = vsub.f32 %v1558, %v1559
    %v1561 = vand.u32 %v1560, 4294901760
    %1562 = vmatmul.f32.gmra.mxu0 %v1561
    %v1563 = vpop.f32.mrf.mxu0
    %v1564 = vadd.f32 0.0, %v1563
    %v1565 = vand.u32 %v217, 4294901760
    %v1566 = vsub.f32 %v217, %v1565
    %v1567 = vand.u32 %v1566, 4294901760
    %v1568 = vsub.f32 %v1566, %v1567
    %v1569 = vand.u32 %v1568, 4294901760
    %1570 = vmatmul.f32.gmra.mxu0 %v1569
    %v1571 = vpop.f32.mrf.mxu0
    %v1572 = vadd.f32 0.0, %v1571
    %v1573 = vand.u32 %v220, 4294901760
    %v1574 = vsub.f32 %v220, %v1573
    %v1575 = vand.u32 %v1574, 4294901760
    %v1576 = vsub.f32 %v1574, %v1575
    %v1577 = vand.u32 %v1576, 4294901760
    %1578 = vmatmul.f32.gmra.mxu0 %v1577
    %v1579 = vpop.f32.mrf.mxu0
    %v1580 = vadd.f32 0.0, %v1579
    %v1581 = vand.u32 %v223, 4294901760
    %v1582 = vsub.f32 %v223, %v1581
    %v1583 = vand.u32 %v1582, 4294901760
    %v1584 = vsub.f32 %v1582, %v1583
    %v1585 = vand.u32 %v1584, 4294901760
    %1586 = vmatmul.f32.gmra.mxu0 %v1585
    %v1587 = vpop.f32.mrf.mxu0
    %v1588 = vadd.f32 0.0, %v1587
    %v1589 = vand.u32 %v226, 4294901760
    %v1590 = vsub.f32 %v226, %v1589
    %v1591 = vand.u32 %v1590, 4294901760
    %v1592 = vsub.f32 %v1590, %v1591
    %v1593 = vand.u32 %v1592, 4294901760
    %1594 = vmatmul.f32.gmra.mxu0 %v1593
    %v1595 = vpop.f32.mrf.mxu0
    %v1596 = vadd.f32 0.0, %v1595
    %v1597 = vand.u32 %v229, 4294901760
    %v1598 = vsub.f32 %v229, %v1597
    %v1599 = vand.u32 %v1598, 4294901760
    %v1600 = vsub.f32 %v1598, %v1599
    %v1601 = vand.u32 %v1600, 4294901760
    %1602 = vmatmul.f32.gmra.mxu0 %v1601
    %v1603 = vpop.f32.mrf.mxu0
    %v1604 = vadd.f32 0.0, %v1603
    %v1605 = vand.u32 %v232, 4294901760
    %v1606 = vsub.f32 %v232, %v1605
    %v1607 = vand.u32 %v1606, 4294901760
    %v1608 = vsub.f32 %v1606, %v1607
    %v1609 = vand.u32 %v1608, 4294901760
    %1610 = vmatmul.f32.gmra.mxu0 %v1609
    %v1611 = vpop.f32.mrf.mxu0
    %v1612 = vadd.f32 0.0, %v1611
    %v1613 = vand.u32 %v235, 4294901760
    %v1614 = vsub.f32 %v235, %v1613
    %v1615 = vand.u32 %v1614, 4294901760
    %v1616 = vsub.f32 %v1614, %v1615
    %v1617 = vand.u32 %v1616, 4294901760
    %1618 = vmatmul.f32.gmra.mxu0 %v1617
    %v1619 = vpop.f32.mrf.mxu0
    %v1620 = vadd.f32 0.0, %v1619
    %v1621 = vand.u32 %v238, 4294901760
    %v1622 = vsub.f32 %v238, %v1621
    %v1623 = vand.u32 %v1622, 4294901760
    %v1624 = vsub.f32 %v1622, %v1623
    %v1625 = vand.u32 %v1624, 4294901760
    %1626 = vmatmul.f32.gmra.mxu0 %v1625
    %v1627 = vpop.f32.mrf.mxu0
    %v1628 = vadd.f32 0.0, %v1627
    %v1629 = vand.u32 %v241, 4294901760
    %v1630 = vsub.f32 %v241, %v1629
    %v1631 = vand.u32 %v1630, 4294901760
    %v1632 = vsub.f32 %v1630, %v1631
    %v1633 = vand.u32 %v1632, 4294901760
    %1634 = vmatmul.f32.gmra.mxu0 %v1633
    %v1635 = vpop.f32.mrf.mxu0
    %v1636 = vadd.f32 0.0, %v1635
    %1637 = vdwg.mxu0
    %1638 = vmatpush.msra.mxu0 0.0
    %1639 = vmatpush.msra.mxu0 0.0
    %1640 = vmatpush.msra.mxu0 0.0
    %1641 = vmatpush.msra.mxu0 0.0
    %1642 = vmatpush.msra.mxu0 0.0
    %1643 = vmatpush.msra.mxu0 0.0
    %1644 = vmatpush.msra.mxu0 0.0
    %1645 = vmatpush.msra.mxu0 0.0
    %1646 = vmatpush.msra.mxu0 0.0
    %1647 = vmatpush.msra.mxu0 0.0
    %1648 = vmatpush.msra.mxu0 0.0
    %1649 = vmatpush.msra.mxu0 0.0
    %1650 = vmatpush.msra.mxu0 0.0
    %1651 = vmatpush.msra.mxu0 0.0
    %v1652 = vand.u32 %v101, 4294901760
    %v1653 = vsub.f32 %v101, %v1652
    %v1654 = vand.u32 %v1653, 4294901760
    %v1655 = vsub.f32 %v1653, %v1654
    %v1656 = vand.u32 %v1655, 4294901760
    %1657 = vmatpush.msra.mxu0 %v1656
    %v1658 = vand.u32 %v99, 4294901760
    %v1659 = vsub.f32 %v99, %v1658
    %v1660 = vand.u32 %v1659, 4294901760
    %v1661 = vsub.f32 %v1659, %v1660
    %v1662 = vand.u32 %v1661, 4294901760
    %1663 = vmatpush.msra.mxu0 %v1662
    %v1664 = vand.u32 %v148, 4294901760
    %1665 = vmatmul.f32.gmra.mxu0 %v1664
    %v1666 = vpop.f32.mrf.mxu0
    %v1667 = vadd.f32 %v1388, %v1666
    %v1668 = vand.u32 %v151, 4294901760
    %1669 = vmatmul.f32.gmra.mxu0 %v1668
    %v1670 = vpop.f32.mrf.mxu0
    %v1671 = vadd.f32 %v1396, %v1670
    %v1672 = vand.u32 %v154, 4294901760
    %1673 = vmatmul.f32.gmra.mxu0 %v1672
    %v1674 = vpop.f32.mrf.mxu0
    %v1675 = vadd.f32 %v1404, %v1674
    %v1676 = vand.u32 %v157, 4294901760
    %1677 = vmatmul.f32.gmra.mxu0 %v1676
    %v1678 = vpop.f32.mrf.mxu0
    %v1679 = vadd.f32 %v1412, %v1678
    %v1680 = vand.u32 %v160, 4294901760
    %1681 = vmatmul.f32.gmra.mxu0 %v1680
    %v1682 = vpop.f32.mrf.mxu0
    %v1683 = vadd.f32 %v1420, %v1682
    %v1684 = vand.u32 %v163, 4294901760
    %1685 = vmatmul.f32.gmra.mxu0 %v1684
    %v1686 = vpop.f32.mrf.mxu0
    %v1687 = vadd.f32 %v1428, %v1686
    %v1688 = vand.u32 %v166, 4294901760
    %1689 = vmatmul.f32.gmra.mxu0 %v1688
    %v1690 = vpop.f32.mrf.mxu0
    %v1691 = vadd.f32 %v1436, %v1690
    %v1692 = vand.u32 %v169, 4294901760
    %1693 = vmatmul.f32.gmra.mxu0 %v1692
    %v1694 = vpop.f32.mrf.mxu0
    %v1695 = vadd.f32 %v1444, %v1694
    %v1696 = vand.u32 %v172, 4294901760
    %1697 = vmatmul.f32.gmra.mxu0 %v1696
    %v1698 = vpop.f32.mrf.mxu0
    %v1699 = vadd.f32 %v1452, %v1698
    %v1700 = vand.u32 %v175, 4294901760
    %1701 = vmatmul.f32.gmra.mxu0 %v1700
    %v1702 = vpop.f32.mrf.mxu0
    %v1703 = vadd.f32 %v1460, %v1702
    %v1704 = vand.u32 %v178, 4294901760
    %1705 = vmatmul.f32.gmra.mxu0 %v1704
    %v1706 = vpop.f32.mrf.mxu0
    %v1707 = vadd.f32 %v1468, %v1706
    %v1708 = vand.u32 %v181, 4294901760
    %1709 = vmatmul.f32.gmra.mxu0 %v1708
    %v1710 = vpop.f32.mrf.mxu0
    %v1711 = vadd.f32 %v1476, %v1710
    %v1712 = vand.u32 %v184, 4294901760
    %1713 = vmatmul.f32.gmra.mxu0 %v1712
    %v1714 = vpop.f32.mrf.mxu0
    %v1715 = vadd.f32 %v1484, %v1714
    %v1716 = vand.u32 %v187, 4294901760
    %1717 = vmatmul.f32.gmra.mxu0 %v1716
    %v1718 = vpop.f32.mrf.mxu0
    %v1719 = vadd.f32 %v1492, %v1718
    %v1720 = vand.u32 %v190, 4294901760
    %1721 = vmatmul.f32.gmra.mxu0 %v1720
    %v1722 = vpop.f32.mrf.mxu0
    %v1723 = vadd.f32 %v1500, %v1722
    %v1724 = vand.u32 %v193, 4294901760
    %1725 = vmatmul.f32.gmra.mxu0 %v1724
    %v1726 = vpop.f32.mrf.mxu0
    %v1727 = vadd.f32 %v1508, %v1726
    %v1728 = vand.u32 %v196, 4294901760
    %1729 = vmatmul.f32.gmra.mxu0 %v1728
    %v1730 = vpop.f32.mrf.mxu0
    %v1731 = vadd.f32 %v1516, %v1730
    %v1732 = vand.u32 %v199, 4294901760
    %1733 = vmatmul.f32.gmra.mxu0 %v1732
    %v1734 = vpop.f32.mrf.mxu0
    %v1735 = vadd.f32 %v1524, %v1734
    %v1736 = vand.u32 %v202, 4294901760
    %1737 = vmatmul.f32.gmra.mxu0 %v1736
    %v1738 = vpop.f32.mrf.mxu0
    %v1739 = vadd.f32 %v1532, %v1738
    %v1740 = vand.u32 %v205, 4294901760
    %1741 = vmatmul.f32.gmra.mxu0 %v1740
    %v1742 = vpop.f32.mrf.mxu0
    %v1743 = vadd.f32 %v1540, %v1742
    %v1744 = vand.u32 %v208, 4294901760
    %1745 = vmatmul.f32.gmra.mxu0 %v1744
    %v1746 = vpop.f32.mrf.mxu0
    %v1747 = vadd.f32 %v1548, %v1746
    %v1748 = vand.u32 %v211, 4294901760
    %1749 = vmatmul.f32.gmra.mxu0 %v1748
    %v1750 = vpop.f32.mrf.mxu0
    %v1751 = vadd.f32 %v1556, %v1750
    %v1752 = vand.u32 %v214, 4294901760
    %1753 = vmatmul.f32.gmra.mxu0 %v1752
    %v1754 = vpop.f32.mrf.mxu0
    %v1755 = vadd.f32 %v1564, %v1754
    %v1756 = vand.u32 %v217, 4294901760
    %1757 = vmatmul.f32.gmra.mxu0 %v1756
    %v1758 = vpop.f32.mrf.mxu0
    %v1759 = vadd.f32 %v1572, %v1758
    %v1760 = vand.u32 %v220, 4294901760
    %1761 = vmatmul.f32.gmra.mxu0 %v1760
    %v1762 = vpop.f32.mrf.mxu0
    %v1763 = vadd.f32 %v1580, %v1762
    %v1764 = vand.u32 %v223, 4294901760
    %1765 = vmatmul.f32.gmra.mxu0 %v1764
    %v1766 = vpop.f32.mrf.mxu0
    %v1767 = vadd.f32 %v1588, %v1766
    %v1768 = vand.u32 %v226, 4294901760
    %1769 = vmatmul.f32.gmra.mxu0 %v1768
    %v1770 = vpop.f32.mrf.mxu0
    %v1771 = vadd.f32 %v1596, %v1770
    %v1772 = vand.u32 %v229, 4294901760
    %1773 = vmatmul.f32.gmra.mxu0 %v1772
    %v1774 = vpop.f32.mrf.mxu0
    %v1775 = vadd.f32 %v1604, %v1774
    %v1776 = vand.u32 %v232, 4294901760
    %1777 = vmatmul.f32.gmra.mxu0 %v1776
    %v1778 = vpop.f32.mrf.mxu0
    %v1779 = vadd.f32 %v1612, %v1778
    %v1780 = vand.u32 %v235, 4294901760
    %1781 = vmatmul.f32.gmra.mxu0 %v1780
    %v1782 = vpop.f32.mrf.mxu0
    %v1783 = vadd.f32 %v1620, %v1782
    %v1784 = vand.u32 %v238, 4294901760
    %1785 = vmatmul.f32.gmra.mxu0 %v1784
    %v1786 = vpop.f32.mrf.mxu0
    %v1787 = vadd.f32 %v1628, %v1786
    %v1788 = vand.u32 %v241, 4294901760
    %1789 = vmatmul.f32.gmra.mxu0 %v1788
    %v1790 = vpop.f32.mrf.mxu0
    %v1791 = vadd.f32 %v1636, %v1790
    %1792 = vdwg.mxu0
    %1793 = vmatpush.msra.mxu0 0.0
    %1794 = vmatpush.msra.mxu0 0.0
    %1795 = vmatpush.msra.mxu0 0.0
    %1796 = vmatpush.msra.mxu0 0.0
    %1797 = vmatpush.msra.mxu0 0.0
    %1798 = vmatpush.msra.mxu0 0.0
    %1799 = vmatpush.msra.mxu0 0.0
    %1800 = vmatpush.msra.mxu0 0.0
    %1801 = vmatpush.msra.mxu0 0.0
    %1802 = vmatpush.msra.mxu0 0.0
    %1803 = vmatpush.msra.mxu0 0.0
    %1804 = vmatpush.msra.mxu0 0.0
    %1805 = vmatpush.msra.mxu0 0.0
    %1806 = vmatpush.msra.mxu0 0.0
    %v1807 = vand.u32 %v101, 4294901760
    %v1808 = vsub.f32 %v101, %v1807
    %1809 = vmatpush.msra.mxu0 %v1808
    %v1810 = vand.u32 %v99, 4294901760
    %v1811 = vsub.f32 %v99, %v1810
    %1812 = vmatpush.msra.mxu0 %v1811
    %v1813 = vand.u32 %v148, 4294901760
    %v1814 = vsub.f32 %v148, %v1813
    %1815 = vmatmul.f32.gmra.mxu0 %v1814
    %v1816 = vpop.f32.mrf.mxu0
    %v1817 = vadd.f32 %v1667, %v1816
    %v1818 = vand.u32 %v151, 4294901760
    %v1819 = vsub.f32 %v151, %v1818
    %1820 = vmatmul.f32.gmra.mxu0 %v1819
    %v1821 = vpop.f32.mrf.mxu0
    %v1822 = vadd.f32 %v1671, %v1821
    %v1823 = vand.u32 %v154, 4294901760
    %v1824 = vsub.f32 %v154, %v1823
    %1825 = vmatmul.f32.gmra.mxu0 %v1824
    %v1826 = vpop.f32.mrf.mxu0
    %v1827 = vadd.f32 %v1675, %v1826
    %v1828 = vand.u32 %v157, 4294901760
    %v1829 = vsub.f32 %v157, %v1828
    %1830 = vmatmul.f32.gmra.mxu0 %v1829
    %v1831 = vpop.f32.mrf.mxu0
    %v1832 = vadd.f32 %v1679, %v1831
    %v1833 = vand.u32 %v160, 4294901760
    %v1834 = vsub.f32 %v160, %v1833
    %1835 = vmatmul.f32.gmra.mxu0 %v1834
    %v1836 = vpop.f32.mrf.mxu0
    %v1837 = vadd.f32 %v1683, %v1836
    %v1838 = vand.u32 %v163, 4294901760
    %v1839 = vsub.f32 %v163, %v1838
    %1840 = vmatmul.f32.gmra.mxu0 %v1839
    %v1841 = vpop.f32.mrf.mxu0
    %v1842 = vadd.f32 %v1687, %v1841
    %v1843 = vand.u32 %v166, 4294901760
    %v1844 = vsub.f32 %v166, %v1843
    %1845 = vmatmul.f32.gmra.mxu0 %v1844
    %v1846 = vpop.f32.mrf.mxu0
    %v1847 = vadd.f32 %v1691, %v1846
    %v1848 = vand.u32 %v169, 4294901760
    %v1849 = vsub.f32 %v169, %v1848
    %1850 = vmatmul.f32.gmra.mxu0 %v1849
    %v1851 = vpop.f32.mrf.mxu0
    %v1852 = vadd.f32 %v1695, %v1851
    %v1853 = vand.u32 %v172, 4294901760
    %v1854 = vsub.f32 %v172, %v1853
    %1855 = vmatmul.f32.gmra.mxu0 %v1854
    %v1856 = vpop.f32.mrf.mxu0
    %v1857 = vadd.f32 %v1699, %v1856
    %v1858 = vand.u32 %v175, 4294901760
    %v1859 = vsub.f32 %v175, %v1858
    %1860 = vmatmul.f32.gmra.mxu0 %v1859
    %v1861 = vpop.f32.mrf.mxu0
    %v1862 = vadd.f32 %v1703, %v1861
    %v1863 = vand.u32 %v178, 4294901760
    %v1864 = vsub.f32 %v178, %v1863
    %1865 = vmatmul.f32.gmra.mxu0 %v1864
    %v1866 = vpop.f32.mrf.mxu0
    %v1867 = vadd.f32 %v1707, %v1866
    %v1868 = vand.u32 %v181, 4294901760
    %v1869 = vsub.f32 %v181, %v1868
    %1870 = vmatmul.f32.gmra.mxu0 %v1869
    %v1871 = vpop.f32.mrf.mxu0
    %v1872 = vadd.f32 %v1711, %v1871
    %v1873 = vand.u32 %v184, 4294901760
    %v1874 = vsub.f32 %v184, %v1873
    %1875 = vmatmul.f32.gmra.mxu0 %v1874
    %v1876 = vpop.f32.mrf.mxu0
    %v1877 = vadd.f32 %v1715, %v1876
    %v1878 = vand.u32 %v187, 4294901760
    %v1879 = vsub.f32 %v187, %v1878
    %1880 = vmatmul.f32.gmra.mxu0 %v1879
    %v1881 = vpop.f32.mrf.mxu0
    %v1882 = vadd.f32 %v1719, %v1881
    %v1883 = vand.u32 %v190, 4294901760
    %v1884 = vsub.f32 %v190, %v1883
    %1885 = vmatmul.f32.gmra.mxu0 %v1884
    %v1886 = vpop.f32.mrf.mxu0
    %v1887 = vadd.f32 %v1723, %v1886
    %v1888 = vand.u32 %v193, 4294901760
    %v1889 = vsub.f32 %v193, %v1888
    %1890 = vmatmul.f32.gmra.mxu0 %v1889
    %v1891 = vpop.f32.mrf.mxu0
    %v1892 = vadd.f32 %v1727, %v1891
    %v1893 = vand.u32 %v196, 4294901760
    %v1894 = vsub.f32 %v196, %v1893
    %1895 = vmatmul.f32.gmra.mxu0 %v1894
    %v1896 = vpop.f32.mrf.mxu0
    %v1897 = vadd.f32 %v1731, %v1896
    %v1898 = vand.u32 %v199, 4294901760
    %v1899 = vsub.f32 %v199, %v1898
    %1900 = vmatmul.f32.gmra.mxu0 %v1899
    %v1901 = vpop.f32.mrf.mxu0
    %v1902 = vadd.f32 %v1735, %v1901
    %v1903 = vand.u32 %v202, 4294901760
    %v1904 = vsub.f32 %v202, %v1903
    %1905 = vmatmul.f32.gmra.mxu0 %v1904
    %v1906 = vpop.f32.mrf.mxu0
    %v1907 = vadd.f32 %v1739, %v1906
    %v1908 = vand.u32 %v205, 4294901760
    %v1909 = vsub.f32 %v205, %v1908
    %1910 = vmatmul.f32.gmra.mxu0 %v1909
    %v1911 = vpop.f32.mrf.mxu0
    %v1912 = vadd.f32 %v1743, %v1911
    %v1913 = vand.u32 %v208, 4294901760
    %v1914 = vsub.f32 %v208, %v1913
    %1915 = vmatmul.f32.gmra.mxu0 %v1914
    %v1916 = vpop.f32.mrf.mxu0
    %v1917 = vadd.f32 %v1747, %v1916
    %v1918 = vand.u32 %v211, 4294901760
    %v1919 = vsub.f32 %v211, %v1918
    %1920 = vmatmul.f32.gmra.mxu0 %v1919
    %v1921 = vpop.f32.mrf.mxu0
    %v1922 = vadd.f32 %v1751, %v1921
    %v1923 = vand.u32 %v214, 4294901760
    %v1924 = vsub.f32 %v214, %v1923
    %1925 = vmatmul.f32.gmra.mxu0 %v1924
    %v1926 = vpop.f32.mrf.mxu0
    %v1927 = vadd.f32 %v1755, %v1926
    %v1928 = vand.u32 %v217, 4294901760
    %v1929 = vsub.f32 %v217, %v1928
    %1930 = vmatmul.f32.gmra.mxu0 %v1929
    %v1931 = vpop.f32.mrf.mxu0
    %v1932 = vadd.f32 %v1759, %v1931
    %v1933 = vand.u32 %v220, 4294901760
    %v1934 = vsub.f32 %v220, %v1933
    %1935 = vmatmul.f32.gmra.mxu0 %v1934
    %v1936 = vpop.f32.mrf.mxu0
    %v1937 = vadd.f32 %v1763, %v1936
    %v1938 = vand.u32 %v223, 4294901760
    %v1939 = vsub.f32 %v223, %v1938
    %1940 = vmatmul.f32.gmra.mxu0 %v1939
    %v1941 = vpop.f32.mrf.mxu0
    %v1942 = vadd.f32 %v1767, %v1941
    %v1943 = vand.u32 %v226, 4294901760
    %v1944 = vsub.f32 %v226, %v1943
    %1945 = vmatmul.f32.gmra.mxu0 %v1944
    %v1946 = vpop.f32.mrf.mxu0
    %v1947 = vadd.f32 %v1771, %v1946
    %v1948 = vand.u32 %v229, 4294901760
    %v1949 = vsub.f32 %v229, %v1948
    %1950 = vmatmul.f32.gmra.mxu0 %v1949
    %v1951 = vpop.f32.mrf.mxu0
    %v1952 = vadd.f32 %v1775, %v1951
    %v1953 = vand.u32 %v232, 4294901760
    %v1954 = vsub.f32 %v232, %v1953
    %1955 = vmatmul.f32.gmra.mxu0 %v1954
    %v1956 = vpop.f32.mrf.mxu0
    %v1957 = vadd.f32 %v1779, %v1956
    %v1958 = vand.u32 %v235, 4294901760
    %v1959 = vsub.f32 %v235, %v1958
    %1960 = vmatmul.f32.gmra.mxu0 %v1959
    %v1961 = vpop.f32.mrf.mxu0
    %v1962 = vadd.f32 %v1783, %v1961
    %v1963 = vand.u32 %v238, 4294901760
    %v1964 = vsub.f32 %v238, %v1963
    %1965 = vmatmul.f32.gmra.mxu0 %v1964
    %v1966 = vpop.f32.mrf.mxu0
    %v1967 = vadd.f32 %v1787, %v1966
    %v1968 = vand.u32 %v241, 4294901760
    %v1969 = vsub.f32 %v241, %v1968
    %1970 = vmatmul.f32.gmra.mxu0 %v1969
    %v1971 = vpop.f32.mrf.mxu0
    %v1972 = vadd.f32 %v1791, %v1971
    %1973 = vdwg.mxu0
    %1974 = vmatpush.msra.mxu0 0.0
    %1975 = vmatpush.msra.mxu0 0.0
    %1976 = vmatpush.msra.mxu0 0.0
    %1977 = vmatpush.msra.mxu0 0.0
    %1978 = vmatpush.msra.mxu0 0.0
    %1979 = vmatpush.msra.mxu0 0.0
    %1980 = vmatpush.msra.mxu0 0.0
    %1981 = vmatpush.msra.mxu0 0.0
    %1982 = vmatpush.msra.mxu0 0.0
    %1983 = vmatpush.msra.mxu0 0.0
    %1984 = vmatpush.msra.mxu0 0.0
    %1985 = vmatpush.msra.mxu0 0.0
    %1986 = vmatpush.msra.mxu0 0.0
    %1987 = vmatpush.msra.mxu0 0.0
    %v1988 = vand.u32 %v101, 4294901760
    %1989 = vmatpush.msra.mxu0 %v1988
    %v1990 = vand.u32 %v99, 4294901760
    %1991 = vmatpush.msra.mxu0 %v1990
    %v1992 = vand.u32 %v148, 4294901760
    %v1993 = vsub.f32 %v148, %v1992
    %v1994 = vand.u32 %v1993, 4294901760
    %1995 = vmatmul.f32.gmra.mxu0 %v1994
    %v1996 = vpop.f32.mrf.mxu0
    %v1997 = vadd.f32 %v1817, %v1996
    %v1998 = vand.u32 %v151, 4294901760
    %v1999 = vsub.f32 %v151, %v1998
    %v2000 = vand.u32 %v1999, 4294901760
    %2001 = vmatmul.f32.gmra.mxu0 %v2000
    %v2002 = vpop.f32.mrf.mxu0
    %v2003 = vadd.f32 %v1822, %v2002
    %v2004 = vand.u32 %v154, 4294901760
    %v2005 = vsub.f32 %v154, %v2004
    %v2006 = vand.u32 %v2005, 4294901760
    %2007 = vmatmul.f32.gmra.mxu0 %v2006
    %v2008 = vpop.f32.mrf.mxu0
    %v2009 = vadd.f32 %v1827, %v2008
    %v2010 = vand.u32 %v157, 4294901760
    %v2011 = vsub.f32 %v157, %v2010
    %v2012 = vand.u32 %v2011, 4294901760
    %2013 = vmatmul.f32.gmra.mxu0 %v2012
    %v2014 = vpop.f32.mrf.mxu0
    %v2015 = vadd.f32 %v1832, %v2014
    %v2016 = vand.u32 %v160, 4294901760
    %v2017 = vsub.f32 %v160, %v2016
    %v2018 = vand.u32 %v2017, 4294901760
    %2019 = vmatmul.f32.gmra.mxu0 %v2018
    %v2020 = vpop.f32.mrf.mxu0
    %v2021 = vadd.f32 %v1837, %v2020
    %v2022 = vand.u32 %v163, 4294901760
    %v2023 = vsub.f32 %v163, %v2022
    %v2024 = vand.u32 %v2023, 4294901760
    %2025 = vmatmul.f32.gmra.mxu0 %v2024
    %v2026 = vpop.f32.mrf.mxu0
    %v2027 = vadd.f32 %v1842, %v2026
    %v2028 = vand.u32 %v166, 4294901760
    %v2029 = vsub.f32 %v166, %v2028
    %v2030 = vand.u32 %v2029, 4294901760
    %2031 = vmatmul.f32.gmra.mxu0 %v2030
    %v2032 = vpop.f32.mrf.mxu0
    %v2033 = vadd.f32 %v1847, %v2032
    %v2034 = vand.u32 %v169, 4294901760
    %v2035 = vsub.f32 %v169, %v2034
    %v2036 = vand.u32 %v2035, 4294901760
    %2037 = vmatmul.f32.gmra.mxu0 %v2036
    %v2038 = vpop.f32.mrf.mxu0
    %v2039 = vadd.f32 %v1852, %v2038
    %v2040 = vand.u32 %v172, 4294901760
    %v2041 = vsub.f32 %v172, %v2040
    %v2042 = vand.u32 %v2041, 4294901760
    %2043 = vmatmul.f32.gmra.mxu0 %v2042
    %v2044 = vpop.f32.mrf.mxu0
    %v2045 = vadd.f32 %v1857, %v2044
    %v2046 = vand.u32 %v175, 4294901760
    %v2047 = vsub.f32 %v175, %v2046
    %v2048 = vand.u32 %v2047, 4294901760
    %2049 = vmatmul.f32.gmra.mxu0 %v2048
    %v2050 = vpop.f32.mrf.mxu0
    %v2051 = vadd.f32 %v1862, %v2050
    %v2052 = vand.u32 %v178, 4294901760
    %v2053 = vsub.f32 %v178, %v2052
    %v2054 = vand.u32 %v2053, 4294901760
    %2055 = vmatmul.f32.gmra.mxu0 %v2054
    %v2056 = vpop.f32.mrf.mxu0
    %v2057 = vadd.f32 %v1867, %v2056
    %v2058 = vand.u32 %v181, 4294901760
    %v2059 = vsub.f32 %v181, %v2058
    %v2060 = vand.u32 %v2059, 4294901760
    %2061 = vmatmul.f32.gmra.mxu0 %v2060
    %v2062 = vpop.f32.mrf.mxu0
    %v2063 = vadd.f32 %v1872, %v2062
    %v2064 = vand.u32 %v184, 4294901760
    %v2065 = vsub.f32 %v184, %v2064
    %v2066 = vand.u32 %v2065, 4294901760
    %2067 = vmatmul.f32.gmra.mxu0 %v2066
    %v2068 = vpop.f32.mrf.mxu0
    %v2069 = vadd.f32 %v1877, %v2068
    %v2070 = vand.u32 %v187, 4294901760
    %v2071 = vsub.f32 %v187, %v2070
    %v2072 = vand.u32 %v2071, 4294901760
    %2073 = vmatmul.f32.gmra.mxu0 %v2072
    %v2074 = vpop.f32.mrf.mxu0
    %v2075 = vadd.f32 %v1882, %v2074
    %v2076 = vand.u32 %v190, 4294901760
    %v2077 = vsub.f32 %v190, %v2076
    %v2078 = vand.u32 %v2077, 4294901760
    %2079 = vmatmul.f32.gmra.mxu0 %v2078
    %v2080 = vpop.f32.mrf.mxu0
    %v2081 = vadd.f32 %v1887, %v2080
    %v2082 = vand.u32 %v193, 4294901760
    %v2083 = vsub.f32 %v193, %v2082
    %v2084 = vand.u32 %v2083, 4294901760
    %2085 = vmatmul.f32.gmra.mxu0 %v2084
    %v2086 = vpop.f32.mrf.mxu0
    %v2087 = vadd.f32 %v1892, %v2086
    %v2088 = vand.u32 %v196, 4294901760
    %v2089 = vsub.f32 %v196, %v2088
    %v2090 = vand.u32 %v2089, 4294901760
    %2091 = vmatmul.f32.gmra.mxu0 %v2090
    %v2092 = vpop.f32.mrf.mxu0
    %v2093 = vadd.f32 %v1897, %v2092
    %v2094 = vand.u32 %v199, 4294901760
    %v2095 = vsub.f32 %v199, %v2094
    %v2096 = vand.u32 %v2095, 4294901760
    %2097 = vmatmul.f32.gmra.mxu0 %v2096
    %v2098 = vpop.f32.mrf.mxu0
    %v2099 = vadd.f32 %v1902, %v2098
    %v2100 = vand.u32 %v202, 4294901760
    %v2101 = vsub.f32 %v202, %v2100
    %v2102 = vand.u32 %v2101, 4294901760
    %2103 = vmatmul.f32.gmra.mxu0 %v2102
    %v2104 = vpop.f32.mrf.mxu0
    %v2105 = vadd.f32 %v1907, %v2104
    %v2106 = vand.u32 %v205, 4294901760
    %v2107 = vsub.f32 %v205, %v2106
    %v2108 = vand.u32 %v2107, 4294901760
    %2109 = vmatmul.f32.gmra.mxu0 %v2108
    %v2110 = vpop.f32.mrf.mxu0
    %v2111 = vadd.f32 %v1912, %v2110
    %v2112 = vand.u32 %v208, 4294901760
    %v2113 = vsub.f32 %v208, %v2112
    %v2114 = vand.u32 %v2113, 4294901760
    %2115 = vmatmul.f32.gmra.mxu0 %v2114
    %v2116 = vpop.f32.mrf.mxu0
    %v2117 = vadd.f32 %v1917, %v2116
    %v2118 = vand.u32 %v211, 4294901760
    %v2119 = vsub.f32 %v211, %v2118
    %v2120 = vand.u32 %v2119, 4294901760
    %2121 = vmatmul.f32.gmra.mxu0 %v2120
    %v2122 = vpop.f32.mrf.mxu0
    %v2123 = vadd.f32 %v1922, %v2122
    %v2124 = vand.u32 %v214, 4294901760
    %v2125 = vsub.f32 %v214, %v2124
    %v2126 = vand.u32 %v2125, 4294901760
    %2127 = vmatmul.f32.gmra.mxu0 %v2126
    %v2128 = vpop.f32.mrf.mxu0
    %v2129 = vadd.f32 %v1927, %v2128
    %v2130 = vand.u32 %v217, 4294901760
    %v2131 = vsub.f32 %v217, %v2130
    %v2132 = vand.u32 %v2131, 4294901760
    %2133 = vmatmul.f32.gmra.mxu0 %v2132
    %v2134 = vpop.f32.mrf.mxu0
    %v2135 = vadd.f32 %v1932, %v2134
    %v2136 = vand.u32 %v220, 4294901760
    %v2137 = vsub.f32 %v220, %v2136
    %v2138 = vand.u32 %v2137, 4294901760
    %2139 = vmatmul.f32.gmra.mxu0 %v2138
    %v2140 = vpop.f32.mrf.mxu0
    %v2141 = vadd.f32 %v1937, %v2140
    %v2142 = vand.u32 %v223, 4294901760
    %v2143 = vsub.f32 %v223, %v2142
    %v2144 = vand.u32 %v2143, 4294901760
    %2145 = vmatmul.f32.gmra.mxu0 %v2144
    %v2146 = vpop.f32.mrf.mxu0
    %v2147 = vadd.f32 %v1942, %v2146
    %v2148 = vand.u32 %v226, 4294901760
    %v2149 = vsub.f32 %v226, %v2148
    %v2150 = vand.u32 %v2149, 4294901760
    %2151 = vmatmul.f32.gmra.mxu0 %v2150
    %v2152 = vpop.f32.mrf.mxu0
    %v2153 = vadd.f32 %v1947, %v2152
    %v2154 = vand.u32 %v229, 4294901760
    %v2155 = vsub.f32 %v229, %v2154
    %v2156 = vand.u32 %v2155, 4294901760
    %2157 = vmatmul.f32.gmra.mxu0 %v2156
    %v2158 = vpop.f32.mrf.mxu0
    %v2159 = vadd.f32 %v1952, %v2158
    %v2160 = vand.u32 %v232, 4294901760
    %v2161 = vsub.f32 %v232, %v2160
    %v2162 = vand.u32 %v2161, 4294901760
    %2163 = vmatmul.f32.gmra.mxu0 %v2162
    %v2164 = vpop.f32.mrf.mxu0
    %v2165 = vadd.f32 %v1957, %v2164
    %v2166 = vand.u32 %v235, 4294901760
    %v2167 = vsub.f32 %v235, %v2166
    %v2168 = vand.u32 %v2167, 4294901760
    %2169 = vmatmul.f32.gmra.mxu0 %v2168
    %v2170 = vpop.f32.mrf.mxu0
    %v2171 = vadd.f32 %v1962, %v2170
    %v2172 = vand.u32 %v238, 4294901760
    %v2173 = vsub.f32 %v238, %v2172
    %v2174 = vand.u32 %v2173, 4294901760
    %2175 = vmatmul.f32.gmra.mxu0 %v2174
    %v2176 = vpop.f32.mrf.mxu0
    %v2177 = vadd.f32 %v1967, %v2176
    %v2178 = vand.u32 %v241, 4294901760
    %v2179 = vsub.f32 %v241, %v2178
    %v2180 = vand.u32 %v2179, 4294901760
    %2181 = vmatmul.f32.gmra.mxu0 %v2180
    %v2182 = vpop.f32.mrf.mxu0
    %v2183 = vadd.f32 %v1972, %v2182
    %2184 = vdwg.mxu0
    %2185 = vmatpush.msra.mxu0 0.0
    %2186 = vmatpush.msra.mxu0 0.0
    %2187 = vmatpush.msra.mxu0 0.0
    %2188 = vmatpush.msra.mxu0 0.0
    %2189 = vmatpush.msra.mxu0 0.0
    %2190 = vmatpush.msra.mxu0 0.0
    %2191 = vmatpush.msra.mxu0 0.0
    %2192 = vmatpush.msra.mxu0 0.0
    %2193 = vmatpush.msra.mxu0 0.0
    %2194 = vmatpush.msra.mxu0 0.0
    %2195 = vmatpush.msra.mxu0 0.0
    %2196 = vmatpush.msra.mxu0 0.0
    %2197 = vmatpush.msra.mxu0 0.0
    %2198 = vmatpush.msra.mxu0 0.0
    %v2199 = vand.u32 %v101, 4294901760
    %v2200 = vsub.f32 %v101, %v2199
    %v2201 = vand.u32 %v2200, 4294901760
    %2202 = vmatpush.msra.mxu0 %v2201
    %v2203 = vand.u32 %v99, 4294901760
    %v2204 = vsub.f32 %v99, %v2203
    %v2205 = vand.u32 %v2204, 4294901760
    %2206 = vmatpush.msra.mxu0 %v2205
    %v2207 = vand.u32 %v148, 4294901760
    %2208 = vmatmul.f32.gmra.mxu0 %v2207
    %v2209 = vpop.f32.mrf.mxu0
    %v2210 = vadd.f32 %v1997, %v2209
    %v2211 = vand.u32 %v151, 4294901760
    %2212 = vmatmul.f32.gmra.mxu0 %v2211
    %v2213 = vpop.f32.mrf.mxu0
    %v2214 = vadd.f32 %v2003, %v2213
    %v2215 = vand.u32 %v154, 4294901760
    %2216 = vmatmul.f32.gmra.mxu0 %v2215
    %v2217 = vpop.f32.mrf.mxu0
    %v2218 = vadd.f32 %v2009, %v2217
    %v2219 = vand.u32 %v157, 4294901760
    %2220 = vmatmul.f32.gmra.mxu0 %v2219
    %v2221 = vpop.f32.mrf.mxu0
    %v2222 = vadd.f32 %v2015, %v2221
    %v2223 = vand.u32 %v160, 4294901760
    %2224 = vmatmul.f32.gmra.mxu0 %v2223
    %v2225 = vpop.f32.mrf.mxu0
    %v2226 = vadd.f32 %v2021, %v2225
    %v2227 = vand.u32 %v163, 4294901760
    %2228 = vmatmul.f32.gmra.mxu0 %v2227
    %v2229 = vpop.f32.mrf.mxu0
    %v2230 = vadd.f32 %v2027, %v2229
    %v2231 = vand.u32 %v166, 4294901760
    %2232 = vmatmul.f32.gmra.mxu0 %v2231
    %v2233 = vpop.f32.mrf.mxu0
    %v2234 = vadd.f32 %v2033, %v2233
    %v2235 = vand.u32 %v169, 4294901760
    %2236 = vmatmul.f32.gmra.mxu0 %v2235
    %v2237 = vpop.f32.mrf.mxu0
    %v2238 = vadd.f32 %v2039, %v2237
    %v2239 = vand.u32 %v172, 4294901760
    %2240 = vmatmul.f32.gmra.mxu0 %v2239
    %v2241 = vpop.f32.mrf.mxu0
    %v2242 = vadd.f32 %v2045, %v2241
    %v2243 = vand.u32 %v175, 4294901760
    %2244 = vmatmul.f32.gmra.mxu0 %v2243
    %v2245 = vpop.f32.mrf.mxu0
    %v2246 = vadd.f32 %v2051, %v2245
    %v2247 = vand.u32 %v178, 4294901760
    %2248 = vmatmul.f32.gmra.mxu0 %v2247
    %v2249 = vpop.f32.mrf.mxu0
    %v2250 = vadd.f32 %v2057, %v2249
    %v2251 = vand.u32 %v181, 4294901760
    %2252 = vmatmul.f32.gmra.mxu0 %v2251
    %v2253 = vpop.f32.mrf.mxu0
    %v2254 = vadd.f32 %v2063, %v2253
    %v2255 = vand.u32 %v184, 4294901760
    %2256 = vmatmul.f32.gmra.mxu0 %v2255
    %v2257 = vpop.f32.mrf.mxu0
    %v2258 = vadd.f32 %v2069, %v2257
    %v2259 = vand.u32 %v187, 4294901760
    %2260 = vmatmul.f32.gmra.mxu0 %v2259
    %v2261 = vpop.f32.mrf.mxu0
    %v2262 = vadd.f32 %v2075, %v2261
    %v2263 = vand.u32 %v190, 4294901760
    %2264 = vmatmul.f32.gmra.mxu0 %v2263
    %v2265 = vpop.f32.mrf.mxu0
    %v2266 = vadd.f32 %v2081, %v2265
    %v2267 = vand.u32 %v193, 4294901760
    %2268 = vmatmul.f32.gmra.mxu0 %v2267
    %v2269 = vpop.f32.mrf.mxu0
    %v2270 = vadd.f32 %v2087, %v2269
    %v2271 = vand.u32 %v196, 4294901760
    %2272 = vmatmul.f32.gmra.mxu0 %v2271
    %v2273 = vpop.f32.mrf.mxu0
    %v2274 = vadd.f32 %v2093, %v2273
    %v2275 = vand.u32 %v199, 4294901760
    %2276 = vmatmul.f32.gmra.mxu0 %v2275
    %v2277 = vpop.f32.mrf.mxu0
    %v2278 = vadd.f32 %v2099, %v2277
    %v2279 = vand.u32 %v202, 4294901760
    %2280 = vmatmul.f32.gmra.mxu0 %v2279
    %v2281 = vpop.f32.mrf.mxu0
    %v2282 = vadd.f32 %v2105, %v2281
    %v2283 = vand.u32 %v205, 4294901760
    %2284 = vmatmul.f32.gmra.mxu0 %v2283
    %v2285 = vpop.f32.mrf.mxu0
    %v2286 = vadd.f32 %v2111, %v2285
    %v2287 = vand.u32 %v208, 4294901760
    %2288 = vmatmul.f32.gmra.mxu0 %v2287
    %v2289 = vpop.f32.mrf.mxu0
    %v2290 = vadd.f32 %v2117, %v2289
    %v2291 = vand.u32 %v211, 4294901760
    %2292 = vmatmul.f32.gmra.mxu0 %v2291
    %v2293 = vpop.f32.mrf.mxu0
    %v2294 = vadd.f32 %v2123, %v2293
    %v2295 = vand.u32 %v214, 4294901760
    %2296 = vmatmul.f32.gmra.mxu0 %v2295
    %v2297 = vpop.f32.mrf.mxu0
    %v2298 = vadd.f32 %v2129, %v2297
    %v2299 = vand.u32 %v217, 4294901760
    %2300 = vmatmul.f32.gmra.mxu0 %v2299
    %v2301 = vpop.f32.mrf.mxu0
    %v2302 = vadd.f32 %v2135, %v2301
    %v2303 = vand.u32 %v220, 4294901760
    %2304 = vmatmul.f32.gmra.mxu0 %v2303
    %v2305 = vpop.f32.mrf.mxu0
    %v2306 = vadd.f32 %v2141, %v2305
    %v2307 = vand.u32 %v223, 4294901760
    %2308 = vmatmul.f32.gmra.mxu0 %v2307
    %v2309 = vpop.f32.mrf.mxu0
    %v2310 = vadd.f32 %v2147, %v2309
    %v2311 = vand.u32 %v226, 4294901760
    %2312 = vmatmul.f32.gmra.mxu0 %v2311
    %v2313 = vpop.f32.mrf.mxu0
    %v2314 = vadd.f32 %v2153, %v2313
    %v2315 = vand.u32 %v229, 4294901760
    %2316 = vmatmul.f32.gmra.mxu0 %v2315
    %v2317 = vpop.f32.mrf.mxu0
    %v2318 = vadd.f32 %v2159, %v2317
    %v2319 = vand.u32 %v232, 4294901760
    %2320 = vmatmul.f32.gmra.mxu0 %v2319
    %v2321 = vpop.f32.mrf.mxu0
    %v2322 = vadd.f32 %v2165, %v2321
    %v2323 = vand.u32 %v235, 4294901760
    %2324 = vmatmul.f32.gmra.mxu0 %v2323
    %v2325 = vpop.f32.mrf.mxu0
    %v2326 = vadd.f32 %v2171, %v2325
    %v2327 = vand.u32 %v238, 4294901760
    %2328 = vmatmul.f32.gmra.mxu0 %v2327
    %v2329 = vpop.f32.mrf.mxu0
    %v2330 = vadd.f32 %v2177, %v2329
    %v2331 = vand.u32 %v241, 4294901760
    %2332 = vmatmul.f32.gmra.mxu0 %v2331
    %v2333 = vpop.f32.mrf.mxu0
    %v2334 = vadd.f32 %v2183, %v2333
    %2335 = vdwg.mxu0
    %2336 = vmatpush.msra.mxu0 0.0
    %2337 = vmatpush.msra.mxu0 0.0
    %2338 = vmatpush.msra.mxu0 0.0
    %2339 = vmatpush.msra.mxu0 0.0
    %2340 = vmatpush.msra.mxu0 0.0
    %2341 = vmatpush.msra.mxu0 0.0
    %2342 = vmatpush.msra.mxu0 0.0
    %2343 = vmatpush.msra.mxu0 0.0
    %2344 = vmatpush.msra.mxu0 0.0
    %2345 = vmatpush.msra.mxu0 0.0
    %2346 = vmatpush.msra.mxu0 0.0
    %2347 = vmatpush.msra.mxu0 0.0
    %2348 = vmatpush.msra.mxu0 0.0
    %2349 = vmatpush.msra.mxu0 0.0
    %v2350 = vand.u32 %v101, 4294901760
    %2351 = vmatpush.msra.mxu0 %v2350
    %v2352 = vand.u32 %v99, 4294901760
    %2353 = vmatpush.msra.mxu0 %v2352
    %v2354 = vand.u32 %v148, 4294901760
    %2355 = vmatmul.f32.gmra.mxu0 %v2354
    %v2356 = vpop.f32.mrf.mxu0
    %v2357 = vadd.f32 %v2210, %v2356
    %v2358 = vand.u32 %v151, 4294901760
    %2359 = vmatmul.f32.gmra.mxu0 %v2358
    %v2360 = vpop.f32.mrf.mxu0
    %v2361 = vadd.f32 %v2214, %v2360
    %v2362 = vand.u32 %v154, 4294901760
    %2363 = vmatmul.f32.gmra.mxu0 %v2362
    %v2364 = vpop.f32.mrf.mxu0
    %v2365 = vadd.f32 %v2218, %v2364
    %v2366 = vand.u32 %v157, 4294901760
    %2367 = vmatmul.f32.gmra.mxu0 %v2366
    %v2368 = vpop.f32.mrf.mxu0
    %v2369 = vadd.f32 %v2222, %v2368
    %v2370 = vand.u32 %v160, 4294901760
    %2371 = vmatmul.f32.gmra.mxu0 %v2370
    %v2372 = vpop.f32.mrf.mxu0
    %v2373 = vadd.f32 %v2226, %v2372
    %v2374 = vand.u32 %v163, 4294901760
    %2375 = vmatmul.f32.gmra.mxu0 %v2374
    %v2376 = vpop.f32.mrf.mxu0
    %v2377 = vadd.f32 %v2230, %v2376
    %v2378 = vand.u32 %v166, 4294901760
    %2379 = vmatmul.f32.gmra.mxu0 %v2378
    %v2380 = vpop.f32.mrf.mxu0
    %v2381 = vadd.f32 %v2234, %v2380
    %v2382 = vand.u32 %v169, 4294901760
    %2383 = vmatmul.f32.gmra.mxu0 %v2382
    %v2384 = vpop.f32.mrf.mxu0
    %v2385 = vadd.f32 %v2238, %v2384
    %v2386 = vand.u32 %v172, 4294901760
    %2387 = vmatmul.f32.gmra.mxu0 %v2386
    %v2388 = vpop.f32.mrf.mxu0
    %v2389 = vadd.f32 %v2242, %v2388
    %v2390 = vand.u32 %v175, 4294901760
    %2391 = vmatmul.f32.gmra.mxu0 %v2390
    %v2392 = vpop.f32.mrf.mxu0
    %v2393 = vadd.f32 %v2246, %v2392
    %v2394 = vand.u32 %v178, 4294901760
    %2395 = vmatmul.f32.gmra.mxu0 %v2394
    %v2396 = vpop.f32.mrf.mxu0
    %v2397 = vadd.f32 %v2250, %v2396
    %v2398 = vand.u32 %v181, 4294901760
    %2399 = vmatmul.f32.gmra.mxu0 %v2398
    %v2400 = vpop.f32.mrf.mxu0
    %v2401 = vadd.f32 %v2254, %v2400
    %v2402 = vand.u32 %v184, 4294901760
    %2403 = vmatmul.f32.gmra.mxu0 %v2402
    %v2404 = vpop.f32.mrf.mxu0
    %v2405 = vadd.f32 %v2258, %v2404
    %v2406 = vand.u32 %v187, 4294901760
    %2407 = vmatmul.f32.gmra.mxu0 %v2406
    %v2408 = vpop.f32.mrf.mxu0
    %v2409 = vadd.f32 %v2262, %v2408
    %v2410 = vand.u32 %v190, 4294901760
    %2411 = vmatmul.f32.gmra.mxu0 %v2410
    %v2412 = vpop.f32.mrf.mxu0
    %v2413 = vadd.f32 %v2266, %v2412
    %v2414 = vand.u32 %v193, 4294901760
    %2415 = vmatmul.f32.gmra.mxu0 %v2414
    %v2416 = vpop.f32.mrf.mxu0
    %v2417 = vadd.f32 %v2270, %v2416
    %v2418 = vand.u32 %v196, 4294901760
    %2419 = vmatmul.f32.gmra.mxu0 %v2418
    %v2420 = vpop.f32.mrf.mxu0
    %v2421 = vadd.f32 %v2274, %v2420
    %v2422 = vand.u32 %v199, 4294901760
    %2423 = vmatmul.f32.gmra.mxu0 %v2422
    %v2424 = vpop.f32.mrf.mxu0
    %v2425 = vadd.f32 %v2278, %v2424
    %v2426 = vand.u32 %v202, 4294901760
    %2427 = vmatmul.f32.gmra.mxu0 %v2426
    %v2428 = vpop.f32.mrf.mxu0
    %v2429 = vadd.f32 %v2282, %v2428
    %v2430 = vand.u32 %v205, 4294901760
    %2431 = vmatmul.f32.gmra.mxu0 %v2430
    %v2432 = vpop.f32.mrf.mxu0
    %v2433 = vadd.f32 %v2286, %v2432
    %v2434 = vand.u32 %v208, 4294901760
    %2435 = vmatmul.f32.gmra.mxu0 %v2434
    %v2436 = vpop.f32.mrf.mxu0
    %v2437 = vadd.f32 %v2290, %v2436
    %v2438 = vand.u32 %v211, 4294901760
    %2439 = vmatmul.f32.gmra.mxu0 %v2438
    %v2440 = vpop.f32.mrf.mxu0
    %v2441 = vadd.f32 %v2294, %v2440
    %v2442 = vand.u32 %v214, 4294901760
    %2443 = vmatmul.f32.gmra.mxu0 %v2442
    %v2444 = vpop.f32.mrf.mxu0
    %v2445 = vadd.f32 %v2298, %v2444
    %v2446 = vand.u32 %v217, 4294901760
    %2447 = vmatmul.f32.gmra.mxu0 %v2446
    %v2448 = vpop.f32.mrf.mxu0
    %v2449 = vadd.f32 %v2302, %v2448
    %v2450 = vand.u32 %v220, 4294901760
    %2451 = vmatmul.f32.gmra.mxu0 %v2450
    %v2452 = vpop.f32.mrf.mxu0
    %v2453 = vadd.f32 %v2306, %v2452
    %v2454 = vand.u32 %v223, 4294901760
    %2455 = vmatmul.f32.gmra.mxu0 %v2454
    %v2456 = vpop.f32.mrf.mxu0
    %v2457 = vadd.f32 %v2310, %v2456
    %v2458 = vand.u32 %v226, 4294901760
    %2459 = vmatmul.f32.gmra.mxu0 %v2458
    %v2460 = vpop.f32.mrf.mxu0
    %v2461 = vadd.f32 %v2314, %v2460
    %v2462 = vand.u32 %v229, 4294901760
    %2463 = vmatmul.f32.gmra.mxu0 %v2462
    %v2464 = vpop.f32.mrf.mxu0
    %v2465 = vadd.f32 %v2318, %v2464
    %v2466 = vand.u32 %v232, 4294901760
    %2467 = vmatmul.f32.gmra.mxu0 %v2466
    %v2468 = vpop.f32.mrf.mxu0
    %v2469 = vadd.f32 %v2322, %v2468
    %v2470 = vand.u32 %v235, 4294901760
    %2471 = vmatmul.f32.gmra.mxu0 %v2470
    %v2472 = vpop.f32.mrf.mxu0
    %v2473 = vadd.f32 %v2326, %v2472
    %v2474 = vand.u32 %v238, 4294901760
    %2475 = vmatmul.f32.gmra.mxu0 %v2474
    %v2476 = vpop.f32.mrf.mxu0
    %v2477 = vadd.f32 %v2330, %v2476
    %v2478 = vand.u32 %v241, 4294901760
    %2479 = vmatmul.f32.gmra.mxu0 %v2478
    %v2480 = vpop.f32.mrf.mxu0
    %v2481 = vadd.f32 %v2334, %v2480
    %2482 = vdwg.mxu0
    %v2484 = vsel %vm146, %v54, 0
    %v2487 = vsel %vm146, %v55, 0
    %v2490 = vsel %vm146, %v56, 0
    %v2493 = vsel %vm146, %v57, 0
    %v2496 = vsel %vm146, %v58, 0
    %v2499 = vsel %vm146, %v59, 0
    %v2502 = vsel %vm146, %v60, 0
    %v2505 = vsel %vm146, %v61, 0
    %v2508 = vsel %vm146, %v62, 0
    %v2511 = vsel %vm146, %v63, 0
    %v2514 = vsel %vm146, %v64, 0
    %v2517 = vsel %vm146, %v65, 0
    %v2520 = vsel %vm146, %v66, 0
    %v2523 = vsel %vm146, %v67, 0
    %v2526 = vsel %vm146, %v68, 0
    %v2529 = vsel %vm146, %v69, 0
    %2531 = vmatpush.msra.mxu0 0.0
    %2532 = vmatpush.msra.mxu0 0.0
    %2533 = vmatpush.msra.mxu0 0.0
    %2534 = vmatpush.msra.mxu0 0.0
    %2535 = vmatpush.msra.mxu0 0.0
    %2536 = vmatpush.msra.mxu0 0.0
    %2537 = vmatpush.msra.mxu0 0.0
    %2538 = vmatpush.msra.mxu0 0.0
    %2539 = vmatpush.msra.mxu0 0.0
    %2540 = vmatpush.msra.mxu0 0.0
    %2541 = vmatpush.msra.mxu0 0.0
    %2542 = vmatpush.msra.mxu0 0.0
    %2543 = vmatpush.msra.mxu0 0.0
    %2544 = vmatpush.msra.mxu0 0.0
    %v2545 = vand.u32 %v122, 4294901760
    %2546 = vmatpush.msra.mxu0 %v2545
    %v2547 = vand.u32 %v120, 4294901760
    %2548 = vmatpush.msra.mxu0 %v2547
    %v2549 = vand.u32 %v2484, 4294901760
    %v2550 = vsub.f32 %v2484, %v2549
    %v2551 = vand.u32 %v2550, 4294901760
    %v2552 = vsub.f32 %v2550, %v2551
    %v2553 = vand.u32 %v2552, 4294901760
    %2554 = vmatmul.f32.gmra.mxu0 %v2553
    %v2555 = vpop.f32.mrf.mxu0
    %v2556 = vadd.f32 0.0, %v2555
    %v2557 = vand.u32 %v2487, 4294901760
    %v2558 = vsub.f32 %v2487, %v2557
    %v2559 = vand.u32 %v2558, 4294901760
    %v2560 = vsub.f32 %v2558, %v2559
    %v2561 = vand.u32 %v2560, 4294901760
    %2562 = vmatmul.f32.gmra.mxu0 %v2561
    %v2563 = vpop.f32.mrf.mxu0
    %v2564 = vadd.f32 0.0, %v2563
    %v2565 = vand.u32 %v2490, 4294901760
    %v2566 = vsub.f32 %v2490, %v2565
    %v2567 = vand.u32 %v2566, 4294901760
    %v2568 = vsub.f32 %v2566, %v2567
    %v2569 = vand.u32 %v2568, 4294901760
    %2570 = vmatmul.f32.gmra.mxu0 %v2569
    %v2571 = vpop.f32.mrf.mxu0
    %v2572 = vadd.f32 0.0, %v2571
    %v2573 = vand.u32 %v2493, 4294901760
    %v2574 = vsub.f32 %v2493, %v2573
    %v2575 = vand.u32 %v2574, 4294901760
    %v2576 = vsub.f32 %v2574, %v2575
    %v2577 = vand.u32 %v2576, 4294901760
    %2578 = vmatmul.f32.gmra.mxu0 %v2577
    %v2579 = vpop.f32.mrf.mxu0
    %v2580 = vadd.f32 0.0, %v2579
    %v2581 = vand.u32 %v2496, 4294901760
    %v2582 = vsub.f32 %v2496, %v2581
    %v2583 = vand.u32 %v2582, 4294901760
    %v2584 = vsub.f32 %v2582, %v2583
    %v2585 = vand.u32 %v2584, 4294901760
    %2586 = vmatmul.f32.gmra.mxu0 %v2585
    %v2587 = vpop.f32.mrf.mxu0
    %v2588 = vadd.f32 0.0, %v2587
    %v2589 = vand.u32 %v2499, 4294901760
    %v2590 = vsub.f32 %v2499, %v2589
    %v2591 = vand.u32 %v2590, 4294901760
    %v2592 = vsub.f32 %v2590, %v2591
    %v2593 = vand.u32 %v2592, 4294901760
    %2594 = vmatmul.f32.gmra.mxu0 %v2593
    %v2595 = vpop.f32.mrf.mxu0
    %v2596 = vadd.f32 0.0, %v2595
    %v2597 = vand.u32 %v2502, 4294901760
    %v2598 = vsub.f32 %v2502, %v2597
    %v2599 = vand.u32 %v2598, 4294901760
    %v2600 = vsub.f32 %v2598, %v2599
    %v2601 = vand.u32 %v2600, 4294901760
    %2602 = vmatmul.f32.gmra.mxu0 %v2601
    %v2603 = vpop.f32.mrf.mxu0
    %v2604 = vadd.f32 0.0, %v2603
    %v2605 = vand.u32 %v2505, 4294901760
    %v2606 = vsub.f32 %v2505, %v2605
    %v2607 = vand.u32 %v2606, 4294901760
    %v2608 = vsub.f32 %v2606, %v2607
    %v2609 = vand.u32 %v2608, 4294901760
    %2610 = vmatmul.f32.gmra.mxu0 %v2609
    %v2611 = vpop.f32.mrf.mxu0
    %v2612 = vadd.f32 0.0, %v2611
    %v2613 = vand.u32 %v2508, 4294901760
    %v2614 = vsub.f32 %v2508, %v2613
    %v2615 = vand.u32 %v2614, 4294901760
    %v2616 = vsub.f32 %v2614, %v2615
    %v2617 = vand.u32 %v2616, 4294901760
    %2618 = vmatmul.f32.gmra.mxu0 %v2617
    %v2619 = vpop.f32.mrf.mxu0
    %v2620 = vadd.f32 0.0, %v2619
    %v2621 = vand.u32 %v2511, 4294901760
    %v2622 = vsub.f32 %v2511, %v2621
    %v2623 = vand.u32 %v2622, 4294901760
    %v2624 = vsub.f32 %v2622, %v2623
    %v2625 = vand.u32 %v2624, 4294901760
    %2626 = vmatmul.f32.gmra.mxu0 %v2625
    %v2627 = vpop.f32.mrf.mxu0
    %v2628 = vadd.f32 0.0, %v2627
    %v2629 = vand.u32 %v2514, 4294901760
    %v2630 = vsub.f32 %v2514, %v2629
    %v2631 = vand.u32 %v2630, 4294901760
    %v2632 = vsub.f32 %v2630, %v2631
    %v2633 = vand.u32 %v2632, 4294901760
    %2634 = vmatmul.f32.gmra.mxu0 %v2633
    %v2635 = vpop.f32.mrf.mxu0
    %v2636 = vadd.f32 0.0, %v2635
    %v2637 = vand.u32 %v2517, 4294901760
    %v2638 = vsub.f32 %v2517, %v2637
    %v2639 = vand.u32 %v2638, 4294901760
    %v2640 = vsub.f32 %v2638, %v2639
    %v2641 = vand.u32 %v2640, 4294901760
    %2642 = vmatmul.f32.gmra.mxu0 %v2641
    %v2643 = vpop.f32.mrf.mxu0
    %v2644 = vadd.f32 0.0, %v2643
    %v2645 = vand.u32 %v2520, 4294901760
    %v2646 = vsub.f32 %v2520, %v2645
    %v2647 = vand.u32 %v2646, 4294901760
    %v2648 = vsub.f32 %v2646, %v2647
    %v2649 = vand.u32 %v2648, 4294901760
    %2650 = vmatmul.f32.gmra.mxu0 %v2649
    %v2651 = vpop.f32.mrf.mxu0
    %v2652 = vadd.f32 0.0, %v2651
    %v2653 = vand.u32 %v2523, 4294901760
    %v2654 = vsub.f32 %v2523, %v2653
    %v2655 = vand.u32 %v2654, 4294901760
    %v2656 = vsub.f32 %v2654, %v2655
    %v2657 = vand.u32 %v2656, 4294901760
    %2658 = vmatmul.f32.gmra.mxu0 %v2657
    %v2659 = vpop.f32.mrf.mxu0
    %v2660 = vadd.f32 0.0, %v2659
    %v2661 = vand.u32 %v2526, 4294901760
    %v2662 = vsub.f32 %v2526, %v2661
    %v2663 = vand.u32 %v2662, 4294901760
    %v2664 = vsub.f32 %v2662, %v2663
    %v2665 = vand.u32 %v2664, 4294901760
    %2666 = vmatmul.f32.gmra.mxu0 %v2665
    %v2667 = vpop.f32.mrf.mxu0
    %v2668 = vadd.f32 0.0, %v2667
    %v2669 = vand.u32 %v2529, 4294901760
    %v2670 = vsub.f32 %v2529, %v2669
    %v2671 = vand.u32 %v2670, 4294901760
    %v2672 = vsub.f32 %v2670, %v2671
    %v2673 = vand.u32 %v2672, 4294901760
    %2674 = vmatmul.f32.gmra.mxu0 %v2673
    %v2675 = vpop.f32.mrf.mxu0
    %v2676 = vadd.f32 0.0, %v2675
    %2677 = vdwg.mxu0
    %2678 = vmatpush.msra.mxu0 0.0
    %2679 = vmatpush.msra.mxu0 0.0
    %2680 = vmatpush.msra.mxu0 0.0
    %2681 = vmatpush.msra.mxu0 0.0
    %2682 = vmatpush.msra.mxu0 0.0
    %2683 = vmatpush.msra.mxu0 0.0
    %2684 = vmatpush.msra.mxu0 0.0
    %2685 = vmatpush.msra.mxu0 0.0
    %2686 = vmatpush.msra.mxu0 0.0
    %2687 = vmatpush.msra.mxu0 0.0
    %2688 = vmatpush.msra.mxu0 0.0
    %2689 = vmatpush.msra.mxu0 0.0
    %2690 = vmatpush.msra.mxu0 0.0
    %2691 = vmatpush.msra.mxu0 0.0
    %v2692 = vand.u32 %v122, 4294901760
    %v2693 = vsub.f32 %v122, %v2692
    %v2694 = vand.u32 %v2693, 4294901760
    %v2695 = vsub.f32 %v2693, %v2694
    %v2696 = vand.u32 %v2695, 4294901760
    %2697 = vmatpush.msra.mxu0 %v2696
    %v2698 = vand.u32 %v120, 4294901760
    %v2699 = vsub.f32 %v120, %v2698
    %v2700 = vand.u32 %v2699, 4294901760
    %v2701 = vsub.f32 %v2699, %v2700
    %v2702 = vand.u32 %v2701, 4294901760
    %2703 = vmatpush.msra.mxu0 %v2702
    %v2704 = vand.u32 %v2484, 4294901760
    %2705 = vmatmul.f32.gmra.mxu0 %v2704
    %v2706 = vpop.f32.mrf.mxu0
    %v2707 = vadd.f32 %v2556, %v2706
    %v2708 = vand.u32 %v2487, 4294901760
    %2709 = vmatmul.f32.gmra.mxu0 %v2708
    %v2710 = vpop.f32.mrf.mxu0
    %v2711 = vadd.f32 %v2564, %v2710
    %v2712 = vand.u32 %v2490, 4294901760
    %2713 = vmatmul.f32.gmra.mxu0 %v2712
    %v2714 = vpop.f32.mrf.mxu0
    %v2715 = vadd.f32 %v2572, %v2714
    %v2716 = vand.u32 %v2493, 4294901760
    %2717 = vmatmul.f32.gmra.mxu0 %v2716
    %v2718 = vpop.f32.mrf.mxu0
    %v2719 = vadd.f32 %v2580, %v2718
    %v2720 = vand.u32 %v2496, 4294901760
    %2721 = vmatmul.f32.gmra.mxu0 %v2720
    %v2722 = vpop.f32.mrf.mxu0
    %v2723 = vadd.f32 %v2588, %v2722
    %v2724 = vand.u32 %v2499, 4294901760
    %2725 = vmatmul.f32.gmra.mxu0 %v2724
    %v2726 = vpop.f32.mrf.mxu0
    %v2727 = vadd.f32 %v2596, %v2726
    %v2728 = vand.u32 %v2502, 4294901760
    %2729 = vmatmul.f32.gmra.mxu0 %v2728
    %v2730 = vpop.f32.mrf.mxu0
    %v2731 = vadd.f32 %v2604, %v2730
    %v2732 = vand.u32 %v2505, 4294901760
    %2733 = vmatmul.f32.gmra.mxu0 %v2732
    %v2734 = vpop.f32.mrf.mxu0
    %v2735 = vadd.f32 %v2612, %v2734
    %v2736 = vand.u32 %v2508, 4294901760
    %2737 = vmatmul.f32.gmra.mxu0 %v2736
    %v2738 = vpop.f32.mrf.mxu0
    %v2739 = vadd.f32 %v2620, %v2738
    %v2740 = vand.u32 %v2511, 4294901760
    %2741 = vmatmul.f32.gmra.mxu0 %v2740
    %v2742 = vpop.f32.mrf.mxu0
    %v2743 = vadd.f32 %v2628, %v2742
    %v2744 = vand.u32 %v2514, 4294901760
    %2745 = vmatmul.f32.gmra.mxu0 %v2744
    %v2746 = vpop.f32.mrf.mxu0
    %v2747 = vadd.f32 %v2636, %v2746
    %v2748 = vand.u32 %v2517, 4294901760
    %2749 = vmatmul.f32.gmra.mxu0 %v2748
    %v2750 = vpop.f32.mrf.mxu0
    %v2751 = vadd.f32 %v2644, %v2750
    %v2752 = vand.u32 %v2520, 4294901760
    %2753 = vmatmul.f32.gmra.mxu0 %v2752
    %v2754 = vpop.f32.mrf.mxu0
    %v2755 = vadd.f32 %v2652, %v2754
    %v2756 = vand.u32 %v2523, 4294901760
    %2757 = vmatmul.f32.gmra.mxu0 %v2756
    %v2758 = vpop.f32.mrf.mxu0
    %v2759 = vadd.f32 %v2660, %v2758
    %v2760 = vand.u32 %v2526, 4294901760
    %2761 = vmatmul.f32.gmra.mxu0 %v2760
    %v2762 = vpop.f32.mrf.mxu0
    %v2763 = vadd.f32 %v2668, %v2762
    %v2764 = vand.u32 %v2529, 4294901760
    %2765 = vmatmul.f32.gmra.mxu0 %v2764
    %v2766 = vpop.f32.mrf.mxu0
    %v2767 = vadd.f32 %v2676, %v2766
    %2768 = vdwg.mxu0
    %2769 = vmatpush.msra.mxu0 0.0
    %2770 = vmatpush.msra.mxu0 0.0
    %2771 = vmatpush.msra.mxu0 0.0
    %2772 = vmatpush.msra.mxu0 0.0
    %2773 = vmatpush.msra.mxu0 0.0
    %2774 = vmatpush.msra.mxu0 0.0
    %2775 = vmatpush.msra.mxu0 0.0
    %2776 = vmatpush.msra.mxu0 0.0
    %2777 = vmatpush.msra.mxu0 0.0
    %2778 = vmatpush.msra.mxu0 0.0
    %2779 = vmatpush.msra.mxu0 0.0
    %2780 = vmatpush.msra.mxu0 0.0
    %2781 = vmatpush.msra.mxu0 0.0
    %2782 = vmatpush.msra.mxu0 0.0
    %v2783 = vand.u32 %v122, 4294901760
    %v2784 = vsub.f32 %v122, %v2783
    %2785 = vmatpush.msra.mxu0 %v2784
    %v2786 = vand.u32 %v120, 4294901760
    %v2787 = vsub.f32 %v120, %v2786
    %2788 = vmatpush.msra.mxu0 %v2787
    %v2789 = vand.u32 %v2484, 4294901760
    %v2790 = vsub.f32 %v2484, %v2789
    %2791 = vmatmul.f32.gmra.mxu0 %v2790
    %v2792 = vpop.f32.mrf.mxu0
    %v2793 = vadd.f32 %v2707, %v2792
    %v2794 = vand.u32 %v2487, 4294901760
    %v2795 = vsub.f32 %v2487, %v2794
    %2796 = vmatmul.f32.gmra.mxu0 %v2795
    %v2797 = vpop.f32.mrf.mxu0
    %v2798 = vadd.f32 %v2711, %v2797
    %v2799 = vand.u32 %v2490, 4294901760
    %v2800 = vsub.f32 %v2490, %v2799
    %2801 = vmatmul.f32.gmra.mxu0 %v2800
    %v2802 = vpop.f32.mrf.mxu0
    %v2803 = vadd.f32 %v2715, %v2802
    %v2804 = vand.u32 %v2493, 4294901760
    %v2805 = vsub.f32 %v2493, %v2804
    %2806 = vmatmul.f32.gmra.mxu0 %v2805
    %v2807 = vpop.f32.mrf.mxu0
    %v2808 = vadd.f32 %v2719, %v2807
    %v2809 = vand.u32 %v2496, 4294901760
    %v2810 = vsub.f32 %v2496, %v2809
    %2811 = vmatmul.f32.gmra.mxu0 %v2810
    %v2812 = vpop.f32.mrf.mxu0
    %v2813 = vadd.f32 %v2723, %v2812
    %v2814 = vand.u32 %v2499, 4294901760
    %v2815 = vsub.f32 %v2499, %v2814
    %2816 = vmatmul.f32.gmra.mxu0 %v2815
    %v2817 = vpop.f32.mrf.mxu0
    %v2818 = vadd.f32 %v2727, %v2817
    %v2819 = vand.u32 %v2502, 4294901760
    %v2820 = vsub.f32 %v2502, %v2819
    %2821 = vmatmul.f32.gmra.mxu0 %v2820
    %v2822 = vpop.f32.mrf.mxu0
    %v2823 = vadd.f32 %v2731, %v2822
    %v2824 = vand.u32 %v2505, 4294901760
    %v2825 = vsub.f32 %v2505, %v2824
    %2826 = vmatmul.f32.gmra.mxu0 %v2825
    %v2827 = vpop.f32.mrf.mxu0
    %v2828 = vadd.f32 %v2735, %v2827
    %v2829 = vand.u32 %v2508, 4294901760
    %v2830 = vsub.f32 %v2508, %v2829
    %2831 = vmatmul.f32.gmra.mxu0 %v2830
    %v2832 = vpop.f32.mrf.mxu0
    %v2833 = vadd.f32 %v2739, %v2832
    %v2834 = vand.u32 %v2511, 4294901760
    %v2835 = vsub.f32 %v2511, %v2834
    %2836 = vmatmul.f32.gmra.mxu0 %v2835
    %v2837 = vpop.f32.mrf.mxu0
    %v2838 = vadd.f32 %v2743, %v2837
    %v2839 = vand.u32 %v2514, 4294901760
    %v2840 = vsub.f32 %v2514, %v2839
    %2841 = vmatmul.f32.gmra.mxu0 %v2840
    %v2842 = vpop.f32.mrf.mxu0
    %v2843 = vadd.f32 %v2747, %v2842
    %v2844 = vand.u32 %v2517, 4294901760
    %v2845 = vsub.f32 %v2517, %v2844
    %2846 = vmatmul.f32.gmra.mxu0 %v2845
    %v2847 = vpop.f32.mrf.mxu0
    %v2848 = vadd.f32 %v2751, %v2847
    %v2849 = vand.u32 %v2520, 4294901760
    %v2850 = vsub.f32 %v2520, %v2849
    %2851 = vmatmul.f32.gmra.mxu0 %v2850
    %v2852 = vpop.f32.mrf.mxu0
    %v2853 = vadd.f32 %v2755, %v2852
    %v2854 = vand.u32 %v2523, 4294901760
    %v2855 = vsub.f32 %v2523, %v2854
    %2856 = vmatmul.f32.gmra.mxu0 %v2855
    %v2857 = vpop.f32.mrf.mxu0
    %v2858 = vadd.f32 %v2759, %v2857
    %v2859 = vand.u32 %v2526, 4294901760
    %v2860 = vsub.f32 %v2526, %v2859
    %2861 = vmatmul.f32.gmra.mxu0 %v2860
    %v2862 = vpop.f32.mrf.mxu0
    %v2863 = vadd.f32 %v2763, %v2862
    %v2864 = vand.u32 %v2529, 4294901760
    %v2865 = vsub.f32 %v2529, %v2864
    %2866 = vmatmul.f32.gmra.mxu0 %v2865
    %v2867 = vpop.f32.mrf.mxu0
    %v2868 = vadd.f32 %v2767, %v2867
    %2869 = vdwg.mxu0
    %2870 = vmatpush.msra.mxu0 0.0
    %2871 = vmatpush.msra.mxu0 0.0
    %2872 = vmatpush.msra.mxu0 0.0
    %2873 = vmatpush.msra.mxu0 0.0
    %2874 = vmatpush.msra.mxu0 0.0
    %2875 = vmatpush.msra.mxu0 0.0
    %2876 = vmatpush.msra.mxu0 0.0
    %2877 = vmatpush.msra.mxu0 0.0
    %2878 = vmatpush.msra.mxu0 0.0
    %2879 = vmatpush.msra.mxu0 0.0
    %2880 = vmatpush.msra.mxu0 0.0
    %2881 = vmatpush.msra.mxu0 0.0
    %2882 = vmatpush.msra.mxu0 0.0
    %2883 = vmatpush.msra.mxu0 0.0
    %v2884 = vand.u32 %v122, 4294901760
    %2885 = vmatpush.msra.mxu0 %v2884
    %v2886 = vand.u32 %v120, 4294901760
    %2887 = vmatpush.msra.mxu0 %v2886
    %v2888 = vand.u32 %v2484, 4294901760
    %v2889 = vsub.f32 %v2484, %v2888
    %v2890 = vand.u32 %v2889, 4294901760
    %2891 = vmatmul.f32.gmra.mxu0 %v2890
    %v2892 = vpop.f32.mrf.mxu0
    %v2893 = vadd.f32 %v2793, %v2892
    %v2894 = vand.u32 %v2487, 4294901760
    %v2895 = vsub.f32 %v2487, %v2894
    %v2896 = vand.u32 %v2895, 4294901760
    %2897 = vmatmul.f32.gmra.mxu0 %v2896
    %v2898 = vpop.f32.mrf.mxu0
    %v2899 = vadd.f32 %v2798, %v2898
    %v2900 = vand.u32 %v2490, 4294901760
    %v2901 = vsub.f32 %v2490, %v2900
    %v2902 = vand.u32 %v2901, 4294901760
    %2903 = vmatmul.f32.gmra.mxu0 %v2902
    %v2904 = vpop.f32.mrf.mxu0
    %v2905 = vadd.f32 %v2803, %v2904
    %v2906 = vand.u32 %v2493, 4294901760
    %v2907 = vsub.f32 %v2493, %v2906
    %v2908 = vand.u32 %v2907, 4294901760
    %2909 = vmatmul.f32.gmra.mxu0 %v2908
    %v2910 = vpop.f32.mrf.mxu0
    %v2911 = vadd.f32 %v2808, %v2910
    %v2912 = vand.u32 %v2496, 4294901760
    %v2913 = vsub.f32 %v2496, %v2912
    %v2914 = vand.u32 %v2913, 4294901760
    %2915 = vmatmul.f32.gmra.mxu0 %v2914
    %v2916 = vpop.f32.mrf.mxu0
    %v2917 = vadd.f32 %v2813, %v2916
    %v2918 = vand.u32 %v2499, 4294901760
    %v2919 = vsub.f32 %v2499, %v2918
    %v2920 = vand.u32 %v2919, 4294901760
    %2921 = vmatmul.f32.gmra.mxu0 %v2920
    %v2922 = vpop.f32.mrf.mxu0
    %v2923 = vadd.f32 %v2818, %v2922
    %v2924 = vand.u32 %v2502, 4294901760
    %v2925 = vsub.f32 %v2502, %v2924
    %v2926 = vand.u32 %v2925, 4294901760
    %2927 = vmatmul.f32.gmra.mxu0 %v2926
    %v2928 = vpop.f32.mrf.mxu0
    %v2929 = vadd.f32 %v2823, %v2928
    %v2930 = vand.u32 %v2505, 4294901760
    %v2931 = vsub.f32 %v2505, %v2930
    %v2932 = vand.u32 %v2931, 4294901760
    %2933 = vmatmul.f32.gmra.mxu0 %v2932
    %v2934 = vpop.f32.mrf.mxu0
    %v2935 = vadd.f32 %v2828, %v2934
    %v2936 = vand.u32 %v2508, 4294901760
    %v2937 = vsub.f32 %v2508, %v2936
    %v2938 = vand.u32 %v2937, 4294901760
    %2939 = vmatmul.f32.gmra.mxu0 %v2938
    %v2940 = vpop.f32.mrf.mxu0
    %v2941 = vadd.f32 %v2833, %v2940
    %v2942 = vand.u32 %v2511, 4294901760
    %v2943 = vsub.f32 %v2511, %v2942
    %v2944 = vand.u32 %v2943, 4294901760
    %2945 = vmatmul.f32.gmra.mxu0 %v2944
    %v2946 = vpop.f32.mrf.mxu0
    %v2947 = vadd.f32 %v2838, %v2946
    %v2948 = vand.u32 %v2514, 4294901760
    %v2949 = vsub.f32 %v2514, %v2948
    %v2950 = vand.u32 %v2949, 4294901760
    %2951 = vmatmul.f32.gmra.mxu0 %v2950
    %v2952 = vpop.f32.mrf.mxu0
    %v2953 = vadd.f32 %v2843, %v2952
    %v2954 = vand.u32 %v2517, 4294901760
    %v2955 = vsub.f32 %v2517, %v2954
    %v2956 = vand.u32 %v2955, 4294901760
    %2957 = vmatmul.f32.gmra.mxu0 %v2956
    %v2958 = vpop.f32.mrf.mxu0
    %v2959 = vadd.f32 %v2848, %v2958
    %v2960 = vand.u32 %v2520, 4294901760
    %v2961 = vsub.f32 %v2520, %v2960
    %v2962 = vand.u32 %v2961, 4294901760
    %2963 = vmatmul.f32.gmra.mxu0 %v2962
    %v2964 = vpop.f32.mrf.mxu0
    %v2965 = vadd.f32 %v2853, %v2964
    %v2966 = vand.u32 %v2523, 4294901760
    %v2967 = vsub.f32 %v2523, %v2966
    %v2968 = vand.u32 %v2967, 4294901760
    %2969 = vmatmul.f32.gmra.mxu0 %v2968
    %v2970 = vpop.f32.mrf.mxu0
    %v2971 = vadd.f32 %v2858, %v2970
    %v2972 = vand.u32 %v2526, 4294901760
    %v2973 = vsub.f32 %v2526, %v2972
    %v2974 = vand.u32 %v2973, 4294901760
    %2975 = vmatmul.f32.gmra.mxu0 %v2974
    %v2976 = vpop.f32.mrf.mxu0
    %v2977 = vadd.f32 %v2863, %v2976
    %v2978 = vand.u32 %v2529, 4294901760
    %v2979 = vsub.f32 %v2529, %v2978
    %v2980 = vand.u32 %v2979, 4294901760
    %2981 = vmatmul.f32.gmra.mxu0 %v2980
    %v2982 = vpop.f32.mrf.mxu0
    %v2983 = vadd.f32 %v2868, %v2982
    %2984 = vdwg.mxu0
    %2985 = vmatpush.msra.mxu0 0.0
    %2986 = vmatpush.msra.mxu0 0.0
    %2987 = vmatpush.msra.mxu0 0.0
    %2988 = vmatpush.msra.mxu0 0.0
    %2989 = vmatpush.msra.mxu0 0.0
    %2990 = vmatpush.msra.mxu0 0.0
    %2991 = vmatpush.msra.mxu0 0.0
    %2992 = vmatpush.msra.mxu0 0.0
    %2993 = vmatpush.msra.mxu0 0.0
    %2994 = vmatpush.msra.mxu0 0.0
    %2995 = vmatpush.msra.mxu0 0.0
    %2996 = vmatpush.msra.mxu0 0.0
    %2997 = vmatpush.msra.mxu0 0.0
    %2998 = vmatpush.msra.mxu0 0.0
    %v2999 = vand.u32 %v122, 4294901760
    %v3000 = vsub.f32 %v122, %v2999
    %v3001 = vand.u32 %v3000, 4294901760
    %3002 = vmatpush.msra.mxu0 %v3001
    %v3003 = vand.u32 %v120, 4294901760
    %v3004 = vsub.f32 %v120, %v3003
    %v3005 = vand.u32 %v3004, 4294901760
    %3006 = vmatpush.msra.mxu0 %v3005
    %v3007 = vand.u32 %v2484, 4294901760
    %3008 = vmatmul.f32.gmra.mxu0 %v3007
    %v3009 = vpop.f32.mrf.mxu0
    %v3010 = vadd.f32 %v2893, %v3009
    %v3011 = vand.u32 %v2487, 4294901760
    %3012 = vmatmul.f32.gmra.mxu0 %v3011
    %v3013 = vpop.f32.mrf.mxu0
    %v3014 = vadd.f32 %v2899, %v3013
    %v3015 = vand.u32 %v2490, 4294901760
    %3016 = vmatmul.f32.gmra.mxu0 %v3015
    %v3017 = vpop.f32.mrf.mxu0
    %v3018 = vadd.f32 %v2905, %v3017
    %v3019 = vand.u32 %v2493, 4294901760
    %3020 = vmatmul.f32.gmra.mxu0 %v3019
    %v3021 = vpop.f32.mrf.mxu0
    %v3022 = vadd.f32 %v2911, %v3021
    %v3023 = vand.u32 %v2496, 4294901760
    %3024 = vmatmul.f32.gmra.mxu0 %v3023
    %v3025 = vpop.f32.mrf.mxu0
    %v3026 = vadd.f32 %v2917, %v3025
    %v3027 = vand.u32 %v2499, 4294901760
    %3028 = vmatmul.f32.gmra.mxu0 %v3027
    %v3029 = vpop.f32.mrf.mxu0
    %v3030 = vadd.f32 %v2923, %v3029
    %v3031 = vand.u32 %v2502, 4294901760
    %3032 = vmatmul.f32.gmra.mxu0 %v3031
    %v3033 = vpop.f32.mrf.mxu0
    %v3034 = vadd.f32 %v2929, %v3033
    %v3035 = vand.u32 %v2505, 4294901760
    %3036 = vmatmul.f32.gmra.mxu0 %v3035
    %v3037 = vpop.f32.mrf.mxu0
    %v3038 = vadd.f32 %v2935, %v3037
    %v3039 = vand.u32 %v2508, 4294901760
    %3040 = vmatmul.f32.gmra.mxu0 %v3039
    %v3041 = vpop.f32.mrf.mxu0
    %v3042 = vadd.f32 %v2941, %v3041
    %v3043 = vand.u32 %v2511, 4294901760
    %3044 = vmatmul.f32.gmra.mxu0 %v3043
    %v3045 = vpop.f32.mrf.mxu0
    %v3046 = vadd.f32 %v2947, %v3045
    %v3047 = vand.u32 %v2514, 4294901760
    %3048 = vmatmul.f32.gmra.mxu0 %v3047
    %v3049 = vpop.f32.mrf.mxu0
    %v3050 = vadd.f32 %v2953, %v3049
    %v3051 = vand.u32 %v2517, 4294901760
    %3052 = vmatmul.f32.gmra.mxu0 %v3051
    %v3053 = vpop.f32.mrf.mxu0
    %v3054 = vadd.f32 %v2959, %v3053
    %v3055 = vand.u32 %v2520, 4294901760
    %3056 = vmatmul.f32.gmra.mxu0 %v3055
    %v3057 = vpop.f32.mrf.mxu0
    %v3058 = vadd.f32 %v2965, %v3057
    %v3059 = vand.u32 %v2523, 4294901760
    %3060 = vmatmul.f32.gmra.mxu0 %v3059
    %v3061 = vpop.f32.mrf.mxu0
    %v3062 = vadd.f32 %v2971, %v3061
    %v3063 = vand.u32 %v2526, 4294901760
    %3064 = vmatmul.f32.gmra.mxu0 %v3063
    %v3065 = vpop.f32.mrf.mxu0
    %v3066 = vadd.f32 %v2977, %v3065
    %v3067 = vand.u32 %v2529, 4294901760
    %3068 = vmatmul.f32.gmra.mxu0 %v3067
    %v3069 = vpop.f32.mrf.mxu0
    %v3070 = vadd.f32 %v2983, %v3069
    %3071 = vdwg.mxu0
    %3072 = vmatpush.msra.mxu0 0.0
    %3073 = vmatpush.msra.mxu0 0.0
    %3074 = vmatpush.msra.mxu0 0.0
    %3075 = vmatpush.msra.mxu0 0.0
    %3076 = vmatpush.msra.mxu0 0.0
    %3077 = vmatpush.msra.mxu0 0.0
    %3078 = vmatpush.msra.mxu0 0.0
    %3079 = vmatpush.msra.mxu0 0.0
    %3080 = vmatpush.msra.mxu0 0.0
    %3081 = vmatpush.msra.mxu0 0.0
    %3082 = vmatpush.msra.mxu0 0.0
    %3083 = vmatpush.msra.mxu0 0.0
    %3084 = vmatpush.msra.mxu0 0.0
    %3085 = vmatpush.msra.mxu0 0.0
    %v3086 = vand.u32 %v122, 4294901760
    %3087 = vmatpush.msra.mxu0 %v3086
    %v3088 = vand.u32 %v120, 4294901760
    %3089 = vmatpush.msra.mxu0 %v3088
    %v3090 = vand.u32 %v2484, 4294901760
    %3091 = vmatmul.f32.gmra.mxu0 %v3090
    %v3092 = vpop.f32.mrf.mxu0
    %v3093 = vadd.f32 %v3010, %v3092
    %v3094 = vand.u32 %v2487, 4294901760
    %3095 = vmatmul.f32.gmra.mxu0 %v3094
    %v3096 = vpop.f32.mrf.mxu0
    %v3097 = vadd.f32 %v3014, %v3096
    %v3098 = vand.u32 %v2490, 4294901760
    %3099 = vmatmul.f32.gmra.mxu0 %v3098
    %v3100 = vpop.f32.mrf.mxu0
    %v3101 = vadd.f32 %v3018, %v3100
    %v3102 = vand.u32 %v2493, 4294901760
    %3103 = vmatmul.f32.gmra.mxu0 %v3102
    %v3104 = vpop.f32.mrf.mxu0
    %v3105 = vadd.f32 %v3022, %v3104
    %v3106 = vand.u32 %v2496, 4294901760
    %3107 = vmatmul.f32.gmra.mxu0 %v3106
    %v3108 = vpop.f32.mrf.mxu0
    %v3109 = vadd.f32 %v3026, %v3108
    %v3110 = vand.u32 %v2499, 4294901760
    %3111 = vmatmul.f32.gmra.mxu0 %v3110
    %v3112 = vpop.f32.mrf.mxu0
    %v3113 = vadd.f32 %v3030, %v3112
    %v3114 = vand.u32 %v2502, 4294901760
    %3115 = vmatmul.f32.gmra.mxu0 %v3114
    %v3116 = vpop.f32.mrf.mxu0
    %v3117 = vadd.f32 %v3034, %v3116
    %v3118 = vand.u32 %v2505, 4294901760
    %3119 = vmatmul.f32.gmra.mxu0 %v3118
    %v3120 = vpop.f32.mrf.mxu0
    %v3121 = vadd.f32 %v3038, %v3120
    %v3122 = vand.u32 %v2508, 4294901760
    %3123 = vmatmul.f32.gmra.mxu0 %v3122
    %v3124 = vpop.f32.mrf.mxu0
    %v3125 = vadd.f32 %v3042, %v3124
    %v3126 = vand.u32 %v2511, 4294901760
    %3127 = vmatmul.f32.gmra.mxu0 %v3126
    %v3128 = vpop.f32.mrf.mxu0
    %v3129 = vadd.f32 %v3046, %v3128
    %v3130 = vand.u32 %v2514, 4294901760
    %3131 = vmatmul.f32.gmra.mxu0 %v3130
    %v3132 = vpop.f32.mrf.mxu0
    %v3133 = vadd.f32 %v3050, %v3132
    %v3134 = vand.u32 %v2517, 4294901760
    %3135 = vmatmul.f32.gmra.mxu0 %v3134
    %v3136 = vpop.f32.mrf.mxu0
    %v3137 = vadd.f32 %v3054, %v3136
    %v3138 = vand.u32 %v2520, 4294901760
    %3139 = vmatmul.f32.gmra.mxu0 %v3138
    %v3140 = vpop.f32.mrf.mxu0
    %v3141 = vadd.f32 %v3058, %v3140
    %v3142 = vand.u32 %v2523, 4294901760
    %3143 = vmatmul.f32.gmra.mxu0 %v3142
    %v3144 = vpop.f32.mrf.mxu0
    %v3145 = vadd.f32 %v3062, %v3144
    %v3146 = vand.u32 %v2526, 4294901760
    %3147 = vmatmul.f32.gmra.mxu0 %v3146
    %v3148 = vpop.f32.mrf.mxu0
    %v3149 = vadd.f32 %v3066, %v3148
    %v3150 = vand.u32 %v2529, 4294901760
    %3151 = vmatmul.f32.gmra.mxu0 %v3150
    %v3152 = vpop.f32.mrf.mxu0
    %v3153 = vadd.f32 %v3070, %v3152
    %3154 = vdwg.mxu0
    %3155 = vmatpush.msra.mxu0 0.0
    %3156 = vmatpush.msra.mxu0 0.0
    %3157 = vmatpush.msra.mxu0 0.0
    %3158 = vmatpush.msra.mxu0 0.0
    %3159 = vmatpush.msra.mxu0 0.0
    %3160 = vmatpush.msra.mxu0 0.0
    %3161 = vmatpush.msra.mxu0 0.0
    %3162 = vmatpush.msra.mxu0 0.0
    %3163 = vmatpush.msra.mxu0 0.0
    %3164 = vmatpush.msra.mxu0 0.0
    %3165 = vmatpush.msra.mxu0 0.0
    %3166 = vmatpush.msra.mxu0 0.0
    %3167 = vmatpush.msra.mxu0 0.0
    %3168 = vmatpush.msra.mxu0 0.0
    %v3169 = vand.u32 %v123, 4294901760
    %3170 = vmatpush.msra.mxu0 %v3169
    %v3171 = vand.u32 %v121, 4294901760
    %3172 = vmatpush.msra.mxu0 %v3171
    %v3173 = vand.u32 %v2484, 4294901760
    %v3174 = vsub.f32 %v2484, %v3173
    %v3175 = vand.u32 %v3174, 4294901760
    %v3176 = vsub.f32 %v3174, %v3175
    %v3177 = vand.u32 %v3176, 4294901760
    %3178 = vmatmul.f32.gmra.mxu0 %v3177
    %v3179 = vpop.f32.mrf.mxu0
    %v3180 = vadd.f32 0.0, %v3179
    %v3181 = vand.u32 %v2487, 4294901760
    %v3182 = vsub.f32 %v2487, %v3181
    %v3183 = vand.u32 %v3182, 4294901760
    %v3184 = vsub.f32 %v3182, %v3183
    %v3185 = vand.u32 %v3184, 4294901760
    %3186 = vmatmul.f32.gmra.mxu0 %v3185
    %v3187 = vpop.f32.mrf.mxu0
    %v3188 = vadd.f32 0.0, %v3187
    %v3189 = vand.u32 %v2490, 4294901760
    %v3190 = vsub.f32 %v2490, %v3189
    %v3191 = vand.u32 %v3190, 4294901760
    %v3192 = vsub.f32 %v3190, %v3191
    %v3193 = vand.u32 %v3192, 4294901760
    %3194 = vmatmul.f32.gmra.mxu0 %v3193
    %v3195 = vpop.f32.mrf.mxu0
    %v3196 = vadd.f32 0.0, %v3195
    %v3197 = vand.u32 %v2493, 4294901760
    %v3198 = vsub.f32 %v2493, %v3197
    %v3199 = vand.u32 %v3198, 4294901760
    %v3200 = vsub.f32 %v3198, %v3199
    %v3201 = vand.u32 %v3200, 4294901760
    %3202 = vmatmul.f32.gmra.mxu0 %v3201
    %v3203 = vpop.f32.mrf.mxu0
    %v3204 = vadd.f32 0.0, %v3203
    %v3205 = vand.u32 %v2496, 4294901760
    %v3206 = vsub.f32 %v2496, %v3205
    %v3207 = vand.u32 %v3206, 4294901760
    %v3208 = vsub.f32 %v3206, %v3207
    %v3209 = vand.u32 %v3208, 4294901760
    %3210 = vmatmul.f32.gmra.mxu0 %v3209
    %v3211 = vpop.f32.mrf.mxu0
    %v3212 = vadd.f32 0.0, %v3211
    %v3213 = vand.u32 %v2499, 4294901760
    %v3214 = vsub.f32 %v2499, %v3213
    %v3215 = vand.u32 %v3214, 4294901760
    %v3216 = vsub.f32 %v3214, %v3215
    %v3217 = vand.u32 %v3216, 4294901760
    %3218 = vmatmul.f32.gmra.mxu0 %v3217
    %v3219 = vpop.f32.mrf.mxu0
    %v3220 = vadd.f32 0.0, %v3219
    %v3221 = vand.u32 %v2502, 4294901760
    %v3222 = vsub.f32 %v2502, %v3221
    %v3223 = vand.u32 %v3222, 4294901760
    %v3224 = vsub.f32 %v3222, %v3223
    %v3225 = vand.u32 %v3224, 4294901760
    %3226 = vmatmul.f32.gmra.mxu0 %v3225
    %v3227 = vpop.f32.mrf.mxu0
    %v3228 = vadd.f32 0.0, %v3227
    %v3229 = vand.u32 %v2505, 4294901760
    %v3230 = vsub.f32 %v2505, %v3229
    %v3231 = vand.u32 %v3230, 4294901760
    %v3232 = vsub.f32 %v3230, %v3231
    %v3233 = vand.u32 %v3232, 4294901760
    %3234 = vmatmul.f32.gmra.mxu0 %v3233
    %v3235 = vpop.f32.mrf.mxu0
    %v3236 = vadd.f32 0.0, %v3235
    %v3237 = vand.u32 %v2508, 4294901760
    %v3238 = vsub.f32 %v2508, %v3237
    %v3239 = vand.u32 %v3238, 4294901760
    %v3240 = vsub.f32 %v3238, %v3239
    %v3241 = vand.u32 %v3240, 4294901760
    %3242 = vmatmul.f32.gmra.mxu0 %v3241
    %v3243 = vpop.f32.mrf.mxu0
    %v3244 = vadd.f32 0.0, %v3243
    %v3245 = vand.u32 %v2511, 4294901760
    %v3246 = vsub.f32 %v2511, %v3245
    %v3247 = vand.u32 %v3246, 4294901760
    %v3248 = vsub.f32 %v3246, %v3247
    %v3249 = vand.u32 %v3248, 4294901760
    %3250 = vmatmul.f32.gmra.mxu0 %v3249
    %v3251 = vpop.f32.mrf.mxu0
    %v3252 = vadd.f32 0.0, %v3251
    %v3253 = vand.u32 %v2514, 4294901760
    %v3254 = vsub.f32 %v2514, %v3253
    %v3255 = vand.u32 %v3254, 4294901760
    %v3256 = vsub.f32 %v3254, %v3255
    %v3257 = vand.u32 %v3256, 4294901760
    %3258 = vmatmul.f32.gmra.mxu0 %v3257
    %v3259 = vpop.f32.mrf.mxu0
    %v3260 = vadd.f32 0.0, %v3259
    %v3261 = vand.u32 %v2517, 4294901760
    %v3262 = vsub.f32 %v2517, %v3261
    %v3263 = vand.u32 %v3262, 4294901760
    %v3264 = vsub.f32 %v3262, %v3263
    %v3265 = vand.u32 %v3264, 4294901760
    %3266 = vmatmul.f32.gmra.mxu0 %v3265
    %v3267 = vpop.f32.mrf.mxu0
    %v3268 = vadd.f32 0.0, %v3267
    %v3269 = vand.u32 %v2520, 4294901760
    %v3270 = vsub.f32 %v2520, %v3269
    %v3271 = vand.u32 %v3270, 4294901760
    %v3272 = vsub.f32 %v3270, %v3271
    %v3273 = vand.u32 %v3272, 4294901760
    %3274 = vmatmul.f32.gmra.mxu0 %v3273
    %v3275 = vpop.f32.mrf.mxu0
    %v3276 = vadd.f32 0.0, %v3275
    %v3277 = vand.u32 %v2523, 4294901760
    %v3278 = vsub.f32 %v2523, %v3277
    %v3279 = vand.u32 %v3278, 4294901760
    %v3280 = vsub.f32 %v3278, %v3279
    %v3281 = vand.u32 %v3280, 4294901760
    %3282 = vmatmul.f32.gmra.mxu0 %v3281
    %v3283 = vpop.f32.mrf.mxu0
    %v3284 = vadd.f32 0.0, %v3283
    %v3285 = vand.u32 %v2526, 4294901760
    %v3286 = vsub.f32 %v2526, %v3285
    %v3287 = vand.u32 %v3286, 4294901760
    %v3288 = vsub.f32 %v3286, %v3287
    %v3289 = vand.u32 %v3288, 4294901760
    %3290 = vmatmul.f32.gmra.mxu0 %v3289
    %v3291 = vpop.f32.mrf.mxu0
    %v3292 = vadd.f32 0.0, %v3291
    %v3293 = vand.u32 %v2529, 4294901760
    %v3294 = vsub.f32 %v2529, %v3293
    %v3295 = vand.u32 %v3294, 4294901760
    %v3296 = vsub.f32 %v3294, %v3295
    %v3297 = vand.u32 %v3296, 4294901760
    %3298 = vmatmul.f32.gmra.mxu0 %v3297
    %v3299 = vpop.f32.mrf.mxu0
    %v3300 = vadd.f32 0.0, %v3299
    %3301 = vdwg.mxu0
    %3302 = vmatpush.msra.mxu0 0.0
    %3303 = vmatpush.msra.mxu0 0.0
    %3304 = vmatpush.msra.mxu0 0.0
    %3305 = vmatpush.msra.mxu0 0.0
    %3306 = vmatpush.msra.mxu0 0.0
    %3307 = vmatpush.msra.mxu0 0.0
    %3308 = vmatpush.msra.mxu0 0.0
    %3309 = vmatpush.msra.mxu0 0.0
    %3310 = vmatpush.msra.mxu0 0.0
    %3311 = vmatpush.msra.mxu0 0.0
    %3312 = vmatpush.msra.mxu0 0.0
    %3313 = vmatpush.msra.mxu0 0.0
    %3314 = vmatpush.msra.mxu0 0.0
    %3315 = vmatpush.msra.mxu0 0.0
    %v3316 = vand.u32 %v123, 4294901760
    %v3317 = vsub.f32 %v123, %v3316
    %v3318 = vand.u32 %v3317, 4294901760
    %v3319 = vsub.f32 %v3317, %v3318
    %v3320 = vand.u32 %v3319, 4294901760
    %3321 = vmatpush.msra.mxu0 %v3320
    %v3322 = vand.u32 %v121, 4294901760
    %v3323 = vsub.f32 %v121, %v3322
    %v3324 = vand.u32 %v3323, 4294901760
    %v3325 = vsub.f32 %v3323, %v3324
    %v3326 = vand.u32 %v3325, 4294901760
    %3327 = vmatpush.msra.mxu0 %v3326
    %v3328 = vand.u32 %v2484, 4294901760
    %3329 = vmatmul.f32.gmra.mxu0 %v3328
    %v3330 = vpop.f32.mrf.mxu0
    %v3331 = vadd.f32 %v3180, %v3330
    %v3332 = vand.u32 %v2487, 4294901760
    %3333 = vmatmul.f32.gmra.mxu0 %v3332
    %v3334 = vpop.f32.mrf.mxu0
    %v3335 = vadd.f32 %v3188, %v3334
    %v3336 = vand.u32 %v2490, 4294901760
    %3337 = vmatmul.f32.gmra.mxu0 %v3336
    %v3338 = vpop.f32.mrf.mxu0
    %v3339 = vadd.f32 %v3196, %v3338
    %v3340 = vand.u32 %v2493, 4294901760
    %3341 = vmatmul.f32.gmra.mxu0 %v3340
    %v3342 = vpop.f32.mrf.mxu0
    %v3343 = vadd.f32 %v3204, %v3342
    %v3344 = vand.u32 %v2496, 4294901760
    %3345 = vmatmul.f32.gmra.mxu0 %v3344
    %v3346 = vpop.f32.mrf.mxu0
    %v3347 = vadd.f32 %v3212, %v3346
    %v3348 = vand.u32 %v2499, 4294901760
    %3349 = vmatmul.f32.gmra.mxu0 %v3348
    %v3350 = vpop.f32.mrf.mxu0
    %v3351 = vadd.f32 %v3220, %v3350
    %v3352 = vand.u32 %v2502, 4294901760
    %3353 = vmatmul.f32.gmra.mxu0 %v3352
    %v3354 = vpop.f32.mrf.mxu0
    %v3355 = vadd.f32 %v3228, %v3354
    %v3356 = vand.u32 %v2505, 4294901760
    %3357 = vmatmul.f32.gmra.mxu0 %v3356
    %v3358 = vpop.f32.mrf.mxu0
    %v3359 = vadd.f32 %v3236, %v3358
    %v3360 = vand.u32 %v2508, 4294901760
    %3361 = vmatmul.f32.gmra.mxu0 %v3360
    %v3362 = vpop.f32.mrf.mxu0
    %v3363 = vadd.f32 %v3244, %v3362
    %v3364 = vand.u32 %v2511, 4294901760
    %3365 = vmatmul.f32.gmra.mxu0 %v3364
    %v3366 = vpop.f32.mrf.mxu0
    %v3367 = vadd.f32 %v3252, %v3366
    %v3368 = vand.u32 %v2514, 4294901760
    %3369 = vmatmul.f32.gmra.mxu0 %v3368
    %v3370 = vpop.f32.mrf.mxu0
    %v3371 = vadd.f32 %v3260, %v3370
    %v3372 = vand.u32 %v2517, 4294901760
    %3373 = vmatmul.f32.gmra.mxu0 %v3372
    %v3374 = vpop.f32.mrf.mxu0
    %v3375 = vadd.f32 %v3268, %v3374
    %v3376 = vand.u32 %v2520, 4294901760
    %3377 = vmatmul.f32.gmra.mxu0 %v3376
    %v3378 = vpop.f32.mrf.mxu0
    %v3379 = vadd.f32 %v3276, %v3378
    %v3380 = vand.u32 %v2523, 4294901760
    %3381 = vmatmul.f32.gmra.mxu0 %v3380
    %v3382 = vpop.f32.mrf.mxu0
    %v3383 = vadd.f32 %v3284, %v3382
    %v3384 = vand.u32 %v2526, 4294901760
    %3385 = vmatmul.f32.gmra.mxu0 %v3384
    %v3386 = vpop.f32.mrf.mxu0
    %v3387 = vadd.f32 %v3292, %v3386
    %v3388 = vand.u32 %v2529, 4294901760
    %3389 = vmatmul.f32.gmra.mxu0 %v3388
    %v3390 = vpop.f32.mrf.mxu0
    %v3391 = vadd.f32 %v3300, %v3390
    %3392 = vdwg.mxu0
    %3393 = vmatpush.msra.mxu0 0.0
    %3394 = vmatpush.msra.mxu0 0.0
    %3395 = vmatpush.msra.mxu0 0.0
    %3396 = vmatpush.msra.mxu0 0.0
    %3397 = vmatpush.msra.mxu0 0.0
    %3398 = vmatpush.msra.mxu0 0.0
    %3399 = vmatpush.msra.mxu0 0.0
    %3400 = vmatpush.msra.mxu0 0.0
    %3401 = vmatpush.msra.mxu0 0.0
    %3402 = vmatpush.msra.mxu0 0.0
    %3403 = vmatpush.msra.mxu0 0.0
    %3404 = vmatpush.msra.mxu0 0.0
    %3405 = vmatpush.msra.mxu0 0.0
    %3406 = vmatpush.msra.mxu0 0.0
    %v3407 = vand.u32 %v123, 4294901760
    %v3408 = vsub.f32 %v123, %v3407
    %3409 = vmatpush.msra.mxu0 %v3408
    %v3410 = vand.u32 %v121, 4294901760
    %v3411 = vsub.f32 %v121, %v3410
    %3412 = vmatpush.msra.mxu0 %v3411
    %v3413 = vand.u32 %v2484, 4294901760
    %v3414 = vsub.f32 %v2484, %v3413
    %3415 = vmatmul.f32.gmra.mxu0 %v3414
    %v3416 = vpop.f32.mrf.mxu0
    %v3417 = vadd.f32 %v3331, %v3416
    %v3418 = vand.u32 %v2487, 4294901760
    %v3419 = vsub.f32 %v2487, %v3418
    %3420 = vmatmul.f32.gmra.mxu0 %v3419
    %v3421 = vpop.f32.mrf.mxu0
    %v3422 = vadd.f32 %v3335, %v3421
    %v3423 = vand.u32 %v2490, 4294901760
    %v3424 = vsub.f32 %v2490, %v3423
    %3425 = vmatmul.f32.gmra.mxu0 %v3424
    %v3426 = vpop.f32.mrf.mxu0
    %v3427 = vadd.f32 %v3339, %v3426
    %v3428 = vand.u32 %v2493, 4294901760
    %v3429 = vsub.f32 %v2493, %v3428
    %3430 = vmatmul.f32.gmra.mxu0 %v3429
    %v3431 = vpop.f32.mrf.mxu0
    %v3432 = vadd.f32 %v3343, %v3431
    %v3433 = vand.u32 %v2496, 4294901760
    %v3434 = vsub.f32 %v2496, %v3433
    %3435 = vmatmul.f32.gmra.mxu0 %v3434
    %v3436 = vpop.f32.mrf.mxu0
    %v3437 = vadd.f32 %v3347, %v3436
    %v3438 = vand.u32 %v2499, 4294901760
    %v3439 = vsub.f32 %v2499, %v3438
    %3440 = vmatmul.f32.gmra.mxu0 %v3439
    %v3441 = vpop.f32.mrf.mxu0
    %v3442 = vadd.f32 %v3351, %v3441
    %v3443 = vand.u32 %v2502, 4294901760
    %v3444 = vsub.f32 %v2502, %v3443
    %3445 = vmatmul.f32.gmra.mxu0 %v3444
    %v3446 = vpop.f32.mrf.mxu0
    %v3447 = vadd.f32 %v3355, %v3446
    %v3448 = vand.u32 %v2505, 4294901760
    %v3449 = vsub.f32 %v2505, %v3448
    %3450 = vmatmul.f32.gmra.mxu0 %v3449
    %v3451 = vpop.f32.mrf.mxu0
    %v3452 = vadd.f32 %v3359, %v3451
    %v3453 = vand.u32 %v2508, 4294901760
    %v3454 = vsub.f32 %v2508, %v3453
    %3455 = vmatmul.f32.gmra.mxu0 %v3454
    %v3456 = vpop.f32.mrf.mxu0
    %v3457 = vadd.f32 %v3363, %v3456
    %v3458 = vand.u32 %v2511, 4294901760
    %v3459 = vsub.f32 %v2511, %v3458
    %3460 = vmatmul.f32.gmra.mxu0 %v3459
    %v3461 = vpop.f32.mrf.mxu0
    %v3462 = vadd.f32 %v3367, %v3461
    %v3463 = vand.u32 %v2514, 4294901760
    %v3464 = vsub.f32 %v2514, %v3463
    %3465 = vmatmul.f32.gmra.mxu0 %v3464
    %v3466 = vpop.f32.mrf.mxu0
    %v3467 = vadd.f32 %v3371, %v3466
    %v3468 = vand.u32 %v2517, 4294901760
    %v3469 = vsub.f32 %v2517, %v3468
    %3470 = vmatmul.f32.gmra.mxu0 %v3469
    %v3471 = vpop.f32.mrf.mxu0
    %v3472 = vadd.f32 %v3375, %v3471
    %v3473 = vand.u32 %v2520, 4294901760
    %v3474 = vsub.f32 %v2520, %v3473
    %3475 = vmatmul.f32.gmra.mxu0 %v3474
    %v3476 = vpop.f32.mrf.mxu0
    %v3477 = vadd.f32 %v3379, %v3476
    %v3478 = vand.u32 %v2523, 4294901760
    %v3479 = vsub.f32 %v2523, %v3478
    %3480 = vmatmul.f32.gmra.mxu0 %v3479
    %v3481 = vpop.f32.mrf.mxu0
    %v3482 = vadd.f32 %v3383, %v3481
    %v3483 = vand.u32 %v2526, 4294901760
    %v3484 = vsub.f32 %v2526, %v3483
    %3485 = vmatmul.f32.gmra.mxu0 %v3484
    %v3486 = vpop.f32.mrf.mxu0
    %v3487 = vadd.f32 %v3387, %v3486
    %v3488 = vand.u32 %v2529, 4294901760
    %v3489 = vsub.f32 %v2529, %v3488
    %3490 = vmatmul.f32.gmra.mxu0 %v3489
    %v3491 = vpop.f32.mrf.mxu0
    %v3492 = vadd.f32 %v3391, %v3491
    %3493 = vdwg.mxu0
    %3494 = vmatpush.msra.mxu0 0.0
    %3495 = vmatpush.msra.mxu0 0.0
    %3496 = vmatpush.msra.mxu0 0.0
    %3497 = vmatpush.msra.mxu0 0.0
    %3498 = vmatpush.msra.mxu0 0.0
    %3499 = vmatpush.msra.mxu0 0.0
    %3500 = vmatpush.msra.mxu0 0.0
    %3501 = vmatpush.msra.mxu0 0.0
    %3502 = vmatpush.msra.mxu0 0.0
    %3503 = vmatpush.msra.mxu0 0.0
    %3504 = vmatpush.msra.mxu0 0.0
    %3505 = vmatpush.msra.mxu0 0.0
    %3506 = vmatpush.msra.mxu0 0.0
    %3507 = vmatpush.msra.mxu0 0.0
    %v3508 = vand.u32 %v123, 4294901760
    %3509 = vmatpush.msra.mxu0 %v3508
    %v3510 = vand.u32 %v121, 4294901760
    %3511 = vmatpush.msra.mxu0 %v3510
    %v3512 = vand.u32 %v2484, 4294901760
    %v3513 = vsub.f32 %v2484, %v3512
    %v3514 = vand.u32 %v3513, 4294901760
    %3515 = vmatmul.f32.gmra.mxu0 %v3514
    %v3516 = vpop.f32.mrf.mxu0
    %v3517 = vadd.f32 %v3417, %v3516
    %v3518 = vand.u32 %v2487, 4294901760
    %v3519 = vsub.f32 %v2487, %v3518
    %v3520 = vand.u32 %v3519, 4294901760
    %3521 = vmatmul.f32.gmra.mxu0 %v3520
    %v3522 = vpop.f32.mrf.mxu0
    %v3523 = vadd.f32 %v3422, %v3522
    %v3524 = vand.u32 %v2490, 4294901760
    %v3525 = vsub.f32 %v2490, %v3524
    %v3526 = vand.u32 %v3525, 4294901760
    %3527 = vmatmul.f32.gmra.mxu0 %v3526
    %v3528 = vpop.f32.mrf.mxu0
    %v3529 = vadd.f32 %v3427, %v3528
    %v3530 = vand.u32 %v2493, 4294901760
    %v3531 = vsub.f32 %v2493, %v3530
    %v3532 = vand.u32 %v3531, 4294901760
    %3533 = vmatmul.f32.gmra.mxu0 %v3532
    %v3534 = vpop.f32.mrf.mxu0
    %v3535 = vadd.f32 %v3432, %v3534
    %v3536 = vand.u32 %v2496, 4294901760
    %v3537 = vsub.f32 %v2496, %v3536
    %v3538 = vand.u32 %v3537, 4294901760
    %3539 = vmatmul.f32.gmra.mxu0 %v3538
    %v3540 = vpop.f32.mrf.mxu0
    %v3541 = vadd.f32 %v3437, %v3540
    %v3542 = vand.u32 %v2499, 4294901760
    %v3543 = vsub.f32 %v2499, %v3542
    %v3544 = vand.u32 %v3543, 4294901760
    %3545 = vmatmul.f32.gmra.mxu0 %v3544
    %v3546 = vpop.f32.mrf.mxu0
    %v3547 = vadd.f32 %v3442, %v3546
    %v3548 = vand.u32 %v2502, 4294901760
    %v3549 = vsub.f32 %v2502, %v3548
    %v3550 = vand.u32 %v3549, 4294901760
    %3551 = vmatmul.f32.gmra.mxu0 %v3550
    %v3552 = vpop.f32.mrf.mxu0
    %v3553 = vadd.f32 %v3447, %v3552
    %v3554 = vand.u32 %v2505, 4294901760
    %v3555 = vsub.f32 %v2505, %v3554
    %v3556 = vand.u32 %v3555, 4294901760
    %3557 = vmatmul.f32.gmra.mxu0 %v3556
    %v3558 = vpop.f32.mrf.mxu0
    %v3559 = vadd.f32 %v3452, %v3558
    %v3560 = vand.u32 %v2508, 4294901760
    %v3561 = vsub.f32 %v2508, %v3560
    %v3562 = vand.u32 %v3561, 4294901760
    %3563 = vmatmul.f32.gmra.mxu0 %v3562
    %v3564 = vpop.f32.mrf.mxu0
    %v3565 = vadd.f32 %v3457, %v3564
    %v3566 = vand.u32 %v2511, 4294901760
    %v3567 = vsub.f32 %v2511, %v3566
    %v3568 = vand.u32 %v3567, 4294901760
    %3569 = vmatmul.f32.gmra.mxu0 %v3568
    %v3570 = vpop.f32.mrf.mxu0
    %v3571 = vadd.f32 %v3462, %v3570
    %v3572 = vand.u32 %v2514, 4294901760
    %v3573 = vsub.f32 %v2514, %v3572
    %v3574 = vand.u32 %v3573, 4294901760
    %3575 = vmatmul.f32.gmra.mxu0 %v3574
    %v3576 = vpop.f32.mrf.mxu0
    %v3577 = vadd.f32 %v3467, %v3576
    %v3578 = vand.u32 %v2517, 4294901760
    %v3579 = vsub.f32 %v2517, %v3578
    %v3580 = vand.u32 %v3579, 4294901760
    %3581 = vmatmul.f32.gmra.mxu0 %v3580
    %v3582 = vpop.f32.mrf.mxu0
    %v3583 = vadd.f32 %v3472, %v3582
    %v3584 = vand.u32 %v2520, 4294901760
    %v3585 = vsub.f32 %v2520, %v3584
    %v3586 = vand.u32 %v3585, 4294901760
    %3587 = vmatmul.f32.gmra.mxu0 %v3586
    %v3588 = vpop.f32.mrf.mxu0
    %v3589 = vadd.f32 %v3477, %v3588
    %v3590 = vand.u32 %v2523, 4294901760
    %v3591 = vsub.f32 %v2523, %v3590
    %v3592 = vand.u32 %v3591, 4294901760
    %3593 = vmatmul.f32.gmra.mxu0 %v3592
    %v3594 = vpop.f32.mrf.mxu0
    %v3595 = vadd.f32 %v3482, %v3594
    %v3596 = vand.u32 %v2526, 4294901760
    %v3597 = vsub.f32 %v2526, %v3596
    %v3598 = vand.u32 %v3597, 4294901760
    %3599 = vmatmul.f32.gmra.mxu0 %v3598
    %v3600 = vpop.f32.mrf.mxu0
    %v3601 = vadd.f32 %v3487, %v3600
    %v3602 = vand.u32 %v2529, 4294901760
    %v3603 = vsub.f32 %v2529, %v3602
    %v3604 = vand.u32 %v3603, 4294901760
    %3605 = vmatmul.f32.gmra.mxu0 %v3604
    %v3606 = vpop.f32.mrf.mxu0
    %v3607 = vadd.f32 %v3492, %v3606
    %3608 = vdwg.mxu0
    %3609 = vmatpush.msra.mxu0 0.0
    %3610 = vmatpush.msra.mxu0 0.0
    %3611 = vmatpush.msra.mxu0 0.0
    %3612 = vmatpush.msra.mxu0 0.0
    %3613 = vmatpush.msra.mxu0 0.0
    %3614 = vmatpush.msra.mxu0 0.0
    %3615 = vmatpush.msra.mxu0 0.0
    %3616 = vmatpush.msra.mxu0 0.0
    %3617 = vmatpush.msra.mxu0 0.0
    %3618 = vmatpush.msra.mxu0 0.0
    %3619 = vmatpush.msra.mxu0 0.0
    %3620 = vmatpush.msra.mxu0 0.0
    %3621 = vmatpush.msra.mxu0 0.0
    %3622 = vmatpush.msra.mxu0 0.0
    %v3623 = vand.u32 %v123, 4294901760
    %v3624 = vsub.f32 %v123, %v3623
    %v3625 = vand.u32 %v3624, 4294901760
    %3626 = vmatpush.msra.mxu0 %v3625
    %v3627 = vand.u32 %v121, 4294901760
    %v3628 = vsub.f32 %v121, %v3627
    %v3629 = vand.u32 %v3628, 4294901760
    %3630 = vmatpush.msra.mxu0 %v3629
    %v3631 = vand.u32 %v2484, 4294901760
    %3632 = vmatmul.f32.gmra.mxu0 %v3631
    %v3633 = vpop.f32.mrf.mxu0
    %v3634 = vadd.f32 %v3517, %v3633
    %v3635 = vand.u32 %v2487, 4294901760
    %3636 = vmatmul.f32.gmra.mxu0 %v3635
    %v3637 = vpop.f32.mrf.mxu0
    %v3638 = vadd.f32 %v3523, %v3637
    %v3639 = vand.u32 %v2490, 4294901760
    %3640 = vmatmul.f32.gmra.mxu0 %v3639
    %v3641 = vpop.f32.mrf.mxu0
    %v3642 = vadd.f32 %v3529, %v3641
    %v3643 = vand.u32 %v2493, 4294901760
    %3644 = vmatmul.f32.gmra.mxu0 %v3643
    %v3645 = vpop.f32.mrf.mxu0
    %v3646 = vadd.f32 %v3535, %v3645
    %v3647 = vand.u32 %v2496, 4294901760
    %3648 = vmatmul.f32.gmra.mxu0 %v3647
    %v3649 = vpop.f32.mrf.mxu0
    %v3650 = vadd.f32 %v3541, %v3649
    %v3651 = vand.u32 %v2499, 4294901760
    %3652 = vmatmul.f32.gmra.mxu0 %v3651
    %v3653 = vpop.f32.mrf.mxu0
    %v3654 = vadd.f32 %v3547, %v3653
    %v3655 = vand.u32 %v2502, 4294901760
    %3656 = vmatmul.f32.gmra.mxu0 %v3655
    %v3657 = vpop.f32.mrf.mxu0
    %v3658 = vadd.f32 %v3553, %v3657
    %v3659 = vand.u32 %v2505, 4294901760
    %3660 = vmatmul.f32.gmra.mxu0 %v3659
    %v3661 = vpop.f32.mrf.mxu0
    %v3662 = vadd.f32 %v3559, %v3661
    %v3663 = vand.u32 %v2508, 4294901760
    %3664 = vmatmul.f32.gmra.mxu0 %v3663
    %v3665 = vpop.f32.mrf.mxu0
    %v3666 = vadd.f32 %v3565, %v3665
    %v3667 = vand.u32 %v2511, 4294901760
    %3668 = vmatmul.f32.gmra.mxu0 %v3667
    %v3669 = vpop.f32.mrf.mxu0
    %v3670 = vadd.f32 %v3571, %v3669
    %v3671 = vand.u32 %v2514, 4294901760
    %3672 = vmatmul.f32.gmra.mxu0 %v3671
    %v3673 = vpop.f32.mrf.mxu0
    %v3674 = vadd.f32 %v3577, %v3673
    %v3675 = vand.u32 %v2517, 4294901760
    %3676 = vmatmul.f32.gmra.mxu0 %v3675
    %v3677 = vpop.f32.mrf.mxu0
    %v3678 = vadd.f32 %v3583, %v3677
    %v3679 = vand.u32 %v2520, 4294901760
    %3680 = vmatmul.f32.gmra.mxu0 %v3679
    %v3681 = vpop.f32.mrf.mxu0
    %v3682 = vadd.f32 %v3589, %v3681
    %v3683 = vand.u32 %v2523, 4294901760
    %3684 = vmatmul.f32.gmra.mxu0 %v3683
    %v3685 = vpop.f32.mrf.mxu0
    %v3686 = vadd.f32 %v3595, %v3685
    %v3687 = vand.u32 %v2526, 4294901760
    %3688 = vmatmul.f32.gmra.mxu0 %v3687
    %v3689 = vpop.f32.mrf.mxu0
    %v3690 = vadd.f32 %v3601, %v3689
    %v3691 = vand.u32 %v2529, 4294901760
    %3692 = vmatmul.f32.gmra.mxu0 %v3691
    %v3693 = vpop.f32.mrf.mxu0
    %v3694 = vadd.f32 %v3607, %v3693
    %3695 = vdwg.mxu0
    %3696 = vmatpush.msra.mxu0 0.0
    %3697 = vmatpush.msra.mxu0 0.0
    %3698 = vmatpush.msra.mxu0 0.0
    %3699 = vmatpush.msra.mxu0 0.0
    %3700 = vmatpush.msra.mxu0 0.0
    %3701 = vmatpush.msra.mxu0 0.0
    %3702 = vmatpush.msra.mxu0 0.0
    %3703 = vmatpush.msra.mxu0 0.0
    %3704 = vmatpush.msra.mxu0 0.0
    %3705 = vmatpush.msra.mxu0 0.0
    %3706 = vmatpush.msra.mxu0 0.0
    %3707 = vmatpush.msra.mxu0 0.0
    %3708 = vmatpush.msra.mxu0 0.0
    %3709 = vmatpush.msra.mxu0 0.0
    %v3710 = vand.u32 %v123, 4294901760
    %3711 = vmatpush.msra.mxu0 %v3710
    %v3712 = vand.u32 %v121, 4294901760
    %3713 = vmatpush.msra.mxu0 %v3712
    %v3714 = vand.u32 %v2484, 4294901760
    %3715 = vmatmul.f32.gmra.mxu0 %v3714
    %v3716 = vpop.f32.mrf.mxu0
    %v3717 = vadd.f32 %v3634, %v3716
    %v3718 = vand.u32 %v2487, 4294901760
    %3719 = vmatmul.f32.gmra.mxu0 %v3718
    %v3720 = vpop.f32.mrf.mxu0
    %v3721 = vadd.f32 %v3638, %v3720
    %v3722 = vand.u32 %v2490, 4294901760
    %3723 = vmatmul.f32.gmra.mxu0 %v3722
    %v3724 = vpop.f32.mrf.mxu0
    %v3725 = vadd.f32 %v3642, %v3724
    %v3726 = vand.u32 %v2493, 4294901760
    %3727 = vmatmul.f32.gmra.mxu0 %v3726
    %v3728 = vpop.f32.mrf.mxu0
    %v3729 = vadd.f32 %v3646, %v3728
    %v3730 = vand.u32 %v2496, 4294901760
    %3731 = vmatmul.f32.gmra.mxu0 %v3730
    %v3732 = vpop.f32.mrf.mxu0
    %v3733 = vadd.f32 %v3650, %v3732
    %v3734 = vand.u32 %v2499, 4294901760
    %3735 = vmatmul.f32.gmra.mxu0 %v3734
    %v3736 = vpop.f32.mrf.mxu0
    %v3737 = vadd.f32 %v3654, %v3736
    %v3738 = vand.u32 %v2502, 4294901760
    %3739 = vmatmul.f32.gmra.mxu0 %v3738
    %v3740 = vpop.f32.mrf.mxu0
    %v3741 = vadd.f32 %v3658, %v3740
    %v3742 = vand.u32 %v2505, 4294901760
    %3743 = vmatmul.f32.gmra.mxu0 %v3742
    %v3744 = vpop.f32.mrf.mxu0
    %v3745 = vadd.f32 %v3662, %v3744
    %v3746 = vand.u32 %v2508, 4294901760
    %3747 = vmatmul.f32.gmra.mxu0 %v3746
    %v3748 = vpop.f32.mrf.mxu0
    %v3749 = vadd.f32 %v3666, %v3748
    %v3750 = vand.u32 %v2511, 4294901760
    %3751 = vmatmul.f32.gmra.mxu0 %v3750
    %v3752 = vpop.f32.mrf.mxu0
    %v3753 = vadd.f32 %v3670, %v3752
    %v3754 = vand.u32 %v2514, 4294901760
    %3755 = vmatmul.f32.gmra.mxu0 %v3754
    %v3756 = vpop.f32.mrf.mxu0
    %v3757 = vadd.f32 %v3674, %v3756
    %v3758 = vand.u32 %v2517, 4294901760
    %3759 = vmatmul.f32.gmra.mxu0 %v3758
    %v3760 = vpop.f32.mrf.mxu0
    %v3761 = vadd.f32 %v3678, %v3760
    %v3762 = vand.u32 %v2520, 4294901760
    %3763 = vmatmul.f32.gmra.mxu0 %v3762
    %v3764 = vpop.f32.mrf.mxu0
    %v3765 = vadd.f32 %v3682, %v3764
    %v3766 = vand.u32 %v2523, 4294901760
    %3767 = vmatmul.f32.gmra.mxu0 %v3766
    %v3768 = vpop.f32.mrf.mxu0
    %v3769 = vadd.f32 %v3686, %v3768
    %v3770 = vand.u32 %v2526, 4294901760
    %3771 = vmatmul.f32.gmra.mxu0 %v3770
    %v3772 = vpop.f32.mrf.mxu0
    %v3773 = vadd.f32 %v3690, %v3772
    %v3774 = vand.u32 %v2529, 4294901760
    %3775 = vmatmul.f32.gmra.mxu0 %v3774
    %v3776 = vpop.f32.mrf.mxu0
    %v3777 = vadd.f32 %v3694, %v3776
    %3778 = vdwg.mxu0
    %v3779 = vmul.f32 %v1237, %v120
    %v3780 = vmul.f32 %v2357, %v121
    %v3781 = vmul.f32 %v1241, %v122
    %v3782 = vmul.f32 %v2361, %v123
    %v3783 = vmul.f32 %v1245, %v120
    %v3784 = vmul.f32 %v2365, %v121
    %v3785 = vmul.f32 %v1249, %v122
    %v3786 = vmul.f32 %v2369, %v123
    %v3787 = vmul.f32 %v1253, %v120
    %v3788 = vmul.f32 %v2373, %v121
    %v3789 = vmul.f32 %v1257, %v122
    %v3790 = vmul.f32 %v2377, %v123
    %v3791 = vmul.f32 %v1261, %v120
    %v3792 = vmul.f32 %v2381, %v121
    %v3793 = vmul.f32 %v1265, %v122
    %v3794 = vmul.f32 %v2385, %v123
    %v3795 = vmul.f32 %v1269, %v120
    %v3796 = vmul.f32 %v2389, %v121
    %v3797 = vmul.f32 %v1273, %v122
    %v3798 = vmul.f32 %v2393, %v123
    %v3799 = vmul.f32 %v1277, %v120
    %v3800 = vmul.f32 %v2397, %v121
    %v3801 = vmul.f32 %v1281, %v122
    %v3802 = vmul.f32 %v2401, %v123
    %v3803 = vmul.f32 %v1285, %v120
    %v3804 = vmul.f32 %v2405, %v121
    %v3805 = vmul.f32 %v1289, %v122
    %v3806 = vmul.f32 %v2409, %v123
    %v3807 = vmul.f32 %v1293, %v120
    %v3808 = vmul.f32 %v2413, %v121
    %v3809 = vmul.f32 %v1297, %v122
    %v3810 = vmul.f32 %v2417, %v123
    %v3811 = vadd.f32 %v3779, %v3781
    %v3812 = vrot.slane %v3811, 4
    %v3813 = vadd.f32 %v3811, %v3812
    %v3814 = vrot.slane %v3813, 2
    %v3815 = vadd.f32 %v3813, %v3814
    %v3816 = vrot.slane %v3815, 1
    %v3817 = vadd.f32 %v3815, %v3816
    %v3818 = vadd.f32 %v3780, %v3782
    %v3819 = vrot.slane %v3818, 4
    %v3820 = vadd.f32 %v3818, %v3819
    %v3821 = vrot.slane %v3820, 2
    %v3822 = vadd.f32 %v3820, %v3821
    %v3823 = vrot.slane %v3822, 1
    %v3824 = vadd.f32 %v3822, %v3823
    %v3825 = vadd.f32 %v3783, %v3785
    %v3826 = vrot.slane %v3825, 4
    %v3827 = vadd.f32 %v3825, %v3826
    %v3828 = vrot.slane %v3827, 2
    %v3829 = vadd.f32 %v3827, %v3828
    %v3830 = vrot.slane %v3829, 1
    %v3831 = vadd.f32 %v3829, %v3830
    %v3832 = vadd.f32 %v3784, %v3786
    %v3833 = vrot.slane %v3832, 4
    %v3834 = vadd.f32 %v3832, %v3833
    %v3835 = vrot.slane %v3834, 2
    %v3836 = vadd.f32 %v3834, %v3835
    %v3837 = vrot.slane %v3836, 1
    %v3838 = vadd.f32 %v3836, %v3837
    %v3839 = vadd.f32 %v3787, %v3789
    %v3840 = vrot.slane %v3839, 4
    %v3841 = vadd.f32 %v3839, %v3840
    %v3842 = vrot.slane %v3841, 2
    %v3843 = vadd.f32 %v3841, %v3842
    %v3844 = vrot.slane %v3843, 1
    %v3845 = vadd.f32 %v3843, %v3844
    %v3846 = vadd.f32 %v3788, %v3790
    %v3847 = vrot.slane %v3846, 4
    %v3848 = vadd.f32 %v3846, %v3847
    %v3849 = vrot.slane %v3848, 2
    %v3850 = vadd.f32 %v3848, %v3849
    %v3851 = vrot.slane %v3850, 1
    %v3852 = vadd.f32 %v3850, %v3851
    %v3853 = vadd.f32 %v3791, %v3793
    %v3854 = vrot.slane %v3853, 4
    %v3855 = vadd.f32 %v3853, %v3854
    %v3856 = vrot.slane %v3855, 2
    %v3857 = vadd.f32 %v3855, %v3856
    %v3858 = vrot.slane %v3857, 1
    %v3859 = vadd.f32 %v3857, %v3858
    %v3860 = vadd.f32 %v3792, %v3794
    %v3861 = vrot.slane %v3860, 4
    %v3862 = vadd.f32 %v3860, %v3861
    %v3863 = vrot.slane %v3862, 2
    %v3864 = vadd.f32 %v3862, %v3863
    %v3865 = vrot.slane %v3864, 1
    %v3866 = vadd.f32 %v3864, %v3865
    %v3867 = vadd.f32 %v3795, %v3797
    %v3868 = vrot.slane %v3867, 4
    %v3869 = vadd.f32 %v3867, %v3868
    %v3870 = vrot.slane %v3869, 2
    %v3871 = vadd.f32 %v3869, %v3870
    %v3872 = vrot.slane %v3871, 1
    %v3873 = vadd.f32 %v3871, %v3872
    %v3874 = vadd.f32 %v3796, %v3798
    %v3875 = vrot.slane %v3874, 4
    %v3876 = vadd.f32 %v3874, %v3875
    %v3877 = vrot.slane %v3876, 2
    %v3878 = vadd.f32 %v3876, %v3877
    %v3879 = vrot.slane %v3878, 1
    %v3880 = vadd.f32 %v3878, %v3879
    %v3881 = vadd.f32 %v3799, %v3801
    %v3882 = vrot.slane %v3881, 4
    %v3883 = vadd.f32 %v3881, %v3882
    %v3884 = vrot.slane %v3883, 2
    %v3885 = vadd.f32 %v3883, %v3884
    %v3886 = vrot.slane %v3885, 1
    %v3887 = vadd.f32 %v3885, %v3886
    %v3888 = vadd.f32 %v3800, %v3802
    %v3889 = vrot.slane %v3888, 4
    %v3890 = vadd.f32 %v3888, %v3889
    %v3891 = vrot.slane %v3890, 2
    %v3892 = vadd.f32 %v3890, %v3891
    %v3893 = vrot.slane %v3892, 1
    %v3894 = vadd.f32 %v3892, %v3893
    %v3895 = vadd.f32 %v3803, %v3805
    %v3896 = vrot.slane %v3895, 4
    %v3897 = vadd.f32 %v3895, %v3896
    %v3898 = vrot.slane %v3897, 2
    %v3899 = vadd.f32 %v3897, %v3898
    %v3900 = vrot.slane %v3899, 1
    %v3901 = vadd.f32 %v3899, %v3900
    %v3902 = vadd.f32 %v3804, %v3806
    %v3903 = vrot.slane %v3902, 4
    %v3904 = vadd.f32 %v3902, %v3903
    %v3905 = vrot.slane %v3904, 2
    %v3906 = vadd.f32 %v3904, %v3905
    %v3907 = vrot.slane %v3906, 1
    %v3908 = vadd.f32 %v3906, %v3907
    %v3909 = vadd.f32 %v3807, %v3809
    %v3910 = vrot.slane %v3909, 4
    %v3911 = vadd.f32 %v3909, %v3910
    %v3912 = vrot.slane %v3911, 2
    %v3913 = vadd.f32 %v3911, %v3912
    %v3914 = vrot.slane %v3913, 1
    %v3915 = vadd.f32 %v3913, %v3914
    %v3916 = vadd.f32 %v3808, %v3810
    %v3917 = vrot.slane %v3916, 4
    %v3918 = vadd.f32 %v3916, %v3917
    %v3919 = vrot.slane %v3918, 2
    %v3920 = vadd.f32 %v3918, %v3919
    %v3921 = vrot.slane %v3920, 1
    %v3922 = vadd.f32 %v3920, %v3921
    %v3923 = vmul.f32 %v1301, %v142
    %v3924 = vmul.f32 %v2421, %v143
    %v3925 = vmul.f32 %v1305, %v144
    %v3926 = vmul.f32 %v2425, %v145
    %v3927 = vmul.f32 %v1309, %v142
    %v3928 = vmul.f32 %v2429, %v143
    %v3929 = vmul.f32 %v1313, %v144
    %v3930 = vmul.f32 %v2433, %v145
    %v3931 = vmul.f32 %v1317, %v142
    %v3932 = vmul.f32 %v2437, %v143
    %v3933 = vmul.f32 %v1321, %v144
    %v3934 = vmul.f32 %v2441, %v145
    %v3935 = vmul.f32 %v1325, %v142
    %v3936 = vmul.f32 %v2445, %v143
    %v3937 = vmul.f32 %v1329, %v144
    %v3938 = vmul.f32 %v2449, %v145
    %v3939 = vmul.f32 %v1333, %v142
    %v3940 = vmul.f32 %v2453, %v143
    %v3941 = vmul.f32 %v1337, %v144
    %v3942 = vmul.f32 %v2457, %v145
    %v3943 = vmul.f32 %v1341, %v142
    %v3944 = vmul.f32 %v2461, %v143
    %v3945 = vmul.f32 %v1345, %v144
    %v3946 = vmul.f32 %v2465, %v145
    %v3947 = vmul.f32 %v1349, %v142
    %v3948 = vmul.f32 %v2469, %v143
    %v3949 = vmul.f32 %v1353, %v144
    %v3950 = vmul.f32 %v2473, %v145
    %v3951 = vmul.f32 %v1357, %v142
    %v3952 = vmul.f32 %v2477, %v143
    %v3953 = vmul.f32 %v1361, %v144
    %v3954 = vmul.f32 %v2481, %v145
    %v3955 = vadd.f32 %v3923, %v3925
    %v3956 = vrot.slane %v3955, 4
    %v3957 = vadd.f32 %v3955, %v3956
    %v3958 = vrot.slane %v3957, 2
    %v3959 = vadd.f32 %v3957, %v3958
    %v3960 = vrot.slane %v3959, 1
    %v3961 = vadd.f32 %v3959, %v3960
    %v3962 = vadd.f32 %v3924, %v3926
    %v3963 = vrot.slane %v3962, 4
    %v3964 = vadd.f32 %v3962, %v3963
    %v3965 = vrot.slane %v3964, 2
    %v3966 = vadd.f32 %v3964, %v3965
    %v3967 = vrot.slane %v3966, 1
    %v3968 = vadd.f32 %v3966, %v3967
    %v3969 = vadd.f32 %v3927, %v3929
    %v3970 = vrot.slane %v3969, 4
    %v3971 = vadd.f32 %v3969, %v3970
    %v3972 = vrot.slane %v3971, 2
    %v3973 = vadd.f32 %v3971, %v3972
    %v3974 = vrot.slane %v3973, 1
    %v3975 = vadd.f32 %v3973, %v3974
    %v3976 = vadd.f32 %v3928, %v3930
    %v3977 = vrot.slane %v3976, 4
    %v3978 = vadd.f32 %v3976, %v3977
    %v3979 = vrot.slane %v3978, 2
    %v3980 = vadd.f32 %v3978, %v3979
    %v3981 = vrot.slane %v3980, 1
    %v3982 = vadd.f32 %v3980, %v3981
    %v3983 = vadd.f32 %v3931, %v3933
    %v3984 = vrot.slane %v3983, 4
    %v3985 = vadd.f32 %v3983, %v3984
    %v3986 = vrot.slane %v3985, 2
    %v3987 = vadd.f32 %v3985, %v3986
    %v3988 = vrot.slane %v3987, 1
    %v3989 = vadd.f32 %v3987, %v3988
    %v3990 = vadd.f32 %v3932, %v3934
    %v3991 = vrot.slane %v3990, 4
    %v3992 = vadd.f32 %v3990, %v3991
    %v3993 = vrot.slane %v3992, 2
    %v3994 = vadd.f32 %v3992, %v3993
    %v3995 = vrot.slane %v3994, 1
    %v3996 = vadd.f32 %v3994, %v3995
    %v3997 = vadd.f32 %v3935, %v3937
    %v3998 = vrot.slane %v3997, 4
    %v3999 = vadd.f32 %v3997, %v3998
    %v4000 = vrot.slane %v3999, 2
    %v4001 = vadd.f32 %v3999, %v4000
    %v4002 = vrot.slane %v4001, 1
    %v4003 = vadd.f32 %v4001, %v4002
    %v4004 = vadd.f32 %v3936, %v3938
    %v4005 = vrot.slane %v4004, 4
    %v4006 = vadd.f32 %v4004, %v4005
    %v4007 = vrot.slane %v4006, 2
    %v4008 = vadd.f32 %v4006, %v4007
    %v4009 = vrot.slane %v4008, 1
    %v4010 = vadd.f32 %v4008, %v4009
    %v4011 = vadd.f32 %v3939, %v3941
    %v4012 = vrot.slane %v4011, 4
    %v4013 = vadd.f32 %v4011, %v4012
    %v4014 = vrot.slane %v4013, 2
    %v4015 = vadd.f32 %v4013, %v4014
    %v4016 = vrot.slane %v4015, 1
    %v4017 = vadd.f32 %v4015, %v4016
    %v4018 = vadd.f32 %v3940, %v3942
    %v4019 = vrot.slane %v4018, 4
    %v4020 = vadd.f32 %v4018, %v4019
    %v4021 = vrot.slane %v4020, 2
    %v4022 = vadd.f32 %v4020, %v4021
    %v4023 = vrot.slane %v4022, 1
    %v4024 = vadd.f32 %v4022, %v4023
    %v4025 = vadd.f32 %v3943, %v3945
    %v4026 = vrot.slane %v4025, 4
    %v4027 = vadd.f32 %v4025, %v4026
    %v4028 = vrot.slane %v4027, 2
    %v4029 = vadd.f32 %v4027, %v4028
    %v4030 = vrot.slane %v4029, 1
    %v4031 = vadd.f32 %v4029, %v4030
    %v4032 = vadd.f32 %v3944, %v3946
    %v4033 = vrot.slane %v4032, 4
    %v4034 = vadd.f32 %v4032, %v4033
    %v4035 = vrot.slane %v4034, 2
    %v4036 = vadd.f32 %v4034, %v4035
    %v4037 = vrot.slane %v4036, 1
    %v4038 = vadd.f32 %v4036, %v4037
    %v4039 = vadd.f32 %v3947, %v3949
    %v4040 = vrot.slane %v4039, 4
    %v4041 = vadd.f32 %v4039, %v4040
    %v4042 = vrot.slane %v4041, 2
    %v4043 = vadd.f32 %v4041, %v4042
    %v4044 = vrot.slane %v4043, 1
    %v4045 = vadd.f32 %v4043, %v4044
    %v4046 = vadd.f32 %v3948, %v3950
    %v4047 = vrot.slane %v4046, 4
    %v4048 = vadd.f32 %v4046, %v4047
    %v4049 = vrot.slane %v4048, 2
    %v4050 = vadd.f32 %v4048, %v4049
    %v4051 = vrot.slane %v4050, 1
    %v4052 = vadd.f32 %v4050, %v4051
    %v4053 = vadd.f32 %v3951, %v3953
    %v4054 = vrot.slane %v4053, 4
    %v4055 = vadd.f32 %v4053, %v4054
    %v4056 = vrot.slane %v4055, 2
    %v4057 = vadd.f32 %v4055, %v4056
    %v4058 = vrot.slane %v4057, 1
    %v4059 = vadd.f32 %v4057, %v4058
    %v4060 = vadd.f32 %v3952, %v3954
    %v4061 = vrot.slane %v4060, 4
    %v4062 = vadd.f32 %v4060, %v4061
    %v4063 = vrot.slane %v4062, 2
    %v4064 = vadd.f32 %v4062, %v4063
    %v4065 = vrot.slane %v4064, 1
    %v4066 = vadd.f32 %v4064, %v4065
    %v4067 = vmul.f32 %v3093, %v142
    %v4068 = vmul.f32 %v3717, %v143
    %v4069 = vmul.f32 %v3097, %v144
    %v4070 = vmul.f32 %v3721, %v145
    %v4071 = vmul.f32 %v3101, %v142
    %v4072 = vmul.f32 %v3725, %v143
    %v4073 = vmul.f32 %v3105, %v144
    %v4074 = vmul.f32 %v3729, %v145
    %v4075 = vmul.f32 %v3109, %v142
    %v4076 = vmul.f32 %v3733, %v143
    %v4077 = vmul.f32 %v3113, %v144
    %v4078 = vmul.f32 %v3737, %v145
    %v4079 = vmul.f32 %v3117, %v142
    %v4080 = vmul.f32 %v3741, %v143
    %v4081 = vmul.f32 %v3121, %v144
    %v4082 = vmul.f32 %v3745, %v145
    %v4083 = vmul.f32 %v3125, %v142
    %v4084 = vmul.f32 %v3749, %v143
    %v4085 = vmul.f32 %v3129, %v144
    %v4086 = vmul.f32 %v3753, %v145
    %v4087 = vmul.f32 %v3133, %v142
    %v4088 = vmul.f32 %v3757, %v143
    %v4089 = vmul.f32 %v3137, %v144
    %v4090 = vmul.f32 %v3761, %v145
    %v4091 = vmul.f32 %v3141, %v142
    %v4092 = vmul.f32 %v3765, %v143
    %v4093 = vmul.f32 %v3145, %v144
    %v4094 = vmul.f32 %v3769, %v145
    %v4095 = vmul.f32 %v3149, %v142
    %v4096 = vmul.f32 %v3773, %v143
    %v4097 = vmul.f32 %v3153, %v144
    %v4098 = vmul.f32 %v3777, %v145
    %v4099 = vadd.f32 %v4067, %v4069
    %v4100 = vrot.slane %v4099, 4
    %v4101 = vadd.f32 %v4099, %v4100
    %v4102 = vrot.slane %v4101, 2
    %v4103 = vadd.f32 %v4101, %v4102
    %v4104 = vrot.slane %v4103, 1
    %v4105 = vadd.f32 %v4103, %v4104
    %v4106 = vadd.f32 %v4068, %v4070
    %v4107 = vrot.slane %v4106, 4
    %v4108 = vadd.f32 %v4106, %v4107
    %v4109 = vrot.slane %v4108, 2
    %v4110 = vadd.f32 %v4108, %v4109
    %v4111 = vrot.slane %v4110, 1
    %v4112 = vadd.f32 %v4110, %v4111
    %v4113 = vadd.f32 %v4071, %v4073
    %v4114 = vrot.slane %v4113, 4
    %v4115 = vadd.f32 %v4113, %v4114
    %v4116 = vrot.slane %v4115, 2
    %v4117 = vadd.f32 %v4115, %v4116
    %v4118 = vrot.slane %v4117, 1
    %v4119 = vadd.f32 %v4117, %v4118
    %v4120 = vadd.f32 %v4072, %v4074
    %v4121 = vrot.slane %v4120, 4
    %v4122 = vadd.f32 %v4120, %v4121
    %v4123 = vrot.slane %v4122, 2
    %v4124 = vadd.f32 %v4122, %v4123
    %v4125 = vrot.slane %v4124, 1
    %v4126 = vadd.f32 %v4124, %v4125
    %v4127 = vadd.f32 %v4075, %v4077
    %v4128 = vrot.slane %v4127, 4
    %v4129 = vadd.f32 %v4127, %v4128
    %v4130 = vrot.slane %v4129, 2
    %v4131 = vadd.f32 %v4129, %v4130
    %v4132 = vrot.slane %v4131, 1
    %v4133 = vadd.f32 %v4131, %v4132
    %v4134 = vadd.f32 %v4076, %v4078
    %v4135 = vrot.slane %v4134, 4
    %v4136 = vadd.f32 %v4134, %v4135
    %v4137 = vrot.slane %v4136, 2
    %v4138 = vadd.f32 %v4136, %v4137
    %v4139 = vrot.slane %v4138, 1
    %v4140 = vadd.f32 %v4138, %v4139
    %v4141 = vadd.f32 %v4079, %v4081
    %v4142 = vrot.slane %v4141, 4
    %v4143 = vadd.f32 %v4141, %v4142
    %v4144 = vrot.slane %v4143, 2
    %v4145 = vadd.f32 %v4143, %v4144
    %v4146 = vrot.slane %v4145, 1
    %v4147 = vadd.f32 %v4145, %v4146
    %v4148 = vadd.f32 %v4080, %v4082
    %v4149 = vrot.slane %v4148, 4
    %v4150 = vadd.f32 %v4148, %v4149
    %v4151 = vrot.slane %v4150, 2
    %v4152 = vadd.f32 %v4150, %v4151
    %v4153 = vrot.slane %v4152, 1
    %v4154 = vadd.f32 %v4152, %v4153
    %v4155 = vadd.f32 %v4083, %v4085
    %v4156 = vrot.slane %v4155, 4
    %v4157 = vadd.f32 %v4155, %v4156
    %v4158 = vrot.slane %v4157, 2
    %v4159 = vadd.f32 %v4157, %v4158
    %v4160 = vrot.slane %v4159, 1
    %v4161 = vadd.f32 %v4159, %v4160
    %v4162 = vadd.f32 %v4084, %v4086
    %v4163 = vrot.slane %v4162, 4
    %v4164 = vadd.f32 %v4162, %v4163
    %v4165 = vrot.slane %v4164, 2
    %v4166 = vadd.f32 %v4164, %v4165
    %v4167 = vrot.slane %v4166, 1
    %v4168 = vadd.f32 %v4166, %v4167
    %v4169 = vadd.f32 %v4087, %v4089
    %v4170 = vrot.slane %v4169, 4
    %v4171 = vadd.f32 %v4169, %v4170
    %v4172 = vrot.slane %v4171, 2
    %v4173 = vadd.f32 %v4171, %v4172
    %v4174 = vrot.slane %v4173, 1
    %v4175 = vadd.f32 %v4173, %v4174
    %v4176 = vadd.f32 %v4088, %v4090
    %v4177 = vrot.slane %v4176, 4
    %v4178 = vadd.f32 %v4176, %v4177
    %v4179 = vrot.slane %v4178, 2
    %v4180 = vadd.f32 %v4178, %v4179
    %v4181 = vrot.slane %v4180, 1
    %v4182 = vadd.f32 %v4180, %v4181
    %v4183 = vadd.f32 %v4091, %v4093
    %v4184 = vrot.slane %v4183, 4
    %v4185 = vadd.f32 %v4183, %v4184
    %v4186 = vrot.slane %v4185, 2
    %v4187 = vadd.f32 %v4185, %v4186
    %v4188 = vrot.slane %v4187, 1
    %v4189 = vadd.f32 %v4187, %v4188
    %v4190 = vadd.f32 %v4092, %v4094
    %v4191 = vrot.slane %v4190, 4
    %v4192 = vadd.f32 %v4190, %v4191
    %v4193 = vrot.slane %v4192, 2
    %v4194 = vadd.f32 %v4192, %v4193
    %v4195 = vrot.slane %v4194, 1
    %v4196 = vadd.f32 %v4194, %v4195
    %v4197 = vadd.f32 %v4095, %v4097
    %v4198 = vrot.slane %v4197, 4
    %v4199 = vadd.f32 %v4197, %v4198
    %v4200 = vrot.slane %v4199, 2
    %v4201 = vadd.f32 %v4199, %v4200
    %v4202 = vrot.slane %v4201, 1
    %v4203 = vadd.f32 %v4201, %v4202
    %v4204 = vadd.f32 %v4096, %v4098
    %v4205 = vrot.slane %v4204, 4
    %v4206 = vadd.f32 %v4204, %v4205
    %v4207 = vrot.slane %v4206, 2
    %v4208 = vadd.f32 %v4206, %v4207
    %v4209 = vrot.slane %v4208, 1
    %v4210 = vadd.f32 %v4208, %v4209
    %v4211 = vmul.f32 %v3817, %v3961
    %v4212 = vmul.f32 %v3824, %v3968
    %v4213 = vmul.f32 %v3831, %v3975
    %v4214 = vmul.f32 %v3838, %v3982
    %v4215 = vmul.f32 %v3845, %v3989
    %v4216 = vmul.f32 %v3852, %v3996
    %v4217 = vmul.f32 %v3859, %v4003
    %v4218 = vmul.f32 %v3866, %v4010
    %v4219 = vmul.f32 %v3873, %v4017
    %v4220 = vmul.f32 %v3880, %v4024
    %v4221 = vmul.f32 %v3887, %v4031
    %v4222 = vmul.f32 %v3894, %v4038
    %v4223 = vmul.f32 %v3901, %v4045
    %v4224 = vmul.f32 %v3908, %v4052
    %v4225 = vmul.f32 %v3915, %v4059
    %v4226 = vmul.f32 %v3922, %v4066
    %v4227 = vmul.f32 %v4211, %v4105
    %v4228 = vmul.f32 %v4212, %v4112
    %v4229 = vmul.f32 %v4213, %v4119
    %v4230 = vmul.f32 %v4214, %v4126
    %v4231 = vmul.f32 %v4215, %v4133
    %v4232 = vmul.f32 %v4216, %v4140
    %v4233 = vmul.f32 %v4217, %v4147
    %v4234 = vmul.f32 %v4218, %v4154
    %v4235 = vmul.f32 %v4219, %v4161
    %v4236 = vmul.f32 %v4220, %v4168
    %v4237 = vmul.f32 %v4221, %v4175
    %v4238 = vmul.f32 %v4222, %v4182
    %v4239 = vmul.f32 %v4223, %v4189
    %v4240 = vmul.f32 %v4224, %v4196
    %v4241 = vmul.f32 %v4225, %v4203
    %v4242 = vmul.f32 %v4226, %v4210
    %vm4259 = vcmask 1041409
    %v4260 = vsel %vm4259, %v4229, %v4227
    %vm4261 = vcmask 1042434
    %v4262 = vsel %vm4261, %v4231, %v4260
    %vm4263 = vcmask 1043459
    %v4264 = vsel %vm4263, %v4233, %v4262
    %vm4265 = vcmask 1044484
    %v4266 = vsel %vm4265, %v4235, %v4264
    %vm4267 = vcmask 1045509
    %v4268 = vsel %vm4267, %v4237, %v4266
    %vm4269 = vcmask 1046534
    %v4270 = vsel %vm4269, %v4239, %v4268
    %vm4271 = vcmask 1047559
    %v4272 = vsel %vm4271, %v4241, %v4270
    %v4273 = vsel %vm4259, %v4230, %v4228
    %v4274 = vsel %vm4261, %v4232, %v4273
    %v4275 = vsel %vm4263, %v4234, %v4274
    %v4276 = vsel %vm4265, %v4236, %v4275
    %v4277 = vsel %vm4267, %v4238, %v4276
    %v4278 = vsel %vm4269, %v4240, %v4277
    %v4279 = vsel %vm4271, %v4242, %v4278
    %4282 = vst [vmem:[#allocation2] sm:$0xff] %v4272
    %4283 = vst [vmem:[#allocation2 + $0x8] sm:$0xff] %v4279
    %v4284 = vld [vmem:[%s3] sm:$0xff]
    %v4285 = vld [vmem:[%s3 + $0x8] sm:$0xff]
    %v4286 = vld [vmem:[%s3 + $0x10] sm:$0xff]
    %v4287 = vld [vmem:[%s3 + $0x18] sm:$0xff]
    %v4288 = vld [vmem:[%s3 + $0x20] sm:$0xff]
    %v4289 = vld [vmem:[%s3 + $0x28] sm:$0xff]
    %v4290 = vld [vmem:[%s3 + $0x30] sm:$0xff]
    %v4291 = vld [vmem:[%s3 + $0x38] sm:$0xff]
    %v4292 = vld [vmem:[%s3 + $0x40] sm:$0xff]
    %v4293 = vld [vmem:[%s3 + $0x48] sm:$0xff]
    %v4294 = vld [vmem:[%s3 + $0x50] sm:$0xff]
    %v4295 = vld [vmem:[%s3 + $0x58] sm:$0xff]
    %v4296 = vld [vmem:[%s3 + $0x60] sm:$0xff]
    %v4297 = vld [vmem:[%s3 + $0x68] sm:$0xff]
    %v4298 = vld [vmem:[%s3 + $0x70] sm:$0xff]
    %v4299 = vld [vmem:[%s3 + $0x78] sm:$0xff]
    %v4300 = vld [vmem:[%s3 + $0x80] sm:$0xff]
    %v4301 = vld [vmem:[%s3 + $0x88] sm:$0xff]
    %v4302 = vld [vmem:[%s3 + $0x90] sm:$0xff]
    %v4303 = vld [vmem:[%s3 + $0x98] sm:$0xff]
    %v4304 = vld [vmem:[%s3 + $0xa0] sm:$0xff]
    %v4305 = vld [vmem:[%s3 + $0xa8] sm:$0xff]
    %v4306 = vld [vmem:[%s3 + $0xb0] sm:$0xff]
    %v4307 = vld [vmem:[%s3 + $0xb8] sm:$0xff]
    %v4308 = vld [vmem:[%s3 + $0xc0] sm:$0xff]
    %v4309 = vld [vmem:[%s3 + $0xc8] sm:$0xff]
    %v4310 = vld [vmem:[%s3 + $0xd0] sm:$0xff]
    %v4311 = vld [vmem:[%s3 + $0xd8] sm:$0xff]
    %v4312 = vld [vmem:[%s3 + $0xe0] sm:$0xff]
    %v4313 = vld [vmem:[%s3 + $0xe8] sm:$0xff]
    %v4314 = vld [vmem:[%s3 + $0xf0] sm:$0xff]
    %v4315 = vld [vmem:[%s3 + $0xf8] sm:$0xff]
    %v4316 = vld [vmem:[%s3 + $0x100] sm:$0xff]
    %v4317 = vld [vmem:[%s3 + $0x108] sm:$0xff]
    %v4318 = vld [vmem:[%s3 + $0x110] sm:$0xff]
    %v4319 = vld [vmem:[%s3 + $0x118] sm:$0xff]
    %v4320 = vld [vmem:[%s3 + $0x120] sm:$0xff]
    %v4321 = vld [vmem:[%s3 + $0x128] sm:$0xff]
    %v4322 = vld [vmem:[%s3 + $0x130] sm:$0xff]
    %v4323 = vld [vmem:[%s3 + $0x138] sm:$0xff]
    %v4324 = vld [vmem:[%s3 + $0x140] sm:$0xff]
    %v4325 = vld [vmem:[%s3 + $0x148] sm:$0xff]
    %v4326 = vld [vmem:[%s3 + $0x150] sm:$0xff]
    %v4327 = vld [vmem:[%s3 + $0x158] sm:$0xff]
    %v4328 = vld [vmem:[%s3 + $0x160] sm:$0xff]
    %v4329 = vld [vmem:[%s3 + $0x168] sm:$0xff]
    %v4330 = vld [vmem:[%s3 + $0x170] sm:$0xff]
    %v4331 = vld [vmem:[%s3 + $0x178] sm:$0xff]
    %v4332 = vld [vmem:[%s3 + $0x180] sm:$0xff]
    %v4333 = vld [vmem:[%s3 + $0x188] sm:$0xff]
    %v4334 = vld [vmem:[%s3 + $0x190] sm:$0xff]
    %v4335 = vld [vmem:[%s3 + $0x198] sm:$0xff]
    %v4336 = vld [vmem:[%s3 + $0x1a0] sm:$0xff]
    %v4337 = vld [vmem:[%s3 + $0x1a8] sm:$0xff]
    %v4338 = vld [vmem:[%s3 + $0x1b0] sm:$0xff]
    %v4339 = vld [vmem:[%s3 + $0x1b8] sm:$0xff]
    %v4340 = vld [vmem:[%s3 + $0x1c0] sm:$0xff]
    %v4341 = vld [vmem:[%s3 + $0x1c8] sm:$0xff]
    %v4342 = vld [vmem:[%s3 + $0x1d0] sm:$0xff]
    %v4343 = vld [vmem:[%s3 + $0x1d8] sm:$0xff]
    %v4344 = vld [vmem:[%s3 + $0x1e0] sm:$0xff]
    %v4345 = vld [vmem:[%s3 + $0x1e8] sm:$0xff]
    %v4346 = vld [vmem:[%s3 + $0x1f0] sm:$0xff]
    %v4347 = vld [vmem:[%s3 + $0x1f8] sm:$0xff]
    %v4348 = vld [vmem:[%s4] sm:$0xff]
    %v4349 = vld [vmem:[%s4 + $0x8] sm:$0xff]
    %v4350 = vld [vmem:[%s4 + $0x10] sm:$0xff]
    %v4351 = vld [vmem:[%s4 + $0x18] sm:$0xff]
    %v4352 = vld [vmem:[%s4 + $0x20] sm:$0xff]
    %v4353 = vld [vmem:[%s4 + $0x28] sm:$0xff]
    %v4354 = vld [vmem:[%s4 + $0x30] sm:$0xff]
    %v4355 = vld [vmem:[%s4 + $0x38] sm:$0xff]
    %v4356 = vld [vmem:[%s4 + $0x40] sm:$0xff]
    %v4357 = vld [vmem:[%s4 + $0x48] sm:$0xff]
    %v4358 = vld [vmem:[%s4 + $0x50] sm:$0xff]
    %v4359 = vld [vmem:[%s4 + $0x58] sm:$0xff]
    %v4360 = vld [vmem:[%s4 + $0x60] sm:$0xff]
    %v4361 = vld [vmem:[%s4 + $0x68] sm:$0xff]
    %v4362 = vld [vmem:[%s4 + $0x70] sm:$0xff]
    %v4363 = vld [vmem:[%s4 + $0x78] sm:$0xff]
    %v4364 = vld [vmem:[%s4 + $0x80] sm:$0xff]
    %v4365 = vld [vmem:[%s4 + $0x88] sm:$0xff]
    %v4366 = vld [vmem:[%s4 + $0x90] sm:$0xff]
    %v4367 = vld [vmem:[%s4 + $0x98] sm:$0xff]
    %v4368 = vld [vmem:[%s4 + $0xa0] sm:$0xff]
    %v4369 = vld [vmem:[%s4 + $0xa8] sm:$0xff]
    %v4370 = vld [vmem:[%s4 + $0xb0] sm:$0xff]
    %v4371 = vld [vmem:[%s4 + $0xb8] sm:$0xff]
    %v4372 = vld [vmem:[%s4 + $0xc0] sm:$0xff]
    %v4373 = vld [vmem:[%s4 + $0xc8] sm:$0xff]
    %v4374 = vld [vmem:[%s4 + $0xd0] sm:$0xff]
    %v4375 = vld [vmem:[%s4 + $0xd8] sm:$0xff]
    %v4376 = vld [vmem:[%s4 + $0xe0] sm:$0xff]
    %v4377 = vld [vmem:[%s4 + $0xe8] sm:$0xff]
    %v4378 = vld [vmem:[%s4 + $0xf0] sm:$0xff]
    %v4379 = vld [vmem:[%s4 + $0xf8] sm:$0xff]
    %v4380 = vmul.f32 %v70, 15.5
    %v4381 = vmax.f32 %v4380, 0.0
    %v4382 = vmin.f32 %v4381, 31.0
    %v4383 = vadd.s32 %v75, 16
    %v4384 = vadd.s32 %v75, 24
    %v4385 = vcvt.s32.f32 %v4383
    %v4386 = vcvt.s32.f32 %v4384
    %v4388 = vperm.slane %v4382, 0
    %v4389 = vperm.slane %v4382, 4
    %v4392 = vperm.slane %v4388, 0
    %v4393 = vperm.slane %v4389, 0
    %v4394 = vsub.f32 %v77, %v4392
    %v4395 = vsub.f32 %v77, %v4393
    %v4396 = vsub.f32 %v78, %v4392
    %v4397 = vsub.f32 %v78, %v4393
    %v4398 = vsub.f32 %v4385, %v4392
    %v4399 = vsub.f32 %v4385, %v4393
    %v4400 = vsub.f32 %v4386, %v4392
    %v4401 = vsub.f32 %v4386, %v4393
    %v4402 = vand.u32 2147483647, %v4394
    %v4403 = vand.u32 2147483647, %v4395
    %v4404 = vand.u32 2147483647, %v4396
    %v4405 = vand.u32 2147483647, %v4397
    %v4406 = vand.u32 2147483647, %v4398
    %v4407 = vand.u32 2147483647, %v4399
    %v4408 = vand.u32 2147483647, %v4400
    %v4409 = vand.u32 2147483647, %v4401
    %v4410 = vsub.f32 1.0, %v4402
    %v4411 = vsub.f32 1.0, %v4403
    %v4412 = vsub.f32 1.0, %v4404
    %v4413 = vsub.f32 1.0, %v4405
    %v4414 = vsub.f32 1.0, %v4406
    %v4415 = vsub.f32 1.0, %v4407
    %v4416 = vsub.f32 1.0, %v4408
    %v4417 = vsub.f32 1.0, %v4409
    %v4418 = vmax.f32 %v4410, 0.0
    %v4419 = vmax.f32 %v4411, 0.0
    %v4420 = vmax.f32 %v4412, 0.0
    %v4421 = vmax.f32 %v4413, 0.0
    %v4422 = vmax.f32 %v4414, 0.0
    %v4423 = vmax.f32 %v4415, 0.0
    %v4424 = vmax.f32 %v4416, 0.0
    %v4425 = vmax.f32 %v4417, 0.0
    %v4426 = vperm.slane %v4382, 1
    %v4427 = vperm.slane %v4382, 5
    %v4430 = vperm.slane %v4426, 1
    %v4431 = vperm.slane %v4427, 1
    %v4432 = vsub.f32 %v77, %v4430
    %v4433 = vsub.f32 %v77, %v4431
    %v4434 = vsub.f32 %v78, %v4430
    %v4435 = vsub.f32 %v78, %v4431
    %v4436 = vsub.f32 %v4385, %v4430
    %v4437 = vsub.f32 %v4385, %v4431
    %v4438 = vsub.f32 %v4386, %v4430
    %v4439 = vsub.f32 %v4386, %v4431
    %v4440 = vand.u32 2147483647, %v4432
    %v4441 = vand.u32 2147483647, %v4433
    %v4442 = vand.u32 2147483647, %v4434
    %v4443 = vand.u32 2147483647, %v4435
    %v4444 = vand.u32 2147483647, %v4436
    %v4445 = vand.u32 2147483647, %v4437
    %v4446 = vand.u32 2147483647, %v4438
    %v4447 = vand.u32 2147483647, %v4439
    %v4448 = vsub.f32 1.0, %v4440
    %v4449 = vsub.f32 1.0, %v4441
    %v4450 = vsub.f32 1.0, %v4442
    %v4451 = vsub.f32 1.0, %v4443
    %v4452 = vsub.f32 1.0, %v4444
    %v4453 = vsub.f32 1.0, %v4445
    %v4454 = vsub.f32 1.0, %v4446
    %v4455 = vsub.f32 1.0, %v4447
    %v4456 = vmax.f32 %v4448, 0.0
    %v4457 = vmax.f32 %v4449, 0.0
    %v4458 = vmax.f32 %v4450, 0.0
    %v4459 = vmax.f32 %v4451, 0.0
    %v4460 = vmax.f32 %v4452, 0.0
    %v4461 = vmax.f32 %v4453, 0.0
    %v4462 = vmax.f32 %v4454, 0.0
    %v4463 = vmax.f32 %v4455, 0.0
    %v4464 = vperm.slane %v4382, 2
    %v4465 = vperm.slane %v4382, 6
    %v4468 = vperm.slane %v4464, 2
    %v4469 = vperm.slane %v4465, 2
    %v4470 = vsub.f32 %v77, %v4468
    %v4471 = vsub.f32 %v77, %v4469
    %v4472 = vsub.f32 %v78, %v4468
    %v4473 = vsub.f32 %v78, %v4469
    %v4474 = vsub.f32 %v4385, %v4468
    %v4475 = vsub.f32 %v4385, %v4469
    %v4476 = vsub.f32 %v4386, %v4468
    %v4477 = vsub.f32 %v4386, %v4469
    %v4478 = vand.u32 2147483647, %v4470
    %v4479 = vand.u32 2147483647, %v4471
    %v4480 = vand.u32 2147483647, %v4472
    %v4481 = vand.u32 2147483647, %v4473
    %v4482 = vand.u32 2147483647, %v4474
    %v4483 = vand.u32 2147483647, %v4475
    %v4484 = vand.u32 2147483647, %v4476
    %v4485 = vand.u32 2147483647, %v4477
    %v4486 = vsub.f32 1.0, %v4478
    %v4487 = vsub.f32 1.0, %v4479
    %v4488 = vsub.f32 1.0, %v4480
    %v4489 = vsub.f32 1.0, %v4481
    %v4490 = vsub.f32 1.0, %v4482
    %v4491 = vsub.f32 1.0, %v4483
    %v4492 = vsub.f32 1.0, %v4484
    %v4493 = vsub.f32 1.0, %v4485
    %v4494 = vmax.f32 %v4486, 0.0
    %v4495 = vmax.f32 %v4487, 0.0
    %v4496 = vmax.f32 %v4488, 0.0
    %v4497 = vmax.f32 %v4489, 0.0
    %v4498 = vmax.f32 %v4490, 0.0
    %v4499 = vmax.f32 %v4491, 0.0
    %v4500 = vmax.f32 %v4492, 0.0
    %v4501 = vmax.f32 %v4493, 0.0
    %vm4502 = vcmask 261120
    %v4504 = vsel %vm4502, %v4284, 0
    %v4507 = vsel %vm4502, %v4285, 0
    %v4510 = vsel %vm4502, %v4286, 0
    %v4513 = vsel %vm4502, %v4287, 0
    %v4516 = vsel %vm4502, %v4288, 0
    %v4519 = vsel %vm4502, %v4289, 0
    %v4522 = vsel %vm4502, %v4290, 0
    %v4525 = vsel %vm4502, %v4291, 0
    %v4528 = vsel %vm4502, %v4292, 0
    %v4531 = vsel %vm4502, %v4293, 0
    %v4534 = vsel %vm4502, %v4294, 0
    %v4537 = vsel %vm4502, %v4295, 0
    %v4540 = vsel %vm4502, %v4296, 0
    %v4543 = vsel %vm4502, %v4297, 0
    %v4546 = vsel %vm4502, %v4298, 0
    %v4549 = vsel %vm4502, %v4299, 0
    %v4552 = vsel %vm4502, %v4300, 0
    %v4555 = vsel %vm4502, %v4301, 0
    %v4558 = vsel %vm4502, %v4302, 0
    %v4561 = vsel %vm4502, %v4303, 0
    %v4564 = vsel %vm4502, %v4304, 0
    %v4567 = vsel %vm4502, %v4305, 0
    %v4570 = vsel %vm4502, %v4306, 0
    %v4573 = vsel %vm4502, %v4307, 0
    %v4576 = vsel %vm4502, %v4308, 0
    %v4579 = vsel %vm4502, %v4309, 0
    %v4582 = vsel %vm4502, %v4310, 0
    %v4585 = vsel %vm4502, %v4311, 0
    %v4588 = vsel %vm4502, %v4312, 0
    %v4591 = vsel %vm4502, %v4313, 0
    %v4594 = vsel %vm4502, %v4314, 0
    %v4597 = vsel %vm4502, %v4315, 0
    %v4600 = vsel %vm4502, %v4316, 0
    %v4603 = vsel %vm4502, %v4317, 0
    %v4606 = vsel %vm4502, %v4318, 0
    %v4609 = vsel %vm4502, %v4319, 0
    %v4612 = vsel %vm4502, %v4320, 0
    %v4615 = vsel %vm4502, %v4321, 0
    %v4618 = vsel %vm4502, %v4322, 0
    %v4621 = vsel %vm4502, %v4323, 0
    %v4624 = vsel %vm4502, %v4324, 0
    %v4627 = vsel %vm4502, %v4325, 0
    %v4630 = vsel %vm4502, %v4326, 0
    %v4633 = vsel %vm4502, %v4327, 0
    %v4636 = vsel %vm4502, %v4328, 0
    %v4639 = vsel %vm4502, %v4329, 0
    %v4642 = vsel %vm4502, %v4330, 0
    %v4645 = vsel %vm4502, %v4331, 0
    %v4648 = vsel %vm4502, %v4332, 0
    %v4651 = vsel %vm4502, %v4333, 0
    %v4654 = vsel %vm4502, %v4334, 0
    %v4657 = vsel %vm4502, %v4335, 0
    %v4660 = vsel %vm4502, %v4336, 0
    %v4663 = vsel %vm4502, %v4337, 0
    %v4666 = vsel %vm4502, %v4338, 0
    %v4669 = vsel %vm4502, %v4339, 0
    %v4672 = vsel %vm4502, %v4340, 0
    %v4675 = vsel %vm4502, %v4341, 0
    %v4678 = vsel %vm4502, %v4342, 0
    %v4681 = vsel %vm4502, %v4343, 0
    %v4684 = vsel %vm4502, %v4344, 0
    %v4687 = vsel %vm4502, %v4345, 0
    %v4690 = vsel %vm4502, %v4346, 0
    %v4693 = vsel %vm4502, %v4347, 0
    %4695 = vmatpush.msra.mxu0 0.0
    %4696 = vmatpush.msra.mxu0 0.0
    %4697 = vmatpush.msra.mxu0 0.0
    %4698 = vmatpush.msra.mxu0 0.0
    %4699 = vmatpush.msra.mxu0 0.0
    %4700 = vmatpush.msra.mxu0 0.0
    %4701 = vmatpush.msra.mxu0 0.0
    %4702 = vmatpush.msra.mxu0 0.0
    %4703 = vmatpush.msra.mxu0 0.0
    %4704 = vmatpush.msra.mxu0 0.0
    %4705 = vmatpush.msra.mxu0 0.0
    %4706 = vmatpush.msra.mxu0 0.0
    %v4707 = vand.u32 %v4424, 4294901760
    %4708 = vmatpush.msra.mxu0 %v4707
    %v4709 = vand.u32 %v4422, 4294901760
    %4710 = vmatpush.msra.mxu0 %v4709
    %v4711 = vand.u32 %v4420, 4294901760
    %4712 = vmatpush.msra.mxu0 %v4711
    %v4713 = vand.u32 %v4418, 4294901760
    %4714 = vmatpush.msra.mxu0 %v4713
    %v4715 = vand.u32 %v4504, 4294901760
    %v4716 = vsub.f32 %v4504, %v4715
    %v4717 = vand.u32 %v4716, 4294901760
    %v4718 = vsub.f32 %v4716, %v4717
    %v4719 = vand.u32 %v4718, 4294901760
    %4720 = vmatmul.f32.gmra.mxu0 %v4719
    %v4721 = vpop.f32.mrf.mxu0
    %v4722 = vadd.f32 0.0, %v4721
    %v4723 = vand.u32 %v4507, 4294901760
    %v4724 = vsub.f32 %v4507, %v4723
    %v4725 = vand.u32 %v4724, 4294901760
    %v4726 = vsub.f32 %v4724, %v4725
    %v4727 = vand.u32 %v4726, 4294901760
    %4728 = vmatmul.f32.gmra.mxu0 %v4727
    %v4729 = vpop.f32.mrf.mxu0
    %v4730 = vadd.f32 0.0, %v4729
    %v4731 = vand.u32 %v4510, 4294901760
    %v4732 = vsub.f32 %v4510, %v4731
    %v4733 = vand.u32 %v4732, 4294901760
    %v4734 = vsub.f32 %v4732, %v4733
    %v4735 = vand.u32 %v4734, 4294901760
    %4736 = vmatmul.f32.gmra.mxu0 %v4735
    %v4737 = vpop.f32.mrf.mxu0
    %v4738 = vadd.f32 0.0, %v4737
    %v4739 = vand.u32 %v4513, 4294901760
    %v4740 = vsub.f32 %v4513, %v4739
    %v4741 = vand.u32 %v4740, 4294901760
    %v4742 = vsub.f32 %v4740, %v4741
    %v4743 = vand.u32 %v4742, 4294901760
    %4744 = vmatmul.f32.gmra.mxu0 %v4743
    %v4745 = vpop.f32.mrf.mxu0
    %v4746 = vadd.f32 0.0, %v4745
    %v4747 = vand.u32 %v4516, 4294901760
    %v4748 = vsub.f32 %v4516, %v4747
    %v4749 = vand.u32 %v4748, 4294901760
    %v4750 = vsub.f32 %v4748, %v4749
    %v4751 = vand.u32 %v4750, 4294901760
    %4752 = vmatmul.f32.gmra.mxu0 %v4751
    %v4753 = vpop.f32.mrf.mxu0
    %v4754 = vadd.f32 0.0, %v4753
    %v4755 = vand.u32 %v4519, 4294901760
    %v4756 = vsub.f32 %v4519, %v4755
    %v4757 = vand.u32 %v4756, 4294901760
    %v4758 = vsub.f32 %v4756, %v4757
    %v4759 = vand.u32 %v4758, 4294901760
    %4760 = vmatmul.f32.gmra.mxu0 %v4759
    %v4761 = vpop.f32.mrf.mxu0
    %v4762 = vadd.f32 0.0, %v4761
    %v4763 = vand.u32 %v4522, 4294901760
    %v4764 = vsub.f32 %v4522, %v4763
    %v4765 = vand.u32 %v4764, 4294901760
    %v4766 = vsub.f32 %v4764, %v4765
    %v4767 = vand.u32 %v4766, 4294901760
    %4768 = vmatmul.f32.gmra.mxu0 %v4767
    %v4769 = vpop.f32.mrf.mxu0
    %v4770 = vadd.f32 0.0, %v4769
    %v4771 = vand.u32 %v4525, 4294901760
    %v4772 = vsub.f32 %v4525, %v4771
    %v4773 = vand.u32 %v4772, 4294901760
    %v4774 = vsub.f32 %v4772, %v4773
    %v4775 = vand.u32 %v4774, 4294901760
    %4776 = vmatmul.f32.gmra.mxu0 %v4775
    %v4777 = vpop.f32.mrf.mxu0
    %v4778 = vadd.f32 0.0, %v4777
    %v4779 = vand.u32 %v4528, 4294901760
    %v4780 = vsub.f32 %v4528, %v4779
    %v4781 = vand.u32 %v4780, 4294901760
    %v4782 = vsub.f32 %v4780, %v4781
    %v4783 = vand.u32 %v4782, 4294901760
    %4784 = vmatmul.f32.gmra.mxu0 %v4783
    %v4785 = vpop.f32.mrf.mxu0
    %v4786 = vadd.f32 0.0, %v4785
    %v4787 = vand.u32 %v4531, 4294901760
    %v4788 = vsub.f32 %v4531, %v4787
    %v4789 = vand.u32 %v4788, 4294901760
    %v4790 = vsub.f32 %v4788, %v4789
    %v4791 = vand.u32 %v4790, 4294901760
    %4792 = vmatmul.f32.gmra.mxu0 %v4791
    %v4793 = vpop.f32.mrf.mxu0
    %v4794 = vadd.f32 0.0, %v4793
    %v4795 = vand.u32 %v4534, 4294901760
    %v4796 = vsub.f32 %v4534, %v4795
    %v4797 = vand.u32 %v4796, 4294901760
    %v4798 = vsub.f32 %v4796, %v4797
    %v4799 = vand.u32 %v4798, 4294901760
    %4800 = vmatmul.f32.gmra.mxu0 %v4799
    %v4801 = vpop.f32.mrf.mxu0
    %v4802 = vadd.f32 0.0, %v4801
    %v4803 = vand.u32 %v4537, 4294901760
    %v4804 = vsub.f32 %v4537, %v4803
    %v4805 = vand.u32 %v4804, 4294901760
    %v4806 = vsub.f32 %v4804, %v4805
    %v4807 = vand.u32 %v4806, 4294901760
    %4808 = vmatmul.f32.gmra.mxu0 %v4807
    %v4809 = vpop.f32.mrf.mxu0
    %v4810 = vadd.f32 0.0, %v4809
    %v4811 = vand.u32 %v4540, 4294901760
    %v4812 = vsub.f32 %v4540, %v4811
    %v4813 = vand.u32 %v4812, 4294901760
    %v4814 = vsub.f32 %v4812, %v4813
    %v4815 = vand.u32 %v4814, 4294901760
    %4816 = vmatmul.f32.gmra.mxu0 %v4815
    %v4817 = vpop.f32.mrf.mxu0
    %v4818 = vadd.f32 0.0, %v4817
    %v4819 = vand.u32 %v4543, 4294901760
    %v4820 = vsub.f32 %v4543, %v4819
    %v4821 = vand.u32 %v4820, 4294901760
    %v4822 = vsub.f32 %v4820, %v4821
    %v4823 = vand.u32 %v4822, 4294901760
    %4824 = vmatmul.f32.gmra.mxu0 %v4823
    %v4825 = vpop.f32.mrf.mxu0
    %v4826 = vadd.f32 0.0, %v4825
    %v4827 = vand.u32 %v4546, 4294901760
    %v4828 = vsub.f32 %v4546, %v4827
    %v4829 = vand.u32 %v4828, 4294901760
    %v4830 = vsub.f32 %v4828, %v4829
    %v4831 = vand.u32 %v4830, 4294901760
    %4832 = vmatmul.f32.gmra.mxu0 %v4831
    %v4833 = vpop.f32.mrf.mxu0
    %v4834 = vadd.f32 0.0, %v4833
    %v4835 = vand.u32 %v4549, 4294901760
    %v4836 = vsub.f32 %v4549, %v4835
    %v4837 = vand.u32 %v4836, 4294901760
    %v4838 = vsub.f32 %v4836, %v4837
    %v4839 = vand.u32 %v4838, 4294901760
    %4840 = vmatmul.f32.gmra.mxu0 %v4839
    %v4841 = vpop.f32.mrf.mxu0
    %v4842 = vadd.f32 0.0, %v4841
    %v4843 = vand.u32 %v4552, 4294901760
    %v4844 = vsub.f32 %v4552, %v4843
    %v4845 = vand.u32 %v4844, 4294901760
    %v4846 = vsub.f32 %v4844, %v4845
    %v4847 = vand.u32 %v4846, 4294901760
    %4848 = vmatmul.f32.gmra.mxu0 %v4847
    %v4849 = vpop.f32.mrf.mxu0
    %v4850 = vadd.f32 0.0, %v4849
    %v4851 = vand.u32 %v4555, 4294901760
    %v4852 = vsub.f32 %v4555, %v4851
    %v4853 = vand.u32 %v4852, 4294901760
    %v4854 = vsub.f32 %v4852, %v4853
    %v4855 = vand.u32 %v4854, 4294901760
    %4856 = vmatmul.f32.gmra.mxu0 %v4855
    %v4857 = vpop.f32.mrf.mxu0
    %v4858 = vadd.f32 0.0, %v4857
    %v4859 = vand.u32 %v4558, 4294901760
    %v4860 = vsub.f32 %v4558, %v4859
    %v4861 = vand.u32 %v4860, 4294901760
    %v4862 = vsub.f32 %v4860, %v4861
    %v4863 = vand.u32 %v4862, 4294901760
    %4864 = vmatmul.f32.gmra.mxu0 %v4863
    %v4865 = vpop.f32.mrf.mxu0
    %v4866 = vadd.f32 0.0, %v4865
    %v4867 = vand.u32 %v4561, 4294901760
    %v4868 = vsub.f32 %v4561, %v4867
    %v4869 = vand.u32 %v4868, 4294901760
    %v4870 = vsub.f32 %v4868, %v4869
    %v4871 = vand.u32 %v4870, 4294901760
    %4872 = vmatmul.f32.gmra.mxu0 %v4871
    %v4873 = vpop.f32.mrf.mxu0
    %v4874 = vadd.f32 0.0, %v4873
    %v4875 = vand.u32 %v4564, 4294901760
    %v4876 = vsub.f32 %v4564, %v4875
    %v4877 = vand.u32 %v4876, 4294901760
    %v4878 = vsub.f32 %v4876, %v4877
    %v4879 = vand.u32 %v4878, 4294901760
    %4880 = vmatmul.f32.gmra.mxu0 %v4879
    %v4881 = vpop.f32.mrf.mxu0
    %v4882 = vadd.f32 0.0, %v4881
    %v4883 = vand.u32 %v4567, 4294901760
    %v4884 = vsub.f32 %v4567, %v4883
    %v4885 = vand.u32 %v4884, 4294901760
    %v4886 = vsub.f32 %v4884, %v4885
    %v4887 = vand.u32 %v4886, 4294901760
    %4888 = vmatmul.f32.gmra.mxu0 %v4887
    %v4889 = vpop.f32.mrf.mxu0
    %v4890 = vadd.f32 0.0, %v4889
    %v4891 = vand.u32 %v4570, 4294901760
    %v4892 = vsub.f32 %v4570, %v4891
    %v4893 = vand.u32 %v4892, 4294901760
    %v4894 = vsub.f32 %v4892, %v4893
    %v4895 = vand.u32 %v4894, 4294901760
    %4896 = vmatmul.f32.gmra.mxu0 %v4895
    %v4897 = vpop.f32.mrf.mxu0
    %v4898 = vadd.f32 0.0, %v4897
    %v4899 = vand.u32 %v4573, 4294901760
    %v4900 = vsub.f32 %v4573, %v4899
    %v4901 = vand.u32 %v4900, 4294901760
    %v4902 = vsub.f32 %v4900, %v4901
    %v4903 = vand.u32 %v4902, 4294901760
    %4904 = vmatmul.f32.gmra.mxu0 %v4903
    %v4905 = vpop.f32.mrf.mxu0
    %v4906 = vadd.f32 0.0, %v4905
    %v4907 = vand.u32 %v4576, 4294901760
    %v4908 = vsub.f32 %v4576, %v4907
    %v4909 = vand.u32 %v4908, 4294901760
    %v4910 = vsub.f32 %v4908, %v4909
    %v4911 = vand.u32 %v4910, 4294901760
    %4912 = vmatmul.f32.gmra.mxu0 %v4911
    %v4913 = vpop.f32.mrf.mxu0
    %v4914 = vadd.f32 0.0, %v4913
    %v4915 = vand.u32 %v4579, 4294901760
    %v4916 = vsub.f32 %v4579, %v4915
    %v4917 = vand.u32 %v4916, 4294901760
    %v4918 = vsub.f32 %v4916, %v4917
    %v4919 = vand.u32 %v4918, 4294901760
    %4920 = vmatmul.f32.gmra.mxu0 %v4919
    %v4921 = vpop.f32.mrf.mxu0
    %v4922 = vadd.f32 0.0, %v4921
    %v4923 = vand.u32 %v4582, 4294901760
    %v4924 = vsub.f32 %v4582, %v4923
    %v4925 = vand.u32 %v4924, 4294901760
    %v4926 = vsub.f32 %v4924, %v4925
    %v4927 = vand.u32 %v4926, 4294901760
    %4928 = vmatmul.f32.gmra.mxu0 %v4927
    %v4929 = vpop.f32.mrf.mxu0
    %v4930 = vadd.f32 0.0, %v4929
    %v4931 = vand.u32 %v4585, 4294901760
    %v4932 = vsub.f32 %v4585, %v4931
    %v4933 = vand.u32 %v4932, 4294901760
    %v4934 = vsub.f32 %v4932, %v4933
    %v4935 = vand.u32 %v4934, 4294901760
    %4936 = vmatmul.f32.gmra.mxu0 %v4935
    %v4937 = vpop.f32.mrf.mxu0
    %v4938 = vadd.f32 0.0, %v4937
    %v4939 = vand.u32 %v4588, 4294901760
    %v4940 = vsub.f32 %v4588, %v4939
    %v4941 = vand.u32 %v4940, 4294901760
    %v4942 = vsub.f32 %v4940, %v4941
    %v4943 = vand.u32 %v4942, 4294901760
    %4944 = vmatmul.f32.gmra.mxu0 %v4943
    %v4945 = vpop.f32.mrf.mxu0
    %v4946 = vadd.f32 0.0, %v4945
    %v4947 = vand.u32 %v4591, 4294901760
    %v4948 = vsub.f32 %v4591, %v4947
    %v4949 = vand.u32 %v4948, 4294901760
    %v4950 = vsub.f32 %v4948, %v4949
    %v4951 = vand.u32 %v4950, 4294901760
    %4952 = vmatmul.f32.gmra.mxu0 %v4951
    %v4953 = vpop.f32.mrf.mxu0
    %v4954 = vadd.f32 0.0, %v4953
    %v4955 = vand.u32 %v4594, 4294901760
    %v4956 = vsub.f32 %v4594, %v4955
    %v4957 = vand.u32 %v4956, 4294901760
    %v4958 = vsub.f32 %v4956, %v4957
    %v4959 = vand.u32 %v4958, 4294901760
    %4960 = vmatmul.f32.gmra.mxu0 %v4959
    %v4961 = vpop.f32.mrf.mxu0
    %v4962 = vadd.f32 0.0, %v4961
    %v4963 = vand.u32 %v4597, 4294901760
    %v4964 = vsub.f32 %v4597, %v4963
    %v4965 = vand.u32 %v4964, 4294901760
    %v4966 = vsub.f32 %v4964, %v4965
    %v4967 = vand.u32 %v4966, 4294901760
    %4968 = vmatmul.f32.gmra.mxu0 %v4967
    %v4969 = vpop.f32.mrf.mxu0
    %v4970 = vadd.f32 0.0, %v4969
    %v4971 = vand.u32 %v4600, 4294901760
    %v4972 = vsub.f32 %v4600, %v4971
    %v4973 = vand.u32 %v4972, 4294901760
    %v4974 = vsub.f32 %v4972, %v4973
    %v4975 = vand.u32 %v4974, 4294901760
    %4976 = vmatmul.f32.gmra.mxu0 %v4975
    %v4977 = vpop.f32.mrf.mxu0
    %v4978 = vadd.f32 0.0, %v4977
    %v4979 = vand.u32 %v4603, 4294901760
    %v4980 = vsub.f32 %v4603, %v4979
    %v4981 = vand.u32 %v4980, 4294901760
    %v4982 = vsub.f32 %v4980, %v4981
    %v4983 = vand.u32 %v4982, 4294901760
    %4984 = vmatmul.f32.gmra.mxu0 %v4983
    %v4985 = vpop.f32.mrf.mxu0
    %v4986 = vadd.f32 0.0, %v4985
    %v4987 = vand.u32 %v4606, 4294901760
    %v4988 = vsub.f32 %v4606, %v4987
    %v4989 = vand.u32 %v4988, 4294901760
    %v4990 = vsub.f32 %v4988, %v4989
    %v4991 = vand.u32 %v4990, 4294901760
    %4992 = vmatmul.f32.gmra.mxu0 %v4991
    %v4993 = vpop.f32.mrf.mxu0
    %v4994 = vadd.f32 0.0, %v4993
    %v4995 = vand.u32 %v4609, 4294901760
    %v4996 = vsub.f32 %v4609, %v4995
    %v4997 = vand.u32 %v4996, 4294901760
    %v4998 = vsub.f32 %v4996, %v4997
    %v4999 = vand.u32 %v4998, 4294901760
    %5000 = vmatmul.f32.gmra.mxu0 %v4999
    %v5001 = vpop.f32.mrf.mxu0
    %v5002 = vadd.f32 0.0, %v5001
    %v5003 = vand.u32 %v4612, 4294901760
    %v5004 = vsub.f32 %v4612, %v5003
    %v5005 = vand.u32 %v5004, 4294901760
    %v5006 = vsub.f32 %v5004, %v5005
    %v5007 = vand.u32 %v5006, 4294901760
    %5008 = vmatmul.f32.gmra.mxu0 %v5007
    %v5009 = vpop.f32.mrf.mxu0
    %v5010 = vadd.f32 0.0, %v5009
    %v5011 = vand.u32 %v4615, 4294901760
    %v5012 = vsub.f32 %v4615, %v5011
    %v5013 = vand.u32 %v5012, 4294901760
    %v5014 = vsub.f32 %v5012, %v5013
    %v5015 = vand.u32 %v5014, 4294901760
    %5016 = vmatmul.f32.gmra.mxu0 %v5015
    %v5017 = vpop.f32.mrf.mxu0
    %v5018 = vadd.f32 0.0, %v5017
    %v5019 = vand.u32 %v4618, 4294901760
    %v5020 = vsub.f32 %v4618, %v5019
    %v5021 = vand.u32 %v5020, 4294901760
    %v5022 = vsub.f32 %v5020, %v5021
    %v5023 = vand.u32 %v5022, 4294901760
    %5024 = vmatmul.f32.gmra.mxu0 %v5023
    %v5025 = vpop.f32.mrf.mxu0
    %v5026 = vadd.f32 0.0, %v5025
    %v5027 = vand.u32 %v4621, 4294901760
    %v5028 = vsub.f32 %v4621, %v5027
    %v5029 = vand.u32 %v5028, 4294901760
    %v5030 = vsub.f32 %v5028, %v5029
    %v5031 = vand.u32 %v5030, 4294901760
    %5032 = vmatmul.f32.gmra.mxu0 %v5031
    %v5033 = vpop.f32.mrf.mxu0
    %v5034 = vadd.f32 0.0, %v5033
    %v5035 = vand.u32 %v4624, 4294901760
    %v5036 = vsub.f32 %v4624, %v5035
    %v5037 = vand.u32 %v5036, 4294901760
    %v5038 = vsub.f32 %v5036, %v5037
    %v5039 = vand.u32 %v5038, 4294901760
    %5040 = vmatmul.f32.gmra.mxu0 %v5039
    %v5041 = vpop.f32.mrf.mxu0
    %v5042 = vadd.f32 0.0, %v5041
    %v5043 = vand.u32 %v4627, 4294901760
    %v5044 = vsub.f32 %v4627, %v5043
    %v5045 = vand.u32 %v5044, 4294901760
    %v5046 = vsub.f32 %v5044, %v5045
    %v5047 = vand.u32 %v5046, 4294901760
    %5048 = vmatmul.f32.gmra.mxu0 %v5047
    %v5049 = vpop.f32.mrf.mxu0
    %v5050 = vadd.f32 0.0, %v5049
    %v5051 = vand.u32 %v4630, 4294901760
    %v5052 = vsub.f32 %v4630, %v5051
    %v5053 = vand.u32 %v5052, 4294901760
    %v5054 = vsub.f32 %v5052, %v5053
    %v5055 = vand.u32 %v5054, 4294901760
    %5056 = vmatmul.f32.gmra.mxu0 %v5055
    %v5057 = vpop.f32.mrf.mxu0
    %v5058 = vadd.f32 0.0, %v5057
    %v5059 = vand.u32 %v4633, 4294901760
    %v5060 = vsub.f32 %v4633, %v5059
    %v5061 = vand.u32 %v5060, 4294901760
    %v5062 = vsub.f32 %v5060, %v5061
    %v5063 = vand.u32 %v5062, 4294901760
    %5064 = vmatmul.f32.gmra.mxu0 %v5063
    %v5065 = vpop.f32.mrf.mxu0
    %v5066 = vadd.f32 0.0, %v5065
    %v5067 = vand.u32 %v4636, 4294901760
    %v5068 = vsub.f32 %v4636, %v5067
    %v5069 = vand.u32 %v5068, 4294901760
    %v5070 = vsub.f32 %v5068, %v5069
    %v5071 = vand.u32 %v5070, 4294901760
    %5072 = vmatmul.f32.gmra.mxu0 %v5071
    %v5073 = vpop.f32.mrf.mxu0
    %v5074 = vadd.f32 0.0, %v5073
    %v5075 = vand.u32 %v4639, 4294901760
    %v5076 = vsub.f32 %v4639, %v5075
    %v5077 = vand.u32 %v5076, 4294901760
    %v5078 = vsub.f32 %v5076, %v5077
    %v5079 = vand.u32 %v5078, 4294901760
    %5080 = vmatmul.f32.gmra.mxu0 %v5079
    %v5081 = vpop.f32.mrf.mxu0
    %v5082 = vadd.f32 0.0, %v5081
    %v5083 = vand.u32 %v4642, 4294901760
    %v5084 = vsub.f32 %v4642, %v5083
    %v5085 = vand.u32 %v5084, 4294901760
    %v5086 = vsub.f32 %v5084, %v5085
    %v5087 = vand.u32 %v5086, 4294901760
    %5088 = vmatmul.f32.gmra.mxu0 %v5087
    %v5089 = vpop.f32.mrf.mxu0
    %v5090 = vadd.f32 0.0, %v5089
    %v5091 = vand.u32 %v4645, 4294901760
    %v5092 = vsub.f32 %v4645, %v5091
    %v5093 = vand.u32 %v5092, 4294901760
    %v5094 = vsub.f32 %v5092, %v5093
    %v5095 = vand.u32 %v5094, 4294901760
    %5096 = vmatmul.f32.gmra.mxu0 %v5095
    %v5097 = vpop.f32.mrf.mxu0
    %v5098 = vadd.f32 0.0, %v5097
    %v5099 = vand.u32 %v4648, 4294901760
    %v5100 = vsub.f32 %v4648, %v5099
    %v5101 = vand.u32 %v5100, 4294901760
    %v5102 = vsub.f32 %v5100, %v5101
    %v5103 = vand.u32 %v5102, 4294901760
    %5104 = vmatmul.f32.gmra.mxu0 %v5103
    %v5105 = vpop.f32.mrf.mxu0
    %v5106 = vadd.f32 0.0, %v5105
    %v5107 = vand.u32 %v4651, 4294901760
    %v5108 = vsub.f32 %v4651, %v5107
    %v5109 = vand.u32 %v5108, 4294901760
    %v5110 = vsub.f32 %v5108, %v5109
    %v5111 = vand.u32 %v5110, 4294901760
    %5112 = vmatmul.f32.gmra.mxu0 %v5111
    %v5113 = vpop.f32.mrf.mxu0
    %v5114 = vadd.f32 0.0, %v5113
    %v5115 = vand.u32 %v4654, 4294901760
    %v5116 = vsub.f32 %v4654, %v5115
    %v5117 = vand.u32 %v5116, 4294901760
    %v5118 = vsub.f32 %v5116, %v5117
    %v5119 = vand.u32 %v5118, 4294901760
    %5120 = vmatmul.f32.gmra.mxu0 %v5119
    %v5121 = vpop.f32.mrf.mxu0
    %v5122 = vadd.f32 0.0, %v5121
    %v5123 = vand.u32 %v4657, 4294901760
    %v5124 = vsub.f32 %v4657, %v5123
    %v5125 = vand.u32 %v5124, 4294901760
    %v5126 = vsub.f32 %v5124, %v5125
    %v5127 = vand.u32 %v5126, 4294901760
    %5128 = vmatmul.f32.gmra.mxu0 %v5127
    %v5129 = vpop.f32.mrf.mxu0
    %v5130 = vadd.f32 0.0, %v5129
    %v5131 = vand.u32 %v4660, 4294901760
    %v5132 = vsub.f32 %v4660, %v5131
    %v5133 = vand.u32 %v5132, 4294901760
    %v5134 = vsub.f32 %v5132, %v5133
    %v5135 = vand.u32 %v5134, 4294901760
    %5136 = vmatmul.f32.gmra.mxu0 %v5135
    %v5137 = vpop.f32.mrf.mxu0
    %v5138 = vadd.f32 0.0, %v5137
    %v5139 = vand.u32 %v4663, 4294901760
    %v5140 = vsub.f32 %v4663, %v5139
    %v5141 = vand.u32 %v5140, 4294901760
    %v5142 = vsub.f32 %v5140, %v5141
    %v5143 = vand.u32 %v5142, 4294901760
    %5144 = vmatmul.f32.gmra.mxu0 %v5143
    %v5145 = vpop.f32.mrf.mxu0
    %v5146 = vadd.f32 0.0, %v5145
    %v5147 = vand.u32 %v4666, 4294901760
    %v5148 = vsub.f32 %v4666, %v5147
    %v5149 = vand.u32 %v5148, 4294901760
    %v5150 = vsub.f32 %v5148, %v5149
    %v5151 = vand.u32 %v5150, 4294901760
    %5152 = vmatmul.f32.gmra.mxu0 %v5151
    %v5153 = vpop.f32.mrf.mxu0
    %v5154 = vadd.f32 0.0, %v5153
    %v5155 = vand.u32 %v4669, 4294901760
    %v5156 = vsub.f32 %v4669, %v5155
    %v5157 = vand.u32 %v5156, 4294901760
    %v5158 = vsub.f32 %v5156, %v5157
    %v5159 = vand.u32 %v5158, 4294901760
    %5160 = vmatmul.f32.gmra.mxu0 %v5159
    %v5161 = vpop.f32.mrf.mxu0
    %v5162 = vadd.f32 0.0, %v5161
    %v5163 = vand.u32 %v4672, 4294901760
    %v5164 = vsub.f32 %v4672, %v5163
    %v5165 = vand.u32 %v5164, 4294901760
    %v5166 = vsub.f32 %v5164, %v5165
    %v5167 = vand.u32 %v5166, 4294901760
    %5168 = vmatmul.f32.gmra.mxu0 %v5167
    %v5169 = vpop.f32.mrf.mxu0
    %v5170 = vadd.f32 0.0, %v5169
    %v5171 = vand.u32 %v4675, 4294901760
    %v5172 = vsub.f32 %v4675, %v5171
    %v5173 = vand.u32 %v5172, 4294901760
    %v5174 = vsub.f32 %v5172, %v5173
    %v5175 = vand.u32 %v5174, 4294901760
    %5176 = vmatmul.f32.gmra.mxu0 %v5175
    %v5177 = vpop.f32.mrf.mxu0
    %v5178 = vadd.f32 0.0, %v5177
    %v5179 = vand.u32 %v4678, 4294901760
    %v5180 = vsub.f32 %v4678, %v5179
    %v5181 = vand.u32 %v5180, 4294901760
    %v5182 = vsub.f32 %v5180, %v5181
    %v5183 = vand.u32 %v5182, 4294901760
    %5184 = vmatmul.f32.gmra.mxu0 %v5183
    %v5185 = vpop.f32.mrf.mxu0
    %v5186 = vadd.f32 0.0, %v5185
    %v5187 = vand.u32 %v4681, 4294901760
    %v5188 = vsub.f32 %v4681, %v5187
    %v5189 = vand.u32 %v5188, 4294901760
    %v5190 = vsub.f32 %v5188, %v5189
    %v5191 = vand.u32 %v5190, 4294901760
    %5192 = vmatmul.f32.gmra.mxu0 %v5191
    %v5193 = vpop.f32.mrf.mxu0
    %v5194 = vadd.f32 0.0, %v5193
    %v5195 = vand.u32 %v4684, 4294901760
    %v5196 = vsub.f32 %v4684, %v5195
    %v5197 = vand.u32 %v5196, 4294901760
    %v5198 = vsub.f32 %v5196, %v5197
    %v5199 = vand.u32 %v5198, 4294901760
    %5200 = vmatmul.f32.gmra.mxu0 %v5199
    %v5201 = vpop.f32.mrf.mxu0
    %v5202 = vadd.f32 0.0, %v5201
    %v5203 = vand.u32 %v4687, 4294901760
    %v5204 = vsub.f32 %v4687, %v5203
    %v5205 = vand.u32 %v5204, 4294901760
    %v5206 = vsub.f32 %v5204, %v5205
    %v5207 = vand.u32 %v5206, 4294901760
    %5208 = vmatmul.f32.gmra.mxu0 %v5207
    %v5209 = vpop.f32.mrf.mxu0
    %v5210 = vadd.f32 0.0, %v5209
    %v5211 = vand.u32 %v4690, 4294901760
    %v5212 = vsub.f32 %v4690, %v5211
    %v5213 = vand.u32 %v5212, 4294901760
    %v5214 = vsub.f32 %v5212, %v5213
    %v5215 = vand.u32 %v5214, 4294901760
    %5216 = vmatmul.f32.gmra.mxu0 %v5215
    %v5217 = vpop.f32.mrf.mxu0
    %v5218 = vadd.f32 0.0, %v5217
    %v5219 = vand.u32 %v4693, 4294901760
    %v5220 = vsub.f32 %v4693, %v5219
    %v5221 = vand.u32 %v5220, 4294901760
    %v5222 = vsub.f32 %v5220, %v5221
    %v5223 = vand.u32 %v5222, 4294901760
    %5224 = vmatmul.f32.gmra.mxu0 %v5223
    %v5225 = vpop.f32.mrf.mxu0
    %v5226 = vadd.f32 0.0, %v5225
    %5227 = vdwg.mxu0
    %5228 = vmatpush.msra.mxu0 0.0
    %5229 = vmatpush.msra.mxu0 0.0
    %5230 = vmatpush.msra.mxu0 0.0
    %5231 = vmatpush.msra.mxu0 0.0
    %5232 = vmatpush.msra.mxu0 0.0
    %5233 = vmatpush.msra.mxu0 0.0
    %5234 = vmatpush.msra.mxu0 0.0
    %5235 = vmatpush.msra.mxu0 0.0
    %5236 = vmatpush.msra.mxu0 0.0
    %5237 = vmatpush.msra.mxu0 0.0
    %5238 = vmatpush.msra.mxu0 0.0
    %5239 = vmatpush.msra.mxu0 0.0
    %v5240 = vand.u32 %v4424, 4294901760
    %v5241 = vsub.f32 %v4424, %v5240
    %v5242 = vand.u32 %v5241, 4294901760
    %v5243 = vsub.f32 %v5241, %v5242
    %v5244 = vand.u32 %v5243, 4294901760
    %5245 = vmatpush.msra.mxu0 %v5244
    %v5246 = vand.u32 %v4422, 4294901760
    %v5247 = vsub.f32 %v4422, %v5246
    %v5248 = vand.u32 %v5247, 4294901760
    %v5249 = vsub.f32 %v5247, %v5248
    %v5250 = vand.u32 %v5249, 4294901760
    %5251 = vmatpush.msra.mxu0 %v5250
    %v5252 = vand.u32 %v4420, 4294901760
    %v5253 = vsub.f32 %v4420, %v5252
    %v5254 = vand.u32 %v5253, 4294901760
    %v5255 = vsub.f32 %v5253, %v5254
    %v5256 = vand.u32 %v5255, 4294901760
    %5257 = vmatpush.msra.mxu0 %v5256
    %v5258 = vand.u32 %v4418, 4294901760
    %v5259 = vsub.f32 %v4418, %v5258
    %v5260 = vand.u32 %v5259, 4294901760
    %v5261 = vsub.f32 %v5259, %v5260
    %v5262 = vand.u32 %v5261, 4294901760
    %5263 = vmatpush.msra.mxu0 %v5262
    %v5264 = vand.u32 %v4504, 4294901760
    %5265 = vmatmul.f32.gmra.mxu0 %v5264
    %v5266 = vpop.f32.mrf.mxu0
    %v5267 = vadd.f32 %v4722, %v5266
    %v5268 = vand.u32 %v4507, 4294901760
    %5269 = vmatmul.f32.gmra.mxu0 %v5268
    %v5270 = vpop.f32.mrf.mxu0
    %v5271 = vadd.f32 %v4730, %v5270
    %v5272 = vand.u32 %v4510, 4294901760
    %5273 = vmatmul.f32.gmra.mxu0 %v5272
    %v5274 = vpop.f32.mrf.mxu0
    %v5275 = vadd.f32 %v4738, %v5274
    %v5276 = vand.u32 %v4513, 4294901760
    %5277 = vmatmul.f32.gmra.mxu0 %v5276
    %v5278 = vpop.f32.mrf.mxu0
    %v5279 = vadd.f32 %v4746, %v5278
    %v5280 = vand.u32 %v4516, 4294901760
    %5281 = vmatmul.f32.gmra.mxu0 %v5280
    %v5282 = vpop.f32.mrf.mxu0
    %v5283 = vadd.f32 %v4754, %v5282
    %v5284 = vand.u32 %v4519, 4294901760
    %5285 = vmatmul.f32.gmra.mxu0 %v5284
    %v5286 = vpop.f32.mrf.mxu0
    %v5287 = vadd.f32 %v4762, %v5286
    %v5288 = vand.u32 %v4522, 4294901760
    %5289 = vmatmul.f32.gmra.mxu0 %v5288
    %v5290 = vpop.f32.mrf.mxu0
    %v5291 = vadd.f32 %v4770, %v5290
    %v5292 = vand.u32 %v4525, 4294901760
    %5293 = vmatmul.f32.gmra.mxu0 %v5292
    %v5294 = vpop.f32.mrf.mxu0
    %v5295 = vadd.f32 %v4778, %v5294
    %v5296 = vand.u32 %v4528, 4294901760
    %5297 = vmatmul.f32.gmra.mxu0 %v5296
    %v5298 = vpop.f32.mrf.mxu0
    %v5299 = vadd.f32 %v4786, %v5298
    %v5300 = vand.u32 %v4531, 4294901760
    %5301 = vmatmul.f32.gmra.mxu0 %v5300
    %v5302 = vpop.f32.mrf.mxu0
    %v5303 = vadd.f32 %v4794, %v5302
    %v5304 = vand.u32 %v4534, 4294901760
    %5305 = vmatmul.f32.gmra.mxu0 %v5304
    %v5306 = vpop.f32.mrf.mxu0
    %v5307 = vadd.f32 %v4802, %v5306
    %v5308 = vand.u32 %v4537, 4294901760
    %5309 = vmatmul.f32.gmra.mxu0 %v5308
    %v5310 = vpop.f32.mrf.mxu0
    %v5311 = vadd.f32 %v4810, %v5310
    %v5312 = vand.u32 %v4540, 4294901760
    %5313 = vmatmul.f32.gmra.mxu0 %v5312
    %v5314 = vpop.f32.mrf.mxu0
    %v5315 = vadd.f32 %v4818, %v5314
    %v5316 = vand.u32 %v4543, 4294901760
    %5317 = vmatmul.f32.gmra.mxu0 %v5316
    %v5318 = vpop.f32.mrf.mxu0
    %v5319 = vadd.f32 %v4826, %v5318
    %v5320 = vand.u32 %v4546, 4294901760
    %5321 = vmatmul.f32.gmra.mxu0 %v5320
    %v5322 = vpop.f32.mrf.mxu0
    %v5323 = vadd.f32 %v4834, %v5322
    %v5324 = vand.u32 %v4549, 4294901760
    %5325 = vmatmul.f32.gmra.mxu0 %v5324
    %v5326 = vpop.f32.mrf.mxu0
    %v5327 = vadd.f32 %v4842, %v5326
    %v5328 = vand.u32 %v4552, 4294901760
    %5329 = vmatmul.f32.gmra.mxu0 %v5328
    %v5330 = vpop.f32.mrf.mxu0
    %v5331 = vadd.f32 %v4850, %v5330
    %v5332 = vand.u32 %v4555, 4294901760
    %5333 = vmatmul.f32.gmra.mxu0 %v5332
    %v5334 = vpop.f32.mrf.mxu0
    %v5335 = vadd.f32 %v4858, %v5334
    %v5336 = vand.u32 %v4558, 4294901760
    %5337 = vmatmul.f32.gmra.mxu0 %v5336
    %v5338 = vpop.f32.mrf.mxu0
    %v5339 = vadd.f32 %v4866, %v5338
    %v5340 = vand.u32 %v4561, 4294901760
    %5341 = vmatmul.f32.gmra.mxu0 %v5340
    %v5342 = vpop.f32.mrf.mxu0
    %v5343 = vadd.f32 %v4874, %v5342
    %v5344 = vand.u32 %v4564, 4294901760
    %5345 = vmatmul.f32.gmra.mxu0 %v5344
    %v5346 = vpop.f32.mrf.mxu0
    %v5347 = vadd.f32 %v4882, %v5346
    %v5348 = vand.u32 %v4567, 4294901760
    %5349 = vmatmul.f32.gmra.mxu0 %v5348
    %v5350 = vpop.f32.mrf.mxu0
    %v5351 = vadd.f32 %v4890, %v5350
    %v5352 = vand.u32 %v4570, 4294901760
    %5353 = vmatmul.f32.gmra.mxu0 %v5352
    %v5354 = vpop.f32.mrf.mxu0
    %v5355 = vadd.f32 %v4898, %v5354
    %v5356 = vand.u32 %v4573, 4294901760
    %5357 = vmatmul.f32.gmra.mxu0 %v5356
    %v5358 = vpop.f32.mrf.mxu0
    %v5359 = vadd.f32 %v4906, %v5358
    %v5360 = vand.u32 %v4576, 4294901760
    %5361 = vmatmul.f32.gmra.mxu0 %v5360
    %v5362 = vpop.f32.mrf.mxu0
    %v5363 = vadd.f32 %v4914, %v5362
    %v5364 = vand.u32 %v4579, 4294901760
    %5365 = vmatmul.f32.gmra.mxu0 %v5364
    %v5366 = vpop.f32.mrf.mxu0
    %v5367 = vadd.f32 %v4922, %v5366
    %v5368 = vand.u32 %v4582, 4294901760
    %5369 = vmatmul.f32.gmra.mxu0 %v5368
    %v5370 = vpop.f32.mrf.mxu0
    %v5371 = vadd.f32 %v4930, %v5370
    %v5372 = vand.u32 %v4585, 4294901760
    %5373 = vmatmul.f32.gmra.mxu0 %v5372
    %v5374 = vpop.f32.mrf.mxu0
    %v5375 = vadd.f32 %v4938, %v5374
    %v5376 = vand.u32 %v4588, 4294901760
    %5377 = vmatmul.f32.gmra.mxu0 %v5376
    %v5378 = vpop.f32.mrf.mxu0
    %v5379 = vadd.f32 %v4946, %v5378
    %v5380 = vand.u32 %v4591, 4294901760
    %5381 = vmatmul.f32.gmra.mxu0 %v5380
    %v5382 = vpop.f32.mrf.mxu0
    %v5383 = vadd.f32 %v4954, %v5382
    %v5384 = vand.u32 %v4594, 4294901760
    %5385 = vmatmul.f32.gmra.mxu0 %v5384
    %v5386 = vpop.f32.mrf.mxu0
    %v5387 = vadd.f32 %v4962, %v5386
    %v5388 = vand.u32 %v4597, 4294901760
    %5389 = vmatmul.f32.gmra.mxu0 %v5388
    %v5390 = vpop.f32.mrf.mxu0
    %v5391 = vadd.f32 %v4970, %v5390
    %v5392 = vand.u32 %v4600, 4294901760
    %5393 = vmatmul.f32.gmra.mxu0 %v5392
    %v5394 = vpop.f32.mrf.mxu0
    %v5395 = vadd.f32 %v4978, %v5394
    %v5396 = vand.u32 %v4603, 4294901760
    %5397 = vmatmul.f32.gmra.mxu0 %v5396
    %v5398 = vpop.f32.mrf.mxu0
    %v5399 = vadd.f32 %v4986, %v5398
    %v5400 = vand.u32 %v4606, 4294901760
    %5401 = vmatmul.f32.gmra.mxu0 %v5400
    %v5402 = vpop.f32.mrf.mxu0
    %v5403 = vadd.f32 %v4994, %v5402
    %v5404 = vand.u32 %v4609, 4294901760
    %5405 = vmatmul.f32.gmra.mxu0 %v5404
    %v5406 = vpop.f32.mrf.mxu0
    %v5407 = vadd.f32 %v5002, %v5406
    %v5408 = vand.u32 %v4612, 4294901760
    %5409 = vmatmul.f32.gmra.mxu0 %v5408
    %v5410 = vpop.f32.mrf.mxu0
    %v5411 = vadd.f32 %v5010, %v5410
    %v5412 = vand.u32 %v4615, 4294901760
    %5413 = vmatmul.f32.gmra.mxu0 %v5412
    %v5414 = vpop.f32.mrf.mxu0
    %v5415 = vadd.f32 %v5018, %v5414
    %v5416 = vand.u32 %v4618, 4294901760
    %5417 = vmatmul.f32.gmra.mxu0 %v5416
    %v5418 = vpop.f32.mrf.mxu0
    %v5419 = vadd.f32 %v5026, %v5418
    %v5420 = vand.u32 %v4621, 4294901760
    %5421 = vmatmul.f32.gmra.mxu0 %v5420
    %v5422 = vpop.f32.mrf.mxu0
    %v5423 = vadd.f32 %v5034, %v5422
    %v5424 = vand.u32 %v4624, 4294901760
    %5425 = vmatmul.f32.gmra.mxu0 %v5424
    %v5426 = vpop.f32.mrf.mxu0
    %v5427 = vadd.f32 %v5042, %v5426
    %v5428 = vand.u32 %v4627, 4294901760
    %5429 = vmatmul.f32.gmra.mxu0 %v5428
    %v5430 = vpop.f32.mrf.mxu0
    %v5431 = vadd.f32 %v5050, %v5430
    %v5432 = vand.u32 %v4630, 4294901760
    %5433 = vmatmul.f32.gmra.mxu0 %v5432
    %v5434 = vpop.f32.mrf.mxu0
    %v5435 = vadd.f32 %v5058, %v5434
    %v5436 = vand.u32 %v4633, 4294901760
    %5437 = vmatmul.f32.gmra.mxu0 %v5436
    %v5438 = vpop.f32.mrf.mxu0
    %v5439 = vadd.f32 %v5066, %v5438
    %v5440 = vand.u32 %v4636, 4294901760
    %5441 = vmatmul.f32.gmra.mxu0 %v5440
    %v5442 = vpop.f32.mrf.mxu0
    %v5443 = vadd.f32 %v5074, %v5442
    %v5444 = vand.u32 %v4639, 4294901760
    %5445 = vmatmul.f32.gmra.mxu0 %v5444
    %v5446 = vpop.f32.mrf.mxu0
    %v5447 = vadd.f32 %v5082, %v5446
    %v5448 = vand.u32 %v4642, 4294901760
    %5449 = vmatmul.f32.gmra.mxu0 %v5448
    %v5450 = vpop.f32.mrf.mxu0
    %v5451 = vadd.f32 %v5090, %v5450
    %v5452 = vand.u32 %v4645, 4294901760
    %5453 = vmatmul.f32.gmra.mxu0 %v5452
    %v5454 = vpop.f32.mrf.mxu0
    %v5455 = vadd.f32 %v5098, %v5454
    %v5456 = vand.u32 %v4648, 4294901760
    %5457 = vmatmul.f32.gmra.mxu0 %v5456
    %v5458 = vpop.f32.mrf.mxu0
    %v5459 = vadd.f32 %v5106, %v5458
    %v5460 = vand.u32 %v4651, 4294901760
    %5461 = vmatmul.f32.gmra.mxu0 %v5460
    %v5462 = vpop.f32.mrf.mxu0
    %v5463 = vadd.f32 %v5114, %v5462
    %v5464 = vand.u32 %v4654, 4294901760
    %5465 = vmatmul.f32.gmra.mxu0 %v5464
    %v5466 = vpop.f32.mrf.mxu0
    %v5467 = vadd.f32 %v5122, %v5466
    %v5468 = vand.u32 %v4657, 4294901760
    %5469 = vmatmul.f32.gmra.mxu0 %v5468
    %v5470 = vpop.f32.mrf.mxu0
    %v5471 = vadd.f32 %v5130, %v5470
    %v5472 = vand.u32 %v4660, 4294901760
    %5473 = vmatmul.f32.gmra.mxu0 %v5472
    %v5474 = vpop.f32.mrf.mxu0
    %v5475 = vadd.f32 %v5138, %v5474
    %v5476 = vand.u32 %v4663, 4294901760
    %5477 = vmatmul.f32.gmra.mxu0 %v5476
    %v5478 = vpop.f32.mrf.mxu0
    %v5479 = vadd.f32 %v5146, %v5478
    %v5480 = vand.u32 %v4666, 4294901760
    %5481 = vmatmul.f32.gmra.mxu0 %v5480
    %v5482 = vpop.f32.mrf.mxu0
    %v5483 = vadd.f32 %v5154, %v5482
    %v5484 = vand.u32 %v4669, 4294901760
    %5485 = vmatmul.f32.gmra.mxu0 %v5484
    %v5486 = vpop.f32.mrf.mxu0
    %v5487 = vadd.f32 %v5162, %v5486
    %v5488 = vand.u32 %v4672, 4294901760
    %5489 = vmatmul.f32.gmra.mxu0 %v5488
    %v5490 = vpop.f32.mrf.mxu0
    %v5491 = vadd.f32 %v5170, %v5490
    %v5492 = vand.u32 %v4675, 4294901760
    %5493 = vmatmul.f32.gmra.mxu0 %v5492
    %v5494 = vpop.f32.mrf.mxu0
    %v5495 = vadd.f32 %v5178, %v5494
    %v5496 = vand.u32 %v4678, 4294901760
    %5497 = vmatmul.f32.gmra.mxu0 %v5496
    %v5498 = vpop.f32.mrf.mxu0
    %v5499 = vadd.f32 %v5186, %v5498
    %v5500 = vand.u32 %v4681, 4294901760
    %5501 = vmatmul.f32.gmra.mxu0 %v5500
    %v5502 = vpop.f32.mrf.mxu0
    %v5503 = vadd.f32 %v5194, %v5502
    %v5504 = vand.u32 %v4684, 4294901760
    %5505 = vmatmul.f32.gmra.mxu0 %v5504
    %v5506 = vpop.f32.mrf.mxu0
    %v5507 = vadd.f32 %v5202, %v5506
    %v5508 = vand.u32 %v4687, 4294901760
    %5509 = vmatmul.f32.gmra.mxu0 %v5508
    %v5510 = vpop.f32.mrf.mxu0
    %v5511 = vadd.f32 %v5210, %v5510
    %v5512 = vand.u32 %v4690, 4294901760
    %5513 = vmatmul.f32.gmra.mxu0 %v5512
    %v5514 = vpop.f32.mrf.mxu0
    %v5515 = vadd.f32 %v5218, %v5514
    %v5516 = vand.u32 %v4693, 4294901760
    %5517 = vmatmul.f32.gmra.mxu0 %v5516
    %v5518 = vpop.f32.mrf.mxu0
    %v5519 = vadd.f32 %v5226, %v5518
    %5520 = vdwg.mxu0
    %5521 = vmatpush.msra.mxu0 0.0
    %5522 = vmatpush.msra.mxu0 0.0
    %5523 = vmatpush.msra.mxu0 0.0
    %5524 = vmatpush.msra.mxu0 0.0
    %5525 = vmatpush.msra.mxu0 0.0
    %5526 = vmatpush.msra.mxu0 0.0
    %5527 = vmatpush.msra.mxu0 0.0
    %5528 = vmatpush.msra.mxu0 0.0
    %5529 = vmatpush.msra.mxu0 0.0
    %5530 = vmatpush.msra.mxu0 0.0
    %5531 = vmatpush.msra.mxu0 0.0
    %5532 = vmatpush.msra.mxu0 0.0
    %v5533 = vand.u32 %v4424, 4294901760
    %v5534 = vsub.f32 %v4424, %v5533
    %5535 = vmatpush.msra.mxu0 %v5534
    %v5536 = vand.u32 %v4422, 4294901760
    %v5537 = vsub.f32 %v4422, %v5536
    %5538 = vmatpush.msra.mxu0 %v5537
    %v5539 = vand.u32 %v4420, 4294901760
    %v5540 = vsub.f32 %v4420, %v5539
    %5541 = vmatpush.msra.mxu0 %v5540
    %v5542 = vand.u32 %v4418, 4294901760
    %v5543 = vsub.f32 %v4418, %v5542
    %5544 = vmatpush.msra.mxu0 %v5543
    %v5545 = vand.u32 %v4504, 4294901760
    %v5546 = vsub.f32 %v4504, %v5545
    %5547 = vmatmul.f32.gmra.mxu0 %v5546
    %v5548 = vpop.f32.mrf.mxu0
    %v5549 = vadd.f32 %v5267, %v5548
    %v5550 = vand.u32 %v4507, 4294901760
    %v5551 = vsub.f32 %v4507, %v5550
    %5552 = vmatmul.f32.gmra.mxu0 %v5551
    %v5553 = vpop.f32.mrf.mxu0
    %v5554 = vadd.f32 %v5271, %v5553
    %v5555 = vand.u32 %v4510, 4294901760
    %v5556 = vsub.f32 %v4510, %v5555
    %5557 = vmatmul.f32.gmra.mxu0 %v5556
    %v5558 = vpop.f32.mrf.mxu0
    %v5559 = vadd.f32 %v5275, %v5558
    %v5560 = vand.u32 %v4513, 4294901760
    %v5561 = vsub.f32 %v4513, %v5560
    %5562 = vmatmul.f32.gmra.mxu0 %v5561
    %v5563 = vpop.f32.mrf.mxu0
    %v5564 = vadd.f32 %v5279, %v5563
    %v5565 = vand.u32 %v4516, 4294901760
    %v5566 = vsub.f32 %v4516, %v5565
    %5567 = vmatmul.f32.gmra.mxu0 %v5566
    %v5568 = vpop.f32.mrf.mxu0
    %v5569 = vadd.f32 %v5283, %v5568
    %v5570 = vand.u32 %v4519, 4294901760
    %v5571 = vsub.f32 %v4519, %v5570
    %5572 = vmatmul.f32.gmra.mxu0 %v5571
    %v5573 = vpop.f32.mrf.mxu0
    %v5574 = vadd.f32 %v5287, %v5573
    %v5575 = vand.u32 %v4522, 4294901760
    %v5576 = vsub.f32 %v4522, %v5575
    %5577 = vmatmul.f32.gmra.mxu0 %v5576
    %v5578 = vpop.f32.mrf.mxu0
    %v5579 = vadd.f32 %v5291, %v5578
    %v5580 = vand.u32 %v4525, 4294901760
    %v5581 = vsub.f32 %v4525, %v5580
    %5582 = vmatmul.f32.gmra.mxu0 %v5581
    %v5583 = vpop.f32.mrf.mxu0
    %v5584 = vadd.f32 %v5295, %v5583
    %v5585 = vand.u32 %v4528, 4294901760
    %v5586 = vsub.f32 %v4528, %v5585
    %5587 = vmatmul.f32.gmra.mxu0 %v5586
    %v5588 = vpop.f32.mrf.mxu0
    %v5589 = vadd.f32 %v5299, %v5588
    %v5590 = vand.u32 %v4531, 4294901760
    %v5591 = vsub.f32 %v4531, %v5590
    %5592 = vmatmul.f32.gmra.mxu0 %v5591
    %v5593 = vpop.f32.mrf.mxu0
    %v5594 = vadd.f32 %v5303, %v5593
    %v5595 = vand.u32 %v4534, 4294901760
    %v5596 = vsub.f32 %v4534, %v5595
    %5597 = vmatmul.f32.gmra.mxu0 %v5596
    %v5598 = vpop.f32.mrf.mxu0
    %v5599 = vadd.f32 %v5307, %v5598
    %v5600 = vand.u32 %v4537, 4294901760
    %v5601 = vsub.f32 %v4537, %v5600
    %5602 = vmatmul.f32.gmra.mxu0 %v5601
    %v5603 = vpop.f32.mrf.mxu0
    %v5604 = vadd.f32 %v5311, %v5603
    %v5605 = vand.u32 %v4540, 4294901760
    %v5606 = vsub.f32 %v4540, %v5605
    %5607 = vmatmul.f32.gmra.mxu0 %v5606
    %v5608 = vpop.f32.mrf.mxu0
    %v5609 = vadd.f32 %v5315, %v5608
    %v5610 = vand.u32 %v4543, 4294901760
    %v5611 = vsub.f32 %v4543, %v5610
    %5612 = vmatmul.f32.gmra.mxu0 %v5611
    %v5613 = vpop.f32.mrf.mxu0
    %v5614 = vadd.f32 %v5319, %v5613
    %v5615 = vand.u32 %v4546, 4294901760
    %v5616 = vsub.f32 %v4546, %v5615
    %5617 = vmatmul.f32.gmra.mxu0 %v5616
    %v5618 = vpop.f32.mrf.mxu0
    %v5619 = vadd.f32 %v5323, %v5618
    %v5620 = vand.u32 %v4549, 4294901760
    %v5621 = vsub.f32 %v4549, %v5620
    %5622 = vmatmul.f32.gmra.mxu0 %v5621
    %v5623 = vpop.f32.mrf.mxu0
    %v5624 = vadd.f32 %v5327, %v5623
    %v5625 = vand.u32 %v4552, 4294901760
    %v5626 = vsub.f32 %v4552, %v5625
    %5627 = vmatmul.f32.gmra.mxu0 %v5626
    %v5628 = vpop.f32.mrf.mxu0
    %v5629 = vadd.f32 %v5331, %v5628
    %v5630 = vand.u32 %v4555, 4294901760
    %v5631 = vsub.f32 %v4555, %v5630
    %5632 = vmatmul.f32.gmra.mxu0 %v5631
    %v5633 = vpop.f32.mrf.mxu0
    %v5634 = vadd.f32 %v5335, %v5633
    %v5635 = vand.u32 %v4558, 4294901760
    %v5636 = vsub.f32 %v4558, %v5635
    %5637 = vmatmul.f32.gmra.mxu0 %v5636
    %v5638 = vpop.f32.mrf.mxu0
    %v5639 = vadd.f32 %v5339, %v5638
    %v5640 = vand.u32 %v4561, 4294901760
    %v5641 = vsub.f32 %v4561, %v5640
    %5642 = vmatmul.f32.gmra.mxu0 %v5641
    %v5643 = vpop.f32.mrf.mxu0
    %v5644 = vadd.f32 %v5343, %v5643
    %v5645 = vand.u32 %v4564, 4294901760
    %v5646 = vsub.f32 %v4564, %v5645
    %5647 = vmatmul.f32.gmra.mxu0 %v5646
    %v5648 = vpop.f32.mrf.mxu0
    %v5649 = vadd.f32 %v5347, %v5648
    %v5650 = vand.u32 %v4567, 4294901760
    %v5651 = vsub.f32 %v4567, %v5650
    %5652 = vmatmul.f32.gmra.mxu0 %v5651
    %v5653 = vpop.f32.mrf.mxu0
    %v5654 = vadd.f32 %v5351, %v5653
    %v5655 = vand.u32 %v4570, 4294901760
    %v5656 = vsub.f32 %v4570, %v5655
    %5657 = vmatmul.f32.gmra.mxu0 %v5656
    %v5658 = vpop.f32.mrf.mxu0
    %v5659 = vadd.f32 %v5355, %v5658
    %v5660 = vand.u32 %v4573, 4294901760
    %v5661 = vsub.f32 %v4573, %v5660
    %5662 = vmatmul.f32.gmra.mxu0 %v5661
    %v5663 = vpop.f32.mrf.mxu0
    %v5664 = vadd.f32 %v5359, %v5663
    %v5665 = vand.u32 %v4576, 4294901760
    %v5666 = vsub.f32 %v4576, %v5665
    %5667 = vmatmul.f32.gmra.mxu0 %v5666
    %v5668 = vpop.f32.mrf.mxu0
    %v5669 = vadd.f32 %v5363, %v5668
    %v5670 = vand.u32 %v4579, 4294901760
    %v5671 = vsub.f32 %v4579, %v5670
    %5672 = vmatmul.f32.gmra.mxu0 %v5671
    %v5673 = vpop.f32.mrf.mxu0
    %v5674 = vadd.f32 %v5367, %v5673
    %v5675 = vand.u32 %v4582, 4294901760
    %v5676 = vsub.f32 %v4582, %v5675
    %5677 = vmatmul.f32.gmra.mxu0 %v5676
    %v5678 = vpop.f32.mrf.mxu0
    %v5679 = vadd.f32 %v5371, %v5678
    %v5680 = vand.u32 %v4585, 4294901760
    %v5681 = vsub.f32 %v4585, %v5680
    %5682 = vmatmul.f32.gmra.mxu0 %v5681
    %v5683 = vpop.f32.mrf.mxu0
    %v5684 = vadd.f32 %v5375, %v5683
    %v5685 = vand.u32 %v4588, 4294901760
    %v5686 = vsub.f32 %v4588, %v5685
    %5687 = vmatmul.f32.gmra.mxu0 %v5686
    %v5688 = vpop.f32.mrf.mxu0
    %v5689 = vadd.f32 %v5379, %v5688
    %v5690 = vand.u32 %v4591, 4294901760
    %v5691 = vsub.f32 %v4591, %v5690
    %5692 = vmatmul.f32.gmra.mxu0 %v5691
    %v5693 = vpop.f32.mrf.mxu0
    %v5694 = vadd.f32 %v5383, %v5693
    %v5695 = vand.u32 %v4594, 4294901760
    %v5696 = vsub.f32 %v4594, %v5695
    %5697 = vmatmul.f32.gmra.mxu0 %v5696
    %v5698 = vpop.f32.mrf.mxu0
    %v5699 = vadd.f32 %v5387, %v5698
    %v5700 = vand.u32 %v4597, 4294901760
    %v5701 = vsub.f32 %v4597, %v5700
    %5702 = vmatmul.f32.gmra.mxu0 %v5701
    %v5703 = vpop.f32.mrf.mxu0
    %v5704 = vadd.f32 %v5391, %v5703
    %v5705 = vand.u32 %v4600, 4294901760
    %v5706 = vsub.f32 %v4600, %v5705
    %5707 = vmatmul.f32.gmra.mxu0 %v5706
    %v5708 = vpop.f32.mrf.mxu0
    %v5709 = vadd.f32 %v5395, %v5708
    %v5710 = vand.u32 %v4603, 4294901760
    %v5711 = vsub.f32 %v4603, %v5710
    %5712 = vmatmul.f32.gmra.mxu0 %v5711
    %v5713 = vpop.f32.mrf.mxu0
    %v5714 = vadd.f32 %v5399, %v5713
    %v5715 = vand.u32 %v4606, 4294901760
    %v5716 = vsub.f32 %v4606, %v5715
    %5717 = vmatmul.f32.gmra.mxu0 %v5716
    %v5718 = vpop.f32.mrf.mxu0
    %v5719 = vadd.f32 %v5403, %v5718
    %v5720 = vand.u32 %v4609, 4294901760
    %v5721 = vsub.f32 %v4609, %v5720
    %5722 = vmatmul.f32.gmra.mxu0 %v5721
    %v5723 = vpop.f32.mrf.mxu0
    %v5724 = vadd.f32 %v5407, %v5723
    %v5725 = vand.u32 %v4612, 4294901760
    %v5726 = vsub.f32 %v4612, %v5725
    %5727 = vmatmul.f32.gmra.mxu0 %v5726
    %v5728 = vpop.f32.mrf.mxu0
    %v5729 = vadd.f32 %v5411, %v5728
    %v5730 = vand.u32 %v4615, 4294901760
    %v5731 = vsub.f32 %v4615, %v5730
    %5732 = vmatmul.f32.gmra.mxu0 %v5731
    %v5733 = vpop.f32.mrf.mxu0
    %v5734 = vadd.f32 %v5415, %v5733
    %v5735 = vand.u32 %v4618, 4294901760
    %v5736 = vsub.f32 %v4618, %v5735
    %5737 = vmatmul.f32.gmra.mxu0 %v5736
    %v5738 = vpop.f32.mrf.mxu0
    %v5739 = vadd.f32 %v5419, %v5738
    %v5740 = vand.u32 %v4621, 4294901760
    %v5741 = vsub.f32 %v4621, %v5740
    %5742 = vmatmul.f32.gmra.mxu0 %v5741
    %v5743 = vpop.f32.mrf.mxu0
    %v5744 = vadd.f32 %v5423, %v5743
    %v5745 = vand.u32 %v4624, 4294901760
    %v5746 = vsub.f32 %v4624, %v5745
    %5747 = vmatmul.f32.gmra.mxu0 %v5746
    %v5748 = vpop.f32.mrf.mxu0
    %v5749 = vadd.f32 %v5427, %v5748
    %v5750 = vand.u32 %v4627, 4294901760
    %v5751 = vsub.f32 %v4627, %v5750
    %5752 = vmatmul.f32.gmra.mxu0 %v5751
    %v5753 = vpop.f32.mrf.mxu0
    %v5754 = vadd.f32 %v5431, %v5753
    %v5755 = vand.u32 %v4630, 4294901760
    %v5756 = vsub.f32 %v4630, %v5755
    %5757 = vmatmul.f32.gmra.mxu0 %v5756
    %v5758 = vpop.f32.mrf.mxu0
    %v5759 = vadd.f32 %v5435, %v5758
    %v5760 = vand.u32 %v4633, 4294901760
    %v5761 = vsub.f32 %v4633, %v5760
    %5762 = vmatmul.f32.gmra.mxu0 %v5761
    %v5763 = vpop.f32.mrf.mxu0
    %v5764 = vadd.f32 %v5439, %v5763
    %v5765 = vand.u32 %v4636, 4294901760
    %v5766 = vsub.f32 %v4636, %v5765
    %5767 = vmatmul.f32.gmra.mxu0 %v5766
    %v5768 = vpop.f32.mrf.mxu0
    %v5769 = vadd.f32 %v5443, %v5768
    %v5770 = vand.u32 %v4639, 4294901760
    %v5771 = vsub.f32 %v4639, %v5770
    %5772 = vmatmul.f32.gmra.mxu0 %v5771
    %v5773 = vpop.f32.mrf.mxu0
    %v5774 = vadd.f32 %v5447, %v5773
    %v5775 = vand.u32 %v4642, 4294901760
    %v5776 = vsub.f32 %v4642, %v5775
    %5777 = vmatmul.f32.gmra.mxu0 %v5776
    %v5778 = vpop.f32.mrf.mxu0
    %v5779 = vadd.f32 %v5451, %v5778
    %v5780 = vand.u32 %v4645, 4294901760
    %v5781 = vsub.f32 %v4645, %v5780
    %5782 = vmatmul.f32.gmra.mxu0 %v5781
    %v5783 = vpop.f32.mrf.mxu0
    %v5784 = vadd.f32 %v5455, %v5783
    %v5785 = vand.u32 %v4648, 4294901760
    %v5786 = vsub.f32 %v4648, %v5785
    %5787 = vmatmul.f32.gmra.mxu0 %v5786
    %v5788 = vpop.f32.mrf.mxu0
    %v5789 = vadd.f32 %v5459, %v5788
    %v5790 = vand.u32 %v4651, 4294901760
    %v5791 = vsub.f32 %v4651, %v5790
    %5792 = vmatmul.f32.gmra.mxu0 %v5791
    %v5793 = vpop.f32.mrf.mxu0
    %v5794 = vadd.f32 %v5463, %v5793
    %v5795 = vand.u32 %v4654, 4294901760
    %v5796 = vsub.f32 %v4654, %v5795
    %5797 = vmatmul.f32.gmra.mxu0 %v5796
    %v5798 = vpop.f32.mrf.mxu0
    %v5799 = vadd.f32 %v5467, %v5798
    %v5800 = vand.u32 %v4657, 4294901760
    %v5801 = vsub.f32 %v4657, %v5800
    %5802 = vmatmul.f32.gmra.mxu0 %v5801
    %v5803 = vpop.f32.mrf.mxu0
    %v5804 = vadd.f32 %v5471, %v5803
    %v5805 = vand.u32 %v4660, 4294901760
    %v5806 = vsub.f32 %v4660, %v5805
    %5807 = vmatmul.f32.gmra.mxu0 %v5806
    %v5808 = vpop.f32.mrf.mxu0
    %v5809 = vadd.f32 %v5475, %v5808
    %v5810 = vand.u32 %v4663, 4294901760
    %v5811 = vsub.f32 %v4663, %v5810
    %5812 = vmatmul.f32.gmra.mxu0 %v5811
    %v5813 = vpop.f32.mrf.mxu0
    %v5814 = vadd.f32 %v5479, %v5813
    %v5815 = vand.u32 %v4666, 4294901760
    %v5816 = vsub.f32 %v4666, %v5815
    %5817 = vmatmul.f32.gmra.mxu0 %v5816
    %v5818 = vpop.f32.mrf.mxu0
    %v5819 = vadd.f32 %v5483, %v5818
    %v5820 = vand.u32 %v4669, 4294901760
    %v5821 = vsub.f32 %v4669, %v5820
    %5822 = vmatmul.f32.gmra.mxu0 %v5821
    %v5823 = vpop.f32.mrf.mxu0
    %v5824 = vadd.f32 %v5487, %v5823
    %v5825 = vand.u32 %v4672, 4294901760
    %v5826 = vsub.f32 %v4672, %v5825
    %5827 = vmatmul.f32.gmra.mxu0 %v5826
    %v5828 = vpop.f32.mrf.mxu0
    %v5829 = vadd.f32 %v5491, %v5828
    %v5830 = vand.u32 %v4675, 4294901760
    %v5831 = vsub.f32 %v4675, %v5830
    %5832 = vmatmul.f32.gmra.mxu0 %v5831
    %v5833 = vpop.f32.mrf.mxu0
    %v5834 = vadd.f32 %v5495, %v5833
    %v5835 = vand.u32 %v4678, 4294901760
    %v5836 = vsub.f32 %v4678, %v5835
    %5837 = vmatmul.f32.gmra.mxu0 %v5836
    %v5838 = vpop.f32.mrf.mxu0
    %v5839 = vadd.f32 %v5499, %v5838
    %v5840 = vand.u32 %v4681, 4294901760
    %v5841 = vsub.f32 %v4681, %v5840
    %5842 = vmatmul.f32.gmra.mxu0 %v5841
    %v5843 = vpop.f32.mrf.mxu0
    %v5844 = vadd.f32 %v5503, %v5843
    %v5845 = vand.u32 %v4684, 4294901760
    %v5846 = vsub.f32 %v4684, %v5845
    %5847 = vmatmul.f32.gmra.mxu0 %v5846
    %v5848 = vpop.f32.mrf.mxu0
    %v5849 = vadd.f32 %v5507, %v5848
    %v5850 = vand.u32 %v4687, 4294901760
    %v5851 = vsub.f32 %v4687, %v5850
    %5852 = vmatmul.f32.gmra.mxu0 %v5851
    %v5853 = vpop.f32.mrf.mxu0
    %v5854 = vadd.f32 %v5511, %v5853
    %v5855 = vand.u32 %v4690, 4294901760
    %v5856 = vsub.f32 %v4690, %v5855
    %5857 = vmatmul.f32.gmra.mxu0 %v5856
    %v5858 = vpop.f32.mrf.mxu0
    %v5859 = vadd.f32 %v5515, %v5858
    %v5860 = vand.u32 %v4693, 4294901760
    %v5861 = vsub.f32 %v4693, %v5860
    %5862 = vmatmul.f32.gmra.mxu0 %v5861
    %v5863 = vpop.f32.mrf.mxu0
    %v5864 = vadd.f32 %v5519, %v5863
    %5865 = vdwg.mxu0
    %5866 = vmatpush.msra.mxu0 0.0
    %5867 = vmatpush.msra.mxu0 0.0
    %5868 = vmatpush.msra.mxu0 0.0
    %5869 = vmatpush.msra.mxu0 0.0
    %5870 = vmatpush.msra.mxu0 0.0
    %5871 = vmatpush.msra.mxu0 0.0
    %5872 = vmatpush.msra.mxu0 0.0
    %5873 = vmatpush.msra.mxu0 0.0
    %5874 = vmatpush.msra.mxu0 0.0
    %5875 = vmatpush.msra.mxu0 0.0
    %5876 = vmatpush.msra.mxu0 0.0
    %5877 = vmatpush.msra.mxu0 0.0
    %v5878 = vand.u32 %v4424, 4294901760
    %5879 = vmatpush.msra.mxu0 %v5878
    %v5880 = vand.u32 %v4422, 4294901760
    %5881 = vmatpush.msra.mxu0 %v5880
    %v5882 = vand.u32 %v4420, 4294901760
    %5883 = vmatpush.msra.mxu0 %v5882
    %v5884 = vand.u32 %v4418, 4294901760
    %5885 = vmatpush.msra.mxu0 %v5884
    %v5886 = vand.u32 %v4504, 4294901760
    %v5887 = vsub.f32 %v4504, %v5886
    %v5888 = vand.u32 %v5887, 4294901760
    %5889 = vmatmul.f32.gmra.mxu0 %v5888
    %v5890 = vpop.f32.mrf.mxu0
    %v5891 = vadd.f32 %v5549, %v5890
    %v5892 = vand.u32 %v4507, 4294901760
    %v5893 = vsub.f32 %v4507, %v5892
    %v5894 = vand.u32 %v5893, 4294901760
    %5895 = vmatmul.f32.gmra.mxu0 %v5894
    %v5896 = vpop.f32.mrf.mxu0
    %v5897 = vadd.f32 %v5554, %v5896
    %v5898 = vand.u32 %v4510, 4294901760
    %v5899 = vsub.f32 %v4510, %v5898
    %v5900 = vand.u32 %v5899, 4294901760
    %5901 = vmatmul.f32.gmra.mxu0 %v5900
    %v5902 = vpop.f32.mrf.mxu0
    %v5903 = vadd.f32 %v5559, %v5902
    %v5904 = vand.u32 %v4513, 4294901760
    %v5905 = vsub.f32 %v4513, %v5904
    %v5906 = vand.u32 %v5905, 4294901760
    %5907 = vmatmul.f32.gmra.mxu0 %v5906
    %v5908 = vpop.f32.mrf.mxu0
    %v5909 = vadd.f32 %v5564, %v5908
    %v5910 = vand.u32 %v4516, 4294901760
    %v5911 = vsub.f32 %v4516, %v5910
    %v5912 = vand.u32 %v5911, 4294901760
    %5913 = vmatmul.f32.gmra.mxu0 %v5912
    %v5914 = vpop.f32.mrf.mxu0
    %v5915 = vadd.f32 %v5569, %v5914
    %v5916 = vand.u32 %v4519, 4294901760
    %v5917 = vsub.f32 %v4519, %v5916
    %v5918 = vand.u32 %v5917, 4294901760
    %5919 = vmatmul.f32.gmra.mxu0 %v5918
    %v5920 = vpop.f32.mrf.mxu0
    %v5921 = vadd.f32 %v5574, %v5920
    %v5922 = vand.u32 %v4522, 4294901760
    %v5923 = vsub.f32 %v4522, %v5922
    %v5924 = vand.u32 %v5923, 4294901760
    %5925 = vmatmul.f32.gmra.mxu0 %v5924
    %v5926 = vpop.f32.mrf.mxu0
    %v5927 = vadd.f32 %v5579, %v5926
    %v5928 = vand.u32 %v4525, 4294901760
    %v5929 = vsub.f32 %v4525, %v5928
    %v5930 = vand.u32 %v5929, 4294901760
    %5931 = vmatmul.f32.gmra.mxu0 %v5930
    %v5932 = vpop.f32.mrf.mxu0
    %v5933 = vadd.f32 %v5584, %v5932
    %v5934 = vand.u32 %v4528, 4294901760
    %v5935 = vsub.f32 %v4528, %v5934
    %v5936 = vand.u32 %v5935, 4294901760
    %5937 = vmatmul.f32.gmra.mxu0 %v5936
    %v5938 = vpop.f32.mrf.mxu0
    %v5939 = vadd.f32 %v5589, %v5938
    %v5940 = vand.u32 %v4531, 4294901760
    %v5941 = vsub.f32 %v4531, %v5940
    %v5942 = vand.u32 %v5941, 4294901760
    %5943 = vmatmul.f32.gmra.mxu0 %v5942
    %v5944 = vpop.f32.mrf.mxu0
    %v5945 = vadd.f32 %v5594, %v5944
    %v5946 = vand.u32 %v4534, 4294901760
    %v5947 = vsub.f32 %v4534, %v5946
    %v5948 = vand.u32 %v5947, 4294901760
    %5949 = vmatmul.f32.gmra.mxu0 %v5948
    %v5950 = vpop.f32.mrf.mxu0
    %v5951 = vadd.f32 %v5599, %v5950
    %v5952 = vand.u32 %v4537, 4294901760
    %v5953 = vsub.f32 %v4537, %v5952
    %v5954 = vand.u32 %v5953, 4294901760
    %5955 = vmatmul.f32.gmra.mxu0 %v5954
    %v5956 = vpop.f32.mrf.mxu0
    %v5957 = vadd.f32 %v5604, %v5956
    %v5958 = vand.u32 %v4540, 4294901760
    %v5959 = vsub.f32 %v4540, %v5958
    %v5960 = vand.u32 %v5959, 4294901760
    %5961 = vmatmul.f32.gmra.mxu0 %v5960
    %v5962 = vpop.f32.mrf.mxu0
    %v5963 = vadd.f32 %v5609, %v5962
    %v5964 = vand.u32 %v4543, 4294901760
    %v5965 = vsub.f32 %v4543, %v5964
    %v5966 = vand.u32 %v5965, 4294901760
    %5967 = vmatmul.f32.gmra.mxu0 %v5966
    %v5968 = vpop.f32.mrf.mxu0
    %v5969 = vadd.f32 %v5614, %v5968
    %v5970 = vand.u32 %v4546, 4294901760
    %v5971 = vsub.f32 %v4546, %v5970
    %v5972 = vand.u32 %v5971, 4294901760
    %5973 = vmatmul.f32.gmra.mxu0 %v5972
    %v5974 = vpop.f32.mrf.mxu0
    %v5975 = vadd.f32 %v5619, %v5974
    %v5976 = vand.u32 %v4549, 4294901760
    %v5977 = vsub.f32 %v4549, %v5976
    %v5978 = vand.u32 %v5977, 4294901760
    %5979 = vmatmul.f32.gmra.mxu0 %v5978
    %v5980 = vpop.f32.mrf.mxu0
    %v5981 = vadd.f32 %v5624, %v5980
    %v5982 = vand.u32 %v4552, 4294901760
    %v5983 = vsub.f32 %v4552, %v5982
    %v5984 = vand.u32 %v5983, 4294901760
    %5985 = vmatmul.f32.gmra.mxu0 %v5984
    %v5986 = vpop.f32.mrf.mxu0
    %v5987 = vadd.f32 %v5629, %v5986
    %v5988 = vand.u32 %v4555, 4294901760
    %v5989 = vsub.f32 %v4555, %v5988
    %v5990 = vand.u32 %v5989, 4294901760
    %5991 = vmatmul.f32.gmra.mxu0 %v5990
    %v5992 = vpop.f32.mrf.mxu0
    %v5993 = vadd.f32 %v5634, %v5992
    %v5994 = vand.u32 %v4558, 4294901760
    %v5995 = vsub.f32 %v4558, %v5994
    %v5996 = vand.u32 %v5995, 4294901760
    %5997 = vmatmul.f32.gmra.mxu0 %v5996
    %v5998 = vpop.f32.mrf.mxu0
    %v5999 = vadd.f32 %v5639, %v5998
    %v6000 = vand.u32 %v4561, 4294901760
    %v6001 = vsub.f32 %v4561, %v6000
    %v6002 = vand.u32 %v6001, 4294901760
    %6003 = vmatmul.f32.gmra.mxu0 %v6002
    %v6004 = vpop.f32.mrf.mxu0
    %v6005 = vadd.f32 %v5644, %v6004
    %v6006 = vand.u32 %v4564, 4294901760
    %v6007 = vsub.f32 %v4564, %v6006
    %v6008 = vand.u32 %v6007, 4294901760
    %6009 = vmatmul.f32.gmra.mxu0 %v6008
    %v6010 = vpop.f32.mrf.mxu0
    %v6011 = vadd.f32 %v5649, %v6010
    %v6012 = vand.u32 %v4567, 4294901760
    %v6013 = vsub.f32 %v4567, %v6012
    %v6014 = vand.u32 %v6013, 4294901760
    %6015 = vmatmul.f32.gmra.mxu0 %v6014
    %v6016 = vpop.f32.mrf.mxu0
    %v6017 = vadd.f32 %v5654, %v6016
    %v6018 = vand.u32 %v4570, 4294901760
    %v6019 = vsub.f32 %v4570, %v6018
    %v6020 = vand.u32 %v6019, 4294901760
    %6021 = vmatmul.f32.gmra.mxu0 %v6020
    %v6022 = vpop.f32.mrf.mxu0
    %v6023 = vadd.f32 %v5659, %v6022
    %v6024 = vand.u32 %v4573, 4294901760
    %v6025 = vsub.f32 %v4573, %v6024
    %v6026 = vand.u32 %v6025, 4294901760
    %6027 = vmatmul.f32.gmra.mxu0 %v6026
    %v6028 = vpop.f32.mrf.mxu0
    %v6029 = vadd.f32 %v5664, %v6028
    %v6030 = vand.u32 %v4576, 4294901760
    %v6031 = vsub.f32 %v4576, %v6030
    %v6032 = vand.u32 %v6031, 4294901760
    %6033 = vmatmul.f32.gmra.mxu0 %v6032
    %v6034 = vpop.f32.mrf.mxu0
    %v6035 = vadd.f32 %v5669, %v6034
    %v6036 = vand.u32 %v4579, 4294901760
    %v6037 = vsub.f32 %v4579, %v6036
    %v6038 = vand.u32 %v6037, 4294901760
    %6039 = vmatmul.f32.gmra.mxu0 %v6038
    %v6040 = vpop.f32.mrf.mxu0
    %v6041 = vadd.f32 %v5674, %v6040
    %v6042 = vand.u32 %v4582, 4294901760
    %v6043 = vsub.f32 %v4582, %v6042
    %v6044 = vand.u32 %v6043, 4294901760
    %6045 = vmatmul.f32.gmra.mxu0 %v6044
    %v6046 = vpop.f32.mrf.mxu0
    %v6047 = vadd.f32 %v5679, %v6046
    %v6048 = vand.u32 %v4585, 4294901760
    %v6049 = vsub.f32 %v4585, %v6048
    %v6050 = vand.u32 %v6049, 4294901760
    %6051 = vmatmul.f32.gmra.mxu0 %v6050
    %v6052 = vpop.f32.mrf.mxu0
    %v6053 = vadd.f32 %v5684, %v6052
    %v6054 = vand.u32 %v4588, 4294901760
    %v6055 = vsub.f32 %v4588, %v6054
    %v6056 = vand.u32 %v6055, 4294901760
    %6057 = vmatmul.f32.gmra.mxu0 %v6056
    %v6058 = vpop.f32.mrf.mxu0
    %v6059 = vadd.f32 %v5689, %v6058
    %v6060 = vand.u32 %v4591, 4294901760
    %v6061 = vsub.f32 %v4591, %v6060
    %v6062 = vand.u32 %v6061, 4294901760
    %6063 = vmatmul.f32.gmra.mxu0 %v6062
    %v6064 = vpop.f32.mrf.mxu0
    %v6065 = vadd.f32 %v5694, %v6064
    %v6066 = vand.u32 %v4594, 4294901760
    %v6067 = vsub.f32 %v4594, %v6066
    %v6068 = vand.u32 %v6067, 4294901760
    %6069 = vmatmul.f32.gmra.mxu0 %v6068
    %v6070 = vpop.f32.mrf.mxu0
    %v6071 = vadd.f32 %v5699, %v6070
    %v6072 = vand.u32 %v4597, 4294901760
    %v6073 = vsub.f32 %v4597, %v6072
    %v6074 = vand.u32 %v6073, 4294901760
    %6075 = vmatmul.f32.gmra.mxu0 %v6074
    %v6076 = vpop.f32.mrf.mxu0
    %v6077 = vadd.f32 %v5704, %v6076
    %v6078 = vand.u32 %v4600, 4294901760
    %v6079 = vsub.f32 %v4600, %v6078
    %v6080 = vand.u32 %v6079, 4294901760
    %6081 = vmatmul.f32.gmra.mxu0 %v6080
    %v6082 = vpop.f32.mrf.mxu0
    %v6083 = vadd.f32 %v5709, %v6082
    %v6084 = vand.u32 %v4603, 4294901760
    %v6085 = vsub.f32 %v4603, %v6084
    %v6086 = vand.u32 %v6085, 4294901760
    %6087 = vmatmul.f32.gmra.mxu0 %v6086
    %v6088 = vpop.f32.mrf.mxu0
    %v6089 = vadd.f32 %v5714, %v6088
    %v6090 = vand.u32 %v4606, 4294901760
    %v6091 = vsub.f32 %v4606, %v6090
    %v6092 = vand.u32 %v6091, 4294901760
    %6093 = vmatmul.f32.gmra.mxu0 %v6092
    %v6094 = vpop.f32.mrf.mxu0
    %v6095 = vadd.f32 %v5719, %v6094
    %v6096 = vand.u32 %v4609, 4294901760
    %v6097 = vsub.f32 %v4609, %v6096
    %v6098 = vand.u32 %v6097, 4294901760
    %6099 = vmatmul.f32.gmra.mxu0 %v6098
    %v6100 = vpop.f32.mrf.mxu0
    %v6101 = vadd.f32 %v5724, %v6100
    %v6102 = vand.u32 %v4612, 4294901760
    %v6103 = vsub.f32 %v4612, %v6102
    %v6104 = vand.u32 %v6103, 4294901760
    %6105 = vmatmul.f32.gmra.mxu0 %v6104
    %v6106 = vpop.f32.mrf.mxu0
    %v6107 = vadd.f32 %v5729, %v6106
    %v6108 = vand.u32 %v4615, 4294901760
    %v6109 = vsub.f32 %v4615, %v6108
    %v6110 = vand.u32 %v6109, 4294901760
    %6111 = vmatmul.f32.gmra.mxu0 %v6110
    %v6112 = vpop.f32.mrf.mxu0
    %v6113 = vadd.f32 %v5734, %v6112
    %v6114 = vand.u32 %v4618, 4294901760
    %v6115 = vsub.f32 %v4618, %v6114
    %v6116 = vand.u32 %v6115, 4294901760
    %6117 = vmatmul.f32.gmra.mxu0 %v6116
    %v6118 = vpop.f32.mrf.mxu0
    %v6119 = vadd.f32 %v5739, %v6118
    %v6120 = vand.u32 %v4621, 4294901760
    %v6121 = vsub.f32 %v4621, %v6120
    %v6122 = vand.u32 %v6121, 4294901760
    %6123 = vmatmul.f32.gmra.mxu0 %v6122
    %v6124 = vpop.f32.mrf.mxu0
    %v6125 = vadd.f32 %v5744, %v6124
    %v6126 = vand.u32 %v4624, 4294901760
    %v6127 = vsub.f32 %v4624, %v6126
    %v6128 = vand.u32 %v6127, 4294901760
    %6129 = vmatmul.f32.gmra.mxu0 %v6128
    %v6130 = vpop.f32.mrf.mxu0
    %v6131 = vadd.f32 %v5749, %v6130
    %v6132 = vand.u32 %v4627, 4294901760
    %v6133 = vsub.f32 %v4627, %v6132
    %v6134 = vand.u32 %v6133, 4294901760
    %6135 = vmatmul.f32.gmra.mxu0 %v6134
    %v6136 = vpop.f32.mrf.mxu0
    %v6137 = vadd.f32 %v5754, %v6136
    %v6138 = vand.u32 %v4630, 4294901760
    %v6139 = vsub.f32 %v4630, %v6138
    %v6140 = vand.u32 %v6139, 4294901760
    %6141 = vmatmul.f32.gmra.mxu0 %v6140
    %v6142 = vpop.f32.mrf.mxu0
    %v6143 = vadd.f32 %v5759, %v6142
    %v6144 = vand.u32 %v4633, 4294901760
    %v6145 = vsub.f32 %v4633, %v6144
    %v6146 = vand.u32 %v6145, 4294901760
    %6147 = vmatmul.f32.gmra.mxu0 %v6146
    %v6148 = vpop.f32.mrf.mxu0
    %v6149 = vadd.f32 %v5764, %v6148
    %v6150 = vand.u32 %v4636, 4294901760
    %v6151 = vsub.f32 %v4636, %v6150
    %v6152 = vand.u32 %v6151, 4294901760
    %6153 = vmatmul.f32.gmra.mxu0 %v6152
    %v6154 = vpop.f32.mrf.mxu0
    %v6155 = vadd.f32 %v5769, %v6154
    %v6156 = vand.u32 %v4639, 4294901760
    %v6157 = vsub.f32 %v4639, %v6156
    %v6158 = vand.u32 %v6157, 4294901760
    %6159 = vmatmul.f32.gmra.mxu0 %v6158
    %v6160 = vpop.f32.mrf.mxu0
    %v6161 = vadd.f32 %v5774, %v6160
    %v6162 = vand.u32 %v4642, 4294901760
    %v6163 = vsub.f32 %v4642, %v6162
    %v6164 = vand.u32 %v6163, 4294901760
    %6165 = vmatmul.f32.gmra.mxu0 %v6164
    %v6166 = vpop.f32.mrf.mxu0
    %v6167 = vadd.f32 %v5779, %v6166
    %v6168 = vand.u32 %v4645, 4294901760
    %v6169 = vsub.f32 %v4645, %v6168
    %v6170 = vand.u32 %v6169, 4294901760
    %6171 = vmatmul.f32.gmra.mxu0 %v6170
    %v6172 = vpop.f32.mrf.mxu0
    %v6173 = vadd.f32 %v5784, %v6172
    %v6174 = vand.u32 %v4648, 4294901760
    %v6175 = vsub.f32 %v4648, %v6174
    %v6176 = vand.u32 %v6175, 4294901760
    %6177 = vmatmul.f32.gmra.mxu0 %v6176
    %v6178 = vpop.f32.mrf.mxu0
    %v6179 = vadd.f32 %v5789, %v6178
    %v6180 = vand.u32 %v4651, 4294901760
    %v6181 = vsub.f32 %v4651, %v6180
    %v6182 = vand.u32 %v6181, 4294901760
    %6183 = vmatmul.f32.gmra.mxu0 %v6182
    %v6184 = vpop.f32.mrf.mxu0
    %v6185 = vadd.f32 %v5794, %v6184
    %v6186 = vand.u32 %v4654, 4294901760
    %v6187 = vsub.f32 %v4654, %v6186
    %v6188 = vand.u32 %v6187, 4294901760
    %6189 = vmatmul.f32.gmra.mxu0 %v6188
    %v6190 = vpop.f32.mrf.mxu0
    %v6191 = vadd.f32 %v5799, %v6190
    %v6192 = vand.u32 %v4657, 4294901760
    %v6193 = vsub.f32 %v4657, %v6192
    %v6194 = vand.u32 %v6193, 4294901760
    %6195 = vmatmul.f32.gmra.mxu0 %v6194
    %v6196 = vpop.f32.mrf.mxu0
    %v6197 = vadd.f32 %v5804, %v6196
    %v6198 = vand.u32 %v4660, 4294901760
    %v6199 = vsub.f32 %v4660, %v6198
    %v6200 = vand.u32 %v6199, 4294901760
    %6201 = vmatmul.f32.gmra.mxu0 %v6200
    %v6202 = vpop.f32.mrf.mxu0
    %v6203 = vadd.f32 %v5809, %v6202
    %v6204 = vand.u32 %v4663, 4294901760
    %v6205 = vsub.f32 %v4663, %v6204
    %v6206 = vand.u32 %v6205, 4294901760
    %6207 = vmatmul.f32.gmra.mxu0 %v6206
    %v6208 = vpop.f32.mrf.mxu0
    %v6209 = vadd.f32 %v5814, %v6208
    %v6210 = vand.u32 %v4666, 4294901760
    %v6211 = vsub.f32 %v4666, %v6210
    %v6212 = vand.u32 %v6211, 4294901760
    %6213 = vmatmul.f32.gmra.mxu0 %v6212
    %v6214 = vpop.f32.mrf.mxu0
    %v6215 = vadd.f32 %v5819, %v6214
    %v6216 = vand.u32 %v4669, 4294901760
    %v6217 = vsub.f32 %v4669, %v6216
    %v6218 = vand.u32 %v6217, 4294901760
    %6219 = vmatmul.f32.gmra.mxu0 %v6218
    %v6220 = vpop.f32.mrf.mxu0
    %v6221 = vadd.f32 %v5824, %v6220
    %v6222 = vand.u32 %v4672, 4294901760
    %v6223 = vsub.f32 %v4672, %v6222
    %v6224 = vand.u32 %v6223, 4294901760
    %6225 = vmatmul.f32.gmra.mxu0 %v6224
    %v6226 = vpop.f32.mrf.mxu0
    %v6227 = vadd.f32 %v5829, %v6226
    %v6228 = vand.u32 %v4675, 4294901760
    %v6229 = vsub.f32 %v4675, %v6228
    %v6230 = vand.u32 %v6229, 4294901760
    %6231 = vmatmul.f32.gmra.mxu0 %v6230
    %v6232 = vpop.f32.mrf.mxu0
    %v6233 = vadd.f32 %v5834, %v6232
    %v6234 = vand.u32 %v4678, 4294901760
    %v6235 = vsub.f32 %v4678, %v6234
    %v6236 = vand.u32 %v6235, 4294901760
    %6237 = vmatmul.f32.gmra.mxu0 %v6236
    %v6238 = vpop.f32.mrf.mxu0
    %v6239 = vadd.f32 %v5839, %v6238
    %v6240 = vand.u32 %v4681, 4294901760
    %v6241 = vsub.f32 %v4681, %v6240
    %v6242 = vand.u32 %v6241, 4294901760
    %6243 = vmatmul.f32.gmra.mxu0 %v6242
    %v6244 = vpop.f32.mrf.mxu0
    %v6245 = vadd.f32 %v5844, %v6244
    %v6246 = vand.u32 %v4684, 4294901760
    %v6247 = vsub.f32 %v4684, %v6246
    %v6248 = vand.u32 %v6247, 4294901760
    %6249 = vmatmul.f32.gmra.mxu0 %v6248
    %v6250 = vpop.f32.mrf.mxu0
    %v6251 = vadd.f32 %v5849, %v6250
    %v6252 = vand.u32 %v4687, 4294901760
    %v6253 = vsub.f32 %v4687, %v6252
    %v6254 = vand.u32 %v6253, 4294901760
    %6255 = vmatmul.f32.gmra.mxu0 %v6254
    %v6256 = vpop.f32.mrf.mxu0
    %v6257 = vadd.f32 %v5854, %v6256
    %v6258 = vand.u32 %v4690, 4294901760
    %v6259 = vsub.f32 %v4690, %v6258
    %v6260 = vand.u32 %v6259, 4294901760
    %6261 = vmatmul.f32.gmra.mxu0 %v6260
    %v6262 = vpop.f32.mrf.mxu0
    %v6263 = vadd.f32 %v5859, %v6262
    %v6264 = vand.u32 %v4693, 4294901760
    %v6265 = vsub.f32 %v4693, %v6264
    %v6266 = vand.u32 %v6265, 4294901760
    %6267 = vmatmul.f32.gmra.mxu0 %v6266
    %v6268 = vpop.f32.mrf.mxu0
    %v6269 = vadd.f32 %v5864, %v6268
    %6270 = vdwg.mxu0
    %6271 = vmatpush.msra.mxu0 0.0
    %6272 = vmatpush.msra.mxu0 0.0
    %6273 = vmatpush.msra.mxu0 0.0
    %6274 = vmatpush.msra.mxu0 0.0
    %6275 = vmatpush.msra.mxu0 0.0
    %6276 = vmatpush.msra.mxu0 0.0
    %6277 = vmatpush.msra.mxu0 0.0
    %6278 = vmatpush.msra.mxu0 0.0
    %6279 = vmatpush.msra.mxu0 0.0
    %6280 = vmatpush.msra.mxu0 0.0
    %6281 = vmatpush.msra.mxu0 0.0
    %6282 = vmatpush.msra.mxu0 0.0
    %v6283 = vand.u32 %v4424, 4294901760
    %v6284 = vsub.f32 %v4424, %v6283
    %v6285 = vand.u32 %v6284, 4294901760
    %6286 = vmatpush.msra.mxu0 %v6285
    %v6287 = vand.u32 %v4422, 4294901760
    %v6288 = vsub.f32 %v4422, %v6287
    %v6289 = vand.u32 %v6288, 4294901760
    %6290 = vmatpush.msra.mxu0 %v6289
    %v6291 = vand.u32 %v4420, 4294901760
    %v6292 = vsub.f32 %v4420, %v6291
    %v6293 = vand.u32 %v6292, 4294901760
    %6294 = vmatpush.msra.mxu0 %v6293
    %v6295 = vand.u32 %v4418, 4294901760
    %v6296 = vsub.f32 %v4418, %v6295
    %v6297 = vand.u32 %v6296, 4294901760
    %6298 = vmatpush.msra.mxu0 %v6297
    %v6299 = vand.u32 %v4504, 4294901760
    %6300 = vmatmul.f32.gmra.mxu0 %v6299
    %v6301 = vpop.f32.mrf.mxu0
    %v6302 = vadd.f32 %v5891, %v6301
    %v6303 = vand.u32 %v4507, 4294901760
    %6304 = vmatmul.f32.gmra.mxu0 %v6303
    %v6305 = vpop.f32.mrf.mxu0
    %v6306 = vadd.f32 %v5897, %v6305
    %v6307 = vand.u32 %v4510, 4294901760
    %6308 = vmatmul.f32.gmra.mxu0 %v6307
    %v6309 = vpop.f32.mrf.mxu0
    %v6310 = vadd.f32 %v5903, %v6309
    %v6311 = vand.u32 %v4513, 4294901760
    %6312 = vmatmul.f32.gmra.mxu0 %v6311
    %v6313 = vpop.f32.mrf.mxu0
    %v6314 = vadd.f32 %v5909, %v6313
    %v6315 = vand.u32 %v4516, 4294901760
    %6316 = vmatmul.f32.gmra.mxu0 %v6315
    %v6317 = vpop.f32.mrf.mxu0
    %v6318 = vadd.f32 %v5915, %v6317
    %v6319 = vand.u32 %v4519, 4294901760
    %6320 = vmatmul.f32.gmra.mxu0 %v6319
    %v6321 = vpop.f32.mrf.mxu0
    %v6322 = vadd.f32 %v5921, %v6321
    %v6323 = vand.u32 %v4522, 4294901760
    %6324 = vmatmul.f32.gmra.mxu0 %v6323
    %v6325 = vpop.f32.mrf.mxu0
    %v6326 = vadd.f32 %v5927, %v6325
    %v6327 = vand.u32 %v4525, 4294901760
    %6328 = vmatmul.f32.gmra.mxu0 %v6327
    %v6329 = vpop.f32.mrf.mxu0
    %v6330 = vadd.f32 %v5933, %v6329
    %v6331 = vand.u32 %v4528, 4294901760
    %6332 = vmatmul.f32.gmra.mxu0 %v6331
    %v6333 = vpop.f32.mrf.mxu0
    %v6334 = vadd.f32 %v5939, %v6333
    %v6335 = vand.u32 %v4531, 4294901760
    %6336 = vmatmul.f32.gmra.mxu0 %v6335
    %v6337 = vpop.f32.mrf.mxu0
    %v6338 = vadd.f32 %v5945, %v6337
    %v6339 = vand.u32 %v4534, 4294901760
    %6340 = vmatmul.f32.gmra.mxu0 %v6339
    %v6341 = vpop.f32.mrf.mxu0
    %v6342 = vadd.f32 %v5951, %v6341
    %v6343 = vand.u32 %v4537, 4294901760
    %6344 = vmatmul.f32.gmra.mxu0 %v6343
    %v6345 = vpop.f32.mrf.mxu0
    %v6346 = vadd.f32 %v5957, %v6345
    %v6347 = vand.u32 %v4540, 4294901760
    %6348 = vmatmul.f32.gmra.mxu0 %v6347
    %v6349 = vpop.f32.mrf.mxu0
    %v6350 = vadd.f32 %v5963, %v6349
    %v6351 = vand.u32 %v4543, 4294901760
    %6352 = vmatmul.f32.gmra.mxu0 %v6351
    %v6353 = vpop.f32.mrf.mxu0
    %v6354 = vadd.f32 %v5969, %v6353
    %v6355 = vand.u32 %v4546, 4294901760
    %6356 = vmatmul.f32.gmra.mxu0 %v6355
    %v6357 = vpop.f32.mrf.mxu0
    %v6358 = vadd.f32 %v5975, %v6357
    %v6359 = vand.u32 %v4549, 4294901760
    %6360 = vmatmul.f32.gmra.mxu0 %v6359
    %v6361 = vpop.f32.mrf.mxu0
    %v6362 = vadd.f32 %v5981, %v6361
    %v6363 = vand.u32 %v4552, 4294901760
    %6364 = vmatmul.f32.gmra.mxu0 %v6363
    %v6365 = vpop.f32.mrf.mxu0
    %v6366 = vadd.f32 %v5987, %v6365
    %v6367 = vand.u32 %v4555, 4294901760
    %6368 = vmatmul.f32.gmra.mxu0 %v6367
    %v6369 = vpop.f32.mrf.mxu0
    %v6370 = vadd.f32 %v5993, %v6369
    %v6371 = vand.u32 %v4558, 4294901760
    %6372 = vmatmul.f32.gmra.mxu0 %v6371
    %v6373 = vpop.f32.mrf.mxu0
    %v6374 = vadd.f32 %v5999, %v6373
    %v6375 = vand.u32 %v4561, 4294901760
    %6376 = vmatmul.f32.gmra.mxu0 %v6375
    %v6377 = vpop.f32.mrf.mxu0
    %v6378 = vadd.f32 %v6005, %v6377
    %v6379 = vand.u32 %v4564, 4294901760
    %6380 = vmatmul.f32.gmra.mxu0 %v6379
    %v6381 = vpop.f32.mrf.mxu0
    %v6382 = vadd.f32 %v6011, %v6381
    %v6383 = vand.u32 %v4567, 4294901760
    %6384 = vmatmul.f32.gmra.mxu0 %v6383
    %v6385 = vpop.f32.mrf.mxu0
    %v6386 = vadd.f32 %v6017, %v6385
    %v6387 = vand.u32 %v4570, 4294901760
    %6388 = vmatmul.f32.gmra.mxu0 %v6387
    %v6389 = vpop.f32.mrf.mxu0
    %v6390 = vadd.f32 %v6023, %v6389
    %v6391 = vand.u32 %v4573, 4294901760
    %6392 = vmatmul.f32.gmra.mxu0 %v6391
    %v6393 = vpop.f32.mrf.mxu0
    %v6394 = vadd.f32 %v6029, %v6393
    %v6395 = vand.u32 %v4576, 4294901760
    %6396 = vmatmul.f32.gmra.mxu0 %v6395
    %v6397 = vpop.f32.mrf.mxu0
    %v6398 = vadd.f32 %v6035, %v6397
    %v6399 = vand.u32 %v4579, 4294901760
    %6400 = vmatmul.f32.gmra.mxu0 %v6399
    %v6401 = vpop.f32.mrf.mxu0
    %v6402 = vadd.f32 %v6041, %v6401
    %v6403 = vand.u32 %v4582, 4294901760
    %6404 = vmatmul.f32.gmra.mxu0 %v6403
    %v6405 = vpop.f32.mrf.mxu0
    %v6406 = vadd.f32 %v6047, %v6405
    %v6407 = vand.u32 %v4585, 4294901760
    %6408 = vmatmul.f32.gmra.mxu0 %v6407
    %v6409 = vpop.f32.mrf.mxu0
    %v6410 = vadd.f32 %v6053, %v6409
    %v6411 = vand.u32 %v4588, 4294901760
    %6412 = vmatmul.f32.gmra.mxu0 %v6411
    %v6413 = vpop.f32.mrf.mxu0
    %v6414 = vadd.f32 %v6059, %v6413
    %v6415 = vand.u32 %v4591, 4294901760
    %6416 = vmatmul.f32.gmra.mxu0 %v6415
    %v6417 = vpop.f32.mrf.mxu0
    %v6418 = vadd.f32 %v6065, %v6417
    %v6419 = vand.u32 %v4594, 4294901760
    %6420 = vmatmul.f32.gmra.mxu0 %v6419
    %v6421 = vpop.f32.mrf.mxu0
    %v6422 = vadd.f32 %v6071, %v6421
    %v6423 = vand.u32 %v4597, 4294901760
    %6424 = vmatmul.f32.gmra.mxu0 %v6423
    %v6425 = vpop.f32.mrf.mxu0
    %v6426 = vadd.f32 %v6077, %v6425
    %v6427 = vand.u32 %v4600, 4294901760
    %6428 = vmatmul.f32.gmra.mxu0 %v6427
    %v6429 = vpop.f32.mrf.mxu0
    %v6430 = vadd.f32 %v6083, %v6429
    %v6431 = vand.u32 %v4603, 4294901760
    %6432 = vmatmul.f32.gmra.mxu0 %v6431
    %v6433 = vpop.f32.mrf.mxu0
    %v6434 = vadd.f32 %v6089, %v6433
    %v6435 = vand.u32 %v4606, 4294901760
    %6436 = vmatmul.f32.gmra.mxu0 %v6435
    %v6437 = vpop.f32.mrf.mxu0
    %v6438 = vadd.f32 %v6095, %v6437
    %v6439 = vand.u32 %v4609, 4294901760
    %6440 = vmatmul.f32.gmra.mxu0 %v6439
    %v6441 = vpop.f32.mrf.mxu0
    %v6442 = vadd.f32 %v6101, %v6441
    %v6443 = vand.u32 %v4612, 4294901760
    %6444 = vmatmul.f32.gmra.mxu0 %v6443
    %v6445 = vpop.f32.mrf.mxu0
    %v6446 = vadd.f32 %v6107, %v6445
    %v6447 = vand.u32 %v4615, 4294901760
    %6448 = vmatmul.f32.gmra.mxu0 %v6447
    %v6449 = vpop.f32.mrf.mxu0
    %v6450 = vadd.f32 %v6113, %v6449
    %v6451 = vand.u32 %v4618, 4294901760
    %6452 = vmatmul.f32.gmra.mxu0 %v6451
    %v6453 = vpop.f32.mrf.mxu0
    %v6454 = vadd.f32 %v6119, %v6453
    %v6455 = vand.u32 %v4621, 4294901760
    %6456 = vmatmul.f32.gmra.mxu0 %v6455
    %v6457 = vpop.f32.mrf.mxu0
    %v6458 = vadd.f32 %v6125, %v6457
    %v6459 = vand.u32 %v4624, 4294901760
    %6460 = vmatmul.f32.gmra.mxu0 %v6459
    %v6461 = vpop.f32.mrf.mxu0
    %v6462 = vadd.f32 %v6131, %v6461
    %v6463 = vand.u32 %v4627, 4294901760
    %6464 = vmatmul.f32.gmra.mxu0 %v6463
    %v6465 = vpop.f32.mrf.mxu0
    %v6466 = vadd.f32 %v6137, %v6465
    %v6467 = vand.u32 %v4630, 4294901760
    %6468 = vmatmul.f32.gmra.mxu0 %v6467
    %v6469 = vpop.f32.mrf.mxu0
    %v6470 = vadd.f32 %v6143, %v6469
    %v6471 = vand.u32 %v4633, 4294901760
    %6472 = vmatmul.f32.gmra.mxu0 %v6471
    %v6473 = vpop.f32.mrf.mxu0
    %v6474 = vadd.f32 %v6149, %v6473
    %v6475 = vand.u32 %v4636, 4294901760
    %6476 = vmatmul.f32.gmra.mxu0 %v6475
    %v6477 = vpop.f32.mrf.mxu0
    %v6478 = vadd.f32 %v6155, %v6477
    %v6479 = vand.u32 %v4639, 4294901760
    %6480 = vmatmul.f32.gmra.mxu0 %v6479
    %v6481 = vpop.f32.mrf.mxu0
    %v6482 = vadd.f32 %v6161, %v6481
    %v6483 = vand.u32 %v4642, 4294901760
    %6484 = vmatmul.f32.gmra.mxu0 %v6483
    %v6485 = vpop.f32.mrf.mxu0
    %v6486 = vadd.f32 %v6167, %v6485
    %v6487 = vand.u32 %v4645, 4294901760
    %6488 = vmatmul.f32.gmra.mxu0 %v6487
    %v6489 = vpop.f32.mrf.mxu0
    %v6490 = vadd.f32 %v6173, %v6489
    %v6491 = vand.u32 %v4648, 4294901760
    %6492 = vmatmul.f32.gmra.mxu0 %v6491
    %v6493 = vpop.f32.mrf.mxu0
    %v6494 = vadd.f32 %v6179, %v6493
    %v6495 = vand.u32 %v4651, 4294901760
    %6496 = vmatmul.f32.gmra.mxu0 %v6495
    %v6497 = vpop.f32.mrf.mxu0
    %v6498 = vadd.f32 %v6185, %v6497
    %v6499 = vand.u32 %v4654, 4294901760
    %6500 = vmatmul.f32.gmra.mxu0 %v6499
    %v6501 = vpop.f32.mrf.mxu0
    %v6502 = vadd.f32 %v6191, %v6501
    %v6503 = vand.u32 %v4657, 4294901760
    %6504 = vmatmul.f32.gmra.mxu0 %v6503
    %v6505 = vpop.f32.mrf.mxu0
    %v6506 = vadd.f32 %v6197, %v6505
    %v6507 = vand.u32 %v4660, 4294901760
    %6508 = vmatmul.f32.gmra.mxu0 %v6507
    %v6509 = vpop.f32.mrf.mxu0
    %v6510 = vadd.f32 %v6203, %v6509
    %v6511 = vand.u32 %v4663, 4294901760
    %6512 = vmatmul.f32.gmra.mxu0 %v6511
    %v6513 = vpop.f32.mrf.mxu0
    %v6514 = vadd.f32 %v6209, %v6513
    %v6515 = vand.u32 %v4666, 4294901760
    %6516 = vmatmul.f32.gmra.mxu0 %v6515
    %v6517 = vpop.f32.mrf.mxu0
    %v6518 = vadd.f32 %v6215, %v6517
    %v6519 = vand.u32 %v4669, 4294901760
    %6520 = vmatmul.f32.gmra.mxu0 %v6519
    %v6521 = vpop.f32.mrf.mxu0
    %v6522 = vadd.f32 %v6221, %v6521
    %v6523 = vand.u32 %v4672, 4294901760
    %6524 = vmatmul.f32.gmra.mxu0 %v6523
    %v6525 = vpop.f32.mrf.mxu0
    %v6526 = vadd.f32 %v6227, %v6525
    %v6527 = vand.u32 %v4675, 4294901760
    %6528 = vmatmul.f32.gmra.mxu0 %v6527
    %v6529 = vpop.f32.mrf.mxu0
    %v6530 = vadd.f32 %v6233, %v6529
    %v6531 = vand.u32 %v4678, 4294901760
    %6532 = vmatmul.f32.gmra.mxu0 %v6531
    %v6533 = vpop.f32.mrf.mxu0
    %v6534 = vadd.f32 %v6239, %v6533
    %v6535 = vand.u32 %v4681, 4294901760
    %6536 = vmatmul.f32.gmra.mxu0 %v6535
    %v6537 = vpop.f32.mrf.mxu0
    %v6538 = vadd.f32 %v6245, %v6537
    %v6539 = vand.u32 %v4684, 4294901760
    %6540 = vmatmul.f32.gmra.mxu0 %v6539
    %v6541 = vpop.f32.mrf.mxu0
    %v6542 = vadd.f32 %v6251, %v6541
    %v6543 = vand.u32 %v4687, 4294901760
    %6544 = vmatmul.f32.gmra.mxu0 %v6543
    %v6545 = vpop.f32.mrf.mxu0
    %v6546 = vadd.f32 %v6257, %v6545
    %v6547 = vand.u32 %v4690, 4294901760
    %6548 = vmatmul.f32.gmra.mxu0 %v6547
    %v6549 = vpop.f32.mrf.mxu0
    %v6550 = vadd.f32 %v6263, %v6549
    %v6551 = vand.u32 %v4693, 4294901760
    %6552 = vmatmul.f32.gmra.mxu0 %v6551
    %v6553 = vpop.f32.mrf.mxu0
    %v6554 = vadd.f32 %v6269, %v6553
    %6555 = vdwg.mxu0
    %6556 = vmatpush.msra.mxu0 0.0
    %6557 = vmatpush.msra.mxu0 0.0
    %6558 = vmatpush.msra.mxu0 0.0
    %6559 = vmatpush.msra.mxu0 0.0
    %6560 = vmatpush.msra.mxu0 0.0
    %6561 = vmatpush.msra.mxu0 0.0
    %6562 = vmatpush.msra.mxu0 0.0
    %6563 = vmatpush.msra.mxu0 0.0
    %6564 = vmatpush.msra.mxu0 0.0
    %6565 = vmatpush.msra.mxu0 0.0
    %6566 = vmatpush.msra.mxu0 0.0
    %6567 = vmatpush.msra.mxu0 0.0
    %v6568 = vand.u32 %v4424, 4294901760
    %6569 = vmatpush.msra.mxu0 %v6568
    %v6570 = vand.u32 %v4422, 4294901760
    %6571 = vmatpush.msra.mxu0 %v6570
    %v6572 = vand.u32 %v4420, 4294901760
    %6573 = vmatpush.msra.mxu0 %v6572
    %v6574 = vand.u32 %v4418, 4294901760
    %6575 = vmatpush.msra.mxu0 %v6574
    %v6576 = vand.u32 %v4504, 4294901760
    %6577 = vmatmul.f32.gmra.mxu0 %v6576
    %v6578 = vpop.f32.mrf.mxu0
    %v6579 = vadd.f32 %v6302, %v6578
    %v6580 = vand.u32 %v4507, 4294901760
    %6581 = vmatmul.f32.gmra.mxu0 %v6580
    %v6582 = vpop.f32.mrf.mxu0
    %v6583 = vadd.f32 %v6306, %v6582
    %v6584 = vand.u32 %v4510, 4294901760
    %6585 = vmatmul.f32.gmra.mxu0 %v6584
    %v6586 = vpop.f32.mrf.mxu0
    %v6587 = vadd.f32 %v6310, %v6586
    %v6588 = vand.u32 %v4513, 4294901760
    %6589 = vmatmul.f32.gmra.mxu0 %v6588
    %v6590 = vpop.f32.mrf.mxu0
    %v6591 = vadd.f32 %v6314, %v6590
    %v6592 = vand.u32 %v4516, 4294901760
    %6593 = vmatmul.f32.gmra.mxu0 %v6592
    %v6594 = vpop.f32.mrf.mxu0
    %v6595 = vadd.f32 %v6318, %v6594
    %v6596 = vand.u32 %v4519, 4294901760
    %6597 = vmatmul.f32.gmra.mxu0 %v6596
    %v6598 = vpop.f32.mrf.mxu0
    %v6599 = vadd.f32 %v6322, %v6598
    %v6600 = vand.u32 %v4522, 4294901760
    %6601 = vmatmul.f32.gmra.mxu0 %v6600
    %v6602 = vpop.f32.mrf.mxu0
    %v6603 = vadd.f32 %v6326, %v6602
    %v6604 = vand.u32 %v4525, 4294901760
    %6605 = vmatmul.f32.gmra.mxu0 %v6604
    %v6606 = vpop.f32.mrf.mxu0
    %v6607 = vadd.f32 %v6330, %v6606
    %v6608 = vand.u32 %v4528, 4294901760
    %6609 = vmatmul.f32.gmra.mxu0 %v6608
    %v6610 = vpop.f32.mrf.mxu0
    %v6611 = vadd.f32 %v6334, %v6610
    %v6612 = vand.u32 %v4531, 4294901760
    %6613 = vmatmul.f32.gmra.mxu0 %v6612
    %v6614 = vpop.f32.mrf.mxu0
    %v6615 = vadd.f32 %v6338, %v6614
    %v6616 = vand.u32 %v4534, 4294901760
    %6617 = vmatmul.f32.gmra.mxu0 %v6616
    %v6618 = vpop.f32.mrf.mxu0
    %v6619 = vadd.f32 %v6342, %v6618
    %v6620 = vand.u32 %v4537, 4294901760
    %6621 = vmatmul.f32.gmra.mxu0 %v6620
    %v6622 = vpop.f32.mrf.mxu0
    %v6623 = vadd.f32 %v6346, %v6622
    %v6624 = vand.u32 %v4540, 4294901760
    %6625 = vmatmul.f32.gmra.mxu0 %v6624
    %v6626 = vpop.f32.mrf.mxu0
    %v6627 = vadd.f32 %v6350, %v6626
    %v6628 = vand.u32 %v4543, 4294901760
    %6629 = vmatmul.f32.gmra.mxu0 %v6628
    %v6630 = vpop.f32.mrf.mxu0
    %v6631 = vadd.f32 %v6354, %v6630
    %v6632 = vand.u32 %v4546, 4294901760
    %6633 = vmatmul.f32.gmra.mxu0 %v6632
    %v6634 = vpop.f32.mrf.mxu0
    %v6635 = vadd.f32 %v6358, %v6634
    %v6636 = vand.u32 %v4549, 4294901760
    %6637 = vmatmul.f32.gmra.mxu0 %v6636
    %v6638 = vpop.f32.mrf.mxu0
    %v6639 = vadd.f32 %v6362, %v6638
    %v6640 = vand.u32 %v4552, 4294901760
    %6641 = vmatmul.f32.gmra.mxu0 %v6640
    %v6642 = vpop.f32.mrf.mxu0
    %v6643 = vadd.f32 %v6366, %v6642
    %v6644 = vand.u32 %v4555, 4294901760
    %6645 = vmatmul.f32.gmra.mxu0 %v6644
    %v6646 = vpop.f32.mrf.mxu0
    %v6647 = vadd.f32 %v6370, %v6646
    %v6648 = vand.u32 %v4558, 4294901760
    %6649 = vmatmul.f32.gmra.mxu0 %v6648
    %v6650 = vpop.f32.mrf.mxu0
    %v6651 = vadd.f32 %v6374, %v6650
    %v6652 = vand.u32 %v4561, 4294901760
    %6653 = vmatmul.f32.gmra.mxu0 %v6652
    %v6654 = vpop.f32.mrf.mxu0
    %v6655 = vadd.f32 %v6378, %v6654
    %v6656 = vand.u32 %v4564, 4294901760
    %6657 = vmatmul.f32.gmra.mxu0 %v6656
    %v6658 = vpop.f32.mrf.mxu0
    %v6659 = vadd.f32 %v6382, %v6658
    %v6660 = vand.u32 %v4567, 4294901760
    %6661 = vmatmul.f32.gmra.mxu0 %v6660
    %v6662 = vpop.f32.mrf.mxu0
    %v6663 = vadd.f32 %v6386, %v6662
    %v6664 = vand.u32 %v4570, 4294901760
    %6665 = vmatmul.f32.gmra.mxu0 %v6664
    %v6666 = vpop.f32.mrf.mxu0
    %v6667 = vadd.f32 %v6390, %v6666
    %v6668 = vand.u32 %v4573, 4294901760
    %6669 = vmatmul.f32.gmra.mxu0 %v6668
    %v6670 = vpop.f32.mrf.mxu0
    %v6671 = vadd.f32 %v6394, %v6670
    %v6672 = vand.u32 %v4576, 4294901760
    %6673 = vmatmul.f32.gmra.mxu0 %v6672
    %v6674 = vpop.f32.mrf.mxu0
    %v6675 = vadd.f32 %v6398, %v6674
    %v6676 = vand.u32 %v4579, 4294901760
    %6677 = vmatmul.f32.gmra.mxu0 %v6676
    %v6678 = vpop.f32.mrf.mxu0
    %v6679 = vadd.f32 %v6402, %v6678
    %v6680 = vand.u32 %v4582, 4294901760
    %6681 = vmatmul.f32.gmra.mxu0 %v6680
    %v6682 = vpop.f32.mrf.mxu0
    %v6683 = vadd.f32 %v6406, %v6682
    %v6684 = vand.u32 %v4585, 4294901760
    %6685 = vmatmul.f32.gmra.mxu0 %v6684
    %v6686 = vpop.f32.mrf.mxu0
    %v6687 = vadd.f32 %v6410, %v6686
    %v6688 = vand.u32 %v4588, 4294901760
    %6689 = vmatmul.f32.gmra.mxu0 %v6688
    %v6690 = vpop.f32.mrf.mxu0
    %v6691 = vadd.f32 %v6414, %v6690
    %v6692 = vand.u32 %v4591, 4294901760
    %6693 = vmatmul.f32.gmra.mxu0 %v6692
    %v6694 = vpop.f32.mrf.mxu0
    %v6695 = vadd.f32 %v6418, %v6694
    %v6696 = vand.u32 %v4594, 4294901760
    %6697 = vmatmul.f32.gmra.mxu0 %v6696
    %v6698 = vpop.f32.mrf.mxu0
    %v6699 = vadd.f32 %v6422, %v6698
    %v6700 = vand.u32 %v4597, 4294901760
    %6701 = vmatmul.f32.gmra.mxu0 %v6700
    %v6702 = vpop.f32.mrf.mxu0
    %v6703 = vadd.f32 %v6426, %v6702
    %v6704 = vand.u32 %v4600, 4294901760
    %6705 = vmatmul.f32.gmra.mxu0 %v6704
    %v6706 = vpop.f32.mrf.mxu0
    %v6707 = vadd.f32 %v6430, %v6706
    %v6708 = vand.u32 %v4603, 4294901760
    %6709 = vmatmul.f32.gmra.mxu0 %v6708
    %v6710 = vpop.f32.mrf.mxu0
    %v6711 = vadd.f32 %v6434, %v6710
    %v6712 = vand.u32 %v4606, 4294901760
    %6713 = vmatmul.f32.gmra.mxu0 %v6712
    %v6714 = vpop.f32.mrf.mxu0
    %v6715 = vadd.f32 %v6438, %v6714
    %v6716 = vand.u32 %v4609, 4294901760
    %6717 = vmatmul.f32.gmra.mxu0 %v6716
    %v6718 = vpop.f32.mrf.mxu0
    %v6719 = vadd.f32 %v6442, %v6718
    %v6720 = vand.u32 %v4612, 4294901760
    %6721 = vmatmul.f32.gmra.mxu0 %v6720
    %v6722 = vpop.f32.mrf.mxu0
    %v6723 = vadd.f32 %v6446, %v6722
    %v6724 = vand.u32 %v4615, 4294901760
    %6725 = vmatmul.f32.gmra.mxu0 %v6724
    %v6726 = vpop.f32.mrf.mxu0
    %v6727 = vadd.f32 %v6450, %v6726
    %v6728 = vand.u32 %v4618, 4294901760
    %6729 = vmatmul.f32.gmra.mxu0 %v6728
    %v6730 = vpop.f32.mrf.mxu0
    %v6731 = vadd.f32 %v6454, %v6730
    %v6732 = vand.u32 %v4621, 4294901760
    %6733 = vmatmul.f32.gmra.mxu0 %v6732
    %v6734 = vpop.f32.mrf.mxu0
    %v6735 = vadd.f32 %v6458, %v6734
    %v6736 = vand.u32 %v4624, 4294901760
    %6737 = vmatmul.f32.gmra.mxu0 %v6736
    %v6738 = vpop.f32.mrf.mxu0
    %v6739 = vadd.f32 %v6462, %v6738
    %v6740 = vand.u32 %v4627, 4294901760
    %6741 = vmatmul.f32.gmra.mxu0 %v6740
    %v6742 = vpop.f32.mrf.mxu0
    %v6743 = vadd.f32 %v6466, %v6742
    %v6744 = vand.u32 %v4630, 4294901760
    %6745 = vmatmul.f32.gmra.mxu0 %v6744
    %v6746 = vpop.f32.mrf.mxu0
    %v6747 = vadd.f32 %v6470, %v6746
    %v6748 = vand.u32 %v4633, 4294901760
    %6749 = vmatmul.f32.gmra.mxu0 %v6748
    %v6750 = vpop.f32.mrf.mxu0
    %v6751 = vadd.f32 %v6474, %v6750
    %v6752 = vand.u32 %v4636, 4294901760
    %6753 = vmatmul.f32.gmra.mxu0 %v6752
    %v6754 = vpop.f32.mrf.mxu0
    %v6755 = vadd.f32 %v6478, %v6754
    %v6756 = vand.u32 %v4639, 4294901760
    %6757 = vmatmul.f32.gmra.mxu0 %v6756
    %v6758 = vpop.f32.mrf.mxu0
    %v6759 = vadd.f32 %v6482, %v6758
    %v6760 = vand.u32 %v4642, 4294901760
    %6761 = vmatmul.f32.gmra.mxu0 %v6760
    %v6762 = vpop.f32.mrf.mxu0
    %v6763 = vadd.f32 %v6486, %v6762
    %v6764 = vand.u32 %v4645, 4294901760
    %6765 = vmatmul.f32.gmra.mxu0 %v6764
    %v6766 = vpop.f32.mrf.mxu0
    %v6767 = vadd.f32 %v6490, %v6766
    %v6768 = vand.u32 %v4648, 4294901760
    %6769 = vmatmul.f32.gmra.mxu0 %v6768
    %v6770 = vpop.f32.mrf.mxu0
    %v6771 = vadd.f32 %v6494, %v6770
    %v6772 = vand.u32 %v4651, 4294901760
    %6773 = vmatmul.f32.gmra.mxu0 %v6772
    %v6774 = vpop.f32.mrf.mxu0
    %v6775 = vadd.f32 %v6498, %v6774
    %v6776 = vand.u32 %v4654, 4294901760
    %6777 = vmatmul.f32.gmra.mxu0 %v6776
    %v6778 = vpop.f32.mrf.mxu0
    %v6779 = vadd.f32 %v6502, %v6778
    %v6780 = vand.u32 %v4657, 4294901760
    %6781 = vmatmul.f32.gmra.mxu0 %v6780
    %v6782 = vpop.f32.mrf.mxu0
    %v6783 = vadd.f32 %v6506, %v6782
    %v6784 = vand.u32 %v4660, 4294901760
    %6785 = vmatmul.f32.gmra.mxu0 %v6784
    %v6786 = vpop.f32.mrf.mxu0
    %v6787 = vadd.f32 %v6510, %v6786
    %v6788 = vand.u32 %v4663, 4294901760
    %6789 = vmatmul.f32.gmra.mxu0 %v6788
    %v6790 = vpop.f32.mrf.mxu0
    %v6791 = vadd.f32 %v6514, %v6790
    %v6792 = vand.u32 %v4666, 4294901760
    %6793 = vmatmul.f32.gmra.mxu0 %v6792
    %v6794 = vpop.f32.mrf.mxu0
    %v6795 = vadd.f32 %v6518, %v6794
    %v6796 = vand.u32 %v4669, 4294901760
    %6797 = vmatmul.f32.gmra.mxu0 %v6796
    %v6798 = vpop.f32.mrf.mxu0
    %v6799 = vadd.f32 %v6522, %v6798
    %v6800 = vand.u32 %v4672, 4294901760
    %6801 = vmatmul.f32.gmra.mxu0 %v6800
    %v6802 = vpop.f32.mrf.mxu0
    %v6803 = vadd.f32 %v6526, %v6802
    %v6804 = vand.u32 %v4675, 4294901760
    %6805 = vmatmul.f32.gmra.mxu0 %v6804
    %v6806 = vpop.f32.mrf.mxu0
    %v6807 = vadd.f32 %v6530, %v6806
    %v6808 = vand.u32 %v4678, 4294901760
    %6809 = vmatmul.f32.gmra.mxu0 %v6808
    %v6810 = vpop.f32.mrf.mxu0
    %v6811 = vadd.f32 %v6534, %v6810
    %v6812 = vand.u32 %v4681, 4294901760
    %6813 = vmatmul.f32.gmra.mxu0 %v6812
    %v6814 = vpop.f32.mrf.mxu0
    %v6815 = vadd.f32 %v6538, %v6814
    %v6816 = vand.u32 %v4684, 4294901760
    %6817 = vmatmul.f32.gmra.mxu0 %v6816
    %v6818 = vpop.f32.mrf.mxu0
    %v6819 = vadd.f32 %v6542, %v6818
    %v6820 = vand.u32 %v4687, 4294901760
    %6821 = vmatmul.f32.gmra.mxu0 %v6820
    %v6822 = vpop.f32.mrf.mxu0
    %v6823 = vadd.f32 %v6546, %v6822
    %v6824 = vand.u32 %v4690, 4294901760
    %6825 = vmatmul.f32.gmra.mxu0 %v6824
    %v6826 = vpop.f32.mrf.mxu0
    %v6827 = vadd.f32 %v6550, %v6826
    %v6828 = vand.u32 %v4693, 4294901760
    %6829 = vmatmul.f32.gmra.mxu0 %v6828
    %v6830 = vpop.f32.mrf.mxu0
    %v6831 = vadd.f32 %v6554, %v6830
    %6832 = vdwg.mxu0
    %6833 = vmatpush.msra.mxu0 0.0
    %6834 = vmatpush.msra.mxu0 0.0
    %6835 = vmatpush.msra.mxu0 0.0
    %6836 = vmatpush.msra.mxu0 0.0
    %6837 = vmatpush.msra.mxu0 0.0
    %6838 = vmatpush.msra.mxu0 0.0
    %6839 = vmatpush.msra.mxu0 0.0
    %6840 = vmatpush.msra.mxu0 0.0
    %6841 = vmatpush.msra.mxu0 0.0
    %6842 = vmatpush.msra.mxu0 0.0
    %6843 = vmatpush.msra.mxu0 0.0
    %6844 = vmatpush.msra.mxu0 0.0
    %v6845 = vand.u32 %v4425, 4294901760
    %6846 = vmatpush.msra.mxu0 %v6845
    %v6847 = vand.u32 %v4423, 4294901760
    %6848 = vmatpush.msra.mxu0 %v6847
    %v6849 = vand.u32 %v4421, 4294901760
    %6850 = vmatpush.msra.mxu0 %v6849
    %v6851 = vand.u32 %v4419, 4294901760
    %6852 = vmatpush.msra.mxu0 %v6851
    %v6853 = vand.u32 %v4504, 4294901760
    %v6854 = vsub.f32 %v4504, %v6853
    %v6855 = vand.u32 %v6854, 4294901760
    %v6856 = vsub.f32 %v6854, %v6855
    %v6857 = vand.u32 %v6856, 4294901760
    %6858 = vmatmul.f32.gmra.mxu0 %v6857
    %v6859 = vpop.f32.mrf.mxu0
    %v6860 = vadd.f32 0.0, %v6859
    %v6861 = vand.u32 %v4507, 4294901760
    %v6862 = vsub.f32 %v4507, %v6861
    %v6863 = vand.u32 %v6862, 4294901760
    %v6864 = vsub.f32 %v6862, %v6863
    %v6865 = vand.u32 %v6864, 4294901760
    %6866 = vmatmul.f32.gmra.mxu0 %v6865
    %v6867 = vpop.f32.mrf.mxu0
    %v6868 = vadd.f32 0.0, %v6867
    %v6869 = vand.u32 %v4510, 4294901760
    %v6870 = vsub.f32 %v4510, %v6869
    %v6871 = vand.u32 %v6870, 4294901760
    %v6872 = vsub.f32 %v6870, %v6871
    %v6873 = vand.u32 %v6872, 4294901760
    %6874 = vmatmul.f32.gmra.mxu0 %v6873
    %v6875 = vpop.f32.mrf.mxu0
    %v6876 = vadd.f32 0.0, %v6875
    %v6877 = vand.u32 %v4513, 4294901760
    %v6878 = vsub.f32 %v4513, %v6877
    %v6879 = vand.u32 %v6878, 4294901760
    %v6880 = vsub.f32 %v6878, %v6879
    %v6881 = vand.u32 %v6880, 4294901760
    %6882 = vmatmul.f32.gmra.mxu0 %v6881
    %v6883 = vpop.f32.mrf.mxu0
    %v6884 = vadd.f32 0.0, %v6883
    %v6885 = vand.u32 %v4516, 4294901760
    %v6886 = vsub.f32 %v4516, %v6885
    %v6887 = vand.u32 %v6886, 4294901760
    %v6888 = vsub.f32 %v6886, %v6887
    %v6889 = vand.u32 %v6888, 4294901760
    %6890 = vmatmul.f32.gmra.mxu0 %v6889
    %v6891 = vpop.f32.mrf.mxu0
    %v6892 = vadd.f32 0.0, %v6891
    %v6893 = vand.u32 %v4519, 4294901760
    %v6894 = vsub.f32 %v4519, %v6893
    %v6895 = vand.u32 %v6894, 4294901760
    %v6896 = vsub.f32 %v6894, %v6895
    %v6897 = vand.u32 %v6896, 4294901760
    %6898 = vmatmul.f32.gmra.mxu0 %v6897
    %v6899 = vpop.f32.mrf.mxu0
    %v6900 = vadd.f32 0.0, %v6899
    %v6901 = vand.u32 %v4522, 4294901760
    %v6902 = vsub.f32 %v4522, %v6901
    %v6903 = vand.u32 %v6902, 4294901760
    %v6904 = vsub.f32 %v6902, %v6903
    %v6905 = vand.u32 %v6904, 4294901760
    %6906 = vmatmul.f32.gmra.mxu0 %v6905
    %v6907 = vpop.f32.mrf.mxu0
    %v6908 = vadd.f32 0.0, %v6907
    %v6909 = vand.u32 %v4525, 4294901760
    %v6910 = vsub.f32 %v4525, %v6909
    %v6911 = vand.u32 %v6910, 4294901760
    %v6912 = vsub.f32 %v6910, %v6911
    %v6913 = vand.u32 %v6912, 4294901760
    %6914 = vmatmul.f32.gmra.mxu0 %v6913
    %v6915 = vpop.f32.mrf.mxu0
    %v6916 = vadd.f32 0.0, %v6915
    %v6917 = vand.u32 %v4528, 4294901760
    %v6918 = vsub.f32 %v4528, %v6917
    %v6919 = vand.u32 %v6918, 4294901760
    %v6920 = vsub.f32 %v6918, %v6919
    %v6921 = vand.u32 %v6920, 4294901760
    %6922 = vmatmul.f32.gmra.mxu0 %v6921
    %v6923 = vpop.f32.mrf.mxu0
    %v6924 = vadd.f32 0.0, %v6923
    %v6925 = vand.u32 %v4531, 4294901760
    %v6926 = vsub.f32 %v4531, %v6925
    %v6927 = vand.u32 %v6926, 4294901760
    %v6928 = vsub.f32 %v6926, %v6927
    %v6929 = vand.u32 %v6928, 4294901760
    %6930 = vmatmul.f32.gmra.mxu0 %v6929
    %v6931 = vpop.f32.mrf.mxu0
    %v6932 = vadd.f32 0.0, %v6931
    %v6933 = vand.u32 %v4534, 4294901760
    %v6934 = vsub.f32 %v4534, %v6933
    %v6935 = vand.u32 %v6934, 4294901760
    %v6936 = vsub.f32 %v6934, %v6935
    %v6937 = vand.u32 %v6936, 4294901760
    %6938 = vmatmul.f32.gmra.mxu0 %v6937
    %v6939 = vpop.f32.mrf.mxu0
    %v6940 = vadd.f32 0.0, %v6939
    %v6941 = vand.u32 %v4537, 4294901760
    %v6942 = vsub.f32 %v4537, %v6941
    %v6943 = vand.u32 %v6942, 4294901760
    %v6944 = vsub.f32 %v6942, %v6943
    %v6945 = vand.u32 %v6944, 4294901760
    %6946 = vmatmul.f32.gmra.mxu0 %v6945
    %v6947 = vpop.f32.mrf.mxu0
    %v6948 = vadd.f32 0.0, %v6947
    %v6949 = vand.u32 %v4540, 4294901760
    %v6950 = vsub.f32 %v4540, %v6949
    %v6951 = vand.u32 %v6950, 4294901760
    %v6952 = vsub.f32 %v6950, %v6951
    %v6953 = vand.u32 %v6952, 4294901760
    %6954 = vmatmul.f32.gmra.mxu0 %v6953
    %v6955 = vpop.f32.mrf.mxu0
    %v6956 = vadd.f32 0.0, %v6955
    %v6957 = vand.u32 %v4543, 4294901760
    %v6958 = vsub.f32 %v4543, %v6957
    %v6959 = vand.u32 %v6958, 4294901760
    %v6960 = vsub.f32 %v6958, %v6959
    %v6961 = vand.u32 %v6960, 4294901760
    %6962 = vmatmul.f32.gmra.mxu0 %v6961
    %v6963 = vpop.f32.mrf.mxu0
    %v6964 = vadd.f32 0.0, %v6963
    %v6965 = vand.u32 %v4546, 4294901760
    %v6966 = vsub.f32 %v4546, %v6965
    %v6967 = vand.u32 %v6966, 4294901760
    %v6968 = vsub.f32 %v6966, %v6967
    %v6969 = vand.u32 %v6968, 4294901760
    %6970 = vmatmul.f32.gmra.mxu0 %v6969
    %v6971 = vpop.f32.mrf.mxu0
    %v6972 = vadd.f32 0.0, %v6971
    %v6973 = vand.u32 %v4549, 4294901760
    %v6974 = vsub.f32 %v4549, %v6973
    %v6975 = vand.u32 %v6974, 4294901760
    %v6976 = vsub.f32 %v6974, %v6975
    %v6977 = vand.u32 %v6976, 4294901760
    %6978 = vmatmul.f32.gmra.mxu0 %v6977
    %v6979 = vpop.f32.mrf.mxu0
    %v6980 = vadd.f32 0.0, %v6979
    %v6981 = vand.u32 %v4552, 4294901760
    %v6982 = vsub.f32 %v4552, %v6981
    %v6983 = vand.u32 %v6982, 4294901760
    %v6984 = vsub.f32 %v6982, %v6983
    %v6985 = vand.u32 %v6984, 4294901760
    %6986 = vmatmul.f32.gmra.mxu0 %v6985
    %v6987 = vpop.f32.mrf.mxu0
    %v6988 = vadd.f32 0.0, %v6987
    %v6989 = vand.u32 %v4555, 4294901760
    %v6990 = vsub.f32 %v4555, %v6989
    %v6991 = vand.u32 %v6990, 4294901760
    %v6992 = vsub.f32 %v6990, %v6991
    %v6993 = vand.u32 %v6992, 4294901760
    %6994 = vmatmul.f32.gmra.mxu0 %v6993
    %v6995 = vpop.f32.mrf.mxu0
    %v6996 = vadd.f32 0.0, %v6995
    %v6997 = vand.u32 %v4558, 4294901760
    %v6998 = vsub.f32 %v4558, %v6997
    %v6999 = vand.u32 %v6998, 4294901760
    %v7000 = vsub.f32 %v6998, %v6999
    %v7001 = vand.u32 %v7000, 4294901760
    %7002 = vmatmul.f32.gmra.mxu0 %v7001
    %v7003 = vpop.f32.mrf.mxu0
    %v7004 = vadd.f32 0.0, %v7003
    %v7005 = vand.u32 %v4561, 4294901760
    %v7006 = vsub.f32 %v4561, %v7005
    %v7007 = vand.u32 %v7006, 4294901760
    %v7008 = vsub.f32 %v7006, %v7007
    %v7009 = vand.u32 %v7008, 4294901760
    %7010 = vmatmul.f32.gmra.mxu0 %v7009
    %v7011 = vpop.f32.mrf.mxu0
    %v7012 = vadd.f32 0.0, %v7011
    %v7013 = vand.u32 %v4564, 4294901760
    %v7014 = vsub.f32 %v4564, %v7013
    %v7015 = vand.u32 %v7014, 4294901760
    %v7016 = vsub.f32 %v7014, %v7015
    %v7017 = vand.u32 %v7016, 4294901760
    %7018 = vmatmul.f32.gmra.mxu0 %v7017
    %v7019 = vpop.f32.mrf.mxu0
    %v7020 = vadd.f32 0.0, %v7019
    %v7021 = vand.u32 %v4567, 4294901760
    %v7022 = vsub.f32 %v4567, %v7021
    %v7023 = vand.u32 %v7022, 4294901760
    %v7024 = vsub.f32 %v7022, %v7023
    %v7025 = vand.u32 %v7024, 4294901760
    %7026 = vmatmul.f32.gmra.mxu0 %v7025
    %v7027 = vpop.f32.mrf.mxu0
    %v7028 = vadd.f32 0.0, %v7027
    %v7029 = vand.u32 %v4570, 4294901760
    %v7030 = vsub.f32 %v4570, %v7029
    %v7031 = vand.u32 %v7030, 4294901760
    %v7032 = vsub.f32 %v7030, %v7031
    %v7033 = vand.u32 %v7032, 4294901760
    %7034 = vmatmul.f32.gmra.mxu0 %v7033
    %v7035 = vpop.f32.mrf.mxu0
    %v7036 = vadd.f32 0.0, %v7035
    %v7037 = vand.u32 %v4573, 4294901760
    %v7038 = vsub.f32 %v4573, %v7037
    %v7039 = vand.u32 %v7038, 4294901760
    %v7040 = vsub.f32 %v7038, %v7039
    %v7041 = vand.u32 %v7040, 4294901760
    %7042 = vmatmul.f32.gmra.mxu0 %v7041
    %v7043 = vpop.f32.mrf.mxu0
    %v7044 = vadd.f32 0.0, %v7043
    %v7045 = vand.u32 %v4576, 4294901760
    %v7046 = vsub.f32 %v4576, %v7045
    %v7047 = vand.u32 %v7046, 4294901760
    %v7048 = vsub.f32 %v7046, %v7047
    %v7049 = vand.u32 %v7048, 4294901760
    %7050 = vmatmul.f32.gmra.mxu0 %v7049
    %v7051 = vpop.f32.mrf.mxu0
    %v7052 = vadd.f32 0.0, %v7051
    %v7053 = vand.u32 %v4579, 4294901760
    %v7054 = vsub.f32 %v4579, %v7053
    %v7055 = vand.u32 %v7054, 4294901760
    %v7056 = vsub.f32 %v7054, %v7055
    %v7057 = vand.u32 %v7056, 4294901760
    %7058 = vmatmul.f32.gmra.mxu0 %v7057
    %v7059 = vpop.f32.mrf.mxu0
    %v7060 = vadd.f32 0.0, %v7059
    %v7061 = vand.u32 %v4582, 4294901760
    %v7062 = vsub.f32 %v4582, %v7061
    %v7063 = vand.u32 %v7062, 4294901760
    %v7064 = vsub.f32 %v7062, %v7063
    %v7065 = vand.u32 %v7064, 4294901760
    %7066 = vmatmul.f32.gmra.mxu0 %v7065
    %v7067 = vpop.f32.mrf.mxu0
    %v7068 = vadd.f32 0.0, %v7067
    %v7069 = vand.u32 %v4585, 4294901760
    %v7070 = vsub.f32 %v4585, %v7069
    %v7071 = vand.u32 %v7070, 4294901760
    %v7072 = vsub.f32 %v7070, %v7071
    %v7073 = vand.u32 %v7072, 4294901760
    %7074 = vmatmul.f32.gmra.mxu0 %v7073
    %v7075 = vpop.f32.mrf.mxu0
    %v7076 = vadd.f32 0.0, %v7075
    %v7077 = vand.u32 %v4588, 4294901760
    %v7078 = vsub.f32 %v4588, %v7077
    %v7079 = vand.u32 %v7078, 4294901760
    %v7080 = vsub.f32 %v7078, %v7079
    %v7081 = vand.u32 %v7080, 4294901760
    %7082 = vmatmul.f32.gmra.mxu0 %v7081
    %v7083 = vpop.f32.mrf.mxu0
    %v7084 = vadd.f32 0.0, %v7083
    %v7085 = vand.u32 %v4591, 4294901760
    %v7086 = vsub.f32 %v4591, %v7085
    %v7087 = vand.u32 %v7086, 4294901760
    %v7088 = vsub.f32 %v7086, %v7087
    %v7089 = vand.u32 %v7088, 4294901760
    %7090 = vmatmul.f32.gmra.mxu0 %v7089
    %v7091 = vpop.f32.mrf.mxu0
    %v7092 = vadd.f32 0.0, %v7091
    %v7093 = vand.u32 %v4594, 4294901760
    %v7094 = vsub.f32 %v4594, %v7093
    %v7095 = vand.u32 %v7094, 4294901760
    %v7096 = vsub.f32 %v7094, %v7095
    %v7097 = vand.u32 %v7096, 4294901760
    %7098 = vmatmul.f32.gmra.mxu0 %v7097
    %v7099 = vpop.f32.mrf.mxu0
    %v7100 = vadd.f32 0.0, %v7099
    %v7101 = vand.u32 %v4597, 4294901760
    %v7102 = vsub.f32 %v4597, %v7101
    %v7103 = vand.u32 %v7102, 4294901760
    %v7104 = vsub.f32 %v7102, %v7103
    %v7105 = vand.u32 %v7104, 4294901760
    %7106 = vmatmul.f32.gmra.mxu0 %v7105
    %v7107 = vpop.f32.mrf.mxu0
    %v7108 = vadd.f32 0.0, %v7107
    %v7109 = vand.u32 %v4600, 4294901760
    %v7110 = vsub.f32 %v4600, %v7109
    %v7111 = vand.u32 %v7110, 4294901760
    %v7112 = vsub.f32 %v7110, %v7111
    %v7113 = vand.u32 %v7112, 4294901760
    %7114 = vmatmul.f32.gmra.mxu0 %v7113
    %v7115 = vpop.f32.mrf.mxu0
    %v7116 = vadd.f32 0.0, %v7115
    %v7117 = vand.u32 %v4603, 4294901760
    %v7118 = vsub.f32 %v4603, %v7117
    %v7119 = vand.u32 %v7118, 4294901760
    %v7120 = vsub.f32 %v7118, %v7119
    %v7121 = vand.u32 %v7120, 4294901760
    %7122 = vmatmul.f32.gmra.mxu0 %v7121
    %v7123 = vpop.f32.mrf.mxu0
    %v7124 = vadd.f32 0.0, %v7123
    %v7125 = vand.u32 %v4606, 4294901760
    %v7126 = vsub.f32 %v4606, %v7125
    %v7127 = vand.u32 %v7126, 4294901760
    %v7128 = vsub.f32 %v7126, %v7127
    %v7129 = vand.u32 %v7128, 4294901760
    %7130 = vmatmul.f32.gmra.mxu0 %v7129
    %v7131 = vpop.f32.mrf.mxu0
    %v7132 = vadd.f32 0.0, %v7131
    %v7133 = vand.u32 %v4609, 4294901760
    %v7134 = vsub.f32 %v4609, %v7133
    %v7135 = vand.u32 %v7134, 4294901760
    %v7136 = vsub.f32 %v7134, %v7135
    %v7137 = vand.u32 %v7136, 4294901760
    %7138 = vmatmul.f32.gmra.mxu0 %v7137
    %v7139 = vpop.f32.mrf.mxu0
    %v7140 = vadd.f32 0.0, %v7139
    %v7141 = vand.u32 %v4612, 4294901760
    %v7142 = vsub.f32 %v4612, %v7141
    %v7143 = vand.u32 %v7142, 4294901760
    %v7144 = vsub.f32 %v7142, %v7143
    %v7145 = vand.u32 %v7144, 4294901760
    %7146 = vmatmul.f32.gmra.mxu0 %v7145
    %v7147 = vpop.f32.mrf.mxu0
    %v7148 = vadd.f32 0.0, %v7147
    %v7149 = vand.u32 %v4615, 4294901760
    %v7150 = vsub.f32 %v4615, %v7149
    %v7151 = vand.u32 %v7150, 4294901760
    %v7152 = vsub.f32 %v7150, %v7151
    %v7153 = vand.u32 %v7152, 4294901760
    %7154 = vmatmul.f32.gmra.mxu0 %v7153
    %v7155 = vpop.f32.mrf.mxu0
    %v7156 = vadd.f32 0.0, %v7155
    %v7157 = vand.u32 %v4618, 4294901760
    %v7158 = vsub.f32 %v4618, %v7157
    %v7159 = vand.u32 %v7158, 4294901760
    %v7160 = vsub.f32 %v7158, %v7159
    %v7161 = vand.u32 %v7160, 4294901760
    %7162 = vmatmul.f32.gmra.mxu0 %v7161
    %v7163 = vpop.f32.mrf.mxu0
    %v7164 = vadd.f32 0.0, %v7163
    %v7165 = vand.u32 %v4621, 4294901760
    %v7166 = vsub.f32 %v4621, %v7165
    %v7167 = vand.u32 %v7166, 4294901760
    %v7168 = vsub.f32 %v7166, %v7167
    %v7169 = vand.u32 %v7168, 4294901760
    %7170 = vmatmul.f32.gmra.mxu0 %v7169
    %v7171 = vpop.f32.mrf.mxu0
    %v7172 = vadd.f32 0.0, %v7171
    %v7173 = vand.u32 %v4624, 4294901760
    %v7174 = vsub.f32 %v4624, %v7173
    %v7175 = vand.u32 %v7174, 4294901760
    %v7176 = vsub.f32 %v7174, %v7175
    %v7177 = vand.u32 %v7176, 4294901760
    %7178 = vmatmul.f32.gmra.mxu0 %v7177
    %v7179 = vpop.f32.mrf.mxu0
    %v7180 = vadd.f32 0.0, %v7179
    %v7181 = vand.u32 %v4627, 4294901760
    %v7182 = vsub.f32 %v4627, %v7181
    %v7183 = vand.u32 %v7182, 4294901760
    %v7184 = vsub.f32 %v7182, %v7183
    %v7185 = vand.u32 %v7184, 4294901760
    %7186 = vmatmul.f32.gmra.mxu0 %v7185
    %v7187 = vpop.f32.mrf.mxu0
    %v7188 = vadd.f32 0.0, %v7187
    %v7189 = vand.u32 %v4630, 4294901760
    %v7190 = vsub.f32 %v4630, %v7189
    %v7191 = vand.u32 %v7190, 4294901760
    %v7192 = vsub.f32 %v7190, %v7191
    %v7193 = vand.u32 %v7192, 4294901760
    %7194 = vmatmul.f32.gmra.mxu0 %v7193
    %v7195 = vpop.f32.mrf.mxu0
    %v7196 = vadd.f32 0.0, %v7195
    %v7197 = vand.u32 %v4633, 4294901760
    %v7198 = vsub.f32 %v4633, %v7197
    %v7199 = vand.u32 %v7198, 4294901760
    %v7200 = vsub.f32 %v7198, %v7199
    %v7201 = vand.u32 %v7200, 4294901760
    %7202 = vmatmul.f32.gmra.mxu0 %v7201
    %v7203 = vpop.f32.mrf.mxu0
    %v7204 = vadd.f32 0.0, %v7203
    %v7205 = vand.u32 %v4636, 4294901760
    %v7206 = vsub.f32 %v4636, %v7205
    %v7207 = vand.u32 %v7206, 4294901760
    %v7208 = vsub.f32 %v7206, %v7207
    %v7209 = vand.u32 %v7208, 4294901760
    %7210 = vmatmul.f32.gmra.mxu0 %v7209
    %v7211 = vpop.f32.mrf.mxu0
    %v7212 = vadd.f32 0.0, %v7211
    %v7213 = vand.u32 %v4639, 4294901760
    %v7214 = vsub.f32 %v4639, %v7213
    %v7215 = vand.u32 %v7214, 4294901760
    %v7216 = vsub.f32 %v7214, %v7215
    %v7217 = vand.u32 %v7216, 4294901760
    %7218 = vmatmul.f32.gmra.mxu0 %v7217
    %v7219 = vpop.f32.mrf.mxu0
    %v7220 = vadd.f32 0.0, %v7219
    %v7221 = vand.u32 %v4642, 4294901760
    %v7222 = vsub.f32 %v4642, %v7221
    %v7223 = vand.u32 %v7222, 4294901760
    %v7224 = vsub.f32 %v7222, %v7223
    %v7225 = vand.u32 %v7224, 4294901760
    %7226 = vmatmul.f32.gmra.mxu0 %v7225
    %v7227 = vpop.f32.mrf.mxu0
    %v7228 = vadd.f32 0.0, %v7227
    %v7229 = vand.u32 %v4645, 4294901760
    %v7230 = vsub.f32 %v4645, %v7229
    %v7231 = vand.u32 %v7230, 4294901760
    %v7232 = vsub.f32 %v7230, %v7231
    %v7233 = vand.u32 %v7232, 4294901760
    %7234 = vmatmul.f32.gmra.mxu0 %v7233
    %v7235 = vpop.f32.mrf.mxu0
    %v7236 = vadd.f32 0.0, %v7235
    %v7237 = vand.u32 %v4648, 4294901760
    %v7238 = vsub.f32 %v4648, %v7237
    %v7239 = vand.u32 %v7238, 4294901760
    %v7240 = vsub.f32 %v7238, %v7239
    %v7241 = vand.u32 %v7240, 4294901760
    %7242 = vmatmul.f32.gmra.mxu0 %v7241
    %v7243 = vpop.f32.mrf.mxu0
    %v7244 = vadd.f32 0.0, %v7243
    %v7245 = vand.u32 %v4651, 4294901760
    %v7246 = vsub.f32 %v4651, %v7245
    %v7247 = vand.u32 %v7246, 4294901760
    %v7248 = vsub.f32 %v7246, %v7247
    %v7249 = vand.u32 %v7248, 4294901760
    %7250 = vmatmul.f32.gmra.mxu0 %v7249
    %v7251 = vpop.f32.mrf.mxu0
    %v7252 = vadd.f32 0.0, %v7251
    %v7253 = vand.u32 %v4654, 4294901760
    %v7254 = vsub.f32 %v4654, %v7253
    %v7255 = vand.u32 %v7254, 4294901760
    %v7256 = vsub.f32 %v7254, %v7255
    %v7257 = vand.u32 %v7256, 4294901760
    %7258 = vmatmul.f32.gmra.mxu0 %v7257
    %v7259 = vpop.f32.mrf.mxu0
    %v7260 = vadd.f32 0.0, %v7259
    %v7261 = vand.u32 %v4657, 4294901760
    %v7262 = vsub.f32 %v4657, %v7261
    %v7263 = vand.u32 %v7262, 4294901760
    %v7264 = vsub.f32 %v7262, %v7263
    %v7265 = vand.u32 %v7264, 4294901760
    %7266 = vmatmul.f32.gmra.mxu0 %v7265
    %v7267 = vpop.f32.mrf.mxu0
    %v7268 = vadd.f32 0.0, %v7267
    %v7269 = vand.u32 %v4660, 4294901760
    %v7270 = vsub.f32 %v4660, %v7269
    %v7271 = vand.u32 %v7270, 4294901760
    %v7272 = vsub.f32 %v7270, %v7271
    %v7273 = vand.u32 %v7272, 4294901760
    %7274 = vmatmul.f32.gmra.mxu0 %v7273
    %v7275 = vpop.f32.mrf.mxu0
    %v7276 = vadd.f32 0.0, %v7275
    %v7277 = vand.u32 %v4663, 4294901760
    %v7278 = vsub.f32 %v4663, %v7277
    %v7279 = vand.u32 %v7278, 4294901760
    %v7280 = vsub.f32 %v7278, %v7279
    %v7281 = vand.u32 %v7280, 4294901760
    %7282 = vmatmul.f32.gmra.mxu0 %v7281
    %v7283 = vpop.f32.mrf.mxu0
    %v7284 = vadd.f32 0.0, %v7283
    %v7285 = vand.u32 %v4666, 4294901760
    %v7286 = vsub.f32 %v4666, %v7285
    %v7287 = vand.u32 %v7286, 4294901760
    %v7288 = vsub.f32 %v7286, %v7287
    %v7289 = vand.u32 %v7288, 4294901760
    %7290 = vmatmul.f32.gmra.mxu0 %v7289
    %v7291 = vpop.f32.mrf.mxu0
    %v7292 = vadd.f32 0.0, %v7291
    %v7293 = vand.u32 %v4669, 4294901760
    %v7294 = vsub.f32 %v4669, %v7293
    %v7295 = vand.u32 %v7294, 4294901760
    %v7296 = vsub.f32 %v7294, %v7295
    %v7297 = vand.u32 %v7296, 4294901760
    %7298 = vmatmul.f32.gmra.mxu0 %v7297
    %v7299 = vpop.f32.mrf.mxu0
    %v7300 = vadd.f32 0.0, %v7299
    %v7301 = vand.u32 %v4672, 4294901760
    %v7302 = vsub.f32 %v4672, %v7301
    %v7303 = vand.u32 %v7302, 4294901760
    %v7304 = vsub.f32 %v7302, %v7303
    %v7305 = vand.u32 %v7304, 4294901760
    %7306 = vmatmul.f32.gmra.mxu0 %v7305
    %v7307 = vpop.f32.mrf.mxu0
    %v7308 = vadd.f32 0.0, %v7307
    %v7309 = vand.u32 %v4675, 4294901760
    %v7310 = vsub.f32 %v4675, %v7309
    %v7311 = vand.u32 %v7310, 4294901760
    %v7312 = vsub.f32 %v7310, %v7311
    %v7313 = vand.u32 %v7312, 4294901760
    %7314 = vmatmul.f32.gmra.mxu0 %v7313
    %v7315 = vpop.f32.mrf.mxu0
    %v7316 = vadd.f32 0.0, %v7315
    %v7317 = vand.u32 %v4678, 4294901760
    %v7318 = vsub.f32 %v4678, %v7317
    %v7319 = vand.u32 %v7318, 4294901760
    %v7320 = vsub.f32 %v7318, %v7319
    %v7321 = vand.u32 %v7320, 4294901760
    %7322 = vmatmul.f32.gmra.mxu0 %v7321
    %v7323 = vpop.f32.mrf.mxu0
    %v7324 = vadd.f32 0.0, %v7323
    %v7325 = vand.u32 %v4681, 4294901760
    %v7326 = vsub.f32 %v4681, %v7325
    %v7327 = vand.u32 %v7326, 4294901760
    %v7328 = vsub.f32 %v7326, %v7327
    %v7329 = vand.u32 %v7328, 4294901760
    %7330 = vmatmul.f32.gmra.mxu0 %v7329
    %v7331 = vpop.f32.mrf.mxu0
    %v7332 = vadd.f32 0.0, %v7331
    %v7333 = vand.u32 %v4684, 4294901760
    %v7334 = vsub.f32 %v4684, %v7333
    %v7335 = vand.u32 %v7334, 4294901760
    %v7336 = vsub.f32 %v7334, %v7335
    %v7337 = vand.u32 %v7336, 4294901760
    %7338 = vmatmul.f32.gmra.mxu0 %v7337
    %v7339 = vpop.f32.mrf.mxu0
    %v7340 = vadd.f32 0.0, %v7339
    %v7341 = vand.u32 %v4687, 4294901760
    %v7342 = vsub.f32 %v4687, %v7341
    %v7343 = vand.u32 %v7342, 4294901760
    %v7344 = vsub.f32 %v7342, %v7343
    %v7345 = vand.u32 %v7344, 4294901760
    %7346 = vmatmul.f32.gmra.mxu0 %v7345
    %v7347 = vpop.f32.mrf.mxu0
    %v7348 = vadd.f32 0.0, %v7347
    %v7349 = vand.u32 %v4690, 4294901760
    %v7350 = vsub.f32 %v4690, %v7349
    %v7351 = vand.u32 %v7350, 4294901760
    %v7352 = vsub.f32 %v7350, %v7351
    %v7353 = vand.u32 %v7352, 4294901760
    %7354 = vmatmul.f32.gmra.mxu0 %v7353
    %v7355 = vpop.f32.mrf.mxu0
    %v7356 = vadd.f32 0.0, %v7355
    %v7357 = vand.u32 %v4693, 4294901760
    %v7358 = vsub.f32 %v4693, %v7357
    %v7359 = vand.u32 %v7358, 4294901760
    %v7360 = vsub.f32 %v7358, %v7359
    %v7361 = vand.u32 %v7360, 4294901760
    %7362 = vmatmul.f32.gmra.mxu0 %v7361
    %v7363 = vpop.f32.mrf.mxu0
    %v7364 = vadd.f32 0.0, %v7363
    %7365 = vdwg.mxu0
    %7366 = vmatpush.msra.mxu0 0.0
    %7367 = vmatpush.msra.mxu0 0.0
    %7368 = vmatpush.msra.mxu0 0.0
    %7369 = vmatpush.msra.mxu0 0.0
    %7370 = vmatpush.msra.mxu0 0.0
    %7371 = vmatpush.msra.mxu0 0.0
    %7372 = vmatpush.msra.mxu0 0.0
    %7373 = vmatpush.msra.mxu0 0.0
    %7374 = vmatpush.msra.mxu0 0.0
    %7375 = vmatpush.msra.mxu0 0.0
    %7376 = vmatpush.msra.mxu0 0.0
    %7377 = vmatpush.msra.mxu0 0.0
    %v7378 = vand.u32 %v4425, 4294901760
    %v7379 = vsub.f32 %v4425, %v7378
    %v7380 = vand.u32 %v7379, 4294901760
    %v7381 = vsub.f32 %v7379, %v7380
    %v7382 = vand.u32 %v7381, 4294901760
    %7383 = vmatpush.msra.mxu0 %v7382
    %v7384 = vand.u32 %v4423, 4294901760
    %v7385 = vsub.f32 %v4423, %v7384
    %v7386 = vand.u32 %v7385, 4294901760
    %v7387 = vsub.f32 %v7385, %v7386
    %v7388 = vand.u32 %v7387, 4294901760
    %7389 = vmatpush.msra.mxu0 %v7388
    %v7390 = vand.u32 %v4421, 4294901760
    %v7391 = vsub.f32 %v4421, %v7390
    %v7392 = vand.u32 %v7391, 4294901760
    %v7393 = vsub.f32 %v7391, %v7392
    %v7394 = vand.u32 %v7393, 4294901760
    %7395 = vmatpush.msra.mxu0 %v7394
    %v7396 = vand.u32 %v4419, 4294901760
    %v7397 = vsub.f32 %v4419, %v7396
    %v7398 = vand.u32 %v7397, 4294901760
    %v7399 = vsub.f32 %v7397, %v7398
    %v7400 = vand.u32 %v7399, 4294901760
    %7401 = vmatpush.msra.mxu0 %v7400
    %v7402 = vand.u32 %v4504, 4294901760
    %7403 = vmatmul.f32.gmra.mxu0 %v7402
    %v7404 = vpop.f32.mrf.mxu0
    %v7405 = vadd.f32 %v6860, %v7404
    %v7406 = vand.u32 %v4507, 4294901760
    %7407 = vmatmul.f32.gmra.mxu0 %v7406
    %v7408 = vpop.f32.mrf.mxu0
    %v7409 = vadd.f32 %v6868, %v7408
    %v7410 = vand.u32 %v4510, 4294901760
    %7411 = vmatmul.f32.gmra.mxu0 %v7410
    %v7412 = vpop.f32.mrf.mxu0
    %v7413 = vadd.f32 %v6876, %v7412
    %v7414 = vand.u32 %v4513, 4294901760
    %7415 = vmatmul.f32.gmra.mxu0 %v7414
    %v7416 = vpop.f32.mrf.mxu0
    %v7417 = vadd.f32 %v6884, %v7416
    %v7418 = vand.u32 %v4516, 4294901760
    %7419 = vmatmul.f32.gmra.mxu0 %v7418
    %v7420 = vpop.f32.mrf.mxu0
    %v7421 = vadd.f32 %v6892, %v7420
    %v7422 = vand.u32 %v4519, 4294901760
    %7423 = vmatmul.f32.gmra.mxu0 %v7422
    %v7424 = vpop.f32.mrf.mxu0
    %v7425 = vadd.f32 %v6900, %v7424
    %v7426 = vand.u32 %v4522, 4294901760
    %7427 = vmatmul.f32.gmra.mxu0 %v7426
    %v7428 = vpop.f32.mrf.mxu0
    %v7429 = vadd.f32 %v6908, %v7428
    %v7430 = vand.u32 %v4525, 4294901760
    %7431 = vmatmul.f32.gmra.mxu0 %v7430
    %v7432 = vpop.f32.mrf.mxu0
    %v7433 = vadd.f32 %v6916, %v7432
    %v7434 = vand.u32 %v4528, 4294901760
    %7435 = vmatmul.f32.gmra.mxu0 %v7434
    %v7436 = vpop.f32.mrf.mxu0
    %v7437 = vadd.f32 %v6924, %v7436
    %v7438 = vand.u32 %v4531, 4294901760
    %7439 = vmatmul.f32.gmra.mxu0 %v7438
    %v7440 = vpop.f32.mrf.mxu0
    %v7441 = vadd.f32 %v6932, %v7440
    %v7442 = vand.u32 %v4534, 4294901760
    %7443 = vmatmul.f32.gmra.mxu0 %v7442
    %v7444 = vpop.f32.mrf.mxu0
    %v7445 = vadd.f32 %v6940, %v7444
    %v7446 = vand.u32 %v4537, 4294901760
    %7447 = vmatmul.f32.gmra.mxu0 %v7446
    %v7448 = vpop.f32.mrf.mxu0
    %v7449 = vadd.f32 %v6948, %v7448
    %v7450 = vand.u32 %v4540, 4294901760
    %7451 = vmatmul.f32.gmra.mxu0 %v7450
    %v7452 = vpop.f32.mrf.mxu0
    %v7453 = vadd.f32 %v6956, %v7452
    %v7454 = vand.u32 %v4543, 4294901760
    %7455 = vmatmul.f32.gmra.mxu0 %v7454
    %v7456 = vpop.f32.mrf.mxu0
    %v7457 = vadd.f32 %v6964, %v7456
    %v7458 = vand.u32 %v4546, 4294901760
    %7459 = vmatmul.f32.gmra.mxu0 %v7458
    %v7460 = vpop.f32.mrf.mxu0
    %v7461 = vadd.f32 %v6972, %v7460
    %v7462 = vand.u32 %v4549, 4294901760
    %7463 = vmatmul.f32.gmra.mxu0 %v7462
    %v7464 = vpop.f32.mrf.mxu0
    %v7465 = vadd.f32 %v6980, %v7464
    %v7466 = vand.u32 %v4552, 4294901760
    %7467 = vmatmul.f32.gmra.mxu0 %v7466
    %v7468 = vpop.f32.mrf.mxu0
    %v7469 = vadd.f32 %v6988, %v7468
    %v7470 = vand.u32 %v4555, 4294901760
    %7471 = vmatmul.f32.gmra.mxu0 %v7470
    %v7472 = vpop.f32.mrf.mxu0
    %v7473 = vadd.f32 %v6996, %v7472
    %v7474 = vand.u32 %v4558, 4294901760
    %7475 = vmatmul.f32.gmra.mxu0 %v7474
    %v7476 = vpop.f32.mrf.mxu0
    %v7477 = vadd.f32 %v7004, %v7476
    %v7478 = vand.u32 %v4561, 4294901760
    %7479 = vmatmul.f32.gmra.mxu0 %v7478
    %v7480 = vpop.f32.mrf.mxu0
    %v7481 = vadd.f32 %v7012, %v7480
    %v7482 = vand.u32 %v4564, 4294901760
    %7483 = vmatmul.f32.gmra.mxu0 %v7482
    %v7484 = vpop.f32.mrf.mxu0
    %v7485 = vadd.f32 %v7020, %v7484
    %v7486 = vand.u32 %v4567, 4294901760
    %7487 = vmatmul.f32.gmra.mxu0 %v7486
    %v7488 = vpop.f32.mrf.mxu0
    %v7489 = vadd.f32 %v7028, %v7488
    %v7490 = vand.u32 %v4570, 4294901760
    %7491 = vmatmul.f32.gmra.mxu0 %v7490
    %v7492 = vpop.f32.mrf.mxu0
    %v7493 = vadd.f32 %v7036, %v7492
    %v7494 = vand.u32 %v4573, 4294901760
    %7495 = vmatmul.f32.gmra.mxu0 %v7494
    %v7496 = vpop.f32.mrf.mxu0
    %v7497 = vadd.f32 %v7044, %v7496
    %v7498 = vand.u32 %v4576, 4294901760
    %7499 = vmatmul.f32.gmra.mxu0 %v7498
    %v7500 = vpop.f32.mrf.mxu0
    %v7501 = vadd.f32 %v7052, %v7500
    %v7502 = vand.u32 %v4579, 4294901760
    %7503 = vmatmul.f32.gmra.mxu0 %v7502
    %v7504 = vpop.f32.mrf.mxu0
    %v7505 = vadd.f32 %v7060, %v7504
    %v7506 = vand.u32 %v4582, 4294901760
    %7507 = vmatmul.f32.gmra.mxu0 %v7506
    %v7508 = vpop.f32.mrf.mxu0
    %v7509 = vadd.f32 %v7068, %v7508
    %v7510 = vand.u32 %v4585, 4294901760
    %7511 = vmatmul.f32.gmra.mxu0 %v7510
    %v7512 = vpop.f32.mrf.mxu0
    %v7513 = vadd.f32 %v7076, %v7512
    %v7514 = vand.u32 %v4588, 4294901760
    %7515 = vmatmul.f32.gmra.mxu0 %v7514
    %v7516 = vpop.f32.mrf.mxu0
    %v7517 = vadd.f32 %v7084, %v7516
    %v7518 = vand.u32 %v4591, 4294901760
    %7519 = vmatmul.f32.gmra.mxu0 %v7518
    %v7520 = vpop.f32.mrf.mxu0
    %v7521 = vadd.f32 %v7092, %v7520
    %v7522 = vand.u32 %v4594, 4294901760
    %7523 = vmatmul.f32.gmra.mxu0 %v7522
    %v7524 = vpop.f32.mrf.mxu0
    %v7525 = vadd.f32 %v7100, %v7524
    %v7526 = vand.u32 %v4597, 4294901760
    %7527 = vmatmul.f32.gmra.mxu0 %v7526
    %v7528 = vpop.f32.mrf.mxu0
    %v7529 = vadd.f32 %v7108, %v7528
    %v7530 = vand.u32 %v4600, 4294901760
    %7531 = vmatmul.f32.gmra.mxu0 %v7530
    %v7532 = vpop.f32.mrf.mxu0
    %v7533 = vadd.f32 %v7116, %v7532
    %v7534 = vand.u32 %v4603, 4294901760
    %7535 = vmatmul.f32.gmra.mxu0 %v7534
    %v7536 = vpop.f32.mrf.mxu0
    %v7537 = vadd.f32 %v7124, %v7536
    %v7538 = vand.u32 %v4606, 4294901760
    %7539 = vmatmul.f32.gmra.mxu0 %v7538
    %v7540 = vpop.f32.mrf.mxu0
    %v7541 = vadd.f32 %v7132, %v7540
    %v7542 = vand.u32 %v4609, 4294901760
    %7543 = vmatmul.f32.gmra.mxu0 %v7542
    %v7544 = vpop.f32.mrf.mxu0
    %v7545 = vadd.f32 %v7140, %v7544
    %v7546 = vand.u32 %v4612, 4294901760
    %7547 = vmatmul.f32.gmra.mxu0 %v7546
    %v7548 = vpop.f32.mrf.mxu0
    %v7549 = vadd.f32 %v7148, %v7548
    %v7550 = vand.u32 %v4615, 4294901760
    %7551 = vmatmul.f32.gmra.mxu0 %v7550
    %v7552 = vpop.f32.mrf.mxu0
    %v7553 = vadd.f32 %v7156, %v7552
    %v7554 = vand.u32 %v4618, 4294901760
    %7555 = vmatmul.f32.gmra.mxu0 %v7554
    %v7556 = vpop.f32.mrf.mxu0
    %v7557 = vadd.f32 %v7164, %v7556
    %v7558 = vand.u32 %v4621, 4294901760
    %7559 = vmatmul.f32.gmra.mxu0 %v7558
    %v7560 = vpop.f32.mrf.mxu0
    %v7561 = vadd.f32 %v7172, %v7560
    %v7562 = vand.u32 %v4624, 4294901760
    %7563 = vmatmul.f32.gmra.mxu0 %v7562
    %v7564 = vpop.f32.mrf.mxu0
    %v7565 = vadd.f32 %v7180, %v7564
    %v7566 = vand.u32 %v4627, 4294901760
    %7567 = vmatmul.f32.gmra.mxu0 %v7566
    %v7568 = vpop.f32.mrf.mxu0
    %v7569 = vadd.f32 %v7188, %v7568
    %v7570 = vand.u32 %v4630, 4294901760
    %7571 = vmatmul.f32.gmra.mxu0 %v7570
    %v7572 = vpop.f32.mrf.mxu0
    %v7573 = vadd.f32 %v7196, %v7572
    %v7574 = vand.u32 %v4633, 4294901760
    %7575 = vmatmul.f32.gmra.mxu0 %v7574
    %v7576 = vpop.f32.mrf.mxu0
    %v7577 = vadd.f32 %v7204, %v7576
    %v7578 = vand.u32 %v4636, 4294901760
    %7579 = vmatmul.f32.gmra.mxu0 %v7578
    %v7580 = vpop.f32.mrf.mxu0
    %v7581 = vadd.f32 %v7212, %v7580
    %v7582 = vand.u32 %v4639, 4294901760
    %7583 = vmatmul.f32.gmra.mxu0 %v7582
    %v7584 = vpop.f32.mrf.mxu0
    %v7585 = vadd.f32 %v7220, %v7584
    %v7586 = vand.u32 %v4642, 4294901760
    %7587 = vmatmul.f32.gmra.mxu0 %v7586
    %v7588 = vpop.f32.mrf.mxu0
    %v7589 = vadd.f32 %v7228, %v7588
    %v7590 = vand.u32 %v4645, 4294901760
    %7591 = vmatmul.f32.gmra.mxu0 %v7590
    %v7592 = vpop.f32.mrf.mxu0
    %v7593 = vadd.f32 %v7236, %v7592
    %v7594 = vand.u32 %v4648, 4294901760
    %7595 = vmatmul.f32.gmra.mxu0 %v7594
    %v7596 = vpop.f32.mrf.mxu0
    %v7597 = vadd.f32 %v7244, %v7596
    %v7598 = vand.u32 %v4651, 4294901760
    %7599 = vmatmul.f32.gmra.mxu0 %v7598
    %v7600 = vpop.f32.mrf.mxu0
    %v7601 = vadd.f32 %v7252, %v7600
    %v7602 = vand.u32 %v4654, 4294901760
    %7603 = vmatmul.f32.gmra.mxu0 %v7602
    %v7604 = vpop.f32.mrf.mxu0
    %v7605 = vadd.f32 %v7260, %v7604
    %v7606 = vand.u32 %v4657, 4294901760
    %7607 = vmatmul.f32.gmra.mxu0 %v7606
    %v7608 = vpop.f32.mrf.mxu0
    %v7609 = vadd.f32 %v7268, %v7608
    %v7610 = vand.u32 %v4660, 4294901760
    %7611 = vmatmul.f32.gmra.mxu0 %v7610
    %v7612 = vpop.f32.mrf.mxu0
    %v7613 = vadd.f32 %v7276, %v7612
    %v7614 = vand.u32 %v4663, 4294901760
    %7615 = vmatmul.f32.gmra.mxu0 %v7614
    %v7616 = vpop.f32.mrf.mxu0
    %v7617 = vadd.f32 %v7284, %v7616
    %v7618 = vand.u32 %v4666, 4294901760
    %7619 = vmatmul.f32.gmra.mxu0 %v7618
    %v7620 = vpop.f32.mrf.mxu0
    %v7621 = vadd.f32 %v7292, %v7620
    %v7622 = vand.u32 %v4669, 4294901760
    %7623 = vmatmul.f32.gmra.mxu0 %v7622
    %v7624 = vpop.f32.mrf.mxu0
    %v7625 = vadd.f32 %v7300, %v7624
    %v7626 = vand.u32 %v4672, 4294901760
    %7627 = vmatmul.f32.gmra.mxu0 %v7626
    %v7628 = vpop.f32.mrf.mxu0
    %v7629 = vadd.f32 %v7308, %v7628
    %v7630 = vand.u32 %v4675, 4294901760
    %7631 = vmatmul.f32.gmra.mxu0 %v7630
    %v7632 = vpop.f32.mrf.mxu0
    %v7633 = vadd.f32 %v7316, %v7632
    %v7634 = vand.u32 %v4678, 4294901760
    %7635 = vmatmul.f32.gmra.mxu0 %v7634
    %v7636 = vpop.f32.mrf.mxu0
    %v7637 = vadd.f32 %v7324, %v7636
    %v7638 = vand.u32 %v4681, 4294901760
    %7639 = vmatmul.f32.gmra.mxu0 %v7638
    %v7640 = vpop.f32.mrf.mxu0
    %v7641 = vadd.f32 %v7332, %v7640
    %v7642 = vand.u32 %v4684, 4294901760
    %7643 = vmatmul.f32.gmra.mxu0 %v7642
    %v7644 = vpop.f32.mrf.mxu0
    %v7645 = vadd.f32 %v7340, %v7644
    %v7646 = vand.u32 %v4687, 4294901760
    %7647 = vmatmul.f32.gmra.mxu0 %v7646
    %v7648 = vpop.f32.mrf.mxu0
    %v7649 = vadd.f32 %v7348, %v7648
    %v7650 = vand.u32 %v4690, 4294901760
    %7651 = vmatmul.f32.gmra.mxu0 %v7650
    %v7652 = vpop.f32.mrf.mxu0
    %v7653 = vadd.f32 %v7356, %v7652
    %v7654 = vand.u32 %v4693, 4294901760
    %7655 = vmatmul.f32.gmra.mxu0 %v7654
    %v7656 = vpop.f32.mrf.mxu0
    %v7657 = vadd.f32 %v7364, %v7656
    %7658 = vdwg.mxu0
    %7659 = vmatpush.msra.mxu0 0.0
    %7660 = vmatpush.msra.mxu0 0.0
    %7661 = vmatpush.msra.mxu0 0.0
    %7662 = vmatpush.msra.mxu0 0.0
    %7663 = vmatpush.msra.mxu0 0.0
    %7664 = vmatpush.msra.mxu0 0.0
    %7665 = vmatpush.msra.mxu0 0.0
    %7666 = vmatpush.msra.mxu0 0.0
    %7667 = vmatpush.msra.mxu0 0.0
    %7668 = vmatpush.msra.mxu0 0.0
    %7669 = vmatpush.msra.mxu0 0.0
    %7670 = vmatpush.msra.mxu0 0.0
    %v7671 = vand.u32 %v4425, 4294901760
    %v7672 = vsub.f32 %v4425, %v7671
    %7673 = vmatpush.msra.mxu0 %v7672
    %v7674 = vand.u32 %v4423, 4294901760
    %v7675 = vsub.f32 %v4423, %v7674
    %7676 = vmatpush.msra.mxu0 %v7675
    %v7677 = vand.u32 %v4421, 4294901760
    %v7678 = vsub.f32 %v4421, %v7677
    %7679 = vmatpush.msra.mxu0 %v7678
    %v7680 = vand.u32 %v4419, 4294901760
    %v7681 = vsub.f32 %v4419, %v7680
    %7682 = vmatpush.msra.mxu0 %v7681
    %v7683 = vand.u32 %v4504, 4294901760
    %v7684 = vsub.f32 %v4504, %v7683
    %7685 = vmatmul.f32.gmra.mxu0 %v7684
    %v7686 = vpop.f32.mrf.mxu0
    %v7687 = vadd.f32 %v7405, %v7686
    %v7688 = vand.u32 %v4507, 4294901760
    %v7689 = vsub.f32 %v4507, %v7688
    %7690 = vmatmul.f32.gmra.mxu0 %v7689
    %v7691 = vpop.f32.mrf.mxu0
    %v7692 = vadd.f32 %v7409, %v7691
    %v7693 = vand.u32 %v4510, 4294901760
    %v7694 = vsub.f32 %v4510, %v7693
    %7695 = vmatmul.f32.gmra.mxu0 %v7694
    %v7696 = vpop.f32.mrf.mxu0
    %v7697 = vadd.f32 %v7413, %v7696
    %v7698 = vand.u32 %v4513, 4294901760
    %v7699 = vsub.f32 %v4513, %v7698
    %7700 = vmatmul.f32.gmra.mxu0 %v7699
    %v7701 = vpop.f32.mrf.mxu0
    %v7702 = vadd.f32 %v7417, %v7701
    %v7703 = vand.u32 %v4516, 4294901760
    %v7704 = vsub.f32 %v4516, %v7703
    %7705 = vmatmul.f32.gmra.mxu0 %v7704
    %v7706 = vpop.f32.mrf.mxu0
    %v7707 = vadd.f32 %v7421, %v7706
    %v7708 = vand.u32 %v4519, 4294901760
    %v7709 = vsub.f32 %v4519, %v7708
    %7710 = vmatmul.f32.gmra.mxu0 %v7709
    %v7711 = vpop.f32.mrf.mxu0
    %v7712 = vadd.f32 %v7425, %v7711
    %v7713 = vand.u32 %v4522, 4294901760
    %v7714 = vsub.f32 %v4522, %v7713
    %7715 = vmatmul.f32.gmra.mxu0 %v7714
    %v7716 = vpop.f32.mrf.mxu0
    %v7717 = vadd.f32 %v7429, %v7716
    %v7718 = vand.u32 %v4525, 4294901760
    %v7719 = vsub.f32 %v4525, %v7718
    %7720 = vmatmul.f32.gmra.mxu0 %v7719
    %v7721 = vpop.f32.mrf.mxu0
    %v7722 = vadd.f32 %v7433, %v7721
    %v7723 = vand.u32 %v4528, 4294901760
    %v7724 = vsub.f32 %v4528, %v7723
    %7725 = vmatmul.f32.gmra.mxu0 %v7724
    %v7726 = vpop.f32.mrf.mxu0
    %v7727 = vadd.f32 %v7437, %v7726
    %v7728 = vand.u32 %v4531, 4294901760
    %v7729 = vsub.f32 %v4531, %v7728
    %7730 = vmatmul.f32.gmra.mxu0 %v7729
    %v7731 = vpop.f32.mrf.mxu0
    %v7732 = vadd.f32 %v7441, %v7731
    %v7733 = vand.u32 %v4534, 4294901760
    %v7734 = vsub.f32 %v4534, %v7733
    %7735 = vmatmul.f32.gmra.mxu0 %v7734
    %v7736 = vpop.f32.mrf.mxu0
    %v7737 = vadd.f32 %v7445, %v7736
    %v7738 = vand.u32 %v4537, 4294901760
    %v7739 = vsub.f32 %v4537, %v7738
    %7740 = vmatmul.f32.gmra.mxu0 %v7739
    %v7741 = vpop.f32.mrf.mxu0
    %v7742 = vadd.f32 %v7449, %v7741
    %v7743 = vand.u32 %v4540, 4294901760
    %v7744 = vsub.f32 %v4540, %v7743
    %7745 = vmatmul.f32.gmra.mxu0 %v7744
    %v7746 = vpop.f32.mrf.mxu0
    %v7747 = vadd.f32 %v7453, %v7746
    %v7748 = vand.u32 %v4543, 4294901760
    %v7749 = vsub.f32 %v4543, %v7748
    %7750 = vmatmul.f32.gmra.mxu0 %v7749
    %v7751 = vpop.f32.mrf.mxu0
    %v7752 = vadd.f32 %v7457, %v7751
    %v7753 = vand.u32 %v4546, 4294901760
    %v7754 = vsub.f32 %v4546, %v7753
    %7755 = vmatmul.f32.gmra.mxu0 %v7754
    %v7756 = vpop.f32.mrf.mxu0
    %v7757 = vadd.f32 %v7461, %v7756
    %v7758 = vand.u32 %v4549, 4294901760
    %v7759 = vsub.f32 %v4549, %v7758
    %7760 = vmatmul.f32.gmra.mxu0 %v7759
    %v7761 = vpop.f32.mrf.mxu0
    %v7762 = vadd.f32 %v7465, %v7761
    %v7763 = vand.u32 %v4552, 4294901760
    %v7764 = vsub.f32 %v4552, %v7763
    %7765 = vmatmul.f32.gmra.mxu0 %v7764
    %v7766 = vpop.f32.mrf.mxu0
    %v7767 = vadd.f32 %v7469, %v7766
    %v7768 = vand.u32 %v4555, 4294901760
    %v7769 = vsub.f32 %v4555, %v7768
    %7770 = vmatmul.f32.gmra.mxu0 %v7769
    %v7771 = vpop.f32.mrf.mxu0
    %v7772 = vadd.f32 %v7473, %v7771
    %v7773 = vand.u32 %v4558, 4294901760
    %v7774 = vsub.f32 %v4558, %v7773
    %7775 = vmatmul.f32.gmra.mxu0 %v7774
    %v7776 = vpop.f32.mrf.mxu0
    %v7777 = vadd.f32 %v7477, %v7776
    %v7778 = vand.u32 %v4561, 4294901760
    %v7779 = vsub.f32 %v4561, %v7778
    %7780 = vmatmul.f32.gmra.mxu0 %v7779
    %v7781 = vpop.f32.mrf.mxu0
    %v7782 = vadd.f32 %v7481, %v7781
    %v7783 = vand.u32 %v4564, 4294901760
    %v7784 = vsub.f32 %v4564, %v7783
    %7785 = vmatmul.f32.gmra.mxu0 %v7784
    %v7786 = vpop.f32.mrf.mxu0
    %v7787 = vadd.f32 %v7485, %v7786
    %v7788 = vand.u32 %v4567, 4294901760
    %v7789 = vsub.f32 %v4567, %v7788
    %7790 = vmatmul.f32.gmra.mxu0 %v7789
    %v7791 = vpop.f32.mrf.mxu0
    %v7792 = vadd.f32 %v7489, %v7791
    %v7793 = vand.u32 %v4570, 4294901760
    %v7794 = vsub.f32 %v4570, %v7793
    %7795 = vmatmul.f32.gmra.mxu0 %v7794
    %v7796 = vpop.f32.mrf.mxu0
    %v7797 = vadd.f32 %v7493, %v7796
    %v7798 = vand.u32 %v4573, 4294901760
    %v7799 = vsub.f32 %v4573, %v7798
    %7800 = vmatmul.f32.gmra.mxu0 %v7799
    %v7801 = vpop.f32.mrf.mxu0
    %v7802 = vadd.f32 %v7497, %v7801
    %v7803 = vand.u32 %v4576, 4294901760
    %v7804 = vsub.f32 %v4576, %v7803
    %7805 = vmatmul.f32.gmra.mxu0 %v7804
    %v7806 = vpop.f32.mrf.mxu0
    %v7807 = vadd.f32 %v7501, %v7806
    %v7808 = vand.u32 %v4579, 4294901760
    %v7809 = vsub.f32 %v4579, %v7808
    %7810 = vmatmul.f32.gmra.mxu0 %v7809
    %v7811 = vpop.f32.mrf.mxu0
    %v7812 = vadd.f32 %v7505, %v7811
    %v7813 = vand.u32 %v4582, 4294901760
    %v7814 = vsub.f32 %v4582, %v7813
    %7815 = vmatmul.f32.gmra.mxu0 %v7814
    %v7816 = vpop.f32.mrf.mxu0
    %v7817 = vadd.f32 %v7509, %v7816
    %v7818 = vand.u32 %v4585, 4294901760
    %v7819 = vsub.f32 %v4585, %v7818
    %7820 = vmatmul.f32.gmra.mxu0 %v7819
    %v7821 = vpop.f32.mrf.mxu0
    %v7822 = vadd.f32 %v7513, %v7821
    %v7823 = vand.u32 %v4588, 4294901760
    %v7824 = vsub.f32 %v4588, %v7823
    %7825 = vmatmul.f32.gmra.mxu0 %v7824
    %v7826 = vpop.f32.mrf.mxu0
    %v7827 = vadd.f32 %v7517, %v7826
    %v7828 = vand.u32 %v4591, 4294901760
    %v7829 = vsub.f32 %v4591, %v7828
    %7830 = vmatmul.f32.gmra.mxu0 %v7829
    %v7831 = vpop.f32.mrf.mxu0
    %v7832 = vadd.f32 %v7521, %v7831
    %v7833 = vand.u32 %v4594, 4294901760
    %v7834 = vsub.f32 %v4594, %v7833
    %7835 = vmatmul.f32.gmra.mxu0 %v7834
    %v7836 = vpop.f32.mrf.mxu0
    %v7837 = vadd.f32 %v7525, %v7836
    %v7838 = vand.u32 %v4597, 4294901760
    %v7839 = vsub.f32 %v4597, %v7838
    %7840 = vmatmul.f32.gmra.mxu0 %v7839
    %v7841 = vpop.f32.mrf.mxu0
    %v7842 = vadd.f32 %v7529, %v7841
    %v7843 = vand.u32 %v4600, 4294901760
    %v7844 = vsub.f32 %v4600, %v7843
    %7845 = vmatmul.f32.gmra.mxu0 %v7844
    %v7846 = vpop.f32.mrf.mxu0
    %v7847 = vadd.f32 %v7533, %v7846
    %v7848 = vand.u32 %v4603, 4294901760
    %v7849 = vsub.f32 %v4603, %v7848
    %7850 = vmatmul.f32.gmra.mxu0 %v7849
    %v7851 = vpop.f32.mrf.mxu0
    %v7852 = vadd.f32 %v7537, %v7851
    %v7853 = vand.u32 %v4606, 4294901760
    %v7854 = vsub.f32 %v4606, %v7853
    %7855 = vmatmul.f32.gmra.mxu0 %v7854
    %v7856 = vpop.f32.mrf.mxu0
    %v7857 = vadd.f32 %v7541, %v7856
    %v7858 = vand.u32 %v4609, 4294901760
    %v7859 = vsub.f32 %v4609, %v7858
    %7860 = vmatmul.f32.gmra.mxu0 %v7859
    %v7861 = vpop.f32.mrf.mxu0
    %v7862 = vadd.f32 %v7545, %v7861
    %v7863 = vand.u32 %v4612, 4294901760
    %v7864 = vsub.f32 %v4612, %v7863
    %7865 = vmatmul.f32.gmra.mxu0 %v7864
    %v7866 = vpop.f32.mrf.mxu0
    %v7867 = vadd.f32 %v7549, %v7866
    %v7868 = vand.u32 %v4615, 4294901760
    %v7869 = vsub.f32 %v4615, %v7868
    %7870 = vmatmul.f32.gmra.mxu0 %v7869
    %v7871 = vpop.f32.mrf.mxu0
    %v7872 = vadd.f32 %v7553, %v7871
    %v7873 = vand.u32 %v4618, 4294901760
    %v7874 = vsub.f32 %v4618, %v7873
    %7875 = vmatmul.f32.gmra.mxu0 %v7874
    %v7876 = vpop.f32.mrf.mxu0
    %v7877 = vadd.f32 %v7557, %v7876
    %v7878 = vand.u32 %v4621, 4294901760
    %v7879 = vsub.f32 %v4621, %v7878
    %7880 = vmatmul.f32.gmra.mxu0 %v7879
    %v7881 = vpop.f32.mrf.mxu0
    %v7882 = vadd.f32 %v7561, %v7881
    %v7883 = vand.u32 %v4624, 4294901760
    %v7884 = vsub.f32 %v4624, %v7883
    %7885 = vmatmul.f32.gmra.mxu0 %v7884
    %v7886 = vpop.f32.mrf.mxu0
    %v7887 = vadd.f32 %v7565, %v7886
    %v7888 = vand.u32 %v4627, 4294901760
    %v7889 = vsub.f32 %v4627, %v7888
    %7890 = vmatmul.f32.gmra.mxu0 %v7889
    %v7891 = vpop.f32.mrf.mxu0
    %v7892 = vadd.f32 %v7569, %v7891
    %v7893 = vand.u32 %v4630, 4294901760
    %v7894 = vsub.f32 %v4630, %v7893
    %7895 = vmatmul.f32.gmra.mxu0 %v7894
    %v7896 = vpop.f32.mrf.mxu0
    %v7897 = vadd.f32 %v7573, %v7896
    %v7898 = vand.u32 %v4633, 4294901760
    %v7899 = vsub.f32 %v4633, %v7898
    %7900 = vmatmul.f32.gmra.mxu0 %v7899
    %v7901 = vpop.f32.mrf.mxu0
    %v7902 = vadd.f32 %v7577, %v7901
    %v7903 = vand.u32 %v4636, 4294901760
    %v7904 = vsub.f32 %v4636, %v7903
    %7905 = vmatmul.f32.gmra.mxu0 %v7904
    %v7906 = vpop.f32.mrf.mxu0
    %v7907 = vadd.f32 %v7581, %v7906
    %v7908 = vand.u32 %v4639, 4294901760
    %v7909 = vsub.f32 %v4639, %v7908
    %7910 = vmatmul.f32.gmra.mxu0 %v7909
    %v7911 = vpop.f32.mrf.mxu0
    %v7912 = vadd.f32 %v7585, %v7911
    %v7913 = vand.u32 %v4642, 4294901760
    %v7914 = vsub.f32 %v4642, %v7913
    %7915 = vmatmul.f32.gmra.mxu0 %v7914
    %v7916 = vpop.f32.mrf.mxu0
    %v7917 = vadd.f32 %v7589, %v7916
    %v7918 = vand.u32 %v4645, 4294901760
    %v7919 = vsub.f32 %v4645, %v7918
    %7920 = vmatmul.f32.gmra.mxu0 %v7919
    %v7921 = vpop.f32.mrf.mxu0
    %v7922 = vadd.f32 %v7593, %v7921
    %v7923 = vand.u32 %v4648, 4294901760
    %v7924 = vsub.f32 %v4648, %v7923
    %7925 = vmatmul.f32.gmra.mxu0 %v7924
    %v7926 = vpop.f32.mrf.mxu0
    %v7927 = vadd.f32 %v7597, %v7926
    %v7928 = vand.u32 %v4651, 4294901760
    %v7929 = vsub.f32 %v4651, %v7928
    %7930 = vmatmul.f32.gmra.mxu0 %v7929
    %v7931 = vpop.f32.mrf.mxu0
    %v7932 = vadd.f32 %v7601, %v7931
    %v7933 = vand.u32 %v4654, 4294901760
    %v7934 = vsub.f32 %v4654, %v7933
    %7935 = vmatmul.f32.gmra.mxu0 %v7934
    %v7936 = vpop.f32.mrf.mxu0
    %v7937 = vadd.f32 %v7605, %v7936
    %v7938 = vand.u32 %v4657, 4294901760
    %v7939 = vsub.f32 %v4657, %v7938
    %7940 = vmatmul.f32.gmra.mxu0 %v7939
    %v7941 = vpop.f32.mrf.mxu0
    %v7942 = vadd.f32 %v7609, %v7941
    %v7943 = vand.u32 %v4660, 4294901760
    %v7944 = vsub.f32 %v4660, %v7943
    %7945 = vmatmul.f32.gmra.mxu0 %v7944
    %v7946 = vpop.f32.mrf.mxu0
    %v7947 = vadd.f32 %v7613, %v7946
    %v7948 = vand.u32 %v4663, 4294901760
    %v7949 = vsub.f32 %v4663, %v7948
    %7950 = vmatmul.f32.gmra.mxu0 %v7949
    %v7951 = vpop.f32.mrf.mxu0
    %v7952 = vadd.f32 %v7617, %v7951
    %v7953 = vand.u32 %v4666, 4294901760
    %v7954 = vsub.f32 %v4666, %v7953
    %7955 = vmatmul.f32.gmra.mxu0 %v7954
    %v7956 = vpop.f32.mrf.mxu0
    %v7957 = vadd.f32 %v7621, %v7956
    %v7958 = vand.u32 %v4669, 4294901760
    %v7959 = vsub.f32 %v4669, %v7958
    %7960 = vmatmul.f32.gmra.mxu0 %v7959
    %v7961 = vpop.f32.mrf.mxu0
    %v7962 = vadd.f32 %v7625, %v7961
    %v7963 = vand.u32 %v4672, 4294901760
    %v7964 = vsub.f32 %v4672, %v7963
    %7965 = vmatmul.f32.gmra.mxu0 %v7964
    %v7966 = vpop.f32.mrf.mxu0
    %v7967 = vadd.f32 %v7629, %v7966
    %v7968 = vand.u32 %v4675, 4294901760
    %v7969 = vsub.f32 %v4675, %v7968
    %7970 = vmatmul.f32.gmra.mxu0 %v7969
    %v7971 = vpop.f32.mrf.mxu0
    %v7972 = vadd.f32 %v7633, %v7971
    %v7973 = vand.u32 %v4678, 4294901760
    %v7974 = vsub.f32 %v4678, %v7973
    %7975 = vmatmul.f32.gmra.mxu0 %v7974
    %v7976 = vpop.f32.mrf.mxu0
    %v7977 = vadd.f32 %v7637, %v7976
    %v7978 = vand.u32 %v4681, 4294901760
    %v7979 = vsub.f32 %v4681, %v7978
    %7980 = vmatmul.f32.gmra.mxu0 %v7979
    %v7981 = vpop.f32.mrf.mxu0
    %v7982 = vadd.f32 %v7641, %v7981
    %v7983 = vand.u32 %v4684, 4294901760
    %v7984 = vsub.f32 %v4684, %v7983
    %7985 = vmatmul.f32.gmra.mxu0 %v7984
    %v7986 = vpop.f32.mrf.mxu0
    %v7987 = vadd.f32 %v7645, %v7986
    %v7988 = vand.u32 %v4687, 4294901760
    %v7989 = vsub.f32 %v4687, %v7988
    %7990 = vmatmul.f32.gmra.mxu0 %v7989
    %v7991 = vpop.f32.mrf.mxu0
    %v7992 = vadd.f32 %v7649, %v7991
    %v7993 = vand.u32 %v4690, 4294901760
    %v7994 = vsub.f32 %v4690, %v7993
    %7995 = vmatmul.f32.gmra.mxu0 %v7994
    %v7996 = vpop.f32.mrf.mxu0
    %v7997 = vadd.f32 %v7653, %v7996
    %v7998 = vand.u32 %v4693, 4294901760
    %v7999 = vsub.f32 %v4693, %v7998
    %8000 = vmatmul.f32.gmra.mxu0 %v7999
    %v8001 = vpop.f32.mrf.mxu0
    %v8002 = vadd.f32 %v7657, %v8001
    %8003 = vdwg.mxu0
    %8004 = vmatpush.msra.mxu0 0.0
    %8005 = vmatpush.msra.mxu0 0.0
    %8006 = vmatpush.msra.mxu0 0.0
    %8007 = vmatpush.msra.mxu0 0.0
    %8008 = vmatpush.msra.mxu0 0.0
    %8009 = vmatpush.msra.mxu0 0.0
    %8010 = vmatpush.msra.mxu0 0.0
    %8011 = vmatpush.msra.mxu0 0.0
    %8012 = vmatpush.msra.mxu0 0.0
    %8013 = vmatpush.msra.mxu0 0.0
    %8014 = vmatpush.msra.mxu0 0.0
    %8015 = vmatpush.msra.mxu0 0.0
    %v8016 = vand.u32 %v4425, 4294901760
    %8017 = vmatpush.msra.mxu0 %v8016
    %v8018 = vand.u32 %v4423, 4294901760
    %8019 = vmatpush.msra.mxu0 %v8018
    %v8020 = vand.u32 %v4421, 4294901760
    %8021 = vmatpush.msra.mxu0 %v8020
    %v8022 = vand.u32 %v4419, 4294901760
    %8023 = vmatpush.msra.mxu0 %v8022
    %v8024 = vand.u32 %v4504, 4294901760
    %v8025 = vsub.f32 %v4504, %v8024
    %v8026 = vand.u32 %v8025, 4294901760
    %8027 = vmatmul.f32.gmra.mxu0 %v8026
    %v8028 = vpop.f32.mrf.mxu0
    %v8029 = vadd.f32 %v7687, %v8028
    %v8030 = vand.u32 %v4507, 4294901760
    %v8031 = vsub.f32 %v4507, %v8030
    %v8032 = vand.u32 %v8031, 4294901760
    %8033 = vmatmul.f32.gmra.mxu0 %v8032
    %v8034 = vpop.f32.mrf.mxu0
    %v8035 = vadd.f32 %v7692, %v8034
    %v8036 = vand.u32 %v4510, 4294901760
    %v8037 = vsub.f32 %v4510, %v8036
    %v8038 = vand.u32 %v8037, 4294901760
    %8039 = vmatmul.f32.gmra.mxu0 %v8038
    %v8040 = vpop.f32.mrf.mxu0
    %v8041 = vadd.f32 %v7697, %v8040
    %v8042 = vand.u32 %v4513, 4294901760
    %v8043 = vsub.f32 %v4513, %v8042
    %v8044 = vand.u32 %v8043, 4294901760
    %8045 = vmatmul.f32.gmra.mxu0 %v8044
    %v8046 = vpop.f32.mrf.mxu0
    %v8047 = vadd.f32 %v7702, %v8046
    %v8048 = vand.u32 %v4516, 4294901760
    %v8049 = vsub.f32 %v4516, %v8048
    %v8050 = vand.u32 %v8049, 4294901760
    %8051 = vmatmul.f32.gmra.mxu0 %v8050
    %v8052 = vpop.f32.mrf.mxu0
    %v8053 = vadd.f32 %v7707, %v8052
    %v8054 = vand.u32 %v4519, 4294901760
    %v8055 = vsub.f32 %v4519, %v8054
    %v8056 = vand.u32 %v8055, 4294901760
    %8057 = vmatmul.f32.gmra.mxu0 %v8056
    %v8058 = vpop.f32.mrf.mxu0
    %v8059 = vadd.f32 %v7712, %v8058
    %v8060 = vand.u32 %v4522, 4294901760
    %v8061 = vsub.f32 %v4522, %v8060
    %v8062 = vand.u32 %v8061, 4294901760
    %8063 = vmatmul.f32.gmra.mxu0 %v8062
    %v8064 = vpop.f32.mrf.mxu0
    %v8065 = vadd.f32 %v7717, %v8064
    %v8066 = vand.u32 %v4525, 4294901760
    %v8067 = vsub.f32 %v4525, %v8066
    %v8068 = vand.u32 %v8067, 4294901760
    %8069 = vmatmul.f32.gmra.mxu0 %v8068
    %v8070 = vpop.f32.mrf.mxu0
    %v8071 = vadd.f32 %v7722, %v8070
    %v8072 = vand.u32 %v4528, 4294901760
    %v8073 = vsub.f32 %v4528, %v8072
    %v8074 = vand.u32 %v8073, 4294901760
    %8075 = vmatmul.f32.gmra.mxu0 %v8074
    %v8076 = vpop.f32.mrf.mxu0
    %v8077 = vadd.f32 %v7727, %v8076
    %v8078 = vand.u32 %v4531, 4294901760
    %v8079 = vsub.f32 %v4531, %v8078
    %v8080 = vand.u32 %v8079, 4294901760
    %8081 = vmatmul.f32.gmra.mxu0 %v8080
    %v8082 = vpop.f32.mrf.mxu0
    %v8083 = vadd.f32 %v7732, %v8082
    %v8084 = vand.u32 %v4534, 4294901760
    %v8085 = vsub.f32 %v4534, %v8084
    %v8086 = vand.u32 %v8085, 4294901760
    %8087 = vmatmul.f32.gmra.mxu0 %v8086
    %v8088 = vpop.f32.mrf.mxu0
    %v8089 = vadd.f32 %v7737, %v8088
    %v8090 = vand.u32 %v4537, 4294901760
    %v8091 = vsub.f32 %v4537, %v8090
    %v8092 = vand.u32 %v8091, 4294901760
    %8093 = vmatmul.f32.gmra.mxu0 %v8092
    %v8094 = vpop.f32.mrf.mxu0
    %v8095 = vadd.f32 %v7742, %v8094
    %v8096 = vand.u32 %v4540, 4294901760
    %v8097 = vsub.f32 %v4540, %v8096
    %v8098 = vand.u32 %v8097, 4294901760
    %8099 = vmatmul.f32.gmra.mxu0 %v8098
    %v8100 = vpop.f32.mrf.mxu0
    %v8101 = vadd.f32 %v7747, %v8100
    %v8102 = vand.u32 %v4543, 4294901760
    %v8103 = vsub.f32 %v4543, %v8102
    %v8104 = vand.u32 %v8103, 4294901760
    %8105 = vmatmul.f32.gmra.mxu0 %v8104
    %v8106 = vpop.f32.mrf.mxu0
    %v8107 = vadd.f32 %v7752, %v8106
    %v8108 = vand.u32 %v4546, 4294901760
    %v8109 = vsub.f32 %v4546, %v8108
    %v8110 = vand.u32 %v8109, 4294901760
    %8111 = vmatmul.f32.gmra.mxu0 %v8110
    %v8112 = vpop.f32.mrf.mxu0
    %v8113 = vadd.f32 %v7757, %v8112
    %v8114 = vand.u32 %v4549, 4294901760
    %v8115 = vsub.f32 %v4549, %v8114
    %v8116 = vand.u32 %v8115, 4294901760
    %8117 = vmatmul.f32.gmra.mxu0 %v8116
    %v8118 = vpop.f32.mrf.mxu0
    %v8119 = vadd.f32 %v7762, %v8118
    %v8120 = vand.u32 %v4552, 4294901760
    %v8121 = vsub.f32 %v4552, %v8120
    %v8122 = vand.u32 %v8121, 4294901760
    %8123 = vmatmul.f32.gmra.mxu0 %v8122
    %v8124 = vpop.f32.mrf.mxu0
    %v8125 = vadd.f32 %v7767, %v8124
    %v8126 = vand.u32 %v4555, 4294901760
    %v8127 = vsub.f32 %v4555, %v8126
    %v8128 = vand.u32 %v8127, 4294901760
    %8129 = vmatmul.f32.gmra.mxu0 %v8128
    %v8130 = vpop.f32.mrf.mxu0
    %v8131 = vadd.f32 %v7772, %v8130
    %v8132 = vand.u32 %v4558, 4294901760
    %v8133 = vsub.f32 %v4558, %v8132
    %v8134 = vand.u32 %v8133, 4294901760
    %8135 = vmatmul.f32.gmra.mxu0 %v8134
    %v8136 = vpop.f32.mrf.mxu0
    %v8137 = vadd.f32 %v7777, %v8136
    %v8138 = vand.u32 %v4561, 4294901760
    %v8139 = vsub.f32 %v4561, %v8138
    %v8140 = vand.u32 %v8139, 4294901760
    %8141 = vmatmul.f32.gmra.mxu0 %v8140
    %v8142 = vpop.f32.mrf.mxu0
    %v8143 = vadd.f32 %v7782, %v8142
    %v8144 = vand.u32 %v4564, 4294901760
    %v8145 = vsub.f32 %v4564, %v8144
    %v8146 = vand.u32 %v8145, 4294901760
    %8147 = vmatmul.f32.gmra.mxu0 %v8146
    %v8148 = vpop.f32.mrf.mxu0
    %v8149 = vadd.f32 %v7787, %v8148
    %v8150 = vand.u32 %v4567, 4294901760
    %v8151 = vsub.f32 %v4567, %v8150
    %v8152 = vand.u32 %v8151, 4294901760
    %8153 = vmatmul.f32.gmra.mxu0 %v8152
    %v8154 = vpop.f32.mrf.mxu0
    %v8155 = vadd.f32 %v7792, %v8154
    %v8156 = vand.u32 %v4570, 4294901760
    %v8157 = vsub.f32 %v4570, %v8156
    %v8158 = vand.u32 %v8157, 4294901760
    %8159 = vmatmul.f32.gmra.mxu0 %v8158
    %v8160 = vpop.f32.mrf.mxu0
    %v8161 = vadd.f32 %v7797, %v8160
    %v8162 = vand.u32 %v4573, 4294901760
    %v8163 = vsub.f32 %v4573, %v8162
    %v8164 = vand.u32 %v8163, 4294901760
    %8165 = vmatmul.f32.gmra.mxu0 %v8164
    %v8166 = vpop.f32.mrf.mxu0
    %v8167 = vadd.f32 %v7802, %v8166
    %v8168 = vand.u32 %v4576, 4294901760
    %v8169 = vsub.f32 %v4576, %v8168
    %v8170 = vand.u32 %v8169, 4294901760
    %8171 = vmatmul.f32.gmra.mxu0 %v8170
    %v8172 = vpop.f32.mrf.mxu0
    %v8173 = vadd.f32 %v7807, %v8172
    %v8174 = vand.u32 %v4579, 4294901760
    %v8175 = vsub.f32 %v4579, %v8174
    %v8176 = vand.u32 %v8175, 4294901760
    %8177 = vmatmul.f32.gmra.mxu0 %v8176
    %v8178 = vpop.f32.mrf.mxu0
    %v8179 = vadd.f32 %v7812, %v8178
    %v8180 = vand.u32 %v4582, 4294901760
    %v8181 = vsub.f32 %v4582, %v8180
    %v8182 = vand.u32 %v8181, 4294901760
    %8183 = vmatmul.f32.gmra.mxu0 %v8182
    %v8184 = vpop.f32.mrf.mxu0
    %v8185 = vadd.f32 %v7817, %v8184
    %v8186 = vand.u32 %v4585, 4294901760
    %v8187 = vsub.f32 %v4585, %v8186
    %v8188 = vand.u32 %v8187, 4294901760
    %8189 = vmatmul.f32.gmra.mxu0 %v8188
    %v8190 = vpop.f32.mrf.mxu0
    %v8191 = vadd.f32 %v7822, %v8190
    %v8192 = vand.u32 %v4588, 4294901760
    %v8193 = vsub.f32 %v4588, %v8192
    %v8194 = vand.u32 %v8193, 4294901760
    %8195 = vmatmul.f32.gmra.mxu0 %v8194
    %v8196 = vpop.f32.mrf.mxu0
    %v8197 = vadd.f32 %v7827, %v8196
    %v8198 = vand.u32 %v4591, 4294901760
    %v8199 = vsub.f32 %v4591, %v8198
    %v8200 = vand.u32 %v8199, 4294901760
    %8201 = vmatmul.f32.gmra.mxu0 %v8200
    %v8202 = vpop.f32.mrf.mxu0
    %v8203 = vadd.f32 %v7832, %v8202
    %v8204 = vand.u32 %v4594, 4294901760
    %v8205 = vsub.f32 %v4594, %v8204
    %v8206 = vand.u32 %v8205, 4294901760
    %8207 = vmatmul.f32.gmra.mxu0 %v8206
    %v8208 = vpop.f32.mrf.mxu0
    %v8209 = vadd.f32 %v7837, %v8208
    %v8210 = vand.u32 %v4597, 4294901760
    %v8211 = vsub.f32 %v4597, %v8210
    %v8212 = vand.u32 %v8211, 4294901760
    %8213 = vmatmul.f32.gmra.mxu0 %v8212
    %v8214 = vpop.f32.mrf.mxu0
    %v8215 = vadd.f32 %v7842, %v8214
    %v8216 = vand.u32 %v4600, 4294901760
    %v8217 = vsub.f32 %v4600, %v8216
    %v8218 = vand.u32 %v8217, 4294901760
    %8219 = vmatmul.f32.gmra.mxu0 %v8218
    %v8220 = vpop.f32.mrf.mxu0
    %v8221 = vadd.f32 %v7847, %v8220
    %v8222 = vand.u32 %v4603, 4294901760
    %v8223 = vsub.f32 %v4603, %v8222
    %v8224 = vand.u32 %v8223, 4294901760
    %8225 = vmatmul.f32.gmra.mxu0 %v8224
    %v8226 = vpop.f32.mrf.mxu0
    %v8227 = vadd.f32 %v7852, %v8226
    %v8228 = vand.u32 %v4606, 4294901760
    %v8229 = vsub.f32 %v4606, %v8228
    %v8230 = vand.u32 %v8229, 4294901760
    %8231 = vmatmul.f32.gmra.mxu0 %v8230
    %v8232 = vpop.f32.mrf.mxu0
    %v8233 = vadd.f32 %v7857, %v8232
    %v8234 = vand.u32 %v4609, 4294901760
    %v8235 = vsub.f32 %v4609, %v8234
    %v8236 = vand.u32 %v8235, 4294901760
    %8237 = vmatmul.f32.gmra.mxu0 %v8236
    %v8238 = vpop.f32.mrf.mxu0
    %v8239 = vadd.f32 %v7862, %v8238
    %v8240 = vand.u32 %v4612, 4294901760
    %v8241 = vsub.f32 %v4612, %v8240
    %v8242 = vand.u32 %v8241, 4294901760
    %8243 = vmatmul.f32.gmra.mxu0 %v8242
    %v8244 = vpop.f32.mrf.mxu0
    %v8245 = vadd.f32 %v7867, %v8244
    %v8246 = vand.u32 %v4615, 4294901760
    %v8247 = vsub.f32 %v4615, %v8246
    %v8248 = vand.u32 %v8247, 4294901760
    %8249 = vmatmul.f32.gmra.mxu0 %v8248
    %v8250 = vpop.f32.mrf.mxu0
    %v8251 = vadd.f32 %v7872, %v8250
    %v8252 = vand.u32 %v4618, 4294901760
    %v8253 = vsub.f32 %v4618, %v8252
    %v8254 = vand.u32 %v8253, 4294901760
    %8255 = vmatmul.f32.gmra.mxu0 %v8254
    %v8256 = vpop.f32.mrf.mxu0
    %v8257 = vadd.f32 %v7877, %v8256
    %v8258 = vand.u32 %v4621, 4294901760
    %v8259 = vsub.f32 %v4621, %v8258
    %v8260 = vand.u32 %v8259, 4294901760
    %8261 = vmatmul.f32.gmra.mxu0 %v8260
    %v8262 = vpop.f32.mrf.mxu0
    %v8263 = vadd.f32 %v7882, %v8262
    %v8264 = vand.u32 %v4624, 4294901760
    %v8265 = vsub.f32 %v4624, %v8264
    %v8266 = vand.u32 %v8265, 4294901760
    %8267 = vmatmul.f32.gmra.mxu0 %v8266
    %v8268 = vpop.f32.mrf.mxu0
    %v8269 = vadd.f32 %v7887, %v8268
    %v8270 = vand.u32 %v4627, 4294901760
    %v8271 = vsub.f32 %v4627, %v8270
    %v8272 = vand.u32 %v8271, 4294901760
    %8273 = vmatmul.f32.gmra.mxu0 %v8272
    %v8274 = vpop.f32.mrf.mxu0
    %v8275 = vadd.f32 %v7892, %v8274
    %v8276 = vand.u32 %v4630, 4294901760
    %v8277 = vsub.f32 %v4630, %v8276
    %v8278 = vand.u32 %v8277, 4294901760
    %8279 = vmatmul.f32.gmra.mxu0 %v8278
    %v8280 = vpop.f32.mrf.mxu0
    %v8281 = vadd.f32 %v7897, %v8280
    %v8282 = vand.u32 %v4633, 4294901760
    %v8283 = vsub.f32 %v4633, %v8282
    %v8284 = vand.u32 %v8283, 4294901760
    %8285 = vmatmul.f32.gmra.mxu0 %v8284
    %v8286 = vpop.f32.mrf.mxu0
    %v8287 = vadd.f32 %v7902, %v8286
    %v8288 = vand.u32 %v4636, 4294901760
    %v8289 = vsub.f32 %v4636, %v8288
    %v8290 = vand.u32 %v8289, 4294901760
    %8291 = vmatmul.f32.gmra.mxu0 %v8290
    %v8292 = vpop.f32.mrf.mxu0
    %v8293 = vadd.f32 %v7907, %v8292
    %v8294 = vand.u32 %v4639, 4294901760
    %v8295 = vsub.f32 %v4639, %v8294
    %v8296 = vand.u32 %v8295, 4294901760
    %8297 = vmatmul.f32.gmra.mxu0 %v8296
    %v8298 = vpop.f32.mrf.mxu0
    %v8299 = vadd.f32 %v7912, %v8298
    %v8300 = vand.u32 %v4642, 4294901760
    %v8301 = vsub.f32 %v4642, %v8300
    %v8302 = vand.u32 %v8301, 4294901760
    %8303 = vmatmul.f32.gmra.mxu0 %v8302
    %v8304 = vpop.f32.mrf.mxu0
    %v8305 = vadd.f32 %v7917, %v8304
    %v8306 = vand.u32 %v4645, 4294901760
    %v8307 = vsub.f32 %v4645, %v8306
    %v8308 = vand.u32 %v8307, 4294901760
    %8309 = vmatmul.f32.gmra.mxu0 %v8308
    %v8310 = vpop.f32.mrf.mxu0
    %v8311 = vadd.f32 %v7922, %v8310
    %v8312 = vand.u32 %v4648, 4294901760
    %v8313 = vsub.f32 %v4648, %v8312
    %v8314 = vand.u32 %v8313, 4294901760
    %8315 = vmatmul.f32.gmra.mxu0 %v8314
    %v8316 = vpop.f32.mrf.mxu0
    %v8317 = vadd.f32 %v7927, %v8316
    %v8318 = vand.u32 %v4651, 4294901760
    %v8319 = vsub.f32 %v4651, %v8318
    %v8320 = vand.u32 %v8319, 4294901760
    %8321 = vmatmul.f32.gmra.mxu0 %v8320
    %v8322 = vpop.f32.mrf.mxu0
    %v8323 = vadd.f32 %v7932, %v8322
    %v8324 = vand.u32 %v4654, 4294901760
    %v8325 = vsub.f32 %v4654, %v8324
    %v8326 = vand.u32 %v8325, 4294901760
    %8327 = vmatmul.f32.gmra.mxu0 %v8326
    %v8328 = vpop.f32.mrf.mxu0
    %v8329 = vadd.f32 %v7937, %v8328
    %v8330 = vand.u32 %v4657, 4294901760
    %v8331 = vsub.f32 %v4657, %v8330
    %v8332 = vand.u32 %v8331, 4294901760
    %8333 = vmatmul.f32.gmra.mxu0 %v8332
    %v8334 = vpop.f32.mrf.mxu0
    %v8335 = vadd.f32 %v7942, %v8334
    %v8336 = vand.u32 %v4660, 4294901760
    %v8337 = vsub.f32 %v4660, %v8336
    %v8338 = vand.u32 %v8337, 4294901760
    %8339 = vmatmul.f32.gmra.mxu0 %v8338
    %v8340 = vpop.f32.mrf.mxu0
    %v8341 = vadd.f32 %v7947, %v8340
    %v8342 = vand.u32 %v4663, 4294901760
    %v8343 = vsub.f32 %v4663, %v8342
    %v8344 = vand.u32 %v8343, 4294901760
    %8345 = vmatmul.f32.gmra.mxu0 %v8344
    %v8346 = vpop.f32.mrf.mxu0
    %v8347 = vadd.f32 %v7952, %v8346
    %v8348 = vand.u32 %v4666, 4294901760
    %v8349 = vsub.f32 %v4666, %v8348
    %v8350 = vand.u32 %v8349, 4294901760
    %8351 = vmatmul.f32.gmra.mxu0 %v8350
    %v8352 = vpop.f32.mrf.mxu0
    %v8353 = vadd.f32 %v7957, %v8352
    %v8354 = vand.u32 %v4669, 4294901760
    %v8355 = vsub.f32 %v4669, %v8354
    %v8356 = vand.u32 %v8355, 4294901760
    %8357 = vmatmul.f32.gmra.mxu0 %v8356
    %v8358 = vpop.f32.mrf.mxu0
    %v8359 = vadd.f32 %v7962, %v8358
    %v8360 = vand.u32 %v4672, 4294901760
    %v8361 = vsub.f32 %v4672, %v8360
    %v8362 = vand.u32 %v8361, 4294901760
    %8363 = vmatmul.f32.gmra.mxu0 %v8362
    %v8364 = vpop.f32.mrf.mxu0
    %v8365 = vadd.f32 %v7967, %v8364
    %v8366 = vand.u32 %v4675, 4294901760
    %v8367 = vsub.f32 %v4675, %v8366
    %v8368 = vand.u32 %v8367, 4294901760
    %8369 = vmatmul.f32.gmra.mxu0 %v8368
    %v8370 = vpop.f32.mrf.mxu0
    %v8371 = vadd.f32 %v7972, %v8370
    %v8372 = vand.u32 %v4678, 4294901760
    %v8373 = vsub.f32 %v4678, %v8372
    %v8374 = vand.u32 %v8373, 4294901760
    %8375 = vmatmul.f32.gmra.mxu0 %v8374
    %v8376 = vpop.f32.mrf.mxu0
    %v8377 = vadd.f32 %v7977, %v8376
    %v8378 = vand.u32 %v4681, 4294901760
    %v8379 = vsub.f32 %v4681, %v8378
    %v8380 = vand.u32 %v8379, 4294901760
    %8381 = vmatmul.f32.gmra.mxu0 %v8380
    %v8382 = vpop.f32.mrf.mxu0
    %v8383 = vadd.f32 %v7982, %v8382
    %v8384 = vand.u32 %v4684, 4294901760
    %v8385 = vsub.f32 %v4684, %v8384
    %v8386 = vand.u32 %v8385, 4294901760
    %8387 = vmatmul.f32.gmra.mxu0 %v8386
    %v8388 = vpop.f32.mrf.mxu0
    %v8389 = vadd.f32 %v7987, %v8388
    %v8390 = vand.u32 %v4687, 4294901760
    %v8391 = vsub.f32 %v4687, %v8390
    %v8392 = vand.u32 %v8391, 4294901760
    %8393 = vmatmul.f32.gmra.mxu0 %v8392
    %v8394 = vpop.f32.mrf.mxu0
    %v8395 = vadd.f32 %v7992, %v8394
    %v8396 = vand.u32 %v4690, 4294901760
    %v8397 = vsub.f32 %v4690, %v8396
    %v8398 = vand.u32 %v8397, 4294901760
    %8399 = vmatmul.f32.gmra.mxu0 %v8398
    %v8400 = vpop.f32.mrf.mxu0
    %v8401 = vadd.f32 %v7997, %v8400
    %v8402 = vand.u32 %v4693, 4294901760
    %v8403 = vsub.f32 %v4693, %v8402
    %v8404 = vand.u32 %v8403, 4294901760
    %8405 = vmatmul.f32.gmra.mxu0 %v8404
    %v8406 = vpop.f32.mrf.mxu0
    %v8407 = vadd.f32 %v8002, %v8406
    %8408 = vdwg.mxu0
    %8409 = vmatpush.msra.mxu0 0.0
    %8410 = vmatpush.msra.mxu0 0.0
    %8411 = vmatpush.msra.mxu0 0.0
    %8412 = vmatpush.msra.mxu0 0.0
    %8413 = vmatpush.msra.mxu0 0.0
    %8414 = vmatpush.msra.mxu0 0.0
    %8415 = vmatpush.msra.mxu0 0.0
    %8416 = vmatpush.msra.mxu0 0.0
    %8417 = vmatpush.msra.mxu0 0.0
    %8418 = vmatpush.msra.mxu0 0.0
    %8419 = vmatpush.msra.mxu0 0.0
    %8420 = vmatpush.msra.mxu0 0.0
    %v8421 = vand.u32 %v4425, 4294901760
    %v8422 = vsub.f32 %v4425, %v8421
    %v8423 = vand.u32 %v8422, 4294901760
    %8424 = vmatpush.msra.mxu0 %v8423
    %v8425 = vand.u32 %v4423, 4294901760
    %v8426 = vsub.f32 %v4423, %v8425
    %v8427 = vand.u32 %v8426, 4294901760
    %8428 = vmatpush.msra.mxu0 %v8427
    %v8429 = vand.u32 %v4421, 4294901760
    %v8430 = vsub.f32 %v4421, %v8429
    %v8431 = vand.u32 %v8430, 4294901760
    %8432 = vmatpush.msra.mxu0 %v8431
    %v8433 = vand.u32 %v4419, 4294901760
    %v8434 = vsub.f32 %v4419, %v8433
    %v8435 = vand.u32 %v8434, 4294901760
    %8436 = vmatpush.msra.mxu0 %v8435
    %v8437 = vand.u32 %v4504, 4294901760
    %8438 = vmatmul.f32.gmra.mxu0 %v8437
    %v8439 = vpop.f32.mrf.mxu0
    %v8440 = vadd.f32 %v8029, %v8439
    %v8441 = vand.u32 %v4507, 4294901760
    %8442 = vmatmul.f32.gmra.mxu0 %v8441
    %v8443 = vpop.f32.mrf.mxu0
    %v8444 = vadd.f32 %v8035, %v8443
    %v8445 = vand.u32 %v4510, 4294901760
    %8446 = vmatmul.f32.gmra.mxu0 %v8445
    %v8447 = vpop.f32.mrf.mxu0
    %v8448 = vadd.f32 %v8041, %v8447
    %v8449 = vand.u32 %v4513, 4294901760
    %8450 = vmatmul.f32.gmra.mxu0 %v8449
    %v8451 = vpop.f32.mrf.mxu0
    %v8452 = vadd.f32 %v8047, %v8451
    %v8453 = vand.u32 %v4516, 4294901760
    %8454 = vmatmul.f32.gmra.mxu0 %v8453
    %v8455 = vpop.f32.mrf.mxu0
    %v8456 = vadd.f32 %v8053, %v8455
    %v8457 = vand.u32 %v4519, 4294901760
    %8458 = vmatmul.f32.gmra.mxu0 %v8457
    %v8459 = vpop.f32.mrf.mxu0
    %v8460 = vadd.f32 %v8059, %v8459
    %v8461 = vand.u32 %v4522, 4294901760
    %8462 = vmatmul.f32.gmra.mxu0 %v8461
    %v8463 = vpop.f32.mrf.mxu0
    %v8464 = vadd.f32 %v8065, %v8463
    %v8465 = vand.u32 %v4525, 4294901760
    %8466 = vmatmul.f32.gmra.mxu0 %v8465
    %v8467 = vpop.f32.mrf.mxu0
    %v8468 = vadd.f32 %v8071, %v8467
    %v8469 = vand.u32 %v4528, 4294901760
    %8470 = vmatmul.f32.gmra.mxu0 %v8469
    %v8471 = vpop.f32.mrf.mxu0
    %v8472 = vadd.f32 %v8077, %v8471
    %v8473 = vand.u32 %v4531, 4294901760
    %8474 = vmatmul.f32.gmra.mxu0 %v8473
    %v8475 = vpop.f32.mrf.mxu0
    %v8476 = vadd.f32 %v8083, %v8475
    %v8477 = vand.u32 %v4534, 4294901760
    %8478 = vmatmul.f32.gmra.mxu0 %v8477
    %v8479 = vpop.f32.mrf.mxu0
    %v8480 = vadd.f32 %v8089, %v8479
    %v8481 = vand.u32 %v4537, 4294901760
    %8482 = vmatmul.f32.gmra.mxu0 %v8481
    %v8483 = vpop.f32.mrf.mxu0
    %v8484 = vadd.f32 %v8095, %v8483
    %v8485 = vand.u32 %v4540, 4294901760
    %8486 = vmatmul.f32.gmra.mxu0 %v8485
    %v8487 = vpop.f32.mrf.mxu0
    %v8488 = vadd.f32 %v8101, %v8487
    %v8489 = vand.u32 %v4543, 4294901760
    %8490 = vmatmul.f32.gmra.mxu0 %v8489
    %v8491 = vpop.f32.mrf.mxu0
    %v8492 = vadd.f32 %v8107, %v8491
    %v8493 = vand.u32 %v4546, 4294901760
    %8494 = vmatmul.f32.gmra.mxu0 %v8493
    %v8495 = vpop.f32.mrf.mxu0
    %v8496 = vadd.f32 %v8113, %v8495
    %v8497 = vand.u32 %v4549, 4294901760
    %8498 = vmatmul.f32.gmra.mxu0 %v8497
    %v8499 = vpop.f32.mrf.mxu0
    %v8500 = vadd.f32 %v8119, %v8499
    %v8501 = vand.u32 %v4552, 4294901760
    %8502 = vmatmul.f32.gmra.mxu0 %v8501
    %v8503 = vpop.f32.mrf.mxu0
    %v8504 = vadd.f32 %v8125, %v8503
    %v8505 = vand.u32 %v4555, 4294901760
    %8506 = vmatmul.f32.gmra.mxu0 %v8505
    %v8507 = vpop.f32.mrf.mxu0
    %v8508 = vadd.f32 %v8131, %v8507
    %v8509 = vand.u32 %v4558, 4294901760
    %8510 = vmatmul.f32.gmra.mxu0 %v8509
    %v8511 = vpop.f32.mrf.mxu0
    %v8512 = vadd.f32 %v8137, %v8511
    %v8513 = vand.u32 %v4561, 4294901760
    %8514 = vmatmul.f32.gmra.mxu0 %v8513
    %v8515 = vpop.f32.mrf.mxu0
    %v8516 = vadd.f32 %v8143, %v8515
    %v8517 = vand.u32 %v4564, 4294901760
    %8518 = vmatmul.f32.gmra.mxu0 %v8517
    %v8519 = vpop.f32.mrf.mxu0
    %v8520 = vadd.f32 %v8149, %v8519
    %v8521 = vand.u32 %v4567, 4294901760
    %8522 = vmatmul.f32.gmra.mxu0 %v8521
    %v8523 = vpop.f32.mrf.mxu0
    %v8524 = vadd.f32 %v8155, %v8523
    %v8525 = vand.u32 %v4570, 4294901760
    %8526 = vmatmul.f32.gmra.mxu0 %v8525
    %v8527 = vpop.f32.mrf.mxu0
    %v8528 = vadd.f32 %v8161, %v8527
    %v8529 = vand.u32 %v4573, 4294901760
    %8530 = vmatmul.f32.gmra.mxu0 %v8529
    %v8531 = vpop.f32.mrf.mxu0
    %v8532 = vadd.f32 %v8167, %v8531
    %v8533 = vand.u32 %v4576, 4294901760
    %8534 = vmatmul.f32.gmra.mxu0 %v8533
    %v8535 = vpop.f32.mrf.mxu0
    %v8536 = vadd.f32 %v8173, %v8535
    %v8537 = vand.u32 %v4579, 4294901760
    %8538 = vmatmul.f32.gmra.mxu0 %v8537
    %v8539 = vpop.f32.mrf.mxu0
    %v8540 = vadd.f32 %v8179, %v8539
    %v8541 = vand.u32 %v4582, 4294901760
    %8542 = vmatmul.f32.gmra.mxu0 %v8541
    %v8543 = vpop.f32.mrf.mxu0
    %v8544 = vadd.f32 %v8185, %v8543
    %v8545 = vand.u32 %v4585, 4294901760
    %8546 = vmatmul.f32.gmra.mxu0 %v8545
    %v8547 = vpop.f32.mrf.mxu0
    %v8548 = vadd.f32 %v8191, %v8547
    %v8549 = vand.u32 %v4588, 4294901760
    %8550 = vmatmul.f32.gmra.mxu0 %v8549
    %v8551 = vpop.f32.mrf.mxu0
    %v8552 = vadd.f32 %v8197, %v8551
    %v8553 = vand.u32 %v4591, 4294901760
    %8554 = vmatmul.f32.gmra.mxu0 %v8553
    %v8555 = vpop.f32.mrf.mxu0
    %v8556 = vadd.f32 %v8203, %v8555
    %v8557 = vand.u32 %v4594, 4294901760
    %8558 = vmatmul.f32.gmra.mxu0 %v8557
    %v8559 = vpop.f32.mrf.mxu0
    %v8560 = vadd.f32 %v8209, %v8559
    %v8561 = vand.u32 %v4597, 4294901760
    %8562 = vmatmul.f32.gmra.mxu0 %v8561
    %v8563 = vpop.f32.mrf.mxu0
    %v8564 = vadd.f32 %v8215, %v8563
    %v8565 = vand.u32 %v4600, 4294901760
    %8566 = vmatmul.f32.gmra.mxu0 %v8565
    %v8567 = vpop.f32.mrf.mxu0
    %v8568 = vadd.f32 %v8221, %v8567
    %v8569 = vand.u32 %v4603, 4294901760
    %8570 = vmatmul.f32.gmra.mxu0 %v8569
    %v8571 = vpop.f32.mrf.mxu0
    %v8572 = vadd.f32 %v8227, %v8571
    %v8573 = vand.u32 %v4606, 4294901760
    %8574 = vmatmul.f32.gmra.mxu0 %v8573
    %v8575 = vpop.f32.mrf.mxu0
    %v8576 = vadd.f32 %v8233, %v8575
    %v8577 = vand.u32 %v4609, 4294901760
    %8578 = vmatmul.f32.gmra.mxu0 %v8577
    %v8579 = vpop.f32.mrf.mxu0
    %v8580 = vadd.f32 %v8239, %v8579
    %v8581 = vand.u32 %v4612, 4294901760
    %8582 = vmatmul.f32.gmra.mxu0 %v8581
    %v8583 = vpop.f32.mrf.mxu0
    %v8584 = vadd.f32 %v8245, %v8583
    %v8585 = vand.u32 %v4615, 4294901760
    %8586 = vmatmul.f32.gmra.mxu0 %v8585
    %v8587 = vpop.f32.mrf.mxu0
    %v8588 = vadd.f32 %v8251, %v8587
    %v8589 = vand.u32 %v4618, 4294901760
    %8590 = vmatmul.f32.gmra.mxu0 %v8589
    %v8591 = vpop.f32.mrf.mxu0
    %v8592 = vadd.f32 %v8257, %v8591
    %v8593 = vand.u32 %v4621, 4294901760
    %8594 = vmatmul.f32.gmra.mxu0 %v8593
    %v8595 = vpop.f32.mrf.mxu0
    %v8596 = vadd.f32 %v8263, %v8595
    %v8597 = vand.u32 %v4624, 4294901760
    %8598 = vmatmul.f32.gmra.mxu0 %v8597
    %v8599 = vpop.f32.mrf.mxu0
    %v8600 = vadd.f32 %v8269, %v8599
    %v8601 = vand.u32 %v4627, 4294901760
    %8602 = vmatmul.f32.gmra.mxu0 %v8601
    %v8603 = vpop.f32.mrf.mxu0
    %v8604 = vadd.f32 %v8275, %v8603
    %v8605 = vand.u32 %v4630, 4294901760
    %8606 = vmatmul.f32.gmra.mxu0 %v8605
    %v8607 = vpop.f32.mrf.mxu0
    %v8608 = vadd.f32 %v8281, %v8607
    %v8609 = vand.u32 %v4633, 4294901760
    %8610 = vmatmul.f32.gmra.mxu0 %v8609
    %v8611 = vpop.f32.mrf.mxu0
    %v8612 = vadd.f32 %v8287, %v8611
    %v8613 = vand.u32 %v4636, 4294901760
    %8614 = vmatmul.f32.gmra.mxu0 %v8613
    %v8615 = vpop.f32.mrf.mxu0
    %v8616 = vadd.f32 %v8293, %v8615
    %v8617 = vand.u32 %v4639, 4294901760
    %8618 = vmatmul.f32.gmra.mxu0 %v8617
    %v8619 = vpop.f32.mrf.mxu0
    %v8620 = vadd.f32 %v8299, %v8619
    %v8621 = vand.u32 %v4642, 4294901760
    %8622 = vmatmul.f32.gmra.mxu0 %v8621
    %v8623 = vpop.f32.mrf.mxu0
    %v8624 = vadd.f32 %v8305, %v8623
    %v8625 = vand.u32 %v4645, 4294901760
    %8626 = vmatmul.f32.gmra.mxu0 %v8625
    %v8627 = vpop.f32.mrf.mxu0
    %v8628 = vadd.f32 %v8311, %v8627
    %v8629 = vand.u32 %v4648, 4294901760
    %8630 = vmatmul.f32.gmra.mxu0 %v8629
    %v8631 = vpop.f32.mrf.mxu0
    %v8632 = vadd.f32 %v8317, %v8631
    %v8633 = vand.u32 %v4651, 4294901760
    %8634 = vmatmul.f32.gmra.mxu0 %v8633
    %v8635 = vpop.f32.mrf.mxu0
    %v8636 = vadd.f32 %v8323, %v8635
    %v8637 = vand.u32 %v4654, 4294901760
    %8638 = vmatmul.f32.gmra.mxu0 %v8637
    %v8639 = vpop.f32.mrf.mxu0
    %v8640 = vadd.f32 %v8329, %v8639
    %v8641 = vand.u32 %v4657, 4294901760
    %8642 = vmatmul.f32.gmra.mxu0 %v8641
    %v8643 = vpop.f32.mrf.mxu0
    %v8644 = vadd.f32 %v8335, %v8643
    %v8645 = vand.u32 %v4660, 4294901760
    %8646 = vmatmul.f32.gmra.mxu0 %v8645
    %v8647 = vpop.f32.mrf.mxu0
    %v8648 = vadd.f32 %v8341, %v8647
    %v8649 = vand.u32 %v4663, 4294901760
    %8650 = vmatmul.f32.gmra.mxu0 %v8649
    %v8651 = vpop.f32.mrf.mxu0
    %v8652 = vadd.f32 %v8347, %v8651
    %v8653 = vand.u32 %v4666, 4294901760
    %8654 = vmatmul.f32.gmra.mxu0 %v8653
    %v8655 = vpop.f32.mrf.mxu0
    %v8656 = vadd.f32 %v8353, %v8655
    %v8657 = vand.u32 %v4669, 4294901760
    %8658 = vmatmul.f32.gmra.mxu0 %v8657
    %v8659 = vpop.f32.mrf.mxu0
    %v8660 = vadd.f32 %v8359, %v8659
    %v8661 = vand.u32 %v4672, 4294901760
    %8662 = vmatmul.f32.gmra.mxu0 %v8661
    %v8663 = vpop.f32.mrf.mxu0
    %v8664 = vadd.f32 %v8365, %v8663
    %v8665 = vand.u32 %v4675, 4294901760
    %8666 = vmatmul.f32.gmra.mxu0 %v8665
    %v8667 = vpop.f32.mrf.mxu0
    %v8668 = vadd.f32 %v8371, %v8667
    %v8669 = vand.u32 %v4678, 4294901760
    %8670 = vmatmul.f32.gmra.mxu0 %v8669
    %v8671 = vpop.f32.mrf.mxu0
    %v8672 = vadd.f32 %v8377, %v8671
    %v8673 = vand.u32 %v4681, 4294901760
    %8674 = vmatmul.f32.gmra.mxu0 %v8673
    %v8675 = vpop.f32.mrf.mxu0
    %v8676 = vadd.f32 %v8383, %v8675
    %v8677 = vand.u32 %v4684, 4294901760
    %8678 = vmatmul.f32.gmra.mxu0 %v8677
    %v8679 = vpop.f32.mrf.mxu0
    %v8680 = vadd.f32 %v8389, %v8679
    %v8681 = vand.u32 %v4687, 4294901760
    %8682 = vmatmul.f32.gmra.mxu0 %v8681
    %v8683 = vpop.f32.mrf.mxu0
    %v8684 = vadd.f32 %v8395, %v8683
    %v8685 = vand.u32 %v4690, 4294901760
    %8686 = vmatmul.f32.gmra.mxu0 %v8685
    %v8687 = vpop.f32.mrf.mxu0
    %v8688 = vadd.f32 %v8401, %v8687
    %v8689 = vand.u32 %v4693, 4294901760
    %8690 = vmatmul.f32.gmra.mxu0 %v8689
    %v8691 = vpop.f32.mrf.mxu0
    %v8692 = vadd.f32 %v8407, %v8691
    %8693 = vdwg.mxu0
    %8694 = vmatpush.msra.mxu0 0.0
    %8695 = vmatpush.msra.mxu0 0.0
    %8696 = vmatpush.msra.mxu0 0.0
    %8697 = vmatpush.msra.mxu0 0.0
    %8698 = vmatpush.msra.mxu0 0.0
    %8699 = vmatpush.msra.mxu0 0.0
    %8700 = vmatpush.msra.mxu0 0.0
    %8701 = vmatpush.msra.mxu0 0.0
    %8702 = vmatpush.msra.mxu0 0.0
    %8703 = vmatpush.msra.mxu0 0.0
    %8704 = vmatpush.msra.mxu0 0.0
    %8705 = vmatpush.msra.mxu0 0.0
    %v8706 = vand.u32 %v4425, 4294901760
    %8707 = vmatpush.msra.mxu0 %v8706
    %v8708 = vand.u32 %v4423, 4294901760
    %8709 = vmatpush.msra.mxu0 %v8708
    %v8710 = vand.u32 %v4421, 4294901760
    %8711 = vmatpush.msra.mxu0 %v8710
    %v8712 = vand.u32 %v4419, 4294901760
    %8713 = vmatpush.msra.mxu0 %v8712
    %v8714 = vand.u32 %v4504, 4294901760
    %8715 = vmatmul.f32.gmra.mxu0 %v8714
    %v8716 = vpop.f32.mrf.mxu0
    %v8717 = vadd.f32 %v8440, %v8716
    %v8718 = vand.u32 %v4507, 4294901760
    %8719 = vmatmul.f32.gmra.mxu0 %v8718
    %v8720 = vpop.f32.mrf.mxu0
    %v8721 = vadd.f32 %v8444, %v8720
    %v8722 = vand.u32 %v4510, 4294901760
    %8723 = vmatmul.f32.gmra.mxu0 %v8722
    %v8724 = vpop.f32.mrf.mxu0
    %v8725 = vadd.f32 %v8448, %v8724
    %v8726 = vand.u32 %v4513, 4294901760
    %8727 = vmatmul.f32.gmra.mxu0 %v8726
    %v8728 = vpop.f32.mrf.mxu0
    %v8729 = vadd.f32 %v8452, %v8728
    %v8730 = vand.u32 %v4516, 4294901760
    %8731 = vmatmul.f32.gmra.mxu0 %v8730
    %v8732 = vpop.f32.mrf.mxu0
    %v8733 = vadd.f32 %v8456, %v8732
    %v8734 = vand.u32 %v4519, 4294901760
    %8735 = vmatmul.f32.gmra.mxu0 %v8734
    %v8736 = vpop.f32.mrf.mxu0
    %v8737 = vadd.f32 %v8460, %v8736
    %v8738 = vand.u32 %v4522, 4294901760
    %8739 = vmatmul.f32.gmra.mxu0 %v8738
    %v8740 = vpop.f32.mrf.mxu0
    %v8741 = vadd.f32 %v8464, %v8740
    %v8742 = vand.u32 %v4525, 4294901760
    %8743 = vmatmul.f32.gmra.mxu0 %v8742
    %v8744 = vpop.f32.mrf.mxu0
    %v8745 = vadd.f32 %v8468, %v8744
    %v8746 = vand.u32 %v4528, 4294901760
    %8747 = vmatmul.f32.gmra.mxu0 %v8746
    %v8748 = vpop.f32.mrf.mxu0
    %v8749 = vadd.f32 %v8472, %v8748
    %v8750 = vand.u32 %v4531, 4294901760
    %8751 = vmatmul.f32.gmra.mxu0 %v8750
    %v8752 = vpop.f32.mrf.mxu0
    %v8753 = vadd.f32 %v8476, %v8752
    %v8754 = vand.u32 %v4534, 4294901760
    %8755 = vmatmul.f32.gmra.mxu0 %v8754
    %v8756 = vpop.f32.mrf.mxu0
    %v8757 = vadd.f32 %v8480, %v8756
    %v8758 = vand.u32 %v4537, 4294901760
    %8759 = vmatmul.f32.gmra.mxu0 %v8758
    %v8760 = vpop.f32.mrf.mxu0
    %v8761 = vadd.f32 %v8484, %v8760
    %v8762 = vand.u32 %v4540, 4294901760
    %8763 = vmatmul.f32.gmra.mxu0 %v8762
    %v8764 = vpop.f32.mrf.mxu0
    %v8765 = vadd.f32 %v8488, %v8764
    %v8766 = vand.u32 %v4543, 4294901760
    %8767 = vmatmul.f32.gmra.mxu0 %v8766
    %v8768 = vpop.f32.mrf.mxu0
    %v8769 = vadd.f32 %v8492, %v8768
    %v8770 = vand.u32 %v4546, 4294901760
    %8771 = vmatmul.f32.gmra.mxu0 %v8770
    %v8772 = vpop.f32.mrf.mxu0
    %v8773 = vadd.f32 %v8496, %v8772
    %v8774 = vand.u32 %v4549, 4294901760
    %8775 = vmatmul.f32.gmra.mxu0 %v8774
    %v8776 = vpop.f32.mrf.mxu0
    %v8777 = vadd.f32 %v8500, %v8776
    %v8778 = vand.u32 %v4552, 4294901760
    %8779 = vmatmul.f32.gmra.mxu0 %v8778
    %v8780 = vpop.f32.mrf.mxu0
    %v8781 = vadd.f32 %v8504, %v8780
    %v8782 = vand.u32 %v4555, 4294901760
    %8783 = vmatmul.f32.gmra.mxu0 %v8782
    %v8784 = vpop.f32.mrf.mxu0
    %v8785 = vadd.f32 %v8508, %v8784
    %v8786 = vand.u32 %v4558, 4294901760
    %8787 = vmatmul.f32.gmra.mxu0 %v8786
    %v8788 = vpop.f32.mrf.mxu0
    %v8789 = vadd.f32 %v8512, %v8788
    %v8790 = vand.u32 %v4561, 4294901760
    %8791 = vmatmul.f32.gmra.mxu0 %v8790
    %v8792 = vpop.f32.mrf.mxu0
    %v8793 = vadd.f32 %v8516, %v8792
    %v8794 = vand.u32 %v4564, 4294901760
    %8795 = vmatmul.f32.gmra.mxu0 %v8794
    %v8796 = vpop.f32.mrf.mxu0
    %v8797 = vadd.f32 %v8520, %v8796
    %v8798 = vand.u32 %v4567, 4294901760
    %8799 = vmatmul.f32.gmra.mxu0 %v8798
    %v8800 = vpop.f32.mrf.mxu0
    %v8801 = vadd.f32 %v8524, %v8800
    %v8802 = vand.u32 %v4570, 4294901760
    %8803 = vmatmul.f32.gmra.mxu0 %v8802
    %v8804 = vpop.f32.mrf.mxu0
    %v8805 = vadd.f32 %v8528, %v8804
    %v8806 = vand.u32 %v4573, 4294901760
    %8807 = vmatmul.f32.gmra.mxu0 %v8806
    %v8808 = vpop.f32.mrf.mxu0
    %v8809 = vadd.f32 %v8532, %v8808
    %v8810 = vand.u32 %v4576, 4294901760
    %8811 = vmatmul.f32.gmra.mxu0 %v8810
    %v8812 = vpop.f32.mrf.mxu0
    %v8813 = vadd.f32 %v8536, %v8812
    %v8814 = vand.u32 %v4579, 4294901760
    %8815 = vmatmul.f32.gmra.mxu0 %v8814
    %v8816 = vpop.f32.mrf.mxu0
    %v8817 = vadd.f32 %v8540, %v8816
    %v8818 = vand.u32 %v4582, 4294901760
    %8819 = vmatmul.f32.gmra.mxu0 %v8818
    %v8820 = vpop.f32.mrf.mxu0
    %v8821 = vadd.f32 %v8544, %v8820
    %v8822 = vand.u32 %v4585, 4294901760
    %8823 = vmatmul.f32.gmra.mxu0 %v8822
    %v8824 = vpop.f32.mrf.mxu0
    %v8825 = vadd.f32 %v8548, %v8824
    %v8826 = vand.u32 %v4588, 4294901760
    %8827 = vmatmul.f32.gmra.mxu0 %v8826
    %v8828 = vpop.f32.mrf.mxu0
    %v8829 = vadd.f32 %v8552, %v8828
    %v8830 = vand.u32 %v4591, 4294901760
    %8831 = vmatmul.f32.gmra.mxu0 %v8830
    %v8832 = vpop.f32.mrf.mxu0
    %v8833 = vadd.f32 %v8556, %v8832
    %v8834 = vand.u32 %v4594, 4294901760
    %8835 = vmatmul.f32.gmra.mxu0 %v8834
    %v8836 = vpop.f32.mrf.mxu0
    %v8837 = vadd.f32 %v8560, %v8836
    %v8838 = vand.u32 %v4597, 4294901760
    %8839 = vmatmul.f32.gmra.mxu0 %v8838
    %v8840 = vpop.f32.mrf.mxu0
    %v8841 = vadd.f32 %v8564, %v8840
    %v8842 = vand.u32 %v4600, 4294901760
    %8843 = vmatmul.f32.gmra.mxu0 %v8842
    %v8844 = vpop.f32.mrf.mxu0
    %v8845 = vadd.f32 %v8568, %v8844
    %v8846 = vand.u32 %v4603, 4294901760
    %8847 = vmatmul.f32.gmra.mxu0 %v8846
    %v8848 = vpop.f32.mrf.mxu0
    %v8849 = vadd.f32 %v8572, %v8848
    %v8850 = vand.u32 %v4606, 4294901760
    %8851 = vmatmul.f32.gmra.mxu0 %v8850
    %v8852 = vpop.f32.mrf.mxu0
    %v8853 = vadd.f32 %v8576, %v8852
    %v8854 = vand.u32 %v4609, 4294901760
    %8855 = vmatmul.f32.gmra.mxu0 %v8854
    %v8856 = vpop.f32.mrf.mxu0
    %v8857 = vadd.f32 %v8580, %v8856
    %v8858 = vand.u32 %v4612, 4294901760
    %8859 = vmatmul.f32.gmra.mxu0 %v8858
    %v8860 = vpop.f32.mrf.mxu0
    %v8861 = vadd.f32 %v8584, %v8860
    %v8862 = vand.u32 %v4615, 4294901760
    %8863 = vmatmul.f32.gmra.mxu0 %v8862
    %v8864 = vpop.f32.mrf.mxu0
    %v8865 = vadd.f32 %v8588, %v8864
    %v8866 = vand.u32 %v4618, 4294901760
    %8867 = vmatmul.f32.gmra.mxu0 %v8866
    %v8868 = vpop.f32.mrf.mxu0
    %v8869 = vadd.f32 %v8592, %v8868
    %v8870 = vand.u32 %v4621, 4294901760
    %8871 = vmatmul.f32.gmra.mxu0 %v8870
    %v8872 = vpop.f32.mrf.mxu0
    %v8873 = vadd.f32 %v8596, %v8872
    %v8874 = vand.u32 %v4624, 4294901760
    %8875 = vmatmul.f32.gmra.mxu0 %v8874
    %v8876 = vpop.f32.mrf.mxu0
    %v8877 = vadd.f32 %v8600, %v8876
    %v8878 = vand.u32 %v4627, 4294901760
    %8879 = vmatmul.f32.gmra.mxu0 %v8878
    %v8880 = vpop.f32.mrf.mxu0
    %v8881 = vadd.f32 %v8604, %v8880
    %v8882 = vand.u32 %v4630, 4294901760
    %8883 = vmatmul.f32.gmra.mxu0 %v8882
    %v8884 = vpop.f32.mrf.mxu0
    %v8885 = vadd.f32 %v8608, %v8884
    %v8886 = vand.u32 %v4633, 4294901760
    %8887 = vmatmul.f32.gmra.mxu0 %v8886
    %v8888 = vpop.f32.mrf.mxu0
    %v8889 = vadd.f32 %v8612, %v8888
    %v8890 = vand.u32 %v4636, 4294901760
    %8891 = vmatmul.f32.gmra.mxu0 %v8890
    %v8892 = vpop.f32.mrf.mxu0
    %v8893 = vadd.f32 %v8616, %v8892
    %v8894 = vand.u32 %v4639, 4294901760
    %8895 = vmatmul.f32.gmra.mxu0 %v8894
    %v8896 = vpop.f32.mrf.mxu0
    %v8897 = vadd.f32 %v8620, %v8896
    %v8898 = vand.u32 %v4642, 4294901760
    %8899 = vmatmul.f32.gmra.mxu0 %v8898
    %v8900 = vpop.f32.mrf.mxu0
    %v8901 = vadd.f32 %v8624, %v8900
    %v8902 = vand.u32 %v4645, 4294901760
    %8903 = vmatmul.f32.gmra.mxu0 %v8902
    %v8904 = vpop.f32.mrf.mxu0
    %v8905 = vadd.f32 %v8628, %v8904
    %v8906 = vand.u32 %v4648, 4294901760
    %8907 = vmatmul.f32.gmra.mxu0 %v8906
    %v8908 = vpop.f32.mrf.mxu0
    %v8909 = vadd.f32 %v8632, %v8908
    %v8910 = vand.u32 %v4651, 4294901760
    %8911 = vmatmul.f32.gmra.mxu0 %v8910
    %v8912 = vpop.f32.mrf.mxu0
    %v8913 = vadd.f32 %v8636, %v8912
    %v8914 = vand.u32 %v4654, 4294901760
    %8915 = vmatmul.f32.gmra.mxu0 %v8914
    %v8916 = vpop.f32.mrf.mxu0
    %v8917 = vadd.f32 %v8640, %v8916
    %v8918 = vand.u32 %v4657, 4294901760
    %8919 = vmatmul.f32.gmra.mxu0 %v8918
    %v8920 = vpop.f32.mrf.mxu0
    %v8921 = vadd.f32 %v8644, %v8920
    %v8922 = vand.u32 %v4660, 4294901760
    %8923 = vmatmul.f32.gmra.mxu0 %v8922
    %v8924 = vpop.f32.mrf.mxu0
    %v8925 = vadd.f32 %v8648, %v8924
    %v8926 = vand.u32 %v4663, 4294901760
    %8927 = vmatmul.f32.gmra.mxu0 %v8926
    %v8928 = vpop.f32.mrf.mxu0
    %v8929 = vadd.f32 %v8652, %v8928
    %v8930 = vand.u32 %v4666, 4294901760
    %8931 = vmatmul.f32.gmra.mxu0 %v8930
    %v8932 = vpop.f32.mrf.mxu0
    %v8933 = vadd.f32 %v8656, %v8932
    %v8934 = vand.u32 %v4669, 4294901760
    %8935 = vmatmul.f32.gmra.mxu0 %v8934
    %v8936 = vpop.f32.mrf.mxu0
    %v8937 = vadd.f32 %v8660, %v8936
    %v8938 = vand.u32 %v4672, 4294901760
    %8939 = vmatmul.f32.gmra.mxu0 %v8938
    %v8940 = vpop.f32.mrf.mxu0
    %v8941 = vadd.f32 %v8664, %v8940
    %v8942 = vand.u32 %v4675, 4294901760
    %8943 = vmatmul.f32.gmra.mxu0 %v8942
    %v8944 = vpop.f32.mrf.mxu0
    %v8945 = vadd.f32 %v8668, %v8944
    %v8946 = vand.u32 %v4678, 4294901760
    %8947 = vmatmul.f32.gmra.mxu0 %v8946
    %v8948 = vpop.f32.mrf.mxu0
    %v8949 = vadd.f32 %v8672, %v8948
    %v8950 = vand.u32 %v4681, 4294901760
    %8951 = vmatmul.f32.gmra.mxu0 %v8950
    %v8952 = vpop.f32.mrf.mxu0
    %v8953 = vadd.f32 %v8676, %v8952
    %v8954 = vand.u32 %v4684, 4294901760
    %8955 = vmatmul.f32.gmra.mxu0 %v8954
    %v8956 = vpop.f32.mrf.mxu0
    %v8957 = vadd.f32 %v8680, %v8956
    %v8958 = vand.u32 %v4687, 4294901760
    %8959 = vmatmul.f32.gmra.mxu0 %v8958
    %v8960 = vpop.f32.mrf.mxu0
    %v8961 = vadd.f32 %v8684, %v8960
    %v8962 = vand.u32 %v4690, 4294901760
    %8963 = vmatmul.f32.gmra.mxu0 %v8962
    %v8964 = vpop.f32.mrf.mxu0
    %v8965 = vadd.f32 %v8688, %v8964
    %v8966 = vand.u32 %v4693, 4294901760
    %8967 = vmatmul.f32.gmra.mxu0 %v8966
    %v8968 = vpop.f32.mrf.mxu0
    %v8969 = vadd.f32 %v8692, %v8968
    %8970 = vdwg.mxu0
    %v8972 = vsel %vm4502, %v4348, 0
    %v8975 = vsel %vm4502, %v4349, 0
    %v8978 = vsel %vm4502, %v4350, 0
    %v8981 = vsel %vm4502, %v4351, 0
    %v8984 = vsel %vm4502, %v4352, 0
    %v8987 = vsel %vm4502, %v4353, 0
    %v8990 = vsel %vm4502, %v4354, 0
    %v8993 = vsel %vm4502, %v4355, 0
    %v8996 = vsel %vm4502, %v4356, 0
    %v8999 = vsel %vm4502, %v4357, 0
    %v9002 = vsel %vm4502, %v4358, 0
    %v9005 = vsel %vm4502, %v4359, 0
    %v9008 = vsel %vm4502, %v4360, 0
    %v9011 = vsel %vm4502, %v4361, 0
    %v9014 = vsel %vm4502, %v4362, 0
    %v9017 = vsel %vm4502, %v4363, 0
    %v9020 = vsel %vm4502, %v4364, 0
    %v9023 = vsel %vm4502, %v4365, 0
    %v9026 = vsel %vm4502, %v4366, 0
    %v9029 = vsel %vm4502, %v4367, 0
    %v9032 = vsel %vm4502, %v4368, 0
    %v9035 = vsel %vm4502, %v4369, 0
    %v9038 = vsel %vm4502, %v4370, 0
    %v9041 = vsel %vm4502, %v4371, 0
    %v9044 = vsel %vm4502, %v4372, 0
    %v9047 = vsel %vm4502, %v4373, 0
    %v9050 = vsel %vm4502, %v4374, 0
    %v9053 = vsel %vm4502, %v4375, 0
    %v9056 = vsel %vm4502, %v4376, 0
    %v9059 = vsel %vm4502, %v4377, 0
    %v9062 = vsel %vm4502, %v4378, 0
    %v9065 = vsel %vm4502, %v4379, 0
    %9067 = vmatpush.msra.mxu0 0.0
    %9068 = vmatpush.msra.mxu0 0.0
    %9069 = vmatpush.msra.mxu0 0.0
    %9070 = vmatpush.msra.mxu0 0.0
    %9071 = vmatpush.msra.mxu0 0.0
    %9072 = vmatpush.msra.mxu0 0.0
    %9073 = vmatpush.msra.mxu0 0.0
    %9074 = vmatpush.msra.mxu0 0.0
    %9075 = vmatpush.msra.mxu0 0.0
    %9076 = vmatpush.msra.mxu0 0.0
    %9077 = vmatpush.msra.mxu0 0.0
    %9078 = vmatpush.msra.mxu0 0.0
    %v9079 = vand.u32 %v4462, 4294901760
    %9080 = vmatpush.msra.mxu0 %v9079
    %v9081 = vand.u32 %v4460, 4294901760
    %9082 = vmatpush.msra.mxu0 %v9081
    %v9083 = vand.u32 %v4458, 4294901760
    %9084 = vmatpush.msra.mxu0 %v9083
    %v9085 = vand.u32 %v4456, 4294901760
    %9086 = vmatpush.msra.mxu0 %v9085
    %v9087 = vand.u32 %v8972, 4294901760
    %v9088 = vsub.f32 %v8972, %v9087
    %v9089 = vand.u32 %v9088, 4294901760
    %v9090 = vsub.f32 %v9088, %v9089
    %v9091 = vand.u32 %v9090, 4294901760
    %9092 = vmatmul.f32.gmra.mxu0 %v9091
    %v9093 = vpop.f32.mrf.mxu0
    %v9094 = vadd.f32 0.0, %v9093
    %v9095 = vand.u32 %v8975, 4294901760
    %v9096 = vsub.f32 %v8975, %v9095
    %v9097 = vand.u32 %v9096, 4294901760
    %v9098 = vsub.f32 %v9096, %v9097
    %v9099 = vand.u32 %v9098, 4294901760
    %9100 = vmatmul.f32.gmra.mxu0 %v9099
    %v9101 = vpop.f32.mrf.mxu0
    %v9102 = vadd.f32 0.0, %v9101
    %v9103 = vand.u32 %v8978, 4294901760
    %v9104 = vsub.f32 %v8978, %v9103
    %v9105 = vand.u32 %v9104, 4294901760
    %v9106 = vsub.f32 %v9104, %v9105
    %v9107 = vand.u32 %v9106, 4294901760
    %9108 = vmatmul.f32.gmra.mxu0 %v9107
    %v9109 = vpop.f32.mrf.mxu0
    %v9110 = vadd.f32 0.0, %v9109
    %v9111 = vand.u32 %v8981, 4294901760
    %v9112 = vsub.f32 %v8981, %v9111
    %v9113 = vand.u32 %v9112, 4294901760
    %v9114 = vsub.f32 %v9112, %v9113
    %v9115 = vand.u32 %v9114, 4294901760
    %9116 = vmatmul.f32.gmra.mxu0 %v9115
    %v9117 = vpop.f32.mrf.mxu0
    %v9118 = vadd.f32 0.0, %v9117
    %v9119 = vand.u32 %v8984, 4294901760
    %v9120 = vsub.f32 %v8984, %v9119
    %v9121 = vand.u32 %v9120, 4294901760
    %v9122 = vsub.f32 %v9120, %v9121
    %v9123 = vand.u32 %v9122, 4294901760
    %9124 = vmatmul.f32.gmra.mxu0 %v9123
    %v9125 = vpop.f32.mrf.mxu0
    %v9126 = vadd.f32 0.0, %v9125
    %v9127 = vand.u32 %v8987, 4294901760
    %v9128 = vsub.f32 %v8987, %v9127
    %v9129 = vand.u32 %v9128, 4294901760
    %v9130 = vsub.f32 %v9128, %v9129
    %v9131 = vand.u32 %v9130, 4294901760
    %9132 = vmatmul.f32.gmra.mxu0 %v9131
    %v9133 = vpop.f32.mrf.mxu0
    %v9134 = vadd.f32 0.0, %v9133
    %v9135 = vand.u32 %v8990, 4294901760
    %v9136 = vsub.f32 %v8990, %v9135
    %v9137 = vand.u32 %v9136, 4294901760
    %v9138 = vsub.f32 %v9136, %v9137
    %v9139 = vand.u32 %v9138, 4294901760
    %9140 = vmatmul.f32.gmra.mxu0 %v9139
    %v9141 = vpop.f32.mrf.mxu0
    %v9142 = vadd.f32 0.0, %v9141
    %v9143 = vand.u32 %v8993, 4294901760
    %v9144 = vsub.f32 %v8993, %v9143
    %v9145 = vand.u32 %v9144, 4294901760
    %v9146 = vsub.f32 %v9144, %v9145
    %v9147 = vand.u32 %v9146, 4294901760
    %9148 = vmatmul.f32.gmra.mxu0 %v9147
    %v9149 = vpop.f32.mrf.mxu0
    %v9150 = vadd.f32 0.0, %v9149
    %v9151 = vand.u32 %v8996, 4294901760
    %v9152 = vsub.f32 %v8996, %v9151
    %v9153 = vand.u32 %v9152, 4294901760
    %v9154 = vsub.f32 %v9152, %v9153
    %v9155 = vand.u32 %v9154, 4294901760
    %9156 = vmatmul.f32.gmra.mxu0 %v9155
    %v9157 = vpop.f32.mrf.mxu0
    %v9158 = vadd.f32 0.0, %v9157
    %v9159 = vand.u32 %v8999, 4294901760
    %v9160 = vsub.f32 %v8999, %v9159
    %v9161 = vand.u32 %v9160, 4294901760
    %v9162 = vsub.f32 %v9160, %v9161
    %v9163 = vand.u32 %v9162, 4294901760
    %9164 = vmatmul.f32.gmra.mxu0 %v9163
    %v9165 = vpop.f32.mrf.mxu0
    %v9166 = vadd.f32 0.0, %v9165
    %v9167 = vand.u32 %v9002, 4294901760
    %v9168 = vsub.f32 %v9002, %v9167
    %v9169 = vand.u32 %v9168, 4294901760
    %v9170 = vsub.f32 %v9168, %v9169
    %v9171 = vand.u32 %v9170, 4294901760
    %9172 = vmatmul.f32.gmra.mxu0 %v9171
    %v9173 = vpop.f32.mrf.mxu0
    %v9174 = vadd.f32 0.0, %v9173
    %v9175 = vand.u32 %v9005, 4294901760
    %v9176 = vsub.f32 %v9005, %v9175
    %v9177 = vand.u32 %v9176, 4294901760
    %v9178 = vsub.f32 %v9176, %v9177
    %v9179 = vand.u32 %v9178, 4294901760
    %9180 = vmatmul.f32.gmra.mxu0 %v9179
    %v9181 = vpop.f32.mrf.mxu0
    %v9182 = vadd.f32 0.0, %v9181
    %v9183 = vand.u32 %v9008, 4294901760
    %v9184 = vsub.f32 %v9008, %v9183
    %v9185 = vand.u32 %v9184, 4294901760
    %v9186 = vsub.f32 %v9184, %v9185
    %v9187 = vand.u32 %v9186, 4294901760
    %9188 = vmatmul.f32.gmra.mxu0 %v9187
    %v9189 = vpop.f32.mrf.mxu0
    %v9190 = vadd.f32 0.0, %v9189
    %v9191 = vand.u32 %v9011, 4294901760
    %v9192 = vsub.f32 %v9011, %v9191
    %v9193 = vand.u32 %v9192, 4294901760
    %v9194 = vsub.f32 %v9192, %v9193
    %v9195 = vand.u32 %v9194, 4294901760
    %9196 = vmatmul.f32.gmra.mxu0 %v9195
    %v9197 = vpop.f32.mrf.mxu0
    %v9198 = vadd.f32 0.0, %v9197
    %v9199 = vand.u32 %v9014, 4294901760
    %v9200 = vsub.f32 %v9014, %v9199
    %v9201 = vand.u32 %v9200, 4294901760
    %v9202 = vsub.f32 %v9200, %v9201
    %v9203 = vand.u32 %v9202, 4294901760
    %9204 = vmatmul.f32.gmra.mxu0 %v9203
    %v9205 = vpop.f32.mrf.mxu0
    %v9206 = vadd.f32 0.0, %v9205
    %v9207 = vand.u32 %v9017, 4294901760
    %v9208 = vsub.f32 %v9017, %v9207
    %v9209 = vand.u32 %v9208, 4294901760
    %v9210 = vsub.f32 %v9208, %v9209
    %v9211 = vand.u32 %v9210, 4294901760
    %9212 = vmatmul.f32.gmra.mxu0 %v9211
    %v9213 = vpop.f32.mrf.mxu0
    %v9214 = vadd.f32 0.0, %v9213
    %v9215 = vand.u32 %v9020, 4294901760
    %v9216 = vsub.f32 %v9020, %v9215
    %v9217 = vand.u32 %v9216, 4294901760
    %v9218 = vsub.f32 %v9216, %v9217
    %v9219 = vand.u32 %v9218, 4294901760
    %9220 = vmatmul.f32.gmra.mxu0 %v9219
    %v9221 = vpop.f32.mrf.mxu0
    %v9222 = vadd.f32 0.0, %v9221
    %v9223 = vand.u32 %v9023, 4294901760
    %v9224 = vsub.f32 %v9023, %v9223
    %v9225 = vand.u32 %v9224, 4294901760
    %v9226 = vsub.f32 %v9224, %v9225
    %v9227 = vand.u32 %v9226, 4294901760
    %9228 = vmatmul.f32.gmra.mxu0 %v9227
    %v9229 = vpop.f32.mrf.mxu0
    %v9230 = vadd.f32 0.0, %v9229
    %v9231 = vand.u32 %v9026, 4294901760
    %v9232 = vsub.f32 %v9026, %v9231
    %v9233 = vand.u32 %v9232, 4294901760
    %v9234 = vsub.f32 %v9232, %v9233
    %v9235 = vand.u32 %v9234, 4294901760
    %9236 = vmatmul.f32.gmra.mxu0 %v9235
    %v9237 = vpop.f32.mrf.mxu0
    %v9238 = vadd.f32 0.0, %v9237
    %v9239 = vand.u32 %v9029, 4294901760
    %v9240 = vsub.f32 %v9029, %v9239
    %v9241 = vand.u32 %v9240, 4294901760
    %v9242 = vsub.f32 %v9240, %v9241
    %v9243 = vand.u32 %v9242, 4294901760
    %9244 = vmatmul.f32.gmra.mxu0 %v9243
    %v9245 = vpop.f32.mrf.mxu0
    %v9246 = vadd.f32 0.0, %v9245
    %v9247 = vand.u32 %v9032, 4294901760
    %v9248 = vsub.f32 %v9032, %v9247
    %v9249 = vand.u32 %v9248, 4294901760
    %v9250 = vsub.f32 %v9248, %v9249
    %v9251 = vand.u32 %v9250, 4294901760
    %9252 = vmatmul.f32.gmra.mxu0 %v9251
    %v9253 = vpop.f32.mrf.mxu0
    %v9254 = vadd.f32 0.0, %v9253
    %v9255 = vand.u32 %v9035, 4294901760
    %v9256 = vsub.f32 %v9035, %v9255
    %v9257 = vand.u32 %v9256, 4294901760
    %v9258 = vsub.f32 %v9256, %v9257
    %v9259 = vand.u32 %v9258, 4294901760
    %9260 = vmatmul.f32.gmra.mxu0 %v9259
    %v9261 = vpop.f32.mrf.mxu0
    %v9262 = vadd.f32 0.0, %v9261
    %v9263 = vand.u32 %v9038, 4294901760
    %v9264 = vsub.f32 %v9038, %v9263
    %v9265 = vand.u32 %v9264, 4294901760
    %v9266 = vsub.f32 %v9264, %v9265
    %v9267 = vand.u32 %v9266, 4294901760
    %9268 = vmatmul.f32.gmra.mxu0 %v9267
    %v9269 = vpop.f32.mrf.mxu0
    %v9270 = vadd.f32 0.0, %v9269
    %v9271 = vand.u32 %v9041, 4294901760
    %v9272 = vsub.f32 %v9041, %v9271
    %v9273 = vand.u32 %v9272, 4294901760
    %v9274 = vsub.f32 %v9272, %v9273
    %v9275 = vand.u32 %v9274, 4294901760
    %9276 = vmatmul.f32.gmra.mxu0 %v9275
    %v9277 = vpop.f32.mrf.mxu0
    %v9278 = vadd.f32 0.0, %v9277
    %v9279 = vand.u32 %v9044, 4294901760
    %v9280 = vsub.f32 %v9044, %v9279
    %v9281 = vand.u32 %v9280, 4294901760
    %v9282 = vsub.f32 %v9280, %v9281
    %v9283 = vand.u32 %v9282, 4294901760
    %9284 = vmatmul.f32.gmra.mxu0 %v9283
    %v9285 = vpop.f32.mrf.mxu0
    %v9286 = vadd.f32 0.0, %v9285
    %v9287 = vand.u32 %v9047, 4294901760
    %v9288 = vsub.f32 %v9047, %v9287
    %v9289 = vand.u32 %v9288, 4294901760
    %v9290 = vsub.f32 %v9288, %v9289
    %v9291 = vand.u32 %v9290, 4294901760
    %9292 = vmatmul.f32.gmra.mxu0 %v9291
    %v9293 = vpop.f32.mrf.mxu0
    %v9294 = vadd.f32 0.0, %v9293
    %v9295 = vand.u32 %v9050, 4294901760
    %v9296 = vsub.f32 %v9050, %v9295
    %v9297 = vand.u32 %v9296, 4294901760
    %v9298 = vsub.f32 %v9296, %v9297
    %v9299 = vand.u32 %v9298, 4294901760
    %9300 = vmatmul.f32.gmra.mxu0 %v9299
    %v9301 = vpop.f32.mrf.mxu0
    %v9302 = vadd.f32 0.0, %v9301
    %v9303 = vand.u32 %v9053, 4294901760
    %v9304 = vsub.f32 %v9053, %v9303
    %v9305 = vand.u32 %v9304, 4294901760
    %v9306 = vsub.f32 %v9304, %v9305
    %v9307 = vand.u32 %v9306, 4294901760
    %9308 = vmatmul.f32.gmra.mxu0 %v9307
    %v9309 = vpop.f32.mrf.mxu0
    %v9310 = vadd.f32 0.0, %v9309
    %v9311 = vand.u32 %v9056, 4294901760
    %v9312 = vsub.f32 %v9056, %v9311
    %v9313 = vand.u32 %v9312, 4294901760
    %v9314 = vsub.f32 %v9312, %v9313
    %v9315 = vand.u32 %v9314, 4294901760
    %9316 = vmatmul.f32.gmra.mxu0 %v9315
    %v9317 = vpop.f32.mrf.mxu0
    %v9318 = vadd.f32 0.0, %v9317
    %v9319 = vand.u32 %v9059, 4294901760
    %v9320 = vsub.f32 %v9059, %v9319
    %v9321 = vand.u32 %v9320, 4294901760
    %v9322 = vsub.f32 %v9320, %v9321
    %v9323 = vand.u32 %v9322, 4294901760
    %9324 = vmatmul.f32.gmra.mxu0 %v9323
    %v9325 = vpop.f32.mrf.mxu0
    %v9326 = vadd.f32 0.0, %v9325
    %v9327 = vand.u32 %v9062, 4294901760
    %v9328 = vsub.f32 %v9062, %v9327
    %v9329 = vand.u32 %v9328, 4294901760
    %v9330 = vsub.f32 %v9328, %v9329
    %v9331 = vand.u32 %v9330, 4294901760
    %9332 = vmatmul.f32.gmra.mxu0 %v9331
    %v9333 = vpop.f32.mrf.mxu0
    %v9334 = vadd.f32 0.0, %v9333
    %v9335 = vand.u32 %v9065, 4294901760
    %v9336 = vsub.f32 %v9065, %v9335
    %v9337 = vand.u32 %v9336, 4294901760
    %v9338 = vsub.f32 %v9336, %v9337
    %v9339 = vand.u32 %v9338, 4294901760
    %9340 = vmatmul.f32.gmra.mxu0 %v9339
    %v9341 = vpop.f32.mrf.mxu0
    %v9342 = vadd.f32 0.0, %v9341
    %9343 = vdwg.mxu0
    %9344 = vmatpush.msra.mxu0 0.0
    %9345 = vmatpush.msra.mxu0 0.0
    %9346 = vmatpush.msra.mxu0 0.0
    %9347 = vmatpush.msra.mxu0 0.0
    %9348 = vmatpush.msra.mxu0 0.0
    %9349 = vmatpush.msra.mxu0 0.0
    %9350 = vmatpush.msra.mxu0 0.0
    %9351 = vmatpush.msra.mxu0 0.0
    %9352 = vmatpush.msra.mxu0 0.0
    %9353 = vmatpush.msra.mxu0 0.0
    %9354 = vmatpush.msra.mxu0 0.0
    %9355 = vmatpush.msra.mxu0 0.0
    %v9356 = vand.u32 %v4462, 4294901760
    %v9357 = vsub.f32 %v4462, %v9356
    %v9358 = vand.u32 %v9357, 4294901760
    %v9359 = vsub.f32 %v9357, %v9358
    %v9360 = vand.u32 %v9359, 4294901760
    %9361 = vmatpush.msra.mxu0 %v9360
    %v9362 = vand.u32 %v4460, 4294901760
    %v9363 = vsub.f32 %v4460, %v9362
    %v9364 = vand.u32 %v9363, 4294901760
    %v9365 = vsub.f32 %v9363, %v9364
    %v9366 = vand.u32 %v9365, 4294901760
    %9367 = vmatpush.msra.mxu0 %v9366
    %v9368 = vand.u32 %v4458, 4294901760
    %v9369 = vsub.f32 %v4458, %v9368
    %v9370 = vand.u32 %v9369, 4294901760
    %v9371 = vsub.f32 %v9369, %v9370
    %v9372 = vand.u32 %v9371, 4294901760
    %9373 = vmatpush.msra.mxu0 %v9372
    %v9374 = vand.u32 %v4456, 4294901760
    %v9375 = vsub.f32 %v4456, %v9374
    %v9376 = vand.u32 %v9375, 4294901760
    %v9377 = vsub.f32 %v9375, %v9376
    %v9378 = vand.u32 %v9377, 4294901760
    %9379 = vmatpush.msra.mxu0 %v9378
    %v9380 = vand.u32 %v8972, 4294901760
    %9381 = vmatmul.f32.gmra.mxu0 %v9380
    %v9382 = vpop.f32.mrf.mxu0
    %v9383 = vadd.f32 %v9094, %v9382
    %v9384 = vand.u32 %v8975, 4294901760
    %9385 = vmatmul.f32.gmra.mxu0 %v9384
    %v9386 = vpop.f32.mrf.mxu0
    %v9387 = vadd.f32 %v9102, %v9386
    %v9388 = vand.u32 %v8978, 4294901760
    %9389 = vmatmul.f32.gmra.mxu0 %v9388
    %v9390 = vpop.f32.mrf.mxu0
    %v9391 = vadd.f32 %v9110, %v9390
    %v9392 = vand.u32 %v8981, 4294901760
    %9393 = vmatmul.f32.gmra.mxu0 %v9392
    %v9394 = vpop.f32.mrf.mxu0
    %v9395 = vadd.f32 %v9118, %v9394
    %v9396 = vand.u32 %v8984, 4294901760
    %9397 = vmatmul.f32.gmra.mxu0 %v9396
    %v9398 = vpop.f32.mrf.mxu0
    %v9399 = vadd.f32 %v9126, %v9398
    %v9400 = vand.u32 %v8987, 4294901760
    %9401 = vmatmul.f32.gmra.mxu0 %v9400
    %v9402 = vpop.f32.mrf.mxu0
    %v9403 = vadd.f32 %v9134, %v9402
    %v9404 = vand.u32 %v8990, 4294901760
    %9405 = vmatmul.f32.gmra.mxu0 %v9404
    %v9406 = vpop.f32.mrf.mxu0
    %v9407 = vadd.f32 %v9142, %v9406
    %v9408 = vand.u32 %v8993, 4294901760
    %9409 = vmatmul.f32.gmra.mxu0 %v9408
    %v9410 = vpop.f32.mrf.mxu0
    %v9411 = vadd.f32 %v9150, %v9410
    %v9412 = vand.u32 %v8996, 4294901760
    %9413 = vmatmul.f32.gmra.mxu0 %v9412
    %v9414 = vpop.f32.mrf.mxu0
    %v9415 = vadd.f32 %v9158, %v9414
    %v9416 = vand.u32 %v8999, 4294901760
    %9417 = vmatmul.f32.gmra.mxu0 %v9416
    %v9418 = vpop.f32.mrf.mxu0
    %v9419 = vadd.f32 %v9166, %v9418
    %v9420 = vand.u32 %v9002, 4294901760
    %9421 = vmatmul.f32.gmra.mxu0 %v9420
    %v9422 = vpop.f32.mrf.mxu0
    %v9423 = vadd.f32 %v9174, %v9422
    %v9424 = vand.u32 %v9005, 4294901760
    %9425 = vmatmul.f32.gmra.mxu0 %v9424
    %v9426 = vpop.f32.mrf.mxu0
    %v9427 = vadd.f32 %v9182, %v9426
    %v9428 = vand.u32 %v9008, 4294901760
    %9429 = vmatmul.f32.gmra.mxu0 %v9428
    %v9430 = vpop.f32.mrf.mxu0
    %v9431 = vadd.f32 %v9190, %v9430
    %v9432 = vand.u32 %v9011, 4294901760
    %9433 = vmatmul.f32.gmra.mxu0 %v9432
    %v9434 = vpop.f32.mrf.mxu0
    %v9435 = vadd.f32 %v9198, %v9434
    %v9436 = vand.u32 %v9014, 4294901760
    %9437 = vmatmul.f32.gmra.mxu0 %v9436
    %v9438 = vpop.f32.mrf.mxu0
    %v9439 = vadd.f32 %v9206, %v9438
    %v9440 = vand.u32 %v9017, 4294901760
    %9441 = vmatmul.f32.gmra.mxu0 %v9440
    %v9442 = vpop.f32.mrf.mxu0
    %v9443 = vadd.f32 %v9214, %v9442
    %v9444 = vand.u32 %v9020, 4294901760
    %9445 = vmatmul.f32.gmra.mxu0 %v9444
    %v9446 = vpop.f32.mrf.mxu0
    %v9447 = vadd.f32 %v9222, %v9446
    %v9448 = vand.u32 %v9023, 4294901760
    %9449 = vmatmul.f32.gmra.mxu0 %v9448
    %v9450 = vpop.f32.mrf.mxu0
    %v9451 = vadd.f32 %v9230, %v9450
    %v9452 = vand.u32 %v9026, 4294901760
    %9453 = vmatmul.f32.gmra.mxu0 %v9452
    %v9454 = vpop.f32.mrf.mxu0
    %v9455 = vadd.f32 %v9238, %v9454
    %v9456 = vand.u32 %v9029, 4294901760
    %9457 = vmatmul.f32.gmra.mxu0 %v9456
    %v9458 = vpop.f32.mrf.mxu0
    %v9459 = vadd.f32 %v9246, %v9458
    %v9460 = vand.u32 %v9032, 4294901760
    %9461 = vmatmul.f32.gmra.mxu0 %v9460
    %v9462 = vpop.f32.mrf.mxu0
    %v9463 = vadd.f32 %v9254, %v9462
    %v9464 = vand.u32 %v9035, 4294901760
    %9465 = vmatmul.f32.gmra.mxu0 %v9464
    %v9466 = vpop.f32.mrf.mxu0
    %v9467 = vadd.f32 %v9262, %v9466
    %v9468 = vand.u32 %v9038, 4294901760
    %9469 = vmatmul.f32.gmra.mxu0 %v9468
    %v9470 = vpop.f32.mrf.mxu0
    %v9471 = vadd.f32 %v9270, %v9470
    %v9472 = vand.u32 %v9041, 4294901760
    %9473 = vmatmul.f32.gmra.mxu0 %v9472
    %v9474 = vpop.f32.mrf.mxu0
    %v9475 = vadd.f32 %v9278, %v9474
    %v9476 = vand.u32 %v9044, 4294901760
    %9477 = vmatmul.f32.gmra.mxu0 %v9476
    %v9478 = vpop.f32.mrf.mxu0
    %v9479 = vadd.f32 %v9286, %v9478
    %v9480 = vand.u32 %v9047, 4294901760
    %9481 = vmatmul.f32.gmra.mxu0 %v9480
    %v9482 = vpop.f32.mrf.mxu0
    %v9483 = vadd.f32 %v9294, %v9482
    %v9484 = vand.u32 %v9050, 4294901760
    %9485 = vmatmul.f32.gmra.mxu0 %v9484
    %v9486 = vpop.f32.mrf.mxu0
    %v9487 = vadd.f32 %v9302, %v9486
    %v9488 = vand.u32 %v9053, 4294901760
    %9489 = vmatmul.f32.gmra.mxu0 %v9488
    %v9490 = vpop.f32.mrf.mxu0
    %v9491 = vadd.f32 %v9310, %v9490
    %v9492 = vand.u32 %v9056, 4294901760
    %9493 = vmatmul.f32.gmra.mxu0 %v9492
    %v9494 = vpop.f32.mrf.mxu0
    %v9495 = vadd.f32 %v9318, %v9494
    %v9496 = vand.u32 %v9059, 4294901760
    %9497 = vmatmul.f32.gmra.mxu0 %v9496
    %v9498 = vpop.f32.mrf.mxu0
    %v9499 = vadd.f32 %v9326, %v9498
    %v9500 = vand.u32 %v9062, 4294901760
    %9501 = vmatmul.f32.gmra.mxu0 %v9500
    %v9502 = vpop.f32.mrf.mxu0
    %v9503 = vadd.f32 %v9334, %v9502
    %v9504 = vand.u32 %v9065, 4294901760
    %9505 = vmatmul.f32.gmra.mxu0 %v9504
    %v9506 = vpop.f32.mrf.mxu0
    %v9507 = vadd.f32 %v9342, %v9506
    %9508 = vdwg.mxu0
    %9509 = vmatpush.msra.mxu0 0.0
    %9510 = vmatpush.msra.mxu0 0.0
    %9511 = vmatpush.msra.mxu0 0.0
    %9512 = vmatpush.msra.mxu0 0.0
    %9513 = vmatpush.msra.mxu0 0.0
    %9514 = vmatpush.msra.mxu0 0.0
    %9515 = vmatpush.msra.mxu0 0.0
    %9516 = vmatpush.msra.mxu0 0.0
    %9517 = vmatpush.msra.mxu0 0.0
    %9518 = vmatpush.msra.mxu0 0.0
    %9519 = vmatpush.msra.mxu0 0.0
    %9520 = vmatpush.msra.mxu0 0.0
    %v9521 = vand.u32 %v4462, 4294901760
    %v9522 = vsub.f32 %v4462, %v9521
    %9523 = vmatpush.msra.mxu0 %v9522
    %v9524 = vand.u32 %v4460, 4294901760
    %v9525 = vsub.f32 %v4460, %v9524
    %9526 = vmatpush.msra.mxu0 %v9525
    %v9527 = vand.u32 %v4458, 4294901760
    %v9528 = vsub.f32 %v4458, %v9527
    %9529 = vmatpush.msra.mxu0 %v9528
    %v9530 = vand.u32 %v4456, 4294901760
    %v9531 = vsub.f32 %v4456, %v9530
    %9532 = vmatpush.msra.mxu0 %v9531
    %v9533 = vand.u32 %v8972, 4294901760
    %v9534 = vsub.f32 %v8972, %v9533
    %9535 = vmatmul.f32.gmra.mxu0 %v9534
    %v9536 = vpop.f32.mrf.mxu0
    %v9537 = vadd.f32 %v9383, %v9536
    %v9538 = vand.u32 %v8975, 4294901760
    %v9539 = vsub.f32 %v8975, %v9538
    %9540 = vmatmul.f32.gmra.mxu0 %v9539
    %v9541 = vpop.f32.mrf.mxu0
    %v9542 = vadd.f32 %v9387, %v9541
    %v9543 = vand.u32 %v8978, 4294901760
    %v9544 = vsub.f32 %v8978, %v9543
    %9545 = vmatmul.f32.gmra.mxu0 %v9544
    %v9546 = vpop.f32.mrf.mxu0
    %v9547 = vadd.f32 %v9391, %v9546
    %v9548 = vand.u32 %v8981, 4294901760
    %v9549 = vsub.f32 %v8981, %v9548
    %9550 = vmatmul.f32.gmra.mxu0 %v9549
    %v9551 = vpop.f32.mrf.mxu0
    %v9552 = vadd.f32 %v9395, %v9551
    %v9553 = vand.u32 %v8984, 4294901760
    %v9554 = vsub.f32 %v8984, %v9553
    %9555 = vmatmul.f32.gmra.mxu0 %v9554
    %v9556 = vpop.f32.mrf.mxu0
    %v9557 = vadd.f32 %v9399, %v9556
    %v9558 = vand.u32 %v8987, 4294901760
    %v9559 = vsub.f32 %v8987, %v9558
    %9560 = vmatmul.f32.gmra.mxu0 %v9559
    %v9561 = vpop.f32.mrf.mxu0
    %v9562 = vadd.f32 %v9403, %v9561
    %v9563 = vand.u32 %v8990, 4294901760
    %v9564 = vsub.f32 %v8990, %v9563
    %9565 = vmatmul.f32.gmra.mxu0 %v9564
    %v9566 = vpop.f32.mrf.mxu0
    %v9567 = vadd.f32 %v9407, %v9566
    %v9568 = vand.u32 %v8993, 4294901760
    %v9569 = vsub.f32 %v8993, %v9568
    %9570 = vmatmul.f32.gmra.mxu0 %v9569
    %v9571 = vpop.f32.mrf.mxu0
    %v9572 = vadd.f32 %v9411, %v9571
    %v9573 = vand.u32 %v8996, 4294901760
    %v9574 = vsub.f32 %v8996, %v9573
    %9575 = vmatmul.f32.gmra.mxu0 %v9574
    %v9576 = vpop.f32.mrf.mxu0
    %v9577 = vadd.f32 %v9415, %v9576
    %v9578 = vand.u32 %v8999, 4294901760
    %v9579 = vsub.f32 %v8999, %v9578
    %9580 = vmatmul.f32.gmra.mxu0 %v9579
    %v9581 = vpop.f32.mrf.mxu0
    %v9582 = vadd.f32 %v9419, %v9581
    %v9583 = vand.u32 %v9002, 4294901760
    %v9584 = vsub.f32 %v9002, %v9583
    %9585 = vmatmul.f32.gmra.mxu0 %v9584
    %v9586 = vpop.f32.mrf.mxu0
    %v9587 = vadd.f32 %v9423, %v9586
    %v9588 = vand.u32 %v9005, 4294901760
    %v9589 = vsub.f32 %v9005, %v9588
    %9590 = vmatmul.f32.gmra.mxu0 %v9589
    %v9591 = vpop.f32.mrf.mxu0
    %v9592 = vadd.f32 %v9427, %v9591
    %v9593 = vand.u32 %v9008, 4294901760
    %v9594 = vsub.f32 %v9008, %v9593
    %9595 = vmatmul.f32.gmra.mxu0 %v9594
    %v9596 = vpop.f32.mrf.mxu0
    %v9597 = vadd.f32 %v9431, %v9596
    %v9598 = vand.u32 %v9011, 4294901760
    %v9599 = vsub.f32 %v9011, %v9598
    %9600 = vmatmul.f32.gmra.mxu0 %v9599
    %v9601 = vpop.f32.mrf.mxu0
    %v9602 = vadd.f32 %v9435, %v9601
    %v9603 = vand.u32 %v9014, 4294901760
    %v9604 = vsub.f32 %v9014, %v9603
    %9605 = vmatmul.f32.gmra.mxu0 %v9604
    %v9606 = vpop.f32.mrf.mxu0
    %v9607 = vadd.f32 %v9439, %v9606
    %v9608 = vand.u32 %v9017, 4294901760
    %v9609 = vsub.f32 %v9017, %v9608
    %9610 = vmatmul.f32.gmra.mxu0 %v9609
    %v9611 = vpop.f32.mrf.mxu0
    %v9612 = vadd.f32 %v9443, %v9611
    %v9613 = vand.u32 %v9020, 4294901760
    %v9614 = vsub.f32 %v9020, %v9613
    %9615 = vmatmul.f32.gmra.mxu0 %v9614
    %v9616 = vpop.f32.mrf.mxu0
    %v9617 = vadd.f32 %v9447, %v9616
    %v9618 = vand.u32 %v9023, 4294901760
    %v9619 = vsub.f32 %v9023, %v9618
    %9620 = vmatmul.f32.gmra.mxu0 %v9619
    %v9621 = vpop.f32.mrf.mxu0
    %v9622 = vadd.f32 %v9451, %v9621
    %v9623 = vand.u32 %v9026, 4294901760
    %v9624 = vsub.f32 %v9026, %v9623
    %9625 = vmatmul.f32.gmra.mxu0 %v9624
    %v9626 = vpop.f32.mrf.mxu0
    %v9627 = vadd.f32 %v9455, %v9626
    %v9628 = vand.u32 %v9029, 4294901760
    %v9629 = vsub.f32 %v9029, %v9628
    %9630 = vmatmul.f32.gmra.mxu0 %v9629
    %v9631 = vpop.f32.mrf.mxu0
    %v9632 = vadd.f32 %v9459, %v9631
    %v9633 = vand.u32 %v9032, 4294901760
    %v9634 = vsub.f32 %v9032, %v9633
    %9635 = vmatmul.f32.gmra.mxu0 %v9634
    %v9636 = vpop.f32.mrf.mxu0
    %v9637 = vadd.f32 %v9463, %v9636
    %v9638 = vand.u32 %v9035, 4294901760
    %v9639 = vsub.f32 %v9035, %v9638
    %9640 = vmatmul.f32.gmra.mxu0 %v9639
    %v9641 = vpop.f32.mrf.mxu0
    %v9642 = vadd.f32 %v9467, %v9641
    %v9643 = vand.u32 %v9038, 4294901760
    %v9644 = vsub.f32 %v9038, %v9643
    %9645 = vmatmul.f32.gmra.mxu0 %v9644
    %v9646 = vpop.f32.mrf.mxu0
    %v9647 = vadd.f32 %v9471, %v9646
    %v9648 = vand.u32 %v9041, 4294901760
    %v9649 = vsub.f32 %v9041, %v9648
    %9650 = vmatmul.f32.gmra.mxu0 %v9649
    %v9651 = vpop.f32.mrf.mxu0
    %v9652 = vadd.f32 %v9475, %v9651
    %v9653 = vand.u32 %v9044, 4294901760
    %v9654 = vsub.f32 %v9044, %v9653
    %9655 = vmatmul.f32.gmra.mxu0 %v9654
    %v9656 = vpop.f32.mrf.mxu0
    %v9657 = vadd.f32 %v9479, %v9656
    %v9658 = vand.u32 %v9047, 4294901760
    %v9659 = vsub.f32 %v9047, %v9658
    %9660 = vmatmul.f32.gmra.mxu0 %v9659
    %v9661 = vpop.f32.mrf.mxu0
    %v9662 = vadd.f32 %v9483, %v9661
    %v9663 = vand.u32 %v9050, 4294901760
    %v9664 = vsub.f32 %v9050, %v9663
    %9665 = vmatmul.f32.gmra.mxu0 %v9664
    %v9666 = vpop.f32.mrf.mxu0
    %v9667 = vadd.f32 %v9487, %v9666
    %v9668 = vand.u32 %v9053, 4294901760
    %v9669 = vsub.f32 %v9053, %v9668
    %9670 = vmatmul.f32.gmra.mxu0 %v9669
    %v9671 = vpop.f32.mrf.mxu0
    %v9672 = vadd.f32 %v9491, %v9671
    %v9673 = vand.u32 %v9056, 4294901760
    %v9674 = vsub.f32 %v9056, %v9673
    %9675 = vmatmul.f32.gmra.mxu0 %v9674
    %v9676 = vpop.f32.mrf.mxu0
    %v9677 = vadd.f32 %v9495, %v9676
    %v9678 = vand.u32 %v9059, 4294901760
    %v9679 = vsub.f32 %v9059, %v9678
    %9680 = vmatmul.f32.gmra.mxu0 %v9679
    %v9681 = vpop.f32.mrf.mxu0
    %v9682 = vadd.f32 %v9499, %v9681
    %v9683 = vand.u32 %v9062, 4294901760
    %v9684 = vsub.f32 %v9062, %v9683
    %9685 = vmatmul.f32.gmra.mxu0 %v9684
    %v9686 = vpop.f32.mrf.mxu0
    %v9687 = vadd.f32 %v9503, %v9686
    %v9688 = vand.u32 %v9065, 4294901760
    %v9689 = vsub.f32 %v9065, %v9688
    %9690 = vmatmul.f32.gmra.mxu0 %v9689
    %v9691 = vpop.f32.mrf.mxu0
    %v9692 = vadd.f32 %v9507, %v9691
    %9693 = vdwg.mxu0
    %9694 = vmatpush.msra.mxu0 0.0
    %9695 = vmatpush.msra.mxu0 0.0
    %9696 = vmatpush.msra.mxu0 0.0
    %9697 = vmatpush.msra.mxu0 0.0
    %9698 = vmatpush.msra.mxu0 0.0
    %9699 = vmatpush.msra.mxu0 0.0
    %9700 = vmatpush.msra.mxu0 0.0
    %9701 = vmatpush.msra.mxu0 0.0
    %9702 = vmatpush.msra.mxu0 0.0
    %9703 = vmatpush.msra.mxu0 0.0
    %9704 = vmatpush.msra.mxu0 0.0
    %9705 = vmatpush.msra.mxu0 0.0
    %v9706 = vand.u32 %v4462, 4294901760
    %9707 = vmatpush.msra.mxu0 %v9706
    %v9708 = vand.u32 %v4460, 4294901760
    %9709 = vmatpush.msra.mxu0 %v9708
    %v9710 = vand.u32 %v4458, 4294901760
    %9711 = vmatpush.msra.mxu0 %v9710
    %v9712 = vand.u32 %v4456, 4294901760
    %9713 = vmatpush.msra.mxu0 %v9712
    %v9714 = vand.u32 %v8972, 4294901760
    %v9715 = vsub.f32 %v8972, %v9714
    %v9716 = vand.u32 %v9715, 4294901760
    %9717 = vmatmul.f32.gmra.mxu0 %v9716
    %v9718 = vpop.f32.mrf.mxu0
    %v9719 = vadd.f32 %v9537, %v9718
    %v9720 = vand.u32 %v8975, 4294901760
    %v9721 = vsub.f32 %v8975, %v9720
    %v9722 = vand.u32 %v9721, 4294901760
    %9723 = vmatmul.f32.gmra.mxu0 %v9722
    %v9724 = vpop.f32.mrf.mxu0
    %v9725 = vadd.f32 %v9542, %v9724
    %v9726 = vand.u32 %v8978, 4294901760
    %v9727 = vsub.f32 %v8978, %v9726
    %v9728 = vand.u32 %v9727, 4294901760
    %9729 = vmatmul.f32.gmra.mxu0 %v9728
    %v9730 = vpop.f32.mrf.mxu0
    %v9731 = vadd.f32 %v9547, %v9730
    %v9732 = vand.u32 %v8981, 4294901760
    %v9733 = vsub.f32 %v8981, %v9732
    %v9734 = vand.u32 %v9733, 4294901760
    %9735 = vmatmul.f32.gmra.mxu0 %v9734
    %v9736 = vpop.f32.mrf.mxu0
    %v9737 = vadd.f32 %v9552, %v9736
    %v9738 = vand.u32 %v8984, 4294901760
    %v9739 = vsub.f32 %v8984, %v9738
    %v9740 = vand.u32 %v9739, 4294901760
    %9741 = vmatmul.f32.gmra.mxu0 %v9740
    %v9742 = vpop.f32.mrf.mxu0
    %v9743 = vadd.f32 %v9557, %v9742
    %v9744 = vand.u32 %v8987, 4294901760
    %v9745 = vsub.f32 %v8987, %v9744
    %v9746 = vand.u32 %v9745, 4294901760
    %9747 = vmatmul.f32.gmra.mxu0 %v9746
    %v9748 = vpop.f32.mrf.mxu0
    %v9749 = vadd.f32 %v9562, %v9748
    %v9750 = vand.u32 %v8990, 4294901760
    %v9751 = vsub.f32 %v8990, %v9750
    %v9752 = vand.u32 %v9751, 4294901760
    %9753 = vmatmul.f32.gmra.mxu0 %v9752
    %v9754 = vpop.f32.mrf.mxu0
    %v9755 = vadd.f32 %v9567, %v9754
    %v9756 = vand.u32 %v8993, 4294901760
    %v9757 = vsub.f32 %v8993, %v9756
    %v9758 = vand.u32 %v9757, 4294901760
    %9759 = vmatmul.f32.gmra.mxu0 %v9758
    %v9760 = vpop.f32.mrf.mxu0
    %v9761 = vadd.f32 %v9572, %v9760
    %v9762 = vand.u32 %v8996, 4294901760
    %v9763 = vsub.f32 %v8996, %v9762
    %v9764 = vand.u32 %v9763, 4294901760
    %9765 = vmatmul.f32.gmra.mxu0 %v9764
    %v9766 = vpop.f32.mrf.mxu0
    %v9767 = vadd.f32 %v9577, %v9766
    %v9768 = vand.u32 %v8999, 4294901760
    %v9769 = vsub.f32 %v8999, %v9768
    %v9770 = vand.u32 %v9769, 4294901760
    %9771 = vmatmul.f32.gmra.mxu0 %v9770
    %v9772 = vpop.f32.mrf.mxu0
    %v9773 = vadd.f32 %v9582, %v9772
    %v9774 = vand.u32 %v9002, 4294901760
    %v9775 = vsub.f32 %v9002, %v9774
    %v9776 = vand.u32 %v9775, 4294901760
    %9777 = vmatmul.f32.gmra.mxu0 %v9776
    %v9778 = vpop.f32.mrf.mxu0
    %v9779 = vadd.f32 %v9587, %v9778
    %v9780 = vand.u32 %v9005, 4294901760
    %v9781 = vsub.f32 %v9005, %v9780
    %v9782 = vand.u32 %v9781, 4294901760
    %9783 = vmatmul.f32.gmra.mxu0 %v9782
    %v9784 = vpop.f32.mrf.mxu0
    %v9785 = vadd.f32 %v9592, %v9784
    %v9786 = vand.u32 %v9008, 4294901760
    %v9787 = vsub.f32 %v9008, %v9786
    %v9788 = vand.u32 %v9787, 4294901760
    %9789 = vmatmul.f32.gmra.mxu0 %v9788
    %v9790 = vpop.f32.mrf.mxu0
    %v9791 = vadd.f32 %v9597, %v9790
    %v9792 = vand.u32 %v9011, 4294901760
    %v9793 = vsub.f32 %v9011, %v9792
    %v9794 = vand.u32 %v9793, 4294901760
    %9795 = vmatmul.f32.gmra.mxu0 %v9794
    %v9796 = vpop.f32.mrf.mxu0
    %v9797 = vadd.f32 %v9602, %v9796
    %v9798 = vand.u32 %v9014, 4294901760
    %v9799 = vsub.f32 %v9014, %v9798
    %v9800 = vand.u32 %v9799, 4294901760
    %9801 = vmatmul.f32.gmra.mxu0 %v9800
    %v9802 = vpop.f32.mrf.mxu0
    %v9803 = vadd.f32 %v9607, %v9802
    %v9804 = vand.u32 %v9017, 4294901760
    %v9805 = vsub.f32 %v9017, %v9804
    %v9806 = vand.u32 %v9805, 4294901760
    %9807 = vmatmul.f32.gmra.mxu0 %v9806
    %v9808 = vpop.f32.mrf.mxu0
    %v9809 = vadd.f32 %v9612, %v9808
    %v9810 = vand.u32 %v9020, 4294901760
    %v9811 = vsub.f32 %v9020, %v9810
    %v9812 = vand.u32 %v9811, 4294901760
    %9813 = vmatmul.f32.gmra.mxu0 %v9812
    %v9814 = vpop.f32.mrf.mxu0
    %v9815 = vadd.f32 %v9617, %v9814
    %v9816 = vand.u32 %v9023, 4294901760
    %v9817 = vsub.f32 %v9023, %v9816
    %v9818 = vand.u32 %v9817, 4294901760
    %9819 = vmatmul.f32.gmra.mxu0 %v9818
    %v9820 = vpop.f32.mrf.mxu0
    %v9821 = vadd.f32 %v9622, %v9820
    %v9822 = vand.u32 %v9026, 4294901760
    %v9823 = vsub.f32 %v9026, %v9822
    %v9824 = vand.u32 %v9823, 4294901760
    %9825 = vmatmul.f32.gmra.mxu0 %v9824
    %v9826 = vpop.f32.mrf.mxu0
    %v9827 = vadd.f32 %v9627, %v9826
    %v9828 = vand.u32 %v9029, 4294901760
    %v9829 = vsub.f32 %v9029, %v9828
    %v9830 = vand.u32 %v9829, 4294901760
    %9831 = vmatmul.f32.gmra.mxu0 %v9830
    %v9832 = vpop.f32.mrf.mxu0
    %v9833 = vadd.f32 %v9632, %v9832
    %v9834 = vand.u32 %v9032, 4294901760
    %v9835 = vsub.f32 %v9032, %v9834
    %v9836 = vand.u32 %v9835, 4294901760
    %9837 = vmatmul.f32.gmra.mxu0 %v9836
    %v9838 = vpop.f32.mrf.mxu0
    %v9839 = vadd.f32 %v9637, %v9838
    %v9840 = vand.u32 %v9035, 4294901760
    %v9841 = vsub.f32 %v9035, %v9840
    %v9842 = vand.u32 %v9841, 4294901760
    %9843 = vmatmul.f32.gmra.mxu0 %v9842
    %v9844 = vpop.f32.mrf.mxu0
    %v9845 = vadd.f32 %v9642, %v9844
    %v9846 = vand.u32 %v9038, 4294901760
    %v9847 = vsub.f32 %v9038, %v9846
    %v9848 = vand.u32 %v9847, 4294901760
    %9849 = vmatmul.f32.gmra.mxu0 %v9848
    %v9850 = vpop.f32.mrf.mxu0
    %v9851 = vadd.f32 %v9647, %v9850
    %v9852 = vand.u32 %v9041, 4294901760
    %v9853 = vsub.f32 %v9041, %v9852
    %v9854 = vand.u32 %v9853, 4294901760
    %9855 = vmatmul.f32.gmra.mxu0 %v9854
    %v9856 = vpop.f32.mrf.mxu0
    %v9857 = vadd.f32 %v9652, %v9856
    %v9858 = vand.u32 %v9044, 4294901760
    %v9859 = vsub.f32 %v9044, %v9858
    %v9860 = vand.u32 %v9859, 4294901760
    %9861 = vmatmul.f32.gmra.mxu0 %v9860
    %v9862 = vpop.f32.mrf.mxu0
    %v9863 = vadd.f32 %v9657, %v9862
    %v9864 = vand.u32 %v9047, 4294901760
    %v9865 = vsub.f32 %v9047, %v9864
    %v9866 = vand.u32 %v9865, 4294901760
    %9867 = vmatmul.f32.gmra.mxu0 %v9866
    %v9868 = vpop.f32.mrf.mxu0
    %v9869 = vadd.f32 %v9662, %v9868
    %v9870 = vand.u32 %v9050, 4294901760
    %v9871 = vsub.f32 %v9050, %v9870
    %v9872 = vand.u32 %v9871, 4294901760
    %9873 = vmatmul.f32.gmra.mxu0 %v9872
    %v9874 = vpop.f32.mrf.mxu0
    %v9875 = vadd.f32 %v9667, %v9874
    %v9876 = vand.u32 %v9053, 4294901760
    %v9877 = vsub.f32 %v9053, %v9876
    %v9878 = vand.u32 %v9877, 4294901760
    %9879 = vmatmul.f32.gmra.mxu0 %v9878
    %v9880 = vpop.f32.mrf.mxu0
    %v9881 = vadd.f32 %v9672, %v9880
    %v9882 = vand.u32 %v9056, 4294901760
    %v9883 = vsub.f32 %v9056, %v9882
    %v9884 = vand.u32 %v9883, 4294901760
    %9885 = vmatmul.f32.gmra.mxu0 %v9884
    %v9886 = vpop.f32.mrf.mxu0
    %v9887 = vadd.f32 %v9677, %v9886
    %v9888 = vand.u32 %v9059, 4294901760
    %v9889 = vsub.f32 %v9059, %v9888
    %v9890 = vand.u32 %v9889, 4294901760
    %9891 = vmatmul.f32.gmra.mxu0 %v9890
    %v9892 = vpop.f32.mrf.mxu0
    %v9893 = vadd.f32 %v9682, %v9892
    %v9894 = vand.u32 %v9062, 4294901760
    %v9895 = vsub.f32 %v9062, %v9894
    %v9896 = vand.u32 %v9895, 4294901760
    %9897 = vmatmul.f32.gmra.mxu0 %v9896
    %v9898 = vpop.f32.mrf.mxu0
    %v9899 = vadd.f32 %v9687, %v9898
    %v9900 = vand.u32 %v9065, 4294901760
    %v9901 = vsub.f32 %v9065, %v9900
    %v9902 = vand.u32 %v9901, 4294901760
    %9903 = vmatmul.f32.gmra.mxu0 %v9902
    %v9904 = vpop.f32.mrf.mxu0
    %v9905 = vadd.f32 %v9692, %v9904
    %9906 = vdwg.mxu0
    %9907 = vmatpush.msra.mxu0 0.0
    %9908 = vmatpush.msra.mxu0 0.0
    %9909 = vmatpush.msra.mxu0 0.0
    %9910 = vmatpush.msra.mxu0 0.0
    %9911 = vmatpush.msra.mxu0 0.0
    %9912 = vmatpush.msra.mxu0 0.0
    %9913 = vmatpush.msra.mxu0 0.0
    %9914 = vmatpush.msra.mxu0 0.0
    %9915 = vmatpush.msra.mxu0 0.0
    %9916 = vmatpush.msra.mxu0 0.0
    %9917 = vmatpush.msra.mxu0 0.0
    %9918 = vmatpush.msra.mxu0 0.0
    %v9919 = vand.u32 %v4462, 4294901760
    %v9920 = vsub.f32 %v4462, %v9919
    %v9921 = vand.u32 %v9920, 4294901760
    %9922 = vmatpush.msra.mxu0 %v9921
    %v9923 = vand.u32 %v4460, 4294901760
    %v9924 = vsub.f32 %v4460, %v9923
    %v9925 = vand.u32 %v9924, 4294901760
    %9926 = vmatpush.msra.mxu0 %v9925
    %v9927 = vand.u32 %v4458, 4294901760
    %v9928 = vsub.f32 %v4458, %v9927
    %v9929 = vand.u32 %v9928, 4294901760
    %9930 = vmatpush.msra.mxu0 %v9929
    %v9931 = vand.u32 %v4456, 4294901760
    %v9932 = vsub.f32 %v4456, %v9931
    %v9933 = vand.u32 %v9932, 4294901760
    %9934 = vmatpush.msra.mxu0 %v9933
    %v9935 = vand.u32 %v8972, 4294901760
    %9936 = vmatmul.f32.gmra.mxu0 %v9935
    %v9937 = vpop.f32.mrf.mxu0
    %v9938 = vadd.f32 %v9719, %v9937
    %v9939 = vand.u32 %v8975, 4294901760
    %9940 = vmatmul.f32.gmra.mxu0 %v9939
    %v9941 = vpop.f32.mrf.mxu0
    %v9942 = vadd.f32 %v9725, %v9941
    %v9943 = vand.u32 %v8978, 4294901760
    %9944 = vmatmul.f32.gmra.mxu0 %v9943
    %v9945 = vpop.f32.mrf.mxu0
    %v9946 = vadd.f32 %v9731, %v9945
    %v9947 = vand.u32 %v8981, 4294901760
    %9948 = vmatmul.f32.gmra.mxu0 %v9947
    %v9949 = vpop.f32.mrf.mxu0
    %v9950 = vadd.f32 %v9737, %v9949
    %v9951 = vand.u32 %v8984, 4294901760
    %9952 = vmatmul.f32.gmra.mxu0 %v9951
    %v9953 = vpop.f32.mrf.mxu0
    %v9954 = vadd.f32 %v9743, %v9953
    %v9955 = vand.u32 %v8987, 4294901760
    %9956 = vmatmul.f32.gmra.mxu0 %v9955
    %v9957 = vpop.f32.mrf.mxu0
    %v9958 = vadd.f32 %v9749, %v9957
    %v9959 = vand.u32 %v8990, 4294901760
    %9960 = vmatmul.f32.gmra.mxu0 %v9959
    %v9961 = vpop.f32.mrf.mxu0
    %v9962 = vadd.f32 %v9755, %v9961
    %v9963 = vand.u32 %v8993, 4294901760
    %9964 = vmatmul.f32.gmra.mxu0 %v9963
    %v9965 = vpop.f32.mrf.mxu0
    %v9966 = vadd.f32 %v9761, %v9965
    %v9967 = vand.u32 %v8996, 4294901760
    %9968 = vmatmul.f32.gmra.mxu0 %v9967
    %v9969 = vpop.f32.mrf.mxu0
    %v9970 = vadd.f32 %v9767, %v9969
    %v9971 = vand.u32 %v8999, 4294901760
    %9972 = vmatmul.f32.gmra.mxu0 %v9971
    %v9973 = vpop.f32.mrf.mxu0
    %v9974 = vadd.f32 %v9773, %v9973
    %v9975 = vand.u32 %v9002, 4294901760
    %9976 = vmatmul.f32.gmra.mxu0 %v9975
    %v9977 = vpop.f32.mrf.mxu0
    %v9978 = vadd.f32 %v9779, %v9977
    %v9979 = vand.u32 %v9005, 4294901760
    %9980 = vmatmul.f32.gmra.mxu0 %v9979
    %v9981 = vpop.f32.mrf.mxu0
    %v9982 = vadd.f32 %v9785, %v9981
    %v9983 = vand.u32 %v9008, 4294901760
    %9984 = vmatmul.f32.gmra.mxu0 %v9983
    %v9985 = vpop.f32.mrf.mxu0
    %v9986 = vadd.f32 %v9791, %v9985
    %v9987 = vand.u32 %v9011, 4294901760
    %9988 = vmatmul.f32.gmra.mxu0 %v9987
    %v9989 = vpop.f32.mrf.mxu0
    %v9990 = vadd.f32 %v9797, %v9989
    %v9991 = vand.u32 %v9014, 4294901760
    %9992 = vmatmul.f32.gmra.mxu0 %v9991
    %v9993 = vpop.f32.mrf.mxu0
    %v9994 = vadd.f32 %v9803, %v9993
    %v9995 = vand.u32 %v9017, 4294901760
    %9996 = vmatmul.f32.gmra.mxu0 %v9995
    %v9997 = vpop.f32.mrf.mxu0
    %v9998 = vadd.f32 %v9809, %v9997
    %v9999 = vand.u32 %v9020, 4294901760
    %10000 = vmatmul.f32.gmra.mxu0 %v9999
    %v10001 = vpop.f32.mrf.mxu0
    %v10002 = vadd.f32 %v9815, %v10001
    %v10003 = vand.u32 %v9023, 4294901760
    %10004 = vmatmul.f32.gmra.mxu0 %v10003
    %v10005 = vpop.f32.mrf.mxu0
    %v10006 = vadd.f32 %v9821, %v10005
    %v10007 = vand.u32 %v9026, 4294901760
    %10008 = vmatmul.f32.gmra.mxu0 %v10007
    %v10009 = vpop.f32.mrf.mxu0
    %v10010 = vadd.f32 %v9827, %v10009
    %v10011 = vand.u32 %v9029, 4294901760
    %10012 = vmatmul.f32.gmra.mxu0 %v10011
    %v10013 = vpop.f32.mrf.mxu0
    %v10014 = vadd.f32 %v9833, %v10013
    %v10015 = vand.u32 %v9032, 4294901760
    %10016 = vmatmul.f32.gmra.mxu0 %v10015
    %v10017 = vpop.f32.mrf.mxu0
    %v10018 = vadd.f32 %v9839, %v10017
    %v10019 = vand.u32 %v9035, 4294901760
    %10020 = vmatmul.f32.gmra.mxu0 %v10019
    %v10021 = vpop.f32.mrf.mxu0
    %v10022 = vadd.f32 %v9845, %v10021
    %v10023 = vand.u32 %v9038, 4294901760
    %10024 = vmatmul.f32.gmra.mxu0 %v10023
    %v10025 = vpop.f32.mrf.mxu0
    %v10026 = vadd.f32 %v9851, %v10025
    %v10027 = vand.u32 %v9041, 4294901760
    %10028 = vmatmul.f32.gmra.mxu0 %v10027
    %v10029 = vpop.f32.mrf.mxu0
    %v10030 = vadd.f32 %v9857, %v10029
    %v10031 = vand.u32 %v9044, 4294901760
    %10032 = vmatmul.f32.gmra.mxu0 %v10031
    %v10033 = vpop.f32.mrf.mxu0
    %v10034 = vadd.f32 %v9863, %v10033
    %v10035 = vand.u32 %v9047, 4294901760
    %10036 = vmatmul.f32.gmra.mxu0 %v10035
    %v10037 = vpop.f32.mrf.mxu0
    %v10038 = vadd.f32 %v9869, %v10037
    %v10039 = vand.u32 %v9050, 4294901760
    %10040 = vmatmul.f32.gmra.mxu0 %v10039
    %v10041 = vpop.f32.mrf.mxu0
    %v10042 = vadd.f32 %v9875, %v10041
    %v10043 = vand.u32 %v9053, 4294901760
    %10044 = vmatmul.f32.gmra.mxu0 %v10043
    %v10045 = vpop.f32.mrf.mxu0
    %v10046 = vadd.f32 %v9881, %v10045
    %v10047 = vand.u32 %v9056, 4294901760
    %10048 = vmatmul.f32.gmra.mxu0 %v10047
    %v10049 = vpop.f32.mrf.mxu0
    %v10050 = vadd.f32 %v9887, %v10049
    %v10051 = vand.u32 %v9059, 4294901760
    %10052 = vmatmul.f32.gmra.mxu0 %v10051
    %v10053 = vpop.f32.mrf.mxu0
    %v10054 = vadd.f32 %v9893, %v10053
    %v10055 = vand.u32 %v9062, 4294901760
    %10056 = vmatmul.f32.gmra.mxu0 %v10055
    %v10057 = vpop.f32.mrf.mxu0
    %v10058 = vadd.f32 %v9899, %v10057
    %v10059 = vand.u32 %v9065, 4294901760
    %10060 = vmatmul.f32.gmra.mxu0 %v10059
    %v10061 = vpop.f32.mrf.mxu0
    %v10062 = vadd.f32 %v9905, %v10061
    %10063 = vdwg.mxu0
    %10064 = vmatpush.msra.mxu0 0.0
    %10065 = vmatpush.msra.mxu0 0.0
    %10066 = vmatpush.msra.mxu0 0.0
    %10067 = vmatpush.msra.mxu0 0.0
    %10068 = vmatpush.msra.mxu0 0.0
    %10069 = vmatpush.msra.mxu0 0.0
    %10070 = vmatpush.msra.mxu0 0.0
    %10071 = vmatpush.msra.mxu0 0.0
    %10072 = vmatpush.msra.mxu0 0.0
    %10073 = vmatpush.msra.mxu0 0.0
    %10074 = vmatpush.msra.mxu0 0.0
    %10075 = vmatpush.msra.mxu0 0.0
    %v10076 = vand.u32 %v4462, 4294901760
    %10077 = vmatpush.msra.mxu0 %v10076
    %v10078 = vand.u32 %v4460, 4294901760
    %10079 = vmatpush.msra.mxu0 %v10078
    %v10080 = vand.u32 %v4458, 4294901760
    %10081 = vmatpush.msra.mxu0 %v10080
    %v10082 = vand.u32 %v4456, 4294901760
    %10083 = vmatpush.msra.mxu0 %v10082
    %v10084 = vand.u32 %v8972, 4294901760
    %10085 = vmatmul.f32.gmra.mxu0 %v10084
    %v10086 = vpop.f32.mrf.mxu0
    %v10087 = vadd.f32 %v9938, %v10086
    %v10088 = vand.u32 %v8975, 4294901760
    %10089 = vmatmul.f32.gmra.mxu0 %v10088
    %v10090 = vpop.f32.mrf.mxu0
    %v10091 = vadd.f32 %v9942, %v10090
    %v10092 = vand.u32 %v8978, 4294901760
    %10093 = vmatmul.f32.gmra.mxu0 %v10092
    %v10094 = vpop.f32.mrf.mxu0
    %v10095 = vadd.f32 %v9946, %v10094
    %v10096 = vand.u32 %v8981, 4294901760
    %10097 = vmatmul.f32.gmra.mxu0 %v10096
    %v10098 = vpop.f32.mrf.mxu0
    %v10099 = vadd.f32 %v9950, %v10098
    %v10100 = vand.u32 %v8984, 4294901760
    %10101 = vmatmul.f32.gmra.mxu0 %v10100
    %v10102 = vpop.f32.mrf.mxu0
    %v10103 = vadd.f32 %v9954, %v10102
    %v10104 = vand.u32 %v8987, 4294901760
    %10105 = vmatmul.f32.gmra.mxu0 %v10104
    %v10106 = vpop.f32.mrf.mxu0
    %v10107 = vadd.f32 %v9958, %v10106
    %v10108 = vand.u32 %v8990, 4294901760
    %10109 = vmatmul.f32.gmra.mxu0 %v10108
    %v10110 = vpop.f32.mrf.mxu0
    %v10111 = vadd.f32 %v9962, %v10110
    %v10112 = vand.u32 %v8993, 4294901760
    %10113 = vmatmul.f32.gmra.mxu0 %v10112
    %v10114 = vpop.f32.mrf.mxu0
    %v10115 = vadd.f32 %v9966, %v10114
    %v10116 = vand.u32 %v8996, 4294901760
    %10117 = vmatmul.f32.gmra.mxu0 %v10116
    %v10118 = vpop.f32.mrf.mxu0
    %v10119 = vadd.f32 %v9970, %v10118
    %v10120 = vand.u32 %v8999, 4294901760
    %10121 = vmatmul.f32.gmra.mxu0 %v10120
    %v10122 = vpop.f32.mrf.mxu0
    %v10123 = vadd.f32 %v9974, %v10122
    %v10124 = vand.u32 %v9002, 4294901760
    %10125 = vmatmul.f32.gmra.mxu0 %v10124
    %v10126 = vpop.f32.mrf.mxu0
    %v10127 = vadd.f32 %v9978, %v10126
    %v10128 = vand.u32 %v9005, 4294901760
    %10129 = vmatmul.f32.gmra.mxu0 %v10128
    %v10130 = vpop.f32.mrf.mxu0
    %v10131 = vadd.f32 %v9982, %v10130
    %v10132 = vand.u32 %v9008, 4294901760
    %10133 = vmatmul.f32.gmra.mxu0 %v10132
    %v10134 = vpop.f32.mrf.mxu0
    %v10135 = vadd.f32 %v9986, %v10134
    %v10136 = vand.u32 %v9011, 4294901760
    %10137 = vmatmul.f32.gmra.mxu0 %v10136
    %v10138 = vpop.f32.mrf.mxu0
    %v10139 = vadd.f32 %v9990, %v10138
    %v10140 = vand.u32 %v9014, 4294901760
    %10141 = vmatmul.f32.gmra.mxu0 %v10140
    %v10142 = vpop.f32.mrf.mxu0
    %v10143 = vadd.f32 %v9994, %v10142
    %v10144 = vand.u32 %v9017, 4294901760
    %10145 = vmatmul.f32.gmra.mxu0 %v10144
    %v10146 = vpop.f32.mrf.mxu0
    %v10147 = vadd.f32 %v9998, %v10146
    %v10148 = vand.u32 %v9020, 4294901760
    %10149 = vmatmul.f32.gmra.mxu0 %v10148
    %v10150 = vpop.f32.mrf.mxu0
    %v10151 = vadd.f32 %v10002, %v10150
    %v10152 = vand.u32 %v9023, 4294901760
    %10153 = vmatmul.f32.gmra.mxu0 %v10152
    %v10154 = vpop.f32.mrf.mxu0
    %v10155 = vadd.f32 %v10006, %v10154
    %v10156 = vand.u32 %v9026, 4294901760
    %10157 = vmatmul.f32.gmra.mxu0 %v10156
    %v10158 = vpop.f32.mrf.mxu0
    %v10159 = vadd.f32 %v10010, %v10158
    %v10160 = vand.u32 %v9029, 4294901760
    %10161 = vmatmul.f32.gmra.mxu0 %v10160
    %v10162 = vpop.f32.mrf.mxu0
    %v10163 = vadd.f32 %v10014, %v10162
    %v10164 = vand.u32 %v9032, 4294901760
    %10165 = vmatmul.f32.gmra.mxu0 %v10164
    %v10166 = vpop.f32.mrf.mxu0
    %v10167 = vadd.f32 %v10018, %v10166
    %v10168 = vand.u32 %v9035, 4294901760
    %10169 = vmatmul.f32.gmra.mxu0 %v10168
    %v10170 = vpop.f32.mrf.mxu0
    %v10171 = vadd.f32 %v10022, %v10170
    %v10172 = vand.u32 %v9038, 4294901760
    %10173 = vmatmul.f32.gmra.mxu0 %v10172
    %v10174 = vpop.f32.mrf.mxu0
    %v10175 = vadd.f32 %v10026, %v10174
    %v10176 = vand.u32 %v9041, 4294901760
    %10177 = vmatmul.f32.gmra.mxu0 %v10176
    %v10178 = vpop.f32.mrf.mxu0
    %v10179 = vadd.f32 %v10030, %v10178
    %v10180 = vand.u32 %v9044, 4294901760
    %10181 = vmatmul.f32.gmra.mxu0 %v10180
    %v10182 = vpop.f32.mrf.mxu0
    %v10183 = vadd.f32 %v10034, %v10182
    %v10184 = vand.u32 %v9047, 4294901760
    %10185 = vmatmul.f32.gmra.mxu0 %v10184
    %v10186 = vpop.f32.mrf.mxu0
    %v10187 = vadd.f32 %v10038, %v10186
    %v10188 = vand.u32 %v9050, 4294901760
    %10189 = vmatmul.f32.gmra.mxu0 %v10188
    %v10190 = vpop.f32.mrf.mxu0
    %v10191 = vadd.f32 %v10042, %v10190
    %v10192 = vand.u32 %v9053, 4294901760
    %10193 = vmatmul.f32.gmra.mxu0 %v10192
    %v10194 = vpop.f32.mrf.mxu0
    %v10195 = vadd.f32 %v10046, %v10194
    %v10196 = vand.u32 %v9056, 4294901760
    %10197 = vmatmul.f32.gmra.mxu0 %v10196
    %v10198 = vpop.f32.mrf.mxu0
    %v10199 = vadd.f32 %v10050, %v10198
    %v10200 = vand.u32 %v9059, 4294901760
    %10201 = vmatmul.f32.gmra.mxu0 %v10200
    %v10202 = vpop.f32.mrf.mxu0
    %v10203 = vadd.f32 %v10054, %v10202
    %v10204 = vand.u32 %v9062, 4294901760
    %10205 = vmatmul.f32.gmra.mxu0 %v10204
    %v10206 = vpop.f32.mrf.mxu0
    %v10207 = vadd.f32 %v10058, %v10206
    %v10208 = vand.u32 %v9065, 4294901760
    %10209 = vmatmul.f32.gmra.mxu0 %v10208
    %v10210 = vpop.f32.mrf.mxu0
    %v10211 = vadd.f32 %v10062, %v10210
    %10212 = vdwg.mxu0
    %10213 = vmatpush.msra.mxu0 0.0
    %10214 = vmatpush.msra.mxu0 0.0
    %10215 = vmatpush.msra.mxu0 0.0
    %10216 = vmatpush.msra.mxu0 0.0
    %10217 = vmatpush.msra.mxu0 0.0
    %10218 = vmatpush.msra.mxu0 0.0
    %10219 = vmatpush.msra.mxu0 0.0
    %10220 = vmatpush.msra.mxu0 0.0
    %10221 = vmatpush.msra.mxu0 0.0
    %10222 = vmatpush.msra.mxu0 0.0
    %10223 = vmatpush.msra.mxu0 0.0
    %10224 = vmatpush.msra.mxu0 0.0
    %v10225 = vand.u32 %v4463, 4294901760
    %10226 = vmatpush.msra.mxu0 %v10225
    %v10227 = vand.u32 %v4461, 4294901760
    %10228 = vmatpush.msra.mxu0 %v10227
    %v10229 = vand.u32 %v4459, 4294901760
    %10230 = vmatpush.msra.mxu0 %v10229
    %v10231 = vand.u32 %v4457, 4294901760
    %10232 = vmatpush.msra.mxu0 %v10231
    %v10233 = vand.u32 %v8972, 4294901760
    %v10234 = vsub.f32 %v8972, %v10233
    %v10235 = vand.u32 %v10234, 4294901760
    %v10236 = vsub.f32 %v10234, %v10235
    %v10237 = vand.u32 %v10236, 4294901760
    %10238 = vmatmul.f32.gmra.mxu0 %v10237
    %v10239 = vpop.f32.mrf.mxu0
    %v10240 = vadd.f32 0.0, %v10239
    %v10241 = vand.u32 %v8975, 4294901760
    %v10242 = vsub.f32 %v8975, %v10241
    %v10243 = vand.u32 %v10242, 4294901760
    %v10244 = vsub.f32 %v10242, %v10243
    %v10245 = vand.u32 %v10244, 4294901760
    %10246 = vmatmul.f32.gmra.mxu0 %v10245
    %v10247 = vpop.f32.mrf.mxu0
    %v10248 = vadd.f32 0.0, %v10247
    %v10249 = vand.u32 %v8978, 4294901760
    %v10250 = vsub.f32 %v8978, %v10249
    %v10251 = vand.u32 %v10250, 4294901760
    %v10252 = vsub.f32 %v10250, %v10251
    %v10253 = vand.u32 %v10252, 4294901760
    %10254 = vmatmul.f32.gmra.mxu0 %v10253
    %v10255 = vpop.f32.mrf.mxu0
    %v10256 = vadd.f32 0.0, %v10255
    %v10257 = vand.u32 %v8981, 4294901760
    %v10258 = vsub.f32 %v8981, %v10257
    %v10259 = vand.u32 %v10258, 4294901760
    %v10260 = vsub.f32 %v10258, %v10259
    %v10261 = vand.u32 %v10260, 4294901760
    %10262 = vmatmul.f32.gmra.mxu0 %v10261
    %v10263 = vpop.f32.mrf.mxu0
    %v10264 = vadd.f32 0.0, %v10263
    %v10265 = vand.u32 %v8984, 4294901760
    %v10266 = vsub.f32 %v8984, %v10265
    %v10267 = vand.u32 %v10266, 4294901760
    %v10268 = vsub.f32 %v10266, %v10267
    %v10269 = vand.u32 %v10268, 4294901760
    %10270 = vmatmul.f32.gmra.mxu0 %v10269
    %v10271 = vpop.f32.mrf.mxu0
    %v10272 = vadd.f32 0.0, %v10271
    %v10273 = vand.u32 %v8987, 4294901760
    %v10274 = vsub.f32 %v8987, %v10273
    %v10275 = vand.u32 %v10274, 4294901760
    %v10276 = vsub.f32 %v10274, %v10275
    %v10277 = vand.u32 %v10276, 4294901760
    %10278 = vmatmul.f32.gmra.mxu0 %v10277
    %v10279 = vpop.f32.mrf.mxu0
    %v10280 = vadd.f32 0.0, %v10279
    %v10281 = vand.u32 %v8990, 4294901760
    %v10282 = vsub.f32 %v8990, %v10281
    %v10283 = vand.u32 %v10282, 4294901760
    %v10284 = vsub.f32 %v10282, %v10283
    %v10285 = vand.u32 %v10284, 4294901760
    %10286 = vmatmul.f32.gmra.mxu0 %v10285
    %v10287 = vpop.f32.mrf.mxu0
    %v10288 = vadd.f32 0.0, %v10287
    %v10289 = vand.u32 %v8993, 4294901760
    %v10290 = vsub.f32 %v8993, %v10289
    %v10291 = vand.u32 %v10290, 4294901760
    %v10292 = vsub.f32 %v10290, %v10291
    %v10293 = vand.u32 %v10292, 4294901760
    %10294 = vmatmul.f32.gmra.mxu0 %v10293
    %v10295 = vpop.f32.mrf.mxu0
    %v10296 = vadd.f32 0.0, %v10295
    %v10297 = vand.u32 %v8996, 4294901760
    %v10298 = vsub.f32 %v8996, %v10297
    %v10299 = vand.u32 %v10298, 4294901760
    %v10300 = vsub.f32 %v10298, %v10299
    %v10301 = vand.u32 %v10300, 4294901760
    %10302 = vmatmul.f32.gmra.mxu0 %v10301
    %v10303 = vpop.f32.mrf.mxu0
    %v10304 = vadd.f32 0.0, %v10303
    %v10305 = vand.u32 %v8999, 4294901760
    %v10306 = vsub.f32 %v8999, %v10305
    %v10307 = vand.u32 %v10306, 4294901760
    %v10308 = vsub.f32 %v10306, %v10307
    %v10309 = vand.u32 %v10308, 4294901760
    %10310 = vmatmul.f32.gmra.mxu0 %v10309
    %v10311 = vpop.f32.mrf.mxu0
    %v10312 = vadd.f32 0.0, %v10311
    %v10313 = vand.u32 %v9002, 4294901760
    %v10314 = vsub.f32 %v9002, %v10313
    %v10315 = vand.u32 %v10314, 4294901760
    %v10316 = vsub.f32 %v10314, %v10315
    %v10317 = vand.u32 %v10316, 4294901760
    %10318 = vmatmul.f32.gmra.mxu0 %v10317
    %v10319 = vpop.f32.mrf.mxu0
    %v10320 = vadd.f32 0.0, %v10319
    %v10321 = vand.u32 %v9005, 4294901760
    %v10322 = vsub.f32 %v9005, %v10321
    %v10323 = vand.u32 %v10322, 4294901760
    %v10324 = vsub.f32 %v10322, %v10323
    %v10325 = vand.u32 %v10324, 4294901760
    %10326 = vmatmul.f32.gmra.mxu0 %v10325
    %v10327 = vpop.f32.mrf.mxu0
    %v10328 = vadd.f32 0.0, %v10327
    %v10329 = vand.u32 %v9008, 4294901760
    %v10330 = vsub.f32 %v9008, %v10329
    %v10331 = vand.u32 %v10330, 4294901760
    %v10332 = vsub.f32 %v10330, %v10331
    %v10333 = vand.u32 %v10332, 4294901760
    %10334 = vmatmul.f32.gmra.mxu0 %v10333
    %v10335 = vpop.f32.mrf.mxu0
    %v10336 = vadd.f32 0.0, %v10335
    %v10337 = vand.u32 %v9011, 4294901760
    %v10338 = vsub.f32 %v9011, %v10337
    %v10339 = vand.u32 %v10338, 4294901760
    %v10340 = vsub.f32 %v10338, %v10339
    %v10341 = vand.u32 %v10340, 4294901760
    %10342 = vmatmul.f32.gmra.mxu0 %v10341
    %v10343 = vpop.f32.mrf.mxu0
    %v10344 = vadd.f32 0.0, %v10343
    %v10345 = vand.u32 %v9014, 4294901760
    %v10346 = vsub.f32 %v9014, %v10345
    %v10347 = vand.u32 %v10346, 4294901760
    %v10348 = vsub.f32 %v10346, %v10347
    %v10349 = vand.u32 %v10348, 4294901760
    %10350 = vmatmul.f32.gmra.mxu0 %v10349
    %v10351 = vpop.f32.mrf.mxu0
    %v10352 = vadd.f32 0.0, %v10351
    %v10353 = vand.u32 %v9017, 4294901760
    %v10354 = vsub.f32 %v9017, %v10353
    %v10355 = vand.u32 %v10354, 4294901760
    %v10356 = vsub.f32 %v10354, %v10355
    %v10357 = vand.u32 %v10356, 4294901760
    %10358 = vmatmul.f32.gmra.mxu0 %v10357
    %v10359 = vpop.f32.mrf.mxu0
    %v10360 = vadd.f32 0.0, %v10359
    %v10361 = vand.u32 %v9020, 4294901760
    %v10362 = vsub.f32 %v9020, %v10361
    %v10363 = vand.u32 %v10362, 4294901760
    %v10364 = vsub.f32 %v10362, %v10363
    %v10365 = vand.u32 %v10364, 4294901760
    %10366 = vmatmul.f32.gmra.mxu0 %v10365
    %v10367 = vpop.f32.mrf.mxu0
    %v10368 = vadd.f32 0.0, %v10367
    %v10369 = vand.u32 %v9023, 4294901760
    %v10370 = vsub.f32 %v9023, %v10369
    %v10371 = vand.u32 %v10370, 4294901760
    %v10372 = vsub.f32 %v10370, %v10371
    %v10373 = vand.u32 %v10372, 4294901760
    %10374 = vmatmul.f32.gmra.mxu0 %v10373
    %v10375 = vpop.f32.mrf.mxu0
    %v10376 = vadd.f32 0.0, %v10375
    %v10377 = vand.u32 %v9026, 4294901760
    %v10378 = vsub.f32 %v9026, %v10377
    %v10379 = vand.u32 %v10378, 4294901760
    %v10380 = vsub.f32 %v10378, %v10379
    %v10381 = vand.u32 %v10380, 4294901760
    %10382 = vmatmul.f32.gmra.mxu0 %v10381
    %v10383 = vpop.f32.mrf.mxu0
    %v10384 = vadd.f32 0.0, %v10383
    %v10385 = vand.u32 %v9029, 4294901760
    %v10386 = vsub.f32 %v9029, %v10385
    %v10387 = vand.u32 %v10386, 4294901760
    %v10388 = vsub.f32 %v10386, %v10387
    %v10389 = vand.u32 %v10388, 4294901760
    %10390 = vmatmul.f32.gmra.mxu0 %v10389
    %v10391 = vpop.f32.mrf.mxu0
    %v10392 = vadd.f32 0.0, %v10391
    %v10393 = vand.u32 %v9032, 4294901760
    %v10394 = vsub.f32 %v9032, %v10393
    %v10395 = vand.u32 %v10394, 4294901760
    %v10396 = vsub.f32 %v10394, %v10395
    %v10397 = vand.u32 %v10396, 4294901760
    %10398 = vmatmul.f32.gmra.mxu0 %v10397
    %v10399 = vpop.f32.mrf.mxu0
    %v10400 = vadd.f32 0.0, %v10399
    %v10401 = vand.u32 %v9035, 4294901760
    %v10402 = vsub.f32 %v9035, %v10401
    %v10403 = vand.u32 %v10402, 4294901760
    %v10404 = vsub.f32 %v10402, %v10403
    %v10405 = vand.u32 %v10404, 4294901760
    %10406 = vmatmul.f32.gmra.mxu0 %v10405
    %v10407 = vpop.f32.mrf.mxu0
    %v10408 = vadd.f32 0.0, %v10407
    %v10409 = vand.u32 %v9038, 4294901760
    %v10410 = vsub.f32 %v9038, %v10409
    %v10411 = vand.u32 %v10410, 4294901760
    %v10412 = vsub.f32 %v10410, %v10411
    %v10413 = vand.u32 %v10412, 4294901760
    %10414 = vmatmul.f32.gmra.mxu0 %v10413
    %v10415 = vpop.f32.mrf.mxu0
    %v10416 = vadd.f32 0.0, %v10415
    %v10417 = vand.u32 %v9041, 4294901760
    %v10418 = vsub.f32 %v9041, %v10417
    %v10419 = vand.u32 %v10418, 4294901760
    %v10420 = vsub.f32 %v10418, %v10419
    %v10421 = vand.u32 %v10420, 4294901760
    %10422 = vmatmul.f32.gmra.mxu0 %v10421
    %v10423 = vpop.f32.mrf.mxu0
    %v10424 = vadd.f32 0.0, %v10423
    %v10425 = vand.u32 %v9044, 4294901760
    %v10426 = vsub.f32 %v9044, %v10425
    %v10427 = vand.u32 %v10426, 4294901760
    %v10428 = vsub.f32 %v10426, %v10427
    %v10429 = vand.u32 %v10428, 4294901760
    %10430 = vmatmul.f32.gmra.mxu0 %v10429
    %v10431 = vpop.f32.mrf.mxu0
    %v10432 = vadd.f32 0.0, %v10431
    %v10433 = vand.u32 %v9047, 4294901760
    %v10434 = vsub.f32 %v9047, %v10433
    %v10435 = vand.u32 %v10434, 4294901760
    %v10436 = vsub.f32 %v10434, %v10435
    %v10437 = vand.u32 %v10436, 4294901760
    %10438 = vmatmul.f32.gmra.mxu0 %v10437
    %v10439 = vpop.f32.mrf.mxu0
    %v10440 = vadd.f32 0.0, %v10439
    %v10441 = vand.u32 %v9050, 4294901760
    %v10442 = vsub.f32 %v9050, %v10441
    %v10443 = vand.u32 %v10442, 4294901760
    %v10444 = vsub.f32 %v10442, %v10443
    %v10445 = vand.u32 %v10444, 4294901760
    %10446 = vmatmul.f32.gmra.mxu0 %v10445
    %v10447 = vpop.f32.mrf.mxu0
    %v10448 = vadd.f32 0.0, %v10447
    %v10449 = vand.u32 %v9053, 4294901760
    %v10450 = vsub.f32 %v9053, %v10449
    %v10451 = vand.u32 %v10450, 4294901760
    %v10452 = vsub.f32 %v10450, %v10451
    %v10453 = vand.u32 %v10452, 4294901760
    %10454 = vmatmul.f32.gmra.mxu0 %v10453
    %v10455 = vpop.f32.mrf.mxu0
    %v10456 = vadd.f32 0.0, %v10455
    %v10457 = vand.u32 %v9056, 4294901760
    %v10458 = vsub.f32 %v9056, %v10457
    %v10459 = vand.u32 %v10458, 4294901760
    %v10460 = vsub.f32 %v10458, %v10459
    %v10461 = vand.u32 %v10460, 4294901760
    %10462 = vmatmul.f32.gmra.mxu0 %v10461
    %v10463 = vpop.f32.mrf.mxu0
    %v10464 = vadd.f32 0.0, %v10463
    %v10465 = vand.u32 %v9059, 4294901760
    %v10466 = vsub.f32 %v9059, %v10465
    %v10467 = vand.u32 %v10466, 4294901760
    %v10468 = vsub.f32 %v10466, %v10467
    %v10469 = vand.u32 %v10468, 4294901760
    %10470 = vmatmul.f32.gmra.mxu0 %v10469
    %v10471 = vpop.f32.mrf.mxu0
    %v10472 = vadd.f32 0.0, %v10471
    %v10473 = vand.u32 %v9062, 4294901760
    %v10474 = vsub.f32 %v9062, %v10473
    %v10475 = vand.u32 %v10474, 4294901760
    %v10476 = vsub.f32 %v10474, %v10475
    %v10477 = vand.u32 %v10476, 4294901760
    %10478 = vmatmul.f32.gmra.mxu0 %v10477
    %v10479 = vpop.f32.mrf.mxu0
    %v10480 = vadd.f32 0.0, %v10479
    %v10481 = vand.u32 %v9065, 4294901760
    %v10482 = vsub.f32 %v9065, %v10481
    %v10483 = vand.u32 %v10482, 4294901760
    %v10484 = vsub.f32 %v10482, %v10483
    %v10485 = vand.u32 %v10484, 4294901760
    %10486 = vmatmul.f32.gmra.mxu0 %v10485
    %v10487 = vpop.f32.mrf.mxu0
    %v10488 = vadd.f32 0.0, %v10487
    %10489 = vdwg.mxu0
    %10490 = vmatpush.msra.mxu0 0.0
    %10491 = vmatpush.msra.mxu0 0.0
    %10492 = vmatpush.msra.mxu0 0.0
    %10493 = vmatpush.msra.mxu0 0.0
    %10494 = vmatpush.msra.mxu0 0.0
    %10495 = vmatpush.msra.mxu0 0.0
    %10496 = vmatpush.msra.mxu0 0.0
    %10497 = vmatpush.msra.mxu0 0.0
    %10498 = vmatpush.msra.mxu0 0.0
    %10499 = vmatpush.msra.mxu0 0.0
    %10500 = vmatpush.msra.mxu0 0.0
    %10501 = vmatpush.msra.mxu0 0.0
    %v10502 = vand.u32 %v4463, 4294901760
    %v10503 = vsub.f32 %v4463, %v10502
    %v10504 = vand.u32 %v10503, 4294901760
    %v10505 = vsub.f32 %v10503, %v10504
    %v10506 = vand.u32 %v10505, 4294901760
    %10507 = vmatpush.msra.mxu0 %v10506
    %v10508 = vand.u32 %v4461, 4294901760
    %v10509 = vsub.f32 %v4461, %v10508
    %v10510 = vand.u32 %v10509, 4294901760
    %v10511 = vsub.f32 %v10509, %v10510
    %v10512 = vand.u32 %v10511, 4294901760
    %10513 = vmatpush.msra.mxu0 %v10512
    %v10514 = vand.u32 %v4459, 4294901760
    %v10515 = vsub.f32 %v4459, %v10514
    %v10516 = vand.u32 %v10515, 4294901760
    %v10517 = vsub.f32 %v10515, %v10516
    %v10518 = vand.u32 %v10517, 4294901760
    %10519 = vmatpush.msra.mxu0 %v10518
    %v10520 = vand.u32 %v4457, 4294901760
    %v10521 = vsub.f32 %v4457, %v10520
    %v10522 = vand.u32 %v10521, 4294901760
    %v10523 = vsub.f32 %v10521, %v10522
    %v10524 = vand.u32 %v10523, 4294901760
    %10525 = vmatpush.msra.mxu0 %v10524
    %v10526 = vand.u32 %v8972, 4294901760
    %10527 = vmatmul.f32.gmra.mxu0 %v10526
    %v10528 = vpop.f32.mrf.mxu0
    %v10529 = vadd.f32 %v10240, %v10528
    %v10530 = vand.u32 %v8975, 4294901760
    %10531 = vmatmul.f32.gmra.mxu0 %v10530
    %v10532 = vpop.f32.mrf.mxu0
    %v10533 = vadd.f32 %v10248, %v10532
    %v10534 = vand.u32 %v8978, 4294901760
    %10535 = vmatmul.f32.gmra.mxu0 %v10534
    %v10536 = vpop.f32.mrf.mxu0
    %v10537 = vadd.f32 %v10256, %v10536
    %v10538 = vand.u32 %v8981, 4294901760
    %10539 = vmatmul.f32.gmra.mxu0 %v10538
    %v10540 = vpop.f32.mrf.mxu0
    %v10541 = vadd.f32 %v10264, %v10540
    %v10542 = vand.u32 %v8984, 4294901760
    %10543 = vmatmul.f32.gmra.mxu0 %v10542
    %v10544 = vpop.f32.mrf.mxu0
    %v10545 = vadd.f32 %v10272, %v10544
    %v10546 = vand.u32 %v8987, 4294901760
    %10547 = vmatmul.f32.gmra.mxu0 %v10546
    %v10548 = vpop.f32.mrf.mxu0
    %v10549 = vadd.f32 %v10280, %v10548
    %v10550 = vand.u32 %v8990, 4294901760
    %10551 = vmatmul.f32.gmra.mxu0 %v10550
    %v10552 = vpop.f32.mrf.mxu0
    %v10553 = vadd.f32 %v10288, %v10552
    %v10554 = vand.u32 %v8993, 4294901760
    %10555 = vmatmul.f32.gmra.mxu0 %v10554
    %v10556 = vpop.f32.mrf.mxu0
    %v10557 = vadd.f32 %v10296, %v10556
    %v10558 = vand.u32 %v8996, 4294901760
    %10559 = vmatmul.f32.gmra.mxu0 %v10558
    %v10560 = vpop.f32.mrf.mxu0
    %v10561 = vadd.f32 %v10304, %v10560
    %v10562 = vand.u32 %v8999, 4294901760
    %10563 = vmatmul.f32.gmra.mxu0 %v10562
    %v10564 = vpop.f32.mrf.mxu0
    %v10565 = vadd.f32 %v10312, %v10564
    %v10566 = vand.u32 %v9002, 4294901760
    %10567 = vmatmul.f32.gmra.mxu0 %v10566
    %v10568 = vpop.f32.mrf.mxu0
    %v10569 = vadd.f32 %v10320, %v10568
    %v10570 = vand.u32 %v9005, 4294901760
    %10571 = vmatmul.f32.gmra.mxu0 %v10570
    %v10572 = vpop.f32.mrf.mxu0
    %v10573 = vadd.f32 %v10328, %v10572
    %v10574 = vand.u32 %v9008, 4294901760
    %10575 = vmatmul.f32.gmra.mxu0 %v10574
    %v10576 = vpop.f32.mrf.mxu0
    %v10577 = vadd.f32 %v10336, %v10576
    %v10578 = vand.u32 %v9011, 4294901760
    %10579 = vmatmul.f32.gmra.mxu0 %v10578
    %v10580 = vpop.f32.mrf.mxu0
    %v10581 = vadd.f32 %v10344, %v10580
    %v10582 = vand.u32 %v9014, 4294901760
    %10583 = vmatmul.f32.gmra.mxu0 %v10582
    %v10584 = vpop.f32.mrf.mxu0
    %v10585 = vadd.f32 %v10352, %v10584
    %v10586 = vand.u32 %v9017, 4294901760
    %10587 = vmatmul.f32.gmra.mxu0 %v10586
    %v10588 = vpop.f32.mrf.mxu0
    %v10589 = vadd.f32 %v10360, %v10588
    %v10590 = vand.u32 %v9020, 4294901760
    %10591 = vmatmul.f32.gmra.mxu0 %v10590
    %v10592 = vpop.f32.mrf.mxu0
    %v10593 = vadd.f32 %v10368, %v10592
    %v10594 = vand.u32 %v9023, 4294901760
    %10595 = vmatmul.f32.gmra.mxu0 %v10594
    %v10596 = vpop.f32.mrf.mxu0
    %v10597 = vadd.f32 %v10376, %v10596
    %v10598 = vand.u32 %v9026, 4294901760
    %10599 = vmatmul.f32.gmra.mxu0 %v10598
    %v10600 = vpop.f32.mrf.mxu0
    %v10601 = vadd.f32 %v10384, %v10600
    %v10602 = vand.u32 %v9029, 4294901760
    %10603 = vmatmul.f32.gmra.mxu0 %v10602
    %v10604 = vpop.f32.mrf.mxu0
    %v10605 = vadd.f32 %v10392, %v10604
    %v10606 = vand.u32 %v9032, 4294901760
    %10607 = vmatmul.f32.gmra.mxu0 %v10606
    %v10608 = vpop.f32.mrf.mxu0
    %v10609 = vadd.f32 %v10400, %v10608
    %v10610 = vand.u32 %v9035, 4294901760
    %10611 = vmatmul.f32.gmra.mxu0 %v10610
    %v10612 = vpop.f32.mrf.mxu0
    %v10613 = vadd.f32 %v10408, %v10612
    %v10614 = vand.u32 %v9038, 4294901760
    %10615 = vmatmul.f32.gmra.mxu0 %v10614
    %v10616 = vpop.f32.mrf.mxu0
    %v10617 = vadd.f32 %v10416, %v10616
    %v10618 = vand.u32 %v9041, 4294901760
    %10619 = vmatmul.f32.gmra.mxu0 %v10618
    %v10620 = vpop.f32.mrf.mxu0
    %v10621 = vadd.f32 %v10424, %v10620
    %v10622 = vand.u32 %v9044, 4294901760
    %10623 = vmatmul.f32.gmra.mxu0 %v10622
    %v10624 = vpop.f32.mrf.mxu0
    %v10625 = vadd.f32 %v10432, %v10624
    %v10626 = vand.u32 %v9047, 4294901760
    %10627 = vmatmul.f32.gmra.mxu0 %v10626
    %v10628 = vpop.f32.mrf.mxu0
    %v10629 = vadd.f32 %v10440, %v10628
    %v10630 = vand.u32 %v9050, 4294901760
    %10631 = vmatmul.f32.gmra.mxu0 %v10630
    %v10632 = vpop.f32.mrf.mxu0
    %v10633 = vadd.f32 %v10448, %v10632
    %v10634 = vand.u32 %v9053, 4294901760
    %10635 = vmatmul.f32.gmra.mxu0 %v10634
    %v10636 = vpop.f32.mrf.mxu0
    %v10637 = vadd.f32 %v10456, %v10636
    %v10638 = vand.u32 %v9056, 4294901760
    %10639 = vmatmul.f32.gmra.mxu0 %v10638
    %v10640 = vpop.f32.mrf.mxu0
    %v10641 = vadd.f32 %v10464, %v10640
    %v10642 = vand.u32 %v9059, 4294901760
    %10643 = vmatmul.f32.gmra.mxu0 %v10642
    %v10644 = vpop.f32.mrf.mxu0
    %v10645 = vadd.f32 %v10472, %v10644
    %v10646 = vand.u32 %v9062, 4294901760
    %10647 = vmatmul.f32.gmra.mxu0 %v10646
    %v10648 = vpop.f32.mrf.mxu0
    %v10649 = vadd.f32 %v10480, %v10648
    %v10650 = vand.u32 %v9065, 4294901760
    %10651 = vmatmul.f32.gmra.mxu0 %v10650
    %v10652 = vpop.f32.mrf.mxu0
    %v10653 = vadd.f32 %v10488, %v10652
    %10654 = vdwg.mxu0
    %10655 = vmatpush.msra.mxu0 0.0
    %10656 = vmatpush.msra.mxu0 0.0
    %10657 = vmatpush.msra.mxu0 0.0
    %10658 = vmatpush.msra.mxu0 0.0
    %10659 = vmatpush.msra.mxu0 0.0
    %10660 = vmatpush.msra.mxu0 0.0
    %10661 = vmatpush.msra.mxu0 0.0
    %10662 = vmatpush.msra.mxu0 0.0
    %10663 = vmatpush.msra.mxu0 0.0
    %10664 = vmatpush.msra.mxu0 0.0
    %10665 = vmatpush.msra.mxu0 0.0
    %10666 = vmatpush.msra.mxu0 0.0
    %v10667 = vand.u32 %v4463, 4294901760
    %v10668 = vsub.f32 %v4463, %v10667
    %10669 = vmatpush.msra.mxu0 %v10668
    %v10670 = vand.u32 %v4461, 4294901760
    %v10671 = vsub.f32 %v4461, %v10670
    %10672 = vmatpush.msra.mxu0 %v10671
    %v10673 = vand.u32 %v4459, 4294901760
    %v10674 = vsub.f32 %v4459, %v10673
    %10675 = vmatpush.msra.mxu0 %v10674
    %v10676 = vand.u32 %v4457, 4294901760
    %v10677 = vsub.f32 %v4457, %v10676
    %10678 = vmatpush.msra.mxu0 %v10677
    %v10679 = vand.u32 %v8972, 4294901760
    %v10680 = vsub.f32 %v8972, %v10679
    %10681 = vmatmul.f32.gmra.mxu0 %v10680
    %v10682 = vpop.f32.mrf.mxu0
    %v10683 = vadd.f32 %v10529, %v10682
    %v10684 = vand.u32 %v8975, 4294901760
    %v10685 = vsub.f32 %v8975, %v10684
    %10686 = vmatmul.f32.gmra.mxu0 %v10685
    %v10687 = vpop.f32.mrf.mxu0
    %v10688 = vadd.f32 %v10533, %v10687
    %v10689 = vand.u32 %v8978, 4294901760
    %v10690 = vsub.f32 %v8978, %v10689
    %10691 = vmatmul.f32.gmra.mxu0 %v10690
    %v10692 = vpop.f32.mrf.mxu0
    %v10693 = vadd.f32 %v10537, %v10692
    %v10694 = vand.u32 %v8981, 4294901760
    %v10695 = vsub.f32 %v8981, %v10694
    %10696 = vmatmul.f32.gmra.mxu0 %v10695
    %v10697 = vpop.f32.mrf.mxu0
    %v10698 = vadd.f32 %v10541, %v10697
    %v10699 = vand.u32 %v8984, 4294901760
    %v10700 = vsub.f32 %v8984, %v10699
    %10701 = vmatmul.f32.gmra.mxu0 %v10700
    %v10702 = vpop.f32.mrf.mxu0
    %v10703 = vadd.f32 %v10545, %v10702
    %v10704 = vand.u32 %v8987, 4294901760
    %v10705 = vsub.f32 %v8987, %v10704
    %10706 = vmatmul.f32.gmra.mxu0 %v10705
    %v10707 = vpop.f32.mrf.mxu0
    %v10708 = vadd.f32 %v10549, %v10707
    %v10709 = vand.u32 %v8990, 4294901760
    %v10710 = vsub.f32 %v8990, %v10709
    %10711 = vmatmul.f32.gmra.mxu0 %v10710
    %v10712 = vpop.f32.mrf.mxu0
    %v10713 = vadd.f32 %v10553, %v10712
    %v10714 = vand.u32 %v8993, 4294901760
    %v10715 = vsub.f32 %v8993, %v10714
    %10716 = vmatmul.f32.gmra.mxu0 %v10715
    %v10717 = vpop.f32.mrf.mxu0
    %v10718 = vadd.f32 %v10557, %v10717
    %v10719 = vand.u32 %v8996, 4294901760
    %v10720 = vsub.f32 %v8996, %v10719
    %10721 = vmatmul.f32.gmra.mxu0 %v10720
    %v10722 = vpop.f32.mrf.mxu0
    %v10723 = vadd.f32 %v10561, %v10722
    %v10724 = vand.u32 %v8999, 4294901760
    %v10725 = vsub.f32 %v8999, %v10724
    %10726 = vmatmul.f32.gmra.mxu0 %v10725
    %v10727 = vpop.f32.mrf.mxu0
    %v10728 = vadd.f32 %v10565, %v10727
    %v10729 = vand.u32 %v9002, 4294901760
    %v10730 = vsub.f32 %v9002, %v10729
    %10731 = vmatmul.f32.gmra.mxu0 %v10730
    %v10732 = vpop.f32.mrf.mxu0
    %v10733 = vadd.f32 %v10569, %v10732
    %v10734 = vand.u32 %v9005, 4294901760
    %v10735 = vsub.f32 %v9005, %v10734
    %10736 = vmatmul.f32.gmra.mxu0 %v10735
    %v10737 = vpop.f32.mrf.mxu0
    %v10738 = vadd.f32 %v10573, %v10737
    %v10739 = vand.u32 %v9008, 4294901760
    %v10740 = vsub.f32 %v9008, %v10739
    %10741 = vmatmul.f32.gmra.mxu0 %v10740
    %v10742 = vpop.f32.mrf.mxu0
    %v10743 = vadd.f32 %v10577, %v10742
    %v10744 = vand.u32 %v9011, 4294901760
    %v10745 = vsub.f32 %v9011, %v10744
    %10746 = vmatmul.f32.gmra.mxu0 %v10745
    %v10747 = vpop.f32.mrf.mxu0
    %v10748 = vadd.f32 %v10581, %v10747
    %v10749 = vand.u32 %v9014, 4294901760
    %v10750 = vsub.f32 %v9014, %v10749
    %10751 = vmatmul.f32.gmra.mxu0 %v10750
    %v10752 = vpop.f32.mrf.mxu0
    %v10753 = vadd.f32 %v10585, %v10752
    %v10754 = vand.u32 %v9017, 4294901760
    %v10755 = vsub.f32 %v9017, %v10754
    %10756 = vmatmul.f32.gmra.mxu0 %v10755
    %v10757 = vpop.f32.mrf.mxu0
    %v10758 = vadd.f32 %v10589, %v10757
    %v10759 = vand.u32 %v9020, 4294901760
    %v10760 = vsub.f32 %v9020, %v10759
    %10761 = vmatmul.f32.gmra.mxu0 %v10760
    %v10762 = vpop.f32.mrf.mxu0
    %v10763 = vadd.f32 %v10593, %v10762
    %v10764 = vand.u32 %v9023, 4294901760
    %v10765 = vsub.f32 %v9023, %v10764
    %10766 = vmatmul.f32.gmra.mxu0 %v10765
    %v10767 = vpop.f32.mrf.mxu0
    %v10768 = vadd.f32 %v10597, %v10767
    %v10769 = vand.u32 %v9026, 4294901760
    %v10770 = vsub.f32 %v9026, %v10769
    %10771 = vmatmul.f32.gmra.mxu0 %v10770
    %v10772 = vpop.f32.mrf.mxu0
    %v10773 = vadd.f32 %v10601, %v10772
    %v10774 = vand.u32 %v9029, 4294901760
    %v10775 = vsub.f32 %v9029, %v10774
    %10776 = vmatmul.f32.gmra.mxu0 %v10775
    %v10777 = vpop.f32.mrf.mxu0
    %v10778 = vadd.f32 %v10605, %v10777
    %v10779 = vand.u32 %v9032, 4294901760
    %v10780 = vsub.f32 %v9032, %v10779
    %10781 = vmatmul.f32.gmra.mxu0 %v10780
    %v10782 = vpop.f32.mrf.mxu0
    %v10783 = vadd.f32 %v10609, %v10782
    %v10784 = vand.u32 %v9035, 4294901760
    %v10785 = vsub.f32 %v9035, %v10784
    %10786 = vmatmul.f32.gmra.mxu0 %v10785
    %v10787 = vpop.f32.mrf.mxu0
    %v10788 = vadd.f32 %v10613, %v10787
    %v10789 = vand.u32 %v9038, 4294901760
    %v10790 = vsub.f32 %v9038, %v10789
    %10791 = vmatmul.f32.gmra.mxu0 %v10790
    %v10792 = vpop.f32.mrf.mxu0
    %v10793 = vadd.f32 %v10617, %v10792
    %v10794 = vand.u32 %v9041, 4294901760
    %v10795 = vsub.f32 %v9041, %v10794
    %10796 = vmatmul.f32.gmra.mxu0 %v10795
    %v10797 = vpop.f32.mrf.mxu0
    %v10798 = vadd.f32 %v10621, %v10797
    %v10799 = vand.u32 %v9044, 4294901760
    %v10800 = vsub.f32 %v9044, %v10799
    %10801 = vmatmul.f32.gmra.mxu0 %v10800
    %v10802 = vpop.f32.mrf.mxu0
    %v10803 = vadd.f32 %v10625, %v10802
    %v10804 = vand.u32 %v9047, 4294901760
    %v10805 = vsub.f32 %v9047, %v10804
    %10806 = vmatmul.f32.gmra.mxu0 %v10805
    %v10807 = vpop.f32.mrf.mxu0
    %v10808 = vadd.f32 %v10629, %v10807
    %v10809 = vand.u32 %v9050, 4294901760
    %v10810 = vsub.f32 %v9050, %v10809
    %10811 = vmatmul.f32.gmra.mxu0 %v10810
    %v10812 = vpop.f32.mrf.mxu0
    %v10813 = vadd.f32 %v10633, %v10812
    %v10814 = vand.u32 %v9053, 4294901760
    %v10815 = vsub.f32 %v9053, %v10814
    %10816 = vmatmul.f32.gmra.mxu0 %v10815
    %v10817 = vpop.f32.mrf.mxu0
    %v10818 = vadd.f32 %v10637, %v10817
    %v10819 = vand.u32 %v9056, 4294901760
    %v10820 = vsub.f32 %v9056, %v10819
    %10821 = vmatmul.f32.gmra.mxu0 %v10820
    %v10822 = vpop.f32.mrf.mxu0
    %v10823 = vadd.f32 %v10641, %v10822
    %v10824 = vand.u32 %v9059, 4294901760
    %v10825 = vsub.f32 %v9059, %v10824
    %10826 = vmatmul.f32.gmra.mxu0 %v10825
    %v10827 = vpop.f32.mrf.mxu0
    %v10828 = vadd.f32 %v10645, %v10827
    %v10829 = vand.u32 %v9062, 4294901760
    %v10830 = vsub.f32 %v9062, %v10829
    %10831 = vmatmul.f32.gmra.mxu0 %v10830
    %v10832 = vpop.f32.mrf.mxu0
    %v10833 = vadd.f32 %v10649, %v10832
    %v10834 = vand.u32 %v9065, 4294901760
    %v10835 = vsub.f32 %v9065, %v10834
    %10836 = vmatmul.f32.gmra.mxu0 %v10835
    %v10837 = vpop.f32.mrf.mxu0
    %v10838 = vadd.f32 %v10653, %v10837
    %10839 = vdwg.mxu0
    %10840 = vmatpush.msra.mxu0 0.0
    %10841 = vmatpush.msra.mxu0 0.0
    %10842 = vmatpush.msra.mxu0 0.0
    %10843 = vmatpush.msra.mxu0 0.0
    %10844 = vmatpush.msra.mxu0 0.0
    %10845 = vmatpush.msra.mxu0 0.0
    %10846 = vmatpush.msra.mxu0 0.0
    %10847 = vmatpush.msra.mxu0 0.0
    %10848 = vmatpush.msra.mxu0 0.0
    %10849 = vmatpush.msra.mxu0 0.0
    %10850 = vmatpush.msra.mxu0 0.0
    %10851 = vmatpush.msra.mxu0 0.0
    %v10852 = vand.u32 %v4463, 4294901760
    %10853 = vmatpush.msra.mxu0 %v10852
    %v10854 = vand.u32 %v4461, 4294901760
    %10855 = vmatpush.msra.mxu0 %v10854
    %v10856 = vand.u32 %v4459, 4294901760
    %10857 = vmatpush.msra.mxu0 %v10856
    %v10858 = vand.u32 %v4457, 4294901760
    %10859 = vmatpush.msra.mxu0 %v10858
    %v10860 = vand.u32 %v8972, 4294901760
    %v10861 = vsub.f32 %v8972, %v10860
    %v10862 = vand.u32 %v10861, 4294901760
    %10863 = vmatmul.f32.gmra.mxu0 %v10862
    %v10864 = vpop.f32.mrf.mxu0
    %v10865 = vadd.f32 %v10683, %v10864
    %v10866 = vand.u32 %v8975, 4294901760
    %v10867 = vsub.f32 %v8975, %v10866
    %v10868 = vand.u32 %v10867, 4294901760
    %10869 = vmatmul.f32.gmra.mxu0 %v10868
    %v10870 = vpop.f32.mrf.mxu0
    %v10871 = vadd.f32 %v10688, %v10870
    %v10872 = vand.u32 %v8978, 4294901760
    %v10873 = vsub.f32 %v8978, %v10872
    %v10874 = vand.u32 %v10873, 4294901760
    %10875 = vmatmul.f32.gmra.mxu0 %v10874
    %v10876 = vpop.f32.mrf.mxu0
    %v10877 = vadd.f32 %v10693, %v10876
    %v10878 = vand.u32 %v8981, 4294901760
    %v10879 = vsub.f32 %v8981, %v10878
    %v10880 = vand.u32 %v10879, 4294901760
    %10881 = vmatmul.f32.gmra.mxu0 %v10880
    %v10882 = vpop.f32.mrf.mxu0
    %v10883 = vadd.f32 %v10698, %v10882
    %v10884 = vand.u32 %v8984, 4294901760
    %v10885 = vsub.f32 %v8984, %v10884
    %v10886 = vand.u32 %v10885, 4294901760
    %10887 = vmatmul.f32.gmra.mxu0 %v10886
    %v10888 = vpop.f32.mrf.mxu0
    %v10889 = vadd.f32 %v10703, %v10888
    %v10890 = vand.u32 %v8987, 4294901760
    %v10891 = vsub.f32 %v8987, %v10890
    %v10892 = vand.u32 %v10891, 4294901760
    %10893 = vmatmul.f32.gmra.mxu0 %v10892
    %v10894 = vpop.f32.mrf.mxu0
    %v10895 = vadd.f32 %v10708, %v10894
    %v10896 = vand.u32 %v8990, 4294901760
    %v10897 = vsub.f32 %v8990, %v10896
    %v10898 = vand.u32 %v10897, 4294901760
    %10899 = vmatmul.f32.gmra.mxu0 %v10898
    %v10900 = vpop.f32.mrf.mxu0
    %v10901 = vadd.f32 %v10713, %v10900
    %v10902 = vand.u32 %v8993, 4294901760
    %v10903 = vsub.f32 %v8993, %v10902
    %v10904 = vand.u32 %v10903, 4294901760
    %10905 = vmatmul.f32.gmra.mxu0 %v10904
    %v10906 = vpop.f32.mrf.mxu0
    %v10907 = vadd.f32 %v10718, %v10906
    %v10908 = vand.u32 %v8996, 4294901760
    %v10909 = vsub.f32 %v8996, %v10908
    %v10910 = vand.u32 %v10909, 4294901760
    %10911 = vmatmul.f32.gmra.mxu0 %v10910
    %v10912 = vpop.f32.mrf.mxu0
    %v10913 = vadd.f32 %v10723, %v10912
    %v10914 = vand.u32 %v8999, 4294901760
    %v10915 = vsub.f32 %v8999, %v10914
    %v10916 = vand.u32 %v10915, 4294901760
    %10917 = vmatmul.f32.gmra.mxu0 %v10916
    %v10918 = vpop.f32.mrf.mxu0
    %v10919 = vadd.f32 %v10728, %v10918
    %v10920 = vand.u32 %v9002, 4294901760
    %v10921 = vsub.f32 %v9002, %v10920
    %v10922 = vand.u32 %v10921, 4294901760
    %10923 = vmatmul.f32.gmra.mxu0 %v10922
    %v10924 = vpop.f32.mrf.mxu0
    %v10925 = vadd.f32 %v10733, %v10924
    %v10926 = vand.u32 %v9005, 4294901760
    %v10927 = vsub.f32 %v9005, %v10926
    %v10928 = vand.u32 %v10927, 4294901760
    %10929 = vmatmul.f32.gmra.mxu0 %v10928
    %v10930 = vpop.f32.mrf.mxu0
    %v10931 = vadd.f32 %v10738, %v10930
    %v10932 = vand.u32 %v9008, 4294901760
    %v10933 = vsub.f32 %v9008, %v10932
    %v10934 = vand.u32 %v10933, 4294901760
    %10935 = vmatmul.f32.gmra.mxu0 %v10934
    %v10936 = vpop.f32.mrf.mxu0
    %v10937 = vadd.f32 %v10743, %v10936
    %v10938 = vand.u32 %v9011, 4294901760
    %v10939 = vsub.f32 %v9011, %v10938
    %v10940 = vand.u32 %v10939, 4294901760
    %10941 = vmatmul.f32.gmra.mxu0 %v10940
    %v10942 = vpop.f32.mrf.mxu0
    %v10943 = vadd.f32 %v10748, %v10942
    %v10944 = vand.u32 %v9014, 4294901760
    %v10945 = vsub.f32 %v9014, %v10944
    %v10946 = vand.u32 %v10945, 4294901760
    %10947 = vmatmul.f32.gmra.mxu0 %v10946
    %v10948 = vpop.f32.mrf.mxu0
    %v10949 = vadd.f32 %v10753, %v10948
    %v10950 = vand.u32 %v9017, 4294901760
    %v10951 = vsub.f32 %v9017, %v10950
    %v10952 = vand.u32 %v10951, 4294901760
    %10953 = vmatmul.f32.gmra.mxu0 %v10952
    %v10954 = vpop.f32.mrf.mxu0
    %v10955 = vadd.f32 %v10758, %v10954
    %v10956 = vand.u32 %v9020, 4294901760
    %v10957 = vsub.f32 %v9020, %v10956
    %v10958 = vand.u32 %v10957, 4294901760
    %10959 = vmatmul.f32.gmra.mxu0 %v10958
    %v10960 = vpop.f32.mrf.mxu0
    %v10961 = vadd.f32 %v10763, %v10960
    %v10962 = vand.u32 %v9023, 4294901760
    %v10963 = vsub.f32 %v9023, %v10962
    %v10964 = vand.u32 %v10963, 4294901760
    %10965 = vmatmul.f32.gmra.mxu0 %v10964
    %v10966 = vpop.f32.mrf.mxu0
    %v10967 = vadd.f32 %v10768, %v10966
    %v10968 = vand.u32 %v9026, 4294901760
    %v10969 = vsub.f32 %v9026, %v10968
    %v10970 = vand.u32 %v10969, 4294901760
    %10971 = vmatmul.f32.gmra.mxu0 %v10970
    %v10972 = vpop.f32.mrf.mxu0
    %v10973 = vadd.f32 %v10773, %v10972
    %v10974 = vand.u32 %v9029, 4294901760
    %v10975 = vsub.f32 %v9029, %v10974
    %v10976 = vand.u32 %v10975, 4294901760
    %10977 = vmatmul.f32.gmra.mxu0 %v10976
    %v10978 = vpop.f32.mrf.mxu0
    %v10979 = vadd.f32 %v10778, %v10978
    %v10980 = vand.u32 %v9032, 4294901760
    %v10981 = vsub.f32 %v9032, %v10980
    %v10982 = vand.u32 %v10981, 4294901760
    %10983 = vmatmul.f32.gmra.mxu0 %v10982
    %v10984 = vpop.f32.mrf.mxu0
    %v10985 = vadd.f32 %v10783, %v10984
    %v10986 = vand.u32 %v9035, 4294901760
    %v10987 = vsub.f32 %v9035, %v10986
    %v10988 = vand.u32 %v10987, 4294901760
    %10989 = vmatmul.f32.gmra.mxu0 %v10988
    %v10990 = vpop.f32.mrf.mxu0
    %v10991 = vadd.f32 %v10788, %v10990
    %v10992 = vand.u32 %v9038, 4294901760
    %v10993 = vsub.f32 %v9038, %v10992
    %v10994 = vand.u32 %v10993, 4294901760
    %10995 = vmatmul.f32.gmra.mxu0 %v10994
    %v10996 = vpop.f32.mrf.mxu0
    %v10997 = vadd.f32 %v10793, %v10996
    %v10998 = vand.u32 %v9041, 4294901760
    %v10999 = vsub.f32 %v9041, %v10998
    %v11000 = vand.u32 %v10999, 4294901760
    %11001 = vmatmul.f32.gmra.mxu0 %v11000
    %v11002 = vpop.f32.mrf.mxu0
    %v11003 = vadd.f32 %v10798, %v11002
    %v11004 = vand.u32 %v9044, 4294901760
    %v11005 = vsub.f32 %v9044, %v11004
    %v11006 = vand.u32 %v11005, 4294901760
    %11007 = vmatmul.f32.gmra.mxu0 %v11006
    %v11008 = vpop.f32.mrf.mxu0
    %v11009 = vadd.f32 %v10803, %v11008
    %v11010 = vand.u32 %v9047, 4294901760
    %v11011 = vsub.f32 %v9047, %v11010
    %v11012 = vand.u32 %v11011, 4294901760
    %11013 = vmatmul.f32.gmra.mxu0 %v11012
    %v11014 = vpop.f32.mrf.mxu0
    %v11015 = vadd.f32 %v10808, %v11014
    %v11016 = vand.u32 %v9050, 4294901760
    %v11017 = vsub.f32 %v9050, %v11016
    %v11018 = vand.u32 %v11017, 4294901760
    %11019 = vmatmul.f32.gmra.mxu0 %v11018
    %v11020 = vpop.f32.mrf.mxu0
    %v11021 = vadd.f32 %v10813, %v11020
    %v11022 = vand.u32 %v9053, 4294901760
    %v11023 = vsub.f32 %v9053, %v11022
    %v11024 = vand.u32 %v11023, 4294901760
    %11025 = vmatmul.f32.gmra.mxu0 %v11024
    %v11026 = vpop.f32.mrf.mxu0
    %v11027 = vadd.f32 %v10818, %v11026
    %v11028 = vand.u32 %v9056, 4294901760
    %v11029 = vsub.f32 %v9056, %v11028
    %v11030 = vand.u32 %v11029, 4294901760
    %11031 = vmatmul.f32.gmra.mxu0 %v11030
    %v11032 = vpop.f32.mrf.mxu0
    %v11033 = vadd.f32 %v10823, %v11032
    %v11034 = vand.u32 %v9059, 4294901760
    %v11035 = vsub.f32 %v9059, %v11034
    %v11036 = vand.u32 %v11035, 4294901760
    %11037 = vmatmul.f32.gmra.mxu0 %v11036
    %v11038 = vpop.f32.mrf.mxu0
    %v11039 = vadd.f32 %v10828, %v11038
    %v11040 = vand.u32 %v9062, 4294901760
    %v11041 = vsub.f32 %v9062, %v11040
    %v11042 = vand.u32 %v11041, 4294901760
    %11043 = vmatmul.f32.gmra.mxu0 %v11042
    %v11044 = vpop.f32.mrf.mxu0
    %v11045 = vadd.f32 %v10833, %v11044
    %v11046 = vand.u32 %v9065, 4294901760
    %v11047 = vsub.f32 %v9065, %v11046
    %v11048 = vand.u32 %v11047, 4294901760
    %11049 = vmatmul.f32.gmra.mxu0 %v11048
    %v11050 = vpop.f32.mrf.mxu0
    %v11051 = vadd.f32 %v10838, %v11050
    %11052 = vdwg.mxu0
    %11053 = vmatpush.msra.mxu0 0.0
    %11054 = vmatpush.msra.mxu0 0.0
    %11055 = vmatpush.msra.mxu0 0.0
    %11056 = vmatpush.msra.mxu0 0.0
    %11057 = vmatpush.msra.mxu0 0.0
    %11058 = vmatpush.msra.mxu0 0.0
    %11059 = vmatpush.msra.mxu0 0.0
    %11060 = vmatpush.msra.mxu0 0.0
    %11061 = vmatpush.msra.mxu0 0.0
    %11062 = vmatpush.msra.mxu0 0.0
    %11063 = vmatpush.msra.mxu0 0.0
    %11064 = vmatpush.msra.mxu0 0.0
    %v11065 = vand.u32 %v4463, 4294901760
    %v11066 = vsub.f32 %v4463, %v11065
    %v11067 = vand.u32 %v11066, 4294901760
    %11068 = vmatpush.msra.mxu0 %v11067
    %v11069 = vand.u32 %v4461, 4294901760
    %v11070 = vsub.f32 %v4461, %v11069
    %v11071 = vand.u32 %v11070, 4294901760
    %11072 = vmatpush.msra.mxu0 %v11071
    %v11073 = vand.u32 %v4459, 4294901760
    %v11074 = vsub.f32 %v4459, %v11073
    %v11075 = vand.u32 %v11074, 4294901760
    %11076 = vmatpush.msra.mxu0 %v11075
    %v11077 = vand.u32 %v4457, 4294901760
    %v11078 = vsub.f32 %v4457, %v11077
    %v11079 = vand.u32 %v11078, 4294901760
    %11080 = vmatpush.msra.mxu0 %v11079
    %v11081 = vand.u32 %v8972, 4294901760
    %11082 = vmatmul.f32.gmra.mxu0 %v11081
    %v11083 = vpop.f32.mrf.mxu0
    %v11084 = vadd.f32 %v10865, %v11083
    %v11085 = vand.u32 %v8975, 4294901760
    %11086 = vmatmul.f32.gmra.mxu0 %v11085
    %v11087 = vpop.f32.mrf.mxu0
    %v11088 = vadd.f32 %v10871, %v11087
    %v11089 = vand.u32 %v8978, 4294901760
    %11090 = vmatmul.f32.gmra.mxu0 %v11089
    %v11091 = vpop.f32.mrf.mxu0
    %v11092 = vadd.f32 %v10877, %v11091
    %v11093 = vand.u32 %v8981, 4294901760
    %11094 = vmatmul.f32.gmra.mxu0 %v11093
    %v11095 = vpop.f32.mrf.mxu0
    %v11096 = vadd.f32 %v10883, %v11095
    %v11097 = vand.u32 %v8984, 4294901760
    %11098 = vmatmul.f32.gmra.mxu0 %v11097
    %v11099 = vpop.f32.mrf.mxu0
    %v11100 = vadd.f32 %v10889, %v11099
    %v11101 = vand.u32 %v8987, 4294901760
    %11102 = vmatmul.f32.gmra.mxu0 %v11101
    %v11103 = vpop.f32.mrf.mxu0
    %v11104 = vadd.f32 %v10895, %v11103
    %v11105 = vand.u32 %v8990, 4294901760
    %11106 = vmatmul.f32.gmra.mxu0 %v11105
    %v11107 = vpop.f32.mrf.mxu0
    %v11108 = vadd.f32 %v10901, %v11107
    %v11109 = vand.u32 %v8993, 4294901760
    %11110 = vmatmul.f32.gmra.mxu0 %v11109
    %v11111 = vpop.f32.mrf.mxu0
    %v11112 = vadd.f32 %v10907, %v11111
    %v11113 = vand.u32 %v8996, 4294901760
    %11114 = vmatmul.f32.gmra.mxu0 %v11113
    %v11115 = vpop.f32.mrf.mxu0
    %v11116 = vadd.f32 %v10913, %v11115
    %v11117 = vand.u32 %v8999, 4294901760
    %11118 = vmatmul.f32.gmra.mxu0 %v11117
    %v11119 = vpop.f32.mrf.mxu0
    %v11120 = vadd.f32 %v10919, %v11119
    %v11121 = vand.u32 %v9002, 4294901760
    %11122 = vmatmul.f32.gmra.mxu0 %v11121
    %v11123 = vpop.f32.mrf.mxu0
    %v11124 = vadd.f32 %v10925, %v11123
    %v11125 = vand.u32 %v9005, 4294901760
    %11126 = vmatmul.f32.gmra.mxu0 %v11125
    %v11127 = vpop.f32.mrf.mxu0
    %v11128 = vadd.f32 %v10931, %v11127
    %v11129 = vand.u32 %v9008, 4294901760
    %11130 = vmatmul.f32.gmra.mxu0 %v11129
    %v11131 = vpop.f32.mrf.mxu0
    %v11132 = vadd.f32 %v10937, %v11131
    %v11133 = vand.u32 %v9011, 4294901760
    %11134 = vmatmul.f32.gmra.mxu0 %v11133
    %v11135 = vpop.f32.mrf.mxu0
    %v11136 = vadd.f32 %v10943, %v11135
    %v11137 = vand.u32 %v9014, 4294901760
    %11138 = vmatmul.f32.gmra.mxu0 %v11137
    %v11139 = vpop.f32.mrf.mxu0
    %v11140 = vadd.f32 %v10949, %v11139
    %v11141 = vand.u32 %v9017, 4294901760
    %11142 = vmatmul.f32.gmra.mxu0 %v11141
    %v11143 = vpop.f32.mrf.mxu0
    %v11144 = vadd.f32 %v10955, %v11143
    %v11145 = vand.u32 %v9020, 4294901760
    %11146 = vmatmul.f32.gmra.mxu0 %v11145
    %v11147 = vpop.f32.mrf.mxu0
    %v11148 = vadd.f32 %v10961, %v11147
    %v11149 = vand.u32 %v9023, 4294901760
    %11150 = vmatmul.f32.gmra.mxu0 %v11149
    %v11151 = vpop.f32.mrf.mxu0
    %v11152 = vadd.f32 %v10967, %v11151
    %v11153 = vand.u32 %v9026, 4294901760
    %11154 = vmatmul.f32.gmra.mxu0 %v11153
    %v11155 = vpop.f32.mrf.mxu0
    %v11156 = vadd.f32 %v10973, %v11155
    %v11157 = vand.u32 %v9029, 4294901760
    %11158 = vmatmul.f32.gmra.mxu0 %v11157
    %v11159 = vpop.f32.mrf.mxu0
    %v11160 = vadd.f32 %v10979, %v11159
    %v11161 = vand.u32 %v9032, 4294901760
    %11162 = vmatmul.f32.gmra.mxu0 %v11161
    %v11163 = vpop.f32.mrf.mxu0
    %v11164 = vadd.f32 %v10985, %v11163
    %v11165 = vand.u32 %v9035, 4294901760
    %11166 = vmatmul.f32.gmra.mxu0 %v11165
    %v11167 = vpop.f32.mrf.mxu0
    %v11168 = vadd.f32 %v10991, %v11167
    %v11169 = vand.u32 %v9038, 4294901760
    %11170 = vmatmul.f32.gmra.mxu0 %v11169
    %v11171 = vpop.f32.mrf.mxu0
    %v11172 = vadd.f32 %v10997, %v11171
    %v11173 = vand.u32 %v9041, 4294901760
    %11174 = vmatmul.f32.gmra.mxu0 %v11173
    %v11175 = vpop.f32.mrf.mxu0
    %v11176 = vadd.f32 %v11003, %v11175
    %v11177 = vand.u32 %v9044, 4294901760
    %11178 = vmatmul.f32.gmra.mxu0 %v11177
    %v11179 = vpop.f32.mrf.mxu0
    %v11180 = vadd.f32 %v11009, %v11179
    %v11181 = vand.u32 %v9047, 4294901760
    %11182 = vmatmul.f32.gmra.mxu0 %v11181
    %v11183 = vpop.f32.mrf.mxu0
    %v11184 = vadd.f32 %v11015, %v11183
    %v11185 = vand.u32 %v9050, 4294901760
    %11186 = vmatmul.f32.gmra.mxu0 %v11185
    %v11187 = vpop.f32.mrf.mxu0
    %v11188 = vadd.f32 %v11021, %v11187
    %v11189 = vand.u32 %v9053, 4294901760
    %11190 = vmatmul.f32.gmra.mxu0 %v11189
    %v11191 = vpop.f32.mrf.mxu0
    %v11192 = vadd.f32 %v11027, %v11191
    %v11193 = vand.u32 %v9056, 4294901760
    %11194 = vmatmul.f32.gmra.mxu0 %v11193
    %v11195 = vpop.f32.mrf.mxu0
    %v11196 = vadd.f32 %v11033, %v11195
    %v11197 = vand.u32 %v9059, 4294901760
    %11198 = vmatmul.f32.gmra.mxu0 %v11197
    %v11199 = vpop.f32.mrf.mxu0
    %v11200 = vadd.f32 %v11039, %v11199
    %v11201 = vand.u32 %v9062, 4294901760
    %11202 = vmatmul.f32.gmra.mxu0 %v11201
    %v11203 = vpop.f32.mrf.mxu0
    %v11204 = vadd.f32 %v11045, %v11203
    %v11205 = vand.u32 %v9065, 4294901760
    %11206 = vmatmul.f32.gmra.mxu0 %v11205
    %v11207 = vpop.f32.mrf.mxu0
    %v11208 = vadd.f32 %v11051, %v11207
    %11209 = vdwg.mxu0
    %11210 = vmatpush.msra.mxu0 0.0
    %11211 = vmatpush.msra.mxu0 0.0
    %11212 = vmatpush.msra.mxu0 0.0
    %11213 = vmatpush.msra.mxu0 0.0
    %11214 = vmatpush.msra.mxu0 0.0
    %11215 = vmatpush.msra.mxu0 0.0
    %11216 = vmatpush.msra.mxu0 0.0
    %11217 = vmatpush.msra.mxu0 0.0
    %11218 = vmatpush.msra.mxu0 0.0
    %11219 = vmatpush.msra.mxu0 0.0
    %11220 = vmatpush.msra.mxu0 0.0
    %11221 = vmatpush.msra.mxu0 0.0
    %v11222 = vand.u32 %v4463, 4294901760
    %11223 = vmatpush.msra.mxu0 %v11222
    %v11224 = vand.u32 %v4461, 4294901760
    %11225 = vmatpush.msra.mxu0 %v11224
    %v11226 = vand.u32 %v4459, 4294901760
    %11227 = vmatpush.msra.mxu0 %v11226
    %v11228 = vand.u32 %v4457, 4294901760
    %11229 = vmatpush.msra.mxu0 %v11228
    %v11230 = vand.u32 %v8972, 4294901760
    %11231 = vmatmul.f32.gmra.mxu0 %v11230
    %v11232 = vpop.f32.mrf.mxu0
    %v11233 = vadd.f32 %v11084, %v11232
    %v11234 = vand.u32 %v8975, 4294901760
    %11235 = vmatmul.f32.gmra.mxu0 %v11234
    %v11236 = vpop.f32.mrf.mxu0
    %v11237 = vadd.f32 %v11088, %v11236
    %v11238 = vand.u32 %v8978, 4294901760
    %11239 = vmatmul.f32.gmra.mxu0 %v11238
    %v11240 = vpop.f32.mrf.mxu0
    %v11241 = vadd.f32 %v11092, %v11240
    %v11242 = vand.u32 %v8981, 4294901760
    %11243 = vmatmul.f32.gmra.mxu0 %v11242
    %v11244 = vpop.f32.mrf.mxu0
    %v11245 = vadd.f32 %v11096, %v11244
    %v11246 = vand.u32 %v8984, 4294901760
    %11247 = vmatmul.f32.gmra.mxu0 %v11246
    %v11248 = vpop.f32.mrf.mxu0
    %v11249 = vadd.f32 %v11100, %v11248
    %v11250 = vand.u32 %v8987, 4294901760
    %11251 = vmatmul.f32.gmra.mxu0 %v11250
    %v11252 = vpop.f32.mrf.mxu0
    %v11253 = vadd.f32 %v11104, %v11252
    %v11254 = vand.u32 %v8990, 4294901760
    %11255 = vmatmul.f32.gmra.mxu0 %v11254
    %v11256 = vpop.f32.mrf.mxu0
    %v11257 = vadd.f32 %v11108, %v11256
    %v11258 = vand.u32 %v8993, 4294901760
    %11259 = vmatmul.f32.gmra.mxu0 %v11258
    %v11260 = vpop.f32.mrf.mxu0
    %v11261 = vadd.f32 %v11112, %v11260
    %v11262 = vand.u32 %v8996, 4294901760
    %11263 = vmatmul.f32.gmra.mxu0 %v11262
    %v11264 = vpop.f32.mrf.mxu0
    %v11265 = vadd.f32 %v11116, %v11264
    %v11266 = vand.u32 %v8999, 4294901760
    %11267 = vmatmul.f32.gmra.mxu0 %v11266
    %v11268 = vpop.f32.mrf.mxu0
    %v11269 = vadd.f32 %v11120, %v11268
    %v11270 = vand.u32 %v9002, 4294901760
    %11271 = vmatmul.f32.gmra.mxu0 %v11270
    %v11272 = vpop.f32.mrf.mxu0
    %v11273 = vadd.f32 %v11124, %v11272
    %v11274 = vand.u32 %v9005, 4294901760
    %11275 = vmatmul.f32.gmra.mxu0 %v11274
    %v11276 = vpop.f32.mrf.mxu0
    %v11277 = vadd.f32 %v11128, %v11276
    %v11278 = vand.u32 %v9008, 4294901760
    %11279 = vmatmul.f32.gmra.mxu0 %v11278
    %v11280 = vpop.f32.mrf.mxu0
    %v11281 = vadd.f32 %v11132, %v11280
    %v11282 = vand.u32 %v9011, 4294901760
    %11283 = vmatmul.f32.gmra.mxu0 %v11282
    %v11284 = vpop.f32.mrf.mxu0
    %v11285 = vadd.f32 %v11136, %v11284
    %v11286 = vand.u32 %v9014, 4294901760
    %11287 = vmatmul.f32.gmra.mxu0 %v11286
    %v11288 = vpop.f32.mrf.mxu0
    %v11289 = vadd.f32 %v11140, %v11288
    %v11290 = vand.u32 %v9017, 4294901760
    %11291 = vmatmul.f32.gmra.mxu0 %v11290
    %v11292 = vpop.f32.mrf.mxu0
    %v11293 = vadd.f32 %v11144, %v11292
    %v11294 = vand.u32 %v9020, 4294901760
    %11295 = vmatmul.f32.gmra.mxu0 %v11294
    %v11296 = vpop.f32.mrf.mxu0
    %v11297 = vadd.f32 %v11148, %v11296
    %v11298 = vand.u32 %v9023, 4294901760
    %11299 = vmatmul.f32.gmra.mxu0 %v11298
    %v11300 = vpop.f32.mrf.mxu0
    %v11301 = vadd.f32 %v11152, %v11300
    %v11302 = vand.u32 %v9026, 4294901760
    %11303 = vmatmul.f32.gmra.mxu0 %v11302
    %v11304 = vpop.f32.mrf.mxu0
    %v11305 = vadd.f32 %v11156, %v11304
    %v11306 = vand.u32 %v9029, 4294901760
    %11307 = vmatmul.f32.gmra.mxu0 %v11306
    %v11308 = vpop.f32.mrf.mxu0
    %v11309 = vadd.f32 %v11160, %v11308
    %v11310 = vand.u32 %v9032, 4294901760
    %11311 = vmatmul.f32.gmra.mxu0 %v11310
    %v11312 = vpop.f32.mrf.mxu0
    %v11313 = vadd.f32 %v11164, %v11312
    %v11314 = vand.u32 %v9035, 4294901760
    %11315 = vmatmul.f32.gmra.mxu0 %v11314
    %v11316 = vpop.f32.mrf.mxu0
    %v11317 = vadd.f32 %v11168, %v11316
    %v11318 = vand.u32 %v9038, 4294901760
    %11319 = vmatmul.f32.gmra.mxu0 %v11318
    %v11320 = vpop.f32.mrf.mxu0
    %v11321 = vadd.f32 %v11172, %v11320
    %v11322 = vand.u32 %v9041, 4294901760
    %11323 = vmatmul.f32.gmra.mxu0 %v11322
    %v11324 = vpop.f32.mrf.mxu0
    %v11325 = vadd.f32 %v11176, %v11324
    %v11326 = vand.u32 %v9044, 4294901760
    %11327 = vmatmul.f32.gmra.mxu0 %v11326
    %v11328 = vpop.f32.mrf.mxu0
    %v11329 = vadd.f32 %v11180, %v11328
    %v11330 = vand.u32 %v9047, 4294901760
    %11331 = vmatmul.f32.gmra.mxu0 %v11330
    %v11332 = vpop.f32.mrf.mxu0
    %v11333 = vadd.f32 %v11184, %v11332
    %v11334 = vand.u32 %v9050, 4294901760
    %11335 = vmatmul.f32.gmra.mxu0 %v11334
    %v11336 = vpop.f32.mrf.mxu0
    %v11337 = vadd.f32 %v11188, %v11336
    %v11338 = vand.u32 %v9053, 4294901760
    %11339 = vmatmul.f32.gmra.mxu0 %v11338
    %v11340 = vpop.f32.mrf.mxu0
    %v11341 = vadd.f32 %v11192, %v11340
    %v11342 = vand.u32 %v9056, 4294901760
    %11343 = vmatmul.f32.gmra.mxu0 %v11342
    %v11344 = vpop.f32.mrf.mxu0
    %v11345 = vadd.f32 %v11196, %v11344
    %v11346 = vand.u32 %v9059, 4294901760
    %11347 = vmatmul.f32.gmra.mxu0 %v11346
    %v11348 = vpop.f32.mrf.mxu0
    %v11349 = vadd.f32 %v11200, %v11348
    %v11350 = vand.u32 %v9062, 4294901760
    %11351 = vmatmul.f32.gmra.mxu0 %v11350
    %v11352 = vpop.f32.mrf.mxu0
    %v11353 = vadd.f32 %v11204, %v11352
    %v11354 = vand.u32 %v9065, 4294901760
    %11355 = vmatmul.f32.gmra.mxu0 %v11354
    %v11356 = vpop.f32.mrf.mxu0
    %v11357 = vadd.f32 %v11208, %v11356
    %11358 = vdwg.mxu0
    %v11359 = vmul.f32 %v6579, %v4456
    %v11360 = vmul.f32 %v8717, %v4457
    %v11361 = vmul.f32 %v6583, %v4458
    %v11362 = vmul.f32 %v8721, %v4459
    %v11363 = vmul.f32 %v6587, %v4460
    %v11364 = vmul.f32 %v8725, %v4461
    %v11365 = vmul.f32 %v6591, %v4462
    %v11366 = vmul.f32 %v8729, %v4463
    %v11367 = vmul.f32 %v6595, %v4456
    %v11368 = vmul.f32 %v8733, %v4457
    %v11369 = vmul.f32 %v6599, %v4458
    %v11370 = vmul.f32 %v8737, %v4459
    %v11371 = vmul.f32 %v6603, %v4460
    %v11372 = vmul.f32 %v8741, %v4461
    %v11373 = vmul.f32 %v6607, %v4462
    %v11374 = vmul.f32 %v8745, %v4463
    %v11375 = vmul.f32 %v6611, %v4456
    %v11376 = vmul.f32 %v8749, %v4457
    %v11377 = vmul.f32 %v6615, %v4458
    %v11378 = vmul.f32 %v8753, %v4459
    %v11379 = vmul.f32 %v6619, %v4460
    %v11380 = vmul.f32 %v8757, %v4461
    %v11381 = vmul.f32 %v6623, %v4462
    %v11382 = vmul.f32 %v8761, %v4463
    %v11383 = vmul.f32 %v6627, %v4456
    %v11384 = vmul.f32 %v8765, %v4457
    %v11385 = vmul.f32 %v6631, %v4458
    %v11386 = vmul.f32 %v8769, %v4459
    %v11387 = vmul.f32 %v6635, %v4460
    %v11388 = vmul.f32 %v8773, %v4461
    %v11389 = vmul.f32 %v6639, %v4462
    %v11390 = vmul.f32 %v8777, %v4463
    %v11391 = vmul.f32 %v6643, %v4456
    %v11392 = vmul.f32 %v8781, %v4457
    %v11393 = vmul.f32 %v6647, %v4458
    %v11394 = vmul.f32 %v8785, %v4459
    %v11395 = vmul.f32 %v6651, %v4460
    %v11396 = vmul.f32 %v8789, %v4461
    %v11397 = vmul.f32 %v6655, %v4462
    %v11398 = vmul.f32 %v8793, %v4463
    %v11399 = vmul.f32 %v6659, %v4456
    %v11400 = vmul.f32 %v8797, %v4457
    %v11401 = vmul.f32 %v6663, %v4458
    %v11402 = vmul.f32 %v8801, %v4459
    %v11403 = vmul.f32 %v6667, %v4460
    %v11404 = vmul.f32 %v8805, %v4461
    %v11405 = vmul.f32 %v6671, %v4462
    %v11406 = vmul.f32 %v8809, %v4463
    %v11407 = vmul.f32 %v6675, %v4456
    %v11408 = vmul.f32 %v8813, %v4457
    %v11409 = vmul.f32 %v6679, %v4458
    %v11410 = vmul.f32 %v8817, %v4459
    %v11411 = vmul.f32 %v6683, %v4460
    %v11412 = vmul.f32 %v8821, %v4461
    %v11413 = vmul.f32 %v6687, %v4462
    %v11414 = vmul.f32 %v8825, %v4463
    %v11415 = vmul.f32 %v6691, %v4456
    %v11416 = vmul.f32 %v8829, %v4457
    %v11417 = vmul.f32 %v6695, %v4458
    %v11418 = vmul.f32 %v8833, %v4459
    %v11419 = vmul.f32 %v6699, %v4460
    %v11420 = vmul.f32 %v8837, %v4461
    %v11421 = vmul.f32 %v6703, %v4462
    %v11422 = vmul.f32 %v8841, %v4463
    %v11423 = vadd.f32 %v11359, %v11361
    %v11424 = vadd.f32 %v11423, %v11363
    %v11425 = vadd.f32 %v11424, %v11365
    %v11426 = vrot.slane %v11425, 4
    %v11427 = vadd.f32 %v11425, %v11426
    %v11428 = vrot.slane %v11427, 2
    %v11429 = vadd.f32 %v11427, %v11428
    %v11430 = vrot.slane %v11429, 1
    %v11431 = vadd.f32 %v11429, %v11430
    %v11432 = vadd.f32 %v11360, %v11362
    %v11433 = vadd.f32 %v11432, %v11364
    %v11434 = vadd.f32 %v11433, %v11366
    %v11435 = vrot.slane %v11434, 4
    %v11436 = vadd.f32 %v11434, %v11435
    %v11437 = vrot.slane %v11436, 2
    %v11438 = vadd.f32 %v11436, %v11437
    %v11439 = vrot.slane %v11438, 1
    %v11440 = vadd.f32 %v11438, %v11439
    %v11441 = vadd.f32 %v11367, %v11369
    %v11442 = vadd.f32 %v11441, %v11371
    %v11443 = vadd.f32 %v11442, %v11373
    %v11444 = vrot.slane %v11443, 4
    %v11445 = vadd.f32 %v11443, %v11444
    %v11446 = vrot.slane %v11445, 2
    %v11447 = vadd.f32 %v11445, %v11446
    %v11448 = vrot.slane %v11447, 1
    %v11449 = vadd.f32 %v11447, %v11448
    %v11450 = vadd.f32 %v11368, %v11370
    %v11451 = vadd.f32 %v11450, %v11372
    %v11452 = vadd.f32 %v11451, %v11374
    %v11453 = vrot.slane %v11452, 4
    %v11454 = vadd.f32 %v11452, %v11453
    %v11455 = vrot.slane %v11454, 2
    %v11456 = vadd.f32 %v11454, %v11455
    %v11457 = vrot.slane %v11456, 1
    %v11458 = vadd.f32 %v11456, %v11457
    %v11459 = vadd.f32 %v11375, %v11377
    %v11460 = vadd.f32 %v11459, %v11379
    %v11461 = vadd.f32 %v11460, %v11381
    %v11462 = vrot.slane %v11461, 4
    %v11463 = vadd.f32 %v11461, %v11462
    %v11464 = vrot.slane %v11463, 2
    %v11465 = vadd.f32 %v11463, %v11464
    %v11466 = vrot.slane %v11465, 1
    %v11467 = vadd.f32 %v11465, %v11466
    %v11468 = vadd.f32 %v11376, %v11378
    %v11469 = vadd.f32 %v11468, %v11380
    %v11470 = vadd.f32 %v11469, %v11382
    %v11471 = vrot.slane %v11470, 4
    %v11472 = vadd.f32 %v11470, %v11471
    %v11473 = vrot.slane %v11472, 2
    %v11474 = vadd.f32 %v11472, %v11473
    %v11475 = vrot.slane %v11474, 1
    %v11476 = vadd.f32 %v11474, %v11475
    %v11477 = vadd.f32 %v11383, %v11385
    %v11478 = vadd.f32 %v11477, %v11387
    %v11479 = vadd.f32 %v11478, %v11389
    %v11480 = vrot.slane %v11479, 4
    %v11481 = vadd.f32 %v11479, %v11480
    %v11482 = vrot.slane %v11481, 2
    %v11483 = vadd.f32 %v11481, %v11482
    %v11484 = vrot.slane %v11483, 1
    %v11485 = vadd.f32 %v11483, %v11484
    %v11486 = vadd.f32 %v11384, %v11386
    %v11487 = vadd.f32 %v11486, %v11388
    %v11488 = vadd.f32 %v11487, %v11390
    %v11489 = vrot.slane %v11488, 4
    %v11490 = vadd.f32 %v11488, %v11489
    %v11491 = vrot.slane %v11490, 2
    %v11492 = vadd.f32 %v11490, %v11491
    %v11493 = vrot.slane %v11492, 1
    %v11494 = vadd.f32 %v11492, %v11493
    %v11495 = vadd.f32 %v11391, %v11393
    %v11496 = vadd.f32 %v11495, %v11395
    %v11497 = vadd.f32 %v11496, %v11397
    %v11498 = vrot.slane %v11497, 4
    %v11499 = vadd.f32 %v11497, %v11498
    %v11500 = vrot.slane %v11499, 2
    %v11501 = vadd.f32 %v11499, %v11500
    %v11502 = vrot.slane %v11501, 1
    %v11503 = vadd.f32 %v11501, %v11502
    %v11504 = vadd.f32 %v11392, %v11394
    %v11505 = vadd.f32 %v11504, %v11396
    %v11506 = vadd.f32 %v11505, %v11398
    %v11507 = vrot.slane %v11506, 4
    %v11508 = vadd.f32 %v11506, %v11507
    %v11509 = vrot.slane %v11508, 2
    %v11510 = vadd.f32 %v11508, %v11509
    %v11511 = vrot.slane %v11510, 1
    %v11512 = vadd.f32 %v11510, %v11511
    %v11513 = vadd.f32 %v11399, %v11401
    %v11514 = vadd.f32 %v11513, %v11403
    %v11515 = vadd.f32 %v11514, %v11405
    %v11516 = vrot.slane %v11515, 4
    %v11517 = vadd.f32 %v11515, %v11516
    %v11518 = vrot.slane %v11517, 2
    %v11519 = vadd.f32 %v11517, %v11518
    %v11520 = vrot.slane %v11519, 1
    %v11521 = vadd.f32 %v11519, %v11520
    %v11522 = vadd.f32 %v11400, %v11402
    %v11523 = vadd.f32 %v11522, %v11404
    %v11524 = vadd.f32 %v11523, %v11406
    %v11525 = vrot.slane %v11524, 4
    %v11526 = vadd.f32 %v11524, %v11525
    %v11527 = vrot.slane %v11526, 2
    %v11528 = vadd.f32 %v11526, %v11527
    %v11529 = vrot.slane %v11528, 1
    %v11530 = vadd.f32 %v11528, %v11529
    %v11531 = vadd.f32 %v11407, %v11409
    %v11532 = vadd.f32 %v11531, %v11411
    %v11533 = vadd.f32 %v11532, %v11413
    %v11534 = vrot.slane %v11533, 4
    %v11535 = vadd.f32 %v11533, %v11534
    %v11536 = vrot.slane %v11535, 2
    %v11537 = vadd.f32 %v11535, %v11536
    %v11538 = vrot.slane %v11537, 1
    %v11539 = vadd.f32 %v11537, %v11538
    %v11540 = vadd.f32 %v11408, %v11410
    %v11541 = vadd.f32 %v11540, %v11412
    %v11542 = vadd.f32 %v11541, %v11414
    %v11543 = vrot.slane %v11542, 4
    %v11544 = vadd.f32 %v11542, %v11543
    %v11545 = vrot.slane %v11544, 2
    %v11546 = vadd.f32 %v11544, %v11545
    %v11547 = vrot.slane %v11546, 1
    %v11548 = vadd.f32 %v11546, %v11547
    %v11549 = vadd.f32 %v11415, %v11417
    %v11550 = vadd.f32 %v11549, %v11419
    %v11551 = vadd.f32 %v11550, %v11421
    %v11552 = vrot.slane %v11551, 4
    %v11553 = vadd.f32 %v11551, %v11552
    %v11554 = vrot.slane %v11553, 2
    %v11555 = vadd.f32 %v11553, %v11554
    %v11556 = vrot.slane %v11555, 1
    %v11557 = vadd.f32 %v11555, %v11556
    %v11558 = vadd.f32 %v11416, %v11418
    %v11559 = vadd.f32 %v11558, %v11420
    %v11560 = vadd.f32 %v11559, %v11422
    %v11561 = vrot.slane %v11560, 4
    %v11562 = vadd.f32 %v11560, %v11561
    %v11563 = vrot.slane %v11562, 2
    %v11564 = vadd.f32 %v11562, %v11563
    %v11565 = vrot.slane %v11564, 1
    %v11566 = vadd.f32 %v11564, %v11565
    %v11567 = vmul.f32 %v6707, %v4494
    %v11568 = vmul.f32 %v8845, %v4495
    %v11569 = vmul.f32 %v6711, %v4496
    %v11570 = vmul.f32 %v8849, %v4497
    %v11571 = vmul.f32 %v6715, %v4498
    %v11572 = vmul.f32 %v8853, %v4499
    %v11573 = vmul.f32 %v6719, %v4500
    %v11574 = vmul.f32 %v8857, %v4501
    %v11575 = vmul.f32 %v6723, %v4494
    %v11576 = vmul.f32 %v8861, %v4495
    %v11577 = vmul.f32 %v6727, %v4496
    %v11578 = vmul.f32 %v8865, %v4497
    %v11579 = vmul.f32 %v6731, %v4498
    %v11580 = vmul.f32 %v8869, %v4499
    %v11581 = vmul.f32 %v6735, %v4500
    %v11582 = vmul.f32 %v8873, %v4501
    %v11583 = vmul.f32 %v6739, %v4494
    %v11584 = vmul.f32 %v8877, %v4495
    %v11585 = vmul.f32 %v6743, %v4496
    %v11586 = vmul.f32 %v8881, %v4497
    %v11587 = vmul.f32 %v6747, %v4498
    %v11588 = vmul.f32 %v8885, %v4499
    %v11589 = vmul.f32 %v6751, %v4500
    %v11590 = vmul.f32 %v8889, %v4501
    %v11591 = vmul.f32 %v6755, %v4494
    %v11592 = vmul.f32 %v8893, %v4495
    %v11593 = vmul.f32 %v6759, %v4496
    %v11594 = vmul.f32 %v8897, %v4497
    %v11595 = vmul.f32 %v6763, %v4498
    %v11596 = vmul.f32 %v8901, %v4499
    %v11597 = vmul.f32 %v6767, %v4500
    %v11598 = vmul.f32 %v8905, %v4501
    %v11599 = vmul.f32 %v6771, %v4494
    %v11600 = vmul.f32 %v8909, %v4495
    %v11601 = vmul.f32 %v6775, %v4496
    %v11602 = vmul.f32 %v8913, %v4497
    %v11603 = vmul.f32 %v6779, %v4498
    %v11604 = vmul.f32 %v8917, %v4499
    %v11605 = vmul.f32 %v6783, %v4500
    %v11606 = vmul.f32 %v8921, %v4501
    %v11607 = vmul.f32 %v6787, %v4494
    %v11608 = vmul.f32 %v8925, %v4495
    %v11609 = vmul.f32 %v6791, %v4496
    %v11610 = vmul.f32 %v8929, %v4497
    %v11611 = vmul.f32 %v6795, %v4498
    %v11612 = vmul.f32 %v8933, %v4499
    %v11613 = vmul.f32 %v6799, %v4500
    %v11614 = vmul.f32 %v8937, %v4501
    %v11615 = vmul.f32 %v6803, %v4494
    %v11616 = vmul.f32 %v8941, %v4495
    %v11617 = vmul.f32 %v6807, %v4496
    %v11618 = vmul.f32 %v8945, %v4497
    %v11619 = vmul.f32 %v6811, %v4498
    %v11620 = vmul.f32 %v8949, %v4499
    %v11621 = vmul.f32 %v6815, %v4500
    %v11622 = vmul.f32 %v8953, %v4501
    %v11623 = vmul.f32 %v6819, %v4494
    %v11624 = vmul.f32 %v8957, %v4495
    %v11625 = vmul.f32 %v6823, %v4496
    %v11626 = vmul.f32 %v8961, %v4497
    %v11627 = vmul.f32 %v6827, %v4498
    %v11628 = vmul.f32 %v8965, %v4499
    %v11629 = vmul.f32 %v6831, %v4500
    %v11630 = vmul.f32 %v8969, %v4501
    %v11631 = vadd.f32 %v11567, %v11569
    %v11632 = vadd.f32 %v11631, %v11571
    %v11633 = vadd.f32 %v11632, %v11573
    %v11634 = vrot.slane %v11633, 4
    %v11635 = vadd.f32 %v11633, %v11634
    %v11636 = vrot.slane %v11635, 2
    %v11637 = vadd.f32 %v11635, %v11636
    %v11638 = vrot.slane %v11637, 1
    %v11639 = vadd.f32 %v11637, %v11638
    %v11640 = vadd.f32 %v11568, %v11570
    %v11641 = vadd.f32 %v11640, %v11572
    %v11642 = vadd.f32 %v11641, %v11574
    %v11643 = vrot.slane %v11642, 4
    %v11644 = vadd.f32 %v11642, %v11643
    %v11645 = vrot.slane %v11644, 2
    %v11646 = vadd.f32 %v11644, %v11645
    %v11647 = vrot.slane %v11646, 1
    %v11648 = vadd.f32 %v11646, %v11647
    %v11649 = vadd.f32 %v11575, %v11577
    %v11650 = vadd.f32 %v11649, %v11579
    %v11651 = vadd.f32 %v11650, %v11581
    %v11652 = vrot.slane %v11651, 4
    %v11653 = vadd.f32 %v11651, %v11652
    %v11654 = vrot.slane %v11653, 2
    %v11655 = vadd.f32 %v11653, %v11654
    %v11656 = vrot.slane %v11655, 1
    %v11657 = vadd.f32 %v11655, %v11656
    %v11658 = vadd.f32 %v11576, %v11578
    %v11659 = vadd.f32 %v11658, %v11580
    %v11660 = vadd.f32 %v11659, %v11582
    %v11661 = vrot.slane %v11660, 4
    %v11662 = vadd.f32 %v11660, %v11661
    %v11663 = vrot.slane %v11662, 2
    %v11664 = vadd.f32 %v11662, %v11663
    %v11665 = vrot.slane %v11664, 1
    %v11666 = vadd.f32 %v11664, %v11665
    %v11667 = vadd.f32 %v11583, %v11585
    %v11668 = vadd.f32 %v11667, %v11587
    %v11669 = vadd.f32 %v11668, %v11589
    %v11670 = vrot.slane %v11669, 4
    %v11671 = vadd.f32 %v11669, %v11670
    %v11672 = vrot.slane %v11671, 2
    %v11673 = vadd.f32 %v11671, %v11672
    %v11674 = vrot.slane %v11673, 1
    %v11675 = vadd.f32 %v11673, %v11674
    %v11676 = vadd.f32 %v11584, %v11586
    %v11677 = vadd.f32 %v11676, %v11588
    %v11678 = vadd.f32 %v11677, %v11590
    %v11679 = vrot.slane %v11678, 4
    %v11680 = vadd.f32 %v11678, %v11679
    %v11681 = vrot.slane %v11680, 2
    %v11682 = vadd.f32 %v11680, %v11681
    %v11683 = vrot.slane %v11682, 1
    %v11684 = vadd.f32 %v11682, %v11683
    %v11685 = vadd.f32 %v11591, %v11593
    %v11686 = vadd.f32 %v11685, %v11595
    %v11687 = vadd.f32 %v11686, %v11597
    %v11688 = vrot.slane %v11687, 4
    %v11689 = vadd.f32 %v11687, %v11688
    %v11690 = vrot.slane %v11689, 2
    %v11691 = vadd.f32 %v11689, %v11690
    %v11692 = vrot.slane %v11691, 1
    %v11693 = vadd.f32 %v11691, %v11692
    %v11694 = vadd.f32 %v11592, %v11594
    %v11695 = vadd.f32 %v11694, %v11596
    %v11696 = vadd.f32 %v11695, %v11598
    %v11697 = vrot.slane %v11696, 4
    %v11698 = vadd.f32 %v11696, %v11697
    %v11699 = vrot.slane %v11698, 2
    %v11700 = vadd.f32 %v11698, %v11699
    %v11701 = vrot.slane %v11700, 1
    %v11702 = vadd.f32 %v11700, %v11701
    %v11703 = vadd.f32 %v11599, %v11601
    %v11704 = vadd.f32 %v11703, %v11603
    %v11705 = vadd.f32 %v11704, %v11605
    %v11706 = vrot.slane %v11705, 4
    %v11707 = vadd.f32 %v11705, %v11706
    %v11708 = vrot.slane %v11707, 2
    %v11709 = vadd.f32 %v11707, %v11708
    %v11710 = vrot.slane %v11709, 1
    %v11711 = vadd.f32 %v11709, %v11710
    %v11712 = vadd.f32 %v11600, %v11602
    %v11713 = vadd.f32 %v11712, %v11604
    %v11714 = vadd.f32 %v11713, %v11606
    %v11715 = vrot.slane %v11714, 4
    %v11716 = vadd.f32 %v11714, %v11715
    %v11717 = vrot.slane %v11716, 2
    %v11718 = vadd.f32 %v11716, %v11717
    %v11719 = vrot.slane %v11718, 1
    %v11720 = vadd.f32 %v11718, %v11719
    %v11721 = vadd.f32 %v11607, %v11609
    %v11722 = vadd.f32 %v11721, %v11611
    %v11723 = vadd.f32 %v11722, %v11613
    %v11724 = vrot.slane %v11723, 4
    %v11725 = vadd.f32 %v11723, %v11724
    %v11726 = vrot.slane %v11725, 2
    %v11727 = vadd.f32 %v11725, %v11726
    %v11728 = vrot.slane %v11727, 1
    %v11729 = vadd.f32 %v11727, %v11728
    %v11730 = vadd.f32 %v11608, %v11610
    %v11731 = vadd.f32 %v11730, %v11612
    %v11732 = vadd.f32 %v11731, %v11614
    %v11733 = vrot.slane %v11732, 4
    %v11734 = vadd.f32 %v11732, %v11733
    %v11735 = vrot.slane %v11734, 2
    %v11736 = vadd.f32 %v11734, %v11735
    %v11737 = vrot.slane %v11736, 1
    %v11738 = vadd.f32 %v11736, %v11737
    %v11739 = vadd.f32 %v11615, %v11617
    %v11740 = vadd.f32 %v11739, %v11619
    %v11741 = vadd.f32 %v11740, %v11621
    %v11742 = vrot.slane %v11741, 4
    %v11743 = vadd.f32 %v11741, %v11742
    %v11744 = vrot.slane %v11743, 2
    %v11745 = vadd.f32 %v11743, %v11744
    %v11746 = vrot.slane %v11745, 1
    %v11747 = vadd.f32 %v11745, %v11746
    %v11748 = vadd.f32 %v11616, %v11618
    %v11749 = vadd.f32 %v11748, %v11620
    %v11750 = vadd.f32 %v11749, %v11622
    %v11751 = vrot.slane %v11750, 4
    %v11752 = vadd.f32 %v11750, %v11751
    %v11753 = vrot.slane %v11752, 2
    %v11754 = vadd.f32 %v11752, %v11753
    %v11755 = vrot.slane %v11754, 1
    %v11756 = vadd.f32 %v11754, %v11755
    %v11757 = vadd.f32 %v11623, %v11625
    %v11758 = vadd.f32 %v11757, %v11627
    %v11759 = vadd.f32 %v11758, %v11629
    %v11760 = vrot.slane %v11759, 4
    %v11761 = vadd.f32 %v11759, %v11760
    %v11762 = vrot.slane %v11761, 2
    %v11763 = vadd.f32 %v11761, %v11762
    %v11764 = vrot.slane %v11763, 1
    %v11765 = vadd.f32 %v11763, %v11764
    %v11766 = vadd.f32 %v11624, %v11626
    %v11767 = vadd.f32 %v11766, %v11628
    %v11768 = vadd.f32 %v11767, %v11630
    %v11769 = vrot.slane %v11768, 4
    %v11770 = vadd.f32 %v11768, %v11769
    %v11771 = vrot.slane %v11770, 2
    %v11772 = vadd.f32 %v11770, %v11771
    %v11773 = vrot.slane %v11772, 1
    %v11774 = vadd.f32 %v11772, %v11773
    %v11775 = vmul.f32 %v10087, %v4494
    %v11776 = vmul.f32 %v11233, %v4495
    %v11777 = vmul.f32 %v10091, %v4496
    %v11778 = vmul.f32 %v11237, %v4497
    %v11779 = vmul.f32 %v10095, %v4498
    %v11780 = vmul.f32 %v11241, %v4499
    %v11781 = vmul.f32 %v10099, %v4500
    %v11782 = vmul.f32 %v11245, %v4501
    %v11783 = vmul.f32 %v10103, %v4494
    %v11784 = vmul.f32 %v11249, %v4495
    %v11785 = vmul.f32 %v10107, %v4496
    %v11786 = vmul.f32 %v11253, %v4497
    %v11787 = vmul.f32 %v10111, %v4498
    %v11788 = vmul.f32 %v11257, %v4499
    %v11789 = vmul.f32 %v10115, %v4500
    %v11790 = vmul.f32 %v11261, %v4501
    %v11791 = vmul.f32 %v10119, %v4494
    %v11792 = vmul.f32 %v11265, %v4495
    %v11793 = vmul.f32 %v10123, %v4496
    %v11794 = vmul.f32 %v11269, %v4497
    %v11795 = vmul.f32 %v10127, %v4498
    %v11796 = vmul.f32 %v11273, %v4499
    %v11797 = vmul.f32 %v10131, %v4500
    %v11798 = vmul.f32 %v11277, %v4501
    %v11799 = vmul.f32 %v10135, %v4494
    %v11800 = vmul.f32 %v11281, %v4495
    %v11801 = vmul.f32 %v10139, %v4496
    %v11802 = vmul.f32 %v11285, %v4497
    %v11803 = vmul.f32 %v10143, %v4498
    %v11804 = vmul.f32 %v11289, %v4499
    %v11805 = vmul.f32 %v10147, %v4500
    %v11806 = vmul.f32 %v11293, %v4501
    %v11807 = vmul.f32 %v10151, %v4494
    %v11808 = vmul.f32 %v11297, %v4495
    %v11809 = vmul.f32 %v10155, %v4496
    %v11810 = vmul.f32 %v11301, %v4497
    %v11811 = vmul.f32 %v10159, %v4498
    %v11812 = vmul.f32 %v11305, %v4499
    %v11813 = vmul.f32 %v10163, %v4500
    %v11814 = vmul.f32 %v11309, %v4501
    %v11815 = vmul.f32 %v10167, %v4494
    %v11816 = vmul.f32 %v11313, %v4495
    %v11817 = vmul.f32 %v10171, %v4496
    %v11818 = vmul.f32 %v11317, %v4497
    %v11819 = vmul.f32 %v10175, %v4498
    %v11820 = vmul.f32 %v11321, %v4499
    %v11821 = vmul.f32 %v10179, %v4500
    %v11822 = vmul.f32 %v11325, %v4501
    %v11823 = vmul.f32 %v10183, %v4494
    %v11824 = vmul.f32 %v11329, %v4495
    %v11825 = vmul.f32 %v10187, %v4496
    %v11826 = vmul.f32 %v11333, %v4497
    %v11827 = vmul.f32 %v10191, %v4498
    %v11828 = vmul.f32 %v11337, %v4499
    %v11829 = vmul.f32 %v10195, %v4500
    %v11830 = vmul.f32 %v11341, %v4501
    %v11831 = vmul.f32 %v10199, %v4494
    %v11832 = vmul.f32 %v11345, %v4495
    %v11833 = vmul.f32 %v10203, %v4496
    %v11834 = vmul.f32 %v11349, %v4497
    %v11835 = vmul.f32 %v10207, %v4498
    %v11836 = vmul.f32 %v11353, %v4499
    %v11837 = vmul.f32 %v10211, %v4500
    %v11838 = vmul.f32 %v11357, %v4501
    %v11839 = vadd.f32 %v11775, %v11777
    %v11840 = vadd.f32 %v11839, %v11779
    %v11841 = vadd.f32 %v11840, %v11781
    %v11842 = vrot.slane %v11841, 4
    %v11843 = vadd.f32 %v11841, %v11842
    %v11844 = vrot.slane %v11843, 2
    %v11845 = vadd.f32 %v11843, %v11844
    %v11846 = vrot.slane %v11845, 1
    %v11847 = vadd.f32 %v11845, %v11846
    %v11848 = vadd.f32 %v11776, %v11778
    %v11849 = vadd.f32 %v11848, %v11780
    %v11850 = vadd.f32 %v11849, %v11782
    %v11851 = vrot.slane %v11850, 4
    %v11852 = vadd.f32 %v11850, %v11851
    %v11853 = vrot.slane %v11852, 2
    %v11854 = vadd.f32 %v11852, %v11853
    %v11855 = vrot.slane %v11854, 1
    %v11856 = vadd.f32 %v11854, %v11855
    %v11857 = vadd.f32 %v11783, %v11785
    %v11858 = vadd.f32 %v11857, %v11787
    %v11859 = vadd.f32 %v11858, %v11789
    %v11860 = vrot.slane %v11859, 4
    %v11861 = vadd.f32 %v11859, %v11860
    %v11862 = vrot.slane %v11861, 2
    %v11863 = vadd.f32 %v11861, %v11862
    %v11864 = vrot.slane %v11863, 1
    %v11865 = vadd.f32 %v11863, %v11864
    %v11866 = vadd.f32 %v11784, %v11786
    %v11867 = vadd.f32 %v11866, %v11788
    %v11868 = vadd.f32 %v11867, %v11790
    %v11869 = vrot.slane %v11868, 4
    %v11870 = vadd.f32 %v11868, %v11869
    %v11871 = vrot.slane %v11870, 2
    %v11872 = vadd.f32 %v11870, %v11871
    %v11873 = vrot.slane %v11872, 1
    %v11874 = vadd.f32 %v11872, %v11873
    %v11875 = vadd.f32 %v11791, %v11793
    %v11876 = vadd.f32 %v11875, %v11795
    %v11877 = vadd.f32 %v11876, %v11797
    %v11878 = vrot.slane %v11877, 4
    %v11879 = vadd.f32 %v11877, %v11878
    %v11880 = vrot.slane %v11879, 2
    %v11881 = vadd.f32 %v11879, %v11880
    %v11882 = vrot.slane %v11881, 1
    %v11883 = vadd.f32 %v11881, %v11882
    %v11884 = vadd.f32 %v11792, %v11794
    %v11885 = vadd.f32 %v11884, %v11796
    %v11886 = vadd.f32 %v11885, %v11798
    %v11887 = vrot.slane %v11886, 4
    %v11888 = vadd.f32 %v11886, %v11887
    %v11889 = vrot.slane %v11888, 2
    %v11890 = vadd.f32 %v11888, %v11889
    %v11891 = vrot.slane %v11890, 1
    %v11892 = vadd.f32 %v11890, %v11891
    %v11893 = vadd.f32 %v11799, %v11801
    %v11894 = vadd.f32 %v11893, %v11803
    %v11895 = vadd.f32 %v11894, %v11805
    %v11896 = vrot.slane %v11895, 4
    %v11897 = vadd.f32 %v11895, %v11896
    %v11898 = vrot.slane %v11897, 2
    %v11899 = vadd.f32 %v11897, %v11898
    %v11900 = vrot.slane %v11899, 1
    %v11901 = vadd.f32 %v11899, %v11900
    %v11902 = vadd.f32 %v11800, %v11802
    %v11903 = vadd.f32 %v11902, %v11804
    %v11904 = vadd.f32 %v11903, %v11806
    %v11905 = vrot.slane %v11904, 4
    %v11906 = vadd.f32 %v11904, %v11905
    %v11907 = vrot.slane %v11906, 2
    %v11908 = vadd.f32 %v11906, %v11907
    %v11909 = vrot.slane %v11908, 1
    %v11910 = vadd.f32 %v11908, %v11909
    %v11911 = vadd.f32 %v11807, %v11809
    %v11912 = vadd.f32 %v11911, %v11811
    %v11913 = vadd.f32 %v11912, %v11813
    %v11914 = vrot.slane %v11913, 4
    %v11915 = vadd.f32 %v11913, %v11914
    %v11916 = vrot.slane %v11915, 2
    %v11917 = vadd.f32 %v11915, %v11916
    %v11918 = vrot.slane %v11917, 1
    %v11919 = vadd.f32 %v11917, %v11918
    %v11920 = vadd.f32 %v11808, %v11810
    %v11921 = vadd.f32 %v11920, %v11812
    %v11922 = vadd.f32 %v11921, %v11814
    %v11923 = vrot.slane %v11922, 4
    %v11924 = vadd.f32 %v11922, %v11923
    %v11925 = vrot.slane %v11924, 2
    %v11926 = vadd.f32 %v11924, %v11925
    %v11927 = vrot.slane %v11926, 1
    %v11928 = vadd.f32 %v11926, %v11927
    %v11929 = vadd.f32 %v11815, %v11817
    %v11930 = vadd.f32 %v11929, %v11819
    %v11931 = vadd.f32 %v11930, %v11821
    %v11932 = vrot.slane %v11931, 4
    %v11933 = vadd.f32 %v11931, %v11932
    %v11934 = vrot.slane %v11933, 2
    %v11935 = vadd.f32 %v11933, %v11934
    %v11936 = vrot.slane %v11935, 1
    %v11937 = vadd.f32 %v11935, %v11936
    %v11938 = vadd.f32 %v11816, %v11818
    %v11939 = vadd.f32 %v11938, %v11820
    %v11940 = vadd.f32 %v11939, %v11822
    %v11941 = vrot.slane %v11940, 4
    %v11942 = vadd.f32 %v11940, %v11941
    %v11943 = vrot.slane %v11942, 2
    %v11944 = vadd.f32 %v11942, %v11943
    %v11945 = vrot.slane %v11944, 1
    %v11946 = vadd.f32 %v11944, %v11945
    %v11947 = vadd.f32 %v11823, %v11825
    %v11948 = vadd.f32 %v11947, %v11827
    %v11949 = vadd.f32 %v11948, %v11829
    %v11950 = vrot.slane %v11949, 4
    %v11951 = vadd.f32 %v11949, %v11950
    %v11952 = vrot.slane %v11951, 2
    %v11953 = vadd.f32 %v11951, %v11952
    %v11954 = vrot.slane %v11953, 1
    %v11955 = vadd.f32 %v11953, %v11954
    %v11956 = vadd.f32 %v11824, %v11826
    %v11957 = vadd.f32 %v11956, %v11828
    %v11958 = vadd.f32 %v11957, %v11830
    %v11959 = vrot.slane %v11958, 4
    %v11960 = vadd.f32 %v11958, %v11959
    %v11961 = vrot.slane %v11960, 2
    %v11962 = vadd.f32 %v11960, %v11961
    %v11963 = vrot.slane %v11962, 1
    %v11964 = vadd.f32 %v11962, %v11963
    %v11965 = vadd.f32 %v11831, %v11833
    %v11966 = vadd.f32 %v11965, %v11835
    %v11967 = vadd.f32 %v11966, %v11837
    %v11968 = vrot.slane %v11967, 4
    %v11969 = vadd.f32 %v11967, %v11968
    %v11970 = vrot.slane %v11969, 2
    %v11971 = vadd.f32 %v11969, %v11970
    %v11972 = vrot.slane %v11971, 1
    %v11973 = vadd.f32 %v11971, %v11972
    %v11974 = vadd.f32 %v11832, %v11834
    %v11975 = vadd.f32 %v11974, %v11836
    %v11976 = vadd.f32 %v11975, %v11838
    %v11977 = vrot.slane %v11976, 4
    %v11978 = vadd.f32 %v11976, %v11977
    %v11979 = vrot.slane %v11978, 2
    %v11980 = vadd.f32 %v11978, %v11979
    %v11981 = vrot.slane %v11980, 1
    %v11982 = vadd.f32 %v11980, %v11981
    %v11983 = vmul.f32 %v11431, %v11639
    %v11984 = vmul.f32 %v11440, %v11648
    %v11985 = vmul.f32 %v11449, %v11657
    %v11986 = vmul.f32 %v11458, %v11666
    %v11987 = vmul.f32 %v11467, %v11675
    %v11988 = vmul.f32 %v11476, %v11684
    %v11989 = vmul.f32 %v11485, %v11693
    %v11990 = vmul.f32 %v11494, %v11702
    %v11991 = vmul.f32 %v11503, %v11711
    %v11992 = vmul.f32 %v11512, %v11720
    %v11993 = vmul.f32 %v11521, %v11729
    %v11994 = vmul.f32 %v11530, %v11738
    %v11995 = vmul.f32 %v11539, %v11747
    %v11996 = vmul.f32 %v11548, %v11756
    %v11997 = vmul.f32 %v11557, %v11765
    %v11998 = vmul.f32 %v11566, %v11774
    %v11999 = vmul.f32 %v11983, %v11847
    %v12000 = vmul.f32 %v11984, %v11856
    %v12001 = vmul.f32 %v11985, %v11865
    %v12002 = vmul.f32 %v11986, %v11874
    %v12003 = vmul.f32 %v11987, %v11883
    %v12004 = vmul.f32 %v11988, %v11892
    %v12005 = vmul.f32 %v11989, %v11901
    %v12006 = vmul.f32 %v11990, %v11910
    %v12007 = vmul.f32 %v11991, %v11919
    %v12008 = vmul.f32 %v11992, %v11928
    %v12009 = vmul.f32 %v11993, %v11937
    %v12010 = vmul.f32 %v11994, %v11946
    %v12011 = vmul.f32 %v11995, %v11955
    %v12012 = vmul.f32 %v11996, %v11964
    %v12013 = vmul.f32 %v11997, %v11973
    %v12014 = vmul.f32 %v11998, %v11982
    %v12031 = vsel %vm4259, %v12001, %v11999
    %v12032 = vsel %vm4261, %v12003, %v12031
    %v12033 = vsel %vm4263, %v12005, %v12032
    %v12034 = vsel %vm4265, %v12007, %v12033
    %v12035 = vsel %vm4267, %v12009, %v12034
    %v12036 = vsel %vm4269, %v12011, %v12035
    %v12037 = vsel %vm4271, %v12013, %v12036
    %v12038 = vsel %vm4259, %v12002, %v12000
    %v12039 = vsel %vm4261, %v12004, %v12038
    %v12040 = vsel %vm4263, %v12006, %v12039
    %v12041 = vsel %vm4265, %v12008, %v12040
    %v12042 = vsel %vm4267, %v12010, %v12041
    %v12043 = vsel %vm4269, %v12012, %v12042
    %v12044 = vsel %vm4271, %v12014, %v12043
    %12047 = vst [vmem:[#allocation2 + $0x10] sm:$0xff] %v12037
    %12048 = vst [vmem:[#allocation2 + $0x18] sm:$0xff] %v12044
    // Predicated region
    $region22: #{tpu_custom_call.1} parent=1 // pred_check
      _
    $region23: #{tpu_custom_call.1} parent=1 // pred_check_branch
      %12050 = sbr.rel (0) target = $region25
    $region24: #{tpu_custom_call.1} parent=1 // pred_region
      %12052 = vsyncadd [#allocation3], 0
      %s12053 = sshll.u32 [#allocation2], 4
      %s12054 = int_to_ptr.vmem [resolvable:$true] %s12053
      %s12055 = sshll.u32 %s5, 4
      %s12056 = int_to_ptr.hbm [resolvable:$true] %s12055
      %12061 = dma.vmem_to_hbm [thread:$0]  %s12054, 512, %s12056, [#allocation3], 256, 256, 16
    $region25: #{tpu_custom_call.1} parent=1 // pred_fallthru
      _
    // Predicated region
    $region26: #{tpu_custom_call.1} parent=1 // pred_check
      _
    $region27: #{tpu_custom_call.1} parent=1 // pred_check_branch
      %12063 = sbr.rel (0) target = $region29
    $region28: #{tpu_custom_call.1} parent=1 // pred_region
      %12065 = dma.done [#allocation3], 512
    $region29: #{tpu_custom_call.1} parent=1 // pred_fallthru
      _
    %12066 = vsyncpa [#allocation3], 1

</llo_original>
